<compile_context>
chip_gen: v6e
topology: v6e:2x2x1
jax: 0.10.0
libtpu: 0.0.40
codegen_flags: <defaults>
</compile_context>

<pallas_src>
import functools

import jax
import jax.numpy as jnp
import numpy as np
from jax.experimental import pallas as pl
from jax.experimental.pallas import tpu as pltpu


def _softmax_last(a):
    """Numerically-stable softmax over the last axis; divide -> EUP reciprocal."""
    m = jnp.max(a, axis=-1, keepdims=True)
    e = jnp.exp(a - m)
    s = jnp.sum(e, axis=-1, keepdims=True)
    return e * pl.reciprocal(s, approx=True)


def _attention_kernel(x_ref, y_ref, wsa1_ref, wsa2_ref, wse1_ref, wse2_ref,
                      wout_ref, bout_ref, o_ref, *, heads, dim_head, seq_len):
    bt, n, dim = x_ref.shape          # block: bt batch elements, full (n, dim)
    hb = bt * heads                   # leading batch axis of every matmul
    cdt = x_ref.dtype                 # MXU operand dtype (f32 or bf16)
    f32 = jnp.float32

    scale = dim_head ** (-0.5)
    # scale / (n / dim_head), folded into a single trace-time scalar.
    secm_scale = scale * (float(dim_head) / float(seq_len))

    # --- replicate activations over heads / weights over the batch block and
    # --- collapse (bt, heads) into one leading batch axis (batch-major).
    def act_hb(ref):                  # (bt, n, dim) -> (hb, n, dim)
        a = ref[...].astype(cdt)
        a = jnp.broadcast_to(a[:, None, :, :], (bt, heads, n, dim))
        return a.reshape(hb, n, dim)

    def w_hb(ref):                    # (heads, dim_head, dim) -> (hb, dim_head, dim)
        w = ref[...].astype(cdt)
        w = jnp.broadcast_to(w[None, :, :, :], (bt, heads, dim_head, dim))
        return w.reshape(hb, dim_head, dim)

    xh = act_hb(x_ref)
    yh = act_hb(y_ref)
    wsa1 = w_hb(wsa1_ref)
    wsa2 = w_hb(wsa2_ref)
    wse1 = w_hb(wse1_ref)
    wse2 = w_hb(wse2_ref)
    wout = w_hb(wout_ref)             # (hb, dim_head, dim)

    # --- projections (bias=False), head-batched on the MXU, f32 accumulation.
    # y1/y2 produced as (hb, n, d); x1/x2 produced directly transposed as
    # (hb, d, n) so the secm contraction never needs an explicit transpose.
    y1 = jnp.einsum('bnk,bdk->bnd', yh, wsa1, preferred_element_type=f32)
    y2 = jnp.einsum('bnk,bdk->bnd', yh, wsa2, preferred_element_type=f32)
    x1t = jnp.einsum('bdk,bnk->bdn', wse1, xh, preferred_element_type=f32)
    x2t = jnp.einsum('bdk,bnk->bdn', wse2, xh, preferred_element_type=f32)

    y1c, y2c = y1.astype(cdt), y2.astype(cdt)
    x1c, x2c = x1t.astype(cdt), x2t.astype(cdt)

    # sacm = softmax(y1 @ y2^T * scale)               -> (hb, n, n)
    sacm = _softmax_last(
        jnp.einsum('bnd,bmd->bnm', y1c, y2c, preferred_element_type=f32) * scale)
    # secm = softmax(x1^T @ x2 * scale / (n / d))     -> (hb, d, d)
    secm = _softmax_last(
        jnp.einsum('bdn,ben->bde', x1c, x2c, preferred_element_type=f32) * secm_scale)

    # out1 = sacm @ x1 ; out2 = y1 @ secm             -> (hb, n, d)
    out1 = jnp.einsum('bnm,bdm->bnd', sacm.astype(cdt), x1c,
                      preferred_element_type=f32)
    out2 = jnp.einsum('bnd,bde->bne', y1c, secm.astype(cdt),
                      preferred_element_type=f32)
    prod = (out1 * out2).astype(cdt)                  # (hb, n, d)

    # to_out: concat-over-heads + Linear(inner, dim) folded into one
    # head-batched matmul against wout (heads, d, dim), then a heads-sum.
    per_head = jnp.einsum('bnd,bdD->bnD', prod, wout,
                          preferred_element_type=f32)             # (hb, n, dim)
    out = jnp.sum(per_head.reshape(bt, heads, n, dim), axis=1)    # (bt, n, dim)
    out = out + bout_ref[...].astype(f32)             # bias (1, dim) broadcast
    # TODO(synk): for production sequence lengths (n = H*W in the thousands)
    # the (n, n) sacm must be tiled flash-style (online softmax over KV
    # blocks) instead of being materialized -- mandatory on v7x's 64 MiB VMEM.
    o_ref[...] = out.astype(o_ref.dtype)


def _pick_block_b(b, n):
    """Largest divisor of b keeping >=2 grid steps (v7x has 2 TCs) and a
    moderate number of rows per step."""
    if b <= 1:
        return 1
    cap = max(1, min(b // 2, max(1, 256 // n)))
    for cand in range(cap, 0, -1):
        if b % cand == 0:
            return cand
    return 1


def attention_pallas(x, y, params, *, heads, dim_head, block_b=None):
    b, n, dim = x.shape
    inner = heads * dim_head
    wsa1, wsa2, wse1, wse2, wout, bout = params
    assert wsa1.shape == (dim, inner) and wout.shape == (inner, dim)

    bt = _pick_block_b(b, n) if block_b is None else block_b
    assert b % bt == 0, f"block_b={bt} must divide batch={b}"

    # Trace-time (free) weight re-layouts so heads become a leading batch dim
    # inside the kernel: (dim, heads*dh) -> (heads, dh, dim).
    def head_major(w):
        return jnp.transpose(w.reshape(dim, heads, dim_head), (1, 2, 0))

    wsa1_h = head_major(wsa1)
    wsa2_h = head_major(wsa2)
    wse1_h = head_major(wse1)
    wse2_h = head_major(wse2)
    wout_h = wout.reshape(heads, dim_head, dim)       # (inner, dim) -> (h, dh, dim)

    kernel = functools.partial(_attention_kernel, heads=heads,
                               dim_head=dim_head, seq_len=n)

    w_spec = pl.BlockSpec((heads, dim_head, dim), lambda i: (0, 0, 0))
    return pl.pallas_call(
        kernel,
        out_shape=jax.ShapeDtypeStruct((b, n, dim), x.dtype),
        grid_spec=pltpu.PrefetchScalarGridSpec(
            num_scalar_prefetch=0,
            grid=(b // bt,),
            in_specs=[
                pl.BlockSpec((bt, n, dim), lambda i: (i, 0, 0)),   # x
                pl.BlockSpec((bt, n, dim), lambda i: (i, 0, 0)),   # y
                w_spec, w_spec, w_spec, w_spec,                    # sa1/sa2/se1/se2
                w_spec,                                            # to_out weight
                pl.BlockSpec((1, dim), lambda i: (0, 0)),          # to_out bias
            ],
            out_specs=pl.BlockSpec((bt, n, dim), lambda i: (i, 0, 0)),
        ),
        compiler_params=pltpu.CompilerParams(
            dimension_semantics=("parallel",)),
    )(x, y, wsa1_h, wsa2_h, wse1_h, wse2_h, wout_h, bout)


def attention_reference(x, y, params, *, heads, dim_head):
    """Pure-JAX reference mirroring the PyTorch forward."""
    wsa1, wsa2, wse1, wse2, wout, bout = params
    b, n, dim = x.shape
    scale = dim_head ** (-0.5)

    def split_heads(t):  # (b, n, h*d) -> (b, h, n, d)
        return t.reshape(b, n, heads, dim_head).transpose(0, 2, 1, 3)

    y1 = split_heads(y @ wsa1)
    y2 = split_heads(y @ wsa2)
    x1 = split_heads(x @ wse1)
    x2 = split_heads(x @ wse2)

    sacm = jax.nn.softmax(
        jnp.einsum('bhnd,bhmd->bhnm', y1, y2) * scale, axis=-1)
    secm = jax.nn.softmax(
        jnp.einsum('bhnd,bhne->bhde', x1, x2) * scale / (n / dim_head), axis=-1)

    out1 = jnp.einsum('bhij,bhjd->bhid', sacm, x1)
    out2 = jnp.einsum('bhni,bhij->bhnj', y1, secm)
    out = (out1 * out2).transpose(0, 2, 1, 3).reshape(b, n, heads * dim_head)
    return out @ wout + bout[0]


def init_params(key, dim, heads, dim_head):
    inner = heads * dim_head
    ks = jax.random.split(key, 6)

    # nn.Linear default init: U(-1/sqrt(fan_in), 1/sqrt(fan_in)); deterministic seeds.
    def lin(k, fan_in, shape):
        bound = 1.0 / np.sqrt(fan_in)
        return jax.random.uniform(k, shape, jnp.float32, -bound, bound)

    wsa1 = lin(ks[0], dim, (dim, inner))
    wsa2 = lin(ks[1], dim, (dim, inner))
    wse1 = lin(ks[2], dim, (dim, inner))
    wse2 = lin(ks[3], dim, (dim, inner))
    wout = lin(ks[4], inner, (inner, dim))
    bout = lin(ks[5], inner, (1, dim))
    return (wsa1, wsa2, wse1, wse2, wout, bout)


if __name__ == "__main__":
    # Small, module-consistent shapes: batch=8, seq n=8, dim=32, heads=4, dim_head=8.
    # block_b=4 -> grid of 2 "parallel" steps (keeps both v7x TCs busy).
    b, n, dim = 8, 8, 32
    heads, dim_head = 4, 8

    key = jax.random.PRNGKey(0)
    kx, ky, kp = jax.random.split(key, 3)
    x = jax.random.normal(kx, (b, n, dim), dtype=jnp.float32)
    y = jax.random.normal(ky, (b, n, dim), dtype=jnp.float32)
    params = init_params(kp, dim, heads, dim_head)

    out = attention_pallas(x, y, params, heads=heads, dim_head=dim_head, block_b=4)
    out = jax.block_until_ready(out)

    ref = attention_reference(x, y, params, heads=heads, dim_head=dim_head)
    # Approx reciprocal in the softmax introduces ~1e-3-level relative error
    # vs the exact-divide reference; 1e-2 tolerances cover it with margin.
    np.testing.assert_allclose(np.asarray(out), np.asarray(ref),
                               rtol=1e-2, atol=1e-2)

    # bf16-into-MXU path (f32 accumulation / softmax kept inside the kernel).
    xb = x.astype(jnp.bfloat16)
    yb = y.astype(jnp.bfloat16)
    pb = tuple(p.astype(jnp.bfloat16) for p in params)
    out_bf16 = attention_pallas(xb, yb, pb, heads=heads, dim_head=dim_head,
                                block_b=4)
    out_bf16 = jax.block_until_ready(out_bf16)
    np.testing.assert_allclose(np.asarray(out_bf16.astype(jnp.float32)),
                               np.asarray(ref), rtol=1.5e-1, atol=1.5e-1)

    print("KERNEL_OK")
</pallas_src>

<mosaic_0001>
module attributes {stable_mosaic.version = 11 : i64} {
  func.func @_attention_kernel(%arg0: i32, %arg1: memref<4x8x32xf32, #tpu.memory_space<vmem>>, %arg2: memref<4x8x32xf32, #tpu.memory_space<vmem>>, %arg3: memref<4x8x32xf32, #tpu.memory_space<vmem>>, %arg4: memref<4x8x32xf32, #tpu.memory_space<vmem>>, %arg5: memref<4x8x32xf32, #tpu.memory_space<vmem>>, %arg6: memref<4x8x32xf32, #tpu.memory_space<vmem>>, %arg7: memref<4x8x32xf32, #tpu.memory_space<vmem>>, %arg8: memref<1x32xf32, #tpu.memory_space<vmem>>, %arg9: memref<4x8x32xf32, #tpu.memory_space<vmem>>) attributes {dimension_semantics = [#tpu.dimension_semantics<parallel>], iteration_bounds = array<i64: 2>, scalar_prefetch = 0 : i64, scratch_operands = 0 : i64, tpu.core_type = #tpu.core_type<tc>, window_params = [{transform_indices = @transform_0, window_bounds = array<i64: 4, 8, 32>}, {transform_indices = @transform_1, window_bounds = array<i64: 4, 8, 32>}, {pipeline_mode = #tpu.pipeline_mode<synchronous>, transform_indices = @transform_2, window_bounds = array<i64: 4, 8, 32>}, {pipeline_mode = #tpu.pipeline_mode<synchronous>, transform_indices = @transform_3, window_bounds = array<i64: 4, 8, 32>}, {pipeline_mode = #tpu.pipeline_mode<synchronous>, transform_indices = @transform_4, window_bounds = array<i64: 4, 8, 32>}, {pipeline_mode = #tpu.pipeline_mode<synchronous>, transform_indices = @transform_5, window_bounds = array<i64: 4, 8, 32>}, {pipeline_mode = #tpu.pipeline_mode<synchronous>, transform_indices = @transform_6, window_bounds = array<i64: 4, 8, 32>}, {pipeline_mode = #tpu.pipeline_mode<synchronous>, transform_indices = @transform_7, window_bounds = array<i64: 1, 32>}, {transform_indices = @transform_8, window_bounds = array<i64: 4, 8, 32>}]} {
    %c0 = arith.constant 0 : index
    %c0_0 = arith.constant 0 : index
    %c0_1 = arith.constant 0 : index
    %0 = vector.load %arg1[%c0, %c0_0, %c0_1] : memref<4x8x32xf32, #tpu.memory_space<vmem>>, vector<4x8x32xf32>
    %1 = vector.shape_cast %0 : vector<4x8x32xf32> to vector<4x1x8x32xf32>
    %2 = vector.shape_cast %1 : vector<4x1x8x32xf32> to vector<4x1x8x32xf32>
    %3 = vector.broadcast %2 : vector<4x1x8x32xf32> to vector<4x4x8x32xf32>
    %4 = vector.shape_cast %3 : vector<4x4x8x32xf32> to vector<16x8x32xf32>
    %c0_2 = arith.constant 0 : index
    %c0_3 = arith.constant 0 : index
    %c0_4 = arith.constant 0 : index
    %5 = vector.load %arg2[%c0_2, %c0_3, %c0_4] : memref<4x8x32xf32, #tpu.memory_space<vmem>>, vector<4x8x32xf32>
    %6 = vector.shape_cast %5 : vector<4x8x32xf32> to vector<4x1x8x32xf32>
    %7 = vector.shape_cast %6 : vector<4x1x8x32xf32> to vector<4x1x8x32xf32>
    %8 = vector.broadcast %7 : vector<4x1x8x32xf32> to vector<4x4x8x32xf32>
    %9 = vector.shape_cast %8 : vector<4x4x8x32xf32> to vector<16x8x32xf32>
    %c0_5 = arith.constant 0 : index
    %c0_6 = arith.constant 0 : index
    %c0_7 = arith.constant 0 : index
    %10 = vector.load %arg3[%c0_5, %c0_6, %c0_7] : memref<4x8x32xf32, #tpu.memory_space<vmem>>, vector<4x8x32xf32>
    %11 = vector.shape_cast %10 : vector<4x8x32xf32> to vector<1x4x8x32xf32>
    %12 = vector.shape_cast %11 : vector<1x4x8x32xf32> to vector<1x4x8x32xf32>
    %13 = vector.broadcast %12 : vector<1x4x8x32xf32> to vector<4x4x8x32xf32>
    %14 = vector.shape_cast %13 : vector<4x4x8x32xf32> to vector<16x8x32xf32>
    %c0_8 = arith.constant 0 : index
    %c0_9 = arith.constant 0 : index
    %c0_10 = arith.constant 0 : index
    %15 = vector.load %arg4[%c0_8, %c0_9, %c0_10] : memref<4x8x32xf32, #tpu.memory_space<vmem>>, vector<4x8x32xf32>
    %16 = vector.shape_cast %15 : vector<4x8x32xf32> to vector<1x4x8x32xf32>
    %17 = vector.shape_cast %16 : vector<1x4x8x32xf32> to vector<1x4x8x32xf32>
    %18 = vector.broadcast %17 : vector<1x4x8x32xf32> to vector<4x4x8x32xf32>
    %19 = vector.shape_cast %18 : vector<4x4x8x32xf32> to vector<16x8x32xf32>
    %c0_11 = arith.constant 0 : index
    %c0_12 = arith.constant 0 : index
    %c0_13 = arith.constant 0 : index
    %20 = vector.load %arg5[%c0_11, %c0_12, %c0_13] : memref<4x8x32xf32, #tpu.memory_space<vmem>>, vector<4x8x32xf32>
    %21 = vector.shape_cast %20 : vector<4x8x32xf32> to vector<1x4x8x32xf32>
    %22 = vector.shape_cast %21 : vector<1x4x8x32xf32> to vector<1x4x8x32xf32>
    %23 = vector.broadcast %22 : vector<1x4x8x32xf32> to vector<4x4x8x32xf32>
    %24 = vector.shape_cast %23 : vector<4x4x8x32xf32> to vector<16x8x32xf32>
    %c0_14 = arith.constant 0 : index
    %c0_15 = arith.constant 0 : index
    %c0_16 = arith.constant 0 : index
    %25 = vector.load %arg6[%c0_14, %c0_15, %c0_16] : memref<4x8x32xf32, #tpu.memory_space<vmem>>, vector<4x8x32xf32>
    %26 = vector.shape_cast %25 : vector<4x8x32xf32> to vector<1x4x8x32xf32>
    %27 = vector.shape_cast %26 : vector<1x4x8x32xf32> to vector<1x4x8x32xf32>
    %28 = vector.broadcast %27 : vector<1x4x8x32xf32> to vector<4x4x8x32xf32>
    %29 = vector.shape_cast %28 : vector<4x4x8x32xf32> to vector<16x8x32xf32>
    %c0_17 = arith.constant 0 : index
    %c0_18 = arith.constant 0 : index
    %c0_19 = arith.constant 0 : index
    %30 = vector.load %arg7[%c0_17, %c0_18, %c0_19] : memref<4x8x32xf32, #tpu.memory_space<vmem>>, vector<4x8x32xf32>
    %31 = vector.shape_cast %30 : vector<4x8x32xf32> to vector<1x4x8x32xf32>
    %32 = vector.shape_cast %31 : vector<1x4x8x32xf32> to vector<1x4x8x32xf32>
    %33 = vector.broadcast %32 : vector<1x4x8x32xf32> to vector<4x4x8x32xf32>
    %34 = vector.shape_cast %33 : vector<4x4x8x32xf32> to vector<16x8x32xf32>
    "tpu.trace_start"() <{level = 10 : i32, message = "bnk,bdk->bnd"}> : () -> ()
    %cst = arith.constant dense<0.000000e+00> : vector<16x8x8xf32>
    %35 = tpu.matmul %9, %14, %cst {dimension_numbers = #tpu.dot_dimension_numbers<[2], [2], [1], [1], [0, 0, 0, 1, 1, 1], [0], [0]>} : vector<16x8x32xf32>, vector<16x8x32xf32>, vector<16x8x8xf32> -> vector<16x8x8xf32>
    %cst_20 = arith.constant dense<0.000000e+00> : vector<16x8x8xf32>
    %36 = tpu.matmul %9, %19, %cst_20 {dimension_numbers = #tpu.dot_dimension_numbers<[2], [2], [1], [1], [0, 0, 0, 1, 1, 1], [0], [0]>} : vector<16x8x32xf32>, vector<16x8x32xf32>, vector<16x8x8xf32> -> vector<16x8x8xf32>
    "tpu.trace_stop"() : () -> ()
    "tpu.trace_start"() <{level = 10 : i32, message = "bdk,bnk->bdn"}> : () -> ()
    %cst_21 = arith.constant dense<0.000000e+00> : vector<16x8x8xf32>
    %37 = tpu.matmul %24, %4, %cst_21 {dimension_numbers = #tpu.dot_dimension_numbers<[2], [2], [1], [1], [0, 0, 0, 1, 1, 1], [0], [0]>} : vector<16x8x32xf32>, vector<16x8x32xf32>, vector<16x8x8xf32> -> vector<16x8x8xf32>
    %cst_22 = arith.constant dense<0.000000e+00> : vector<16x8x8xf32>
    %38 = tpu.matmul %29, %4, %cst_22 {dimension_numbers = #tpu.dot_dimension_numbers<[2], [2], [1], [1], [0, 0, 0, 1, 1, 1], [0], [0]>} : vector<16x8x32xf32>, vector<16x8x32xf32>, vector<16x8x8xf32> -> vector<16x8x8xf32>
    "tpu.trace_stop"() : () -> ()
    "tpu.trace_start"() <{level = 10 : i32, message = "bnd,bmd->bnm"}> : () -> ()
    %cst_23 = arith.constant dense<0.000000e+00> : vector<16x8x8xf32>
    %39 = tpu.matmul %35, %36, %cst_23 {dimension_numbers = #tpu.dot_dimension_numbers<[2], [2], [1], [1], [0, 0, 0, 1, 1, 1], [0], [0]>} : vector<16x8x8xf32>, vector<16x8x8xf32>, vector<16x8x8xf32> -> vector<16x8x8xf32>
    "tpu.trace_stop"() : () -> ()
    %cst_24 = arith.constant 0.353553385 : f32
    %40 = vector.broadcast %cst_24 : f32 to vector<16x8x8xf32>
    %41 = arith.mulf %39, %40 : vector<16x8x8xf32>
    %cst_25 = arith.constant dense<0xFF800000> : vector<16x8xf32>
    %42 = vector.multi_reduction <maximumf>, %41, %cst_25 [2] : vector<16x8x8xf32> to vector<16x8xf32>
    %43 = vector.shape_cast %42 : vector<16x8xf32> to vector<16x8x1xf32>
    %44 = vector.broadcast %43 : vector<16x8x1xf32> to vector<16x8x8xf32>
    %45 = arith.subf %41, %44 : vector<16x8x8xf32>
    %46 = math.exp %45 : vector<16x8x8xf32>
    %cst_26 = arith.constant dense<0.000000e+00> : vector<16x8xf32>
    %47 = vector.multi_reduction <add>, %46, %cst_26 [2] : vector<16x8x8xf32> to vector<16x8xf32>
    %48 = vector.shape_cast %47 : vector<16x8xf32> to vector<16x8x1xf32>
    %49 = tpu.reciprocal %48 {approx = true} : vector<16x8x1xf32> -> vector<16x8x1xf32>
    %50 = vector.broadcast %49 : vector<16x8x1xf32> to vector<16x8x8xf32>
    %51 = arith.mulf %46, %50 : vector<16x8x8xf32>
    "tpu.trace_start"() <{level = 10 : i32, message = "bdn,ben->bde"}> : () -> ()
    %cst_27 = arith.constant dense<0.000000e+00> : vector<16x8x8xf32>
    %52 = tpu.matmul %37, %38, %cst_27 {dimension_numbers = #tpu.dot_dimension_numbers<[2], [2], [1], [1], [0, 0, 0, 1, 1, 1], [0], [0]>} : vector<16x8x8xf32>, vector<16x8x8xf32>, vector<16x8x8xf32> -> vector<16x8x8xf32>
    "tpu.trace_stop"() : () -> ()
    %cst_28 = arith.constant 0.353553385 : f32
    %53 = vector.broadcast %cst_28 : f32 to vector<16x8x8xf32>
    %54 = arith.mulf %52, %53 : vector<16x8x8xf32>
    %cst_29 = arith.constant dense<0xFF800000> : vector<16x8xf32>
    %55 = vector.multi_reduction <maximumf>, %54, %cst_29 [2] : vector<16x8x8xf32> to vector<16x8xf32>
    %56 = vector.shape_cast %55 : vector<16x8xf32> to vector<16x8x1xf32>
    %57 = vector.broadcast %56 : vector<16x8x1xf32> to vector<16x8x8xf32>
    %58 = arith.subf %54, %57 : vector<16x8x8xf32>
    %59 = math.exp %58 : vector<16x8x8xf32>
    %cst_30 = arith.constant dense<0.000000e+00> : vector<16x8xf32>
    %60 = vector.multi_reduction <add>, %59, %cst_30 [2] : vector<16x8x8xf32> to vector<16x8xf32>
    %61 = vector.shape_cast %60 : vector<16x8xf32> to vector<16x8x1xf32>
    %62 = tpu.reciprocal %61 {approx = true} : vector<16x8x1xf32> -> vector<16x8x1xf32>
    %63 = vector.broadcast %62 : vector<16x8x1xf32> to vector<16x8x8xf32>
    %64 = arith.mulf %59, %63 : vector<16x8x8xf32>
    "tpu.trace_start"() <{level = 10 : i32, message = "bnm,bdm->bnd"}> : () -> ()
    %cst_31 = arith.constant dense<0.000000e+00> : vector<16x8x8xf32>
    %65 = tpu.matmul %51, %37, %cst_31 {dimension_numbers = #tpu.dot_dimension_numbers<[2], [2], [1], [1], [0, 0, 0, 1, 1, 1], [0], [0]>} : vector<16x8x8xf32>, vector<16x8x8xf32>, vector<16x8x8xf32> -> vector<16x8x8xf32>
    "tpu.trace_stop"() : () -> ()
    "tpu.trace_start"() <{level = 10 : i32, message = "bnd,bde->bne"}> : () -> ()
    %cst_32 = arith.constant dense<0.000000e+00> : vector<16x8x8xf32>
    %66 = tpu.matmul %35, %64, %cst_32 {dimension_numbers = #tpu.dot_dimension_numbers<[2], [1], [1], [2], [0, 0, 0, 1, 1, 2], [0], [0]>} : vector<16x8x8xf32>, vector<16x8x8xf32>, vector<16x8x8xf32> -> vector<16x8x8xf32>
    "tpu.trace_stop"() : () -> ()
    %67 = arith.mulf %65, %66 : vector<16x8x8xf32>
    "tpu.trace_start"() <{level = 10 : i32, message = "bnd,bdD->bnD"}> : () -> ()
    %cst_33 = arith.constant dense<0.000000e+00> : vector<16x8x32xf32>
    %68 = tpu.matmul %67, %34, %cst_33 {dimension_numbers = #tpu.dot_dimension_numbers<[2], [1], [1], [2], [0, 0, 0, 1, 1, 2], [0], [0]>} : vector<16x8x8xf32>, vector<16x8x32xf32>, vector<16x8x32xf32> -> vector<16x8x32xf32>
    "tpu.trace_stop"() : () -> ()
    %69 = vector.shape_cast %68 : vector<16x8x32xf32> to vector<4x4x8x32xf32>
    %cst_34 = arith.constant dense<0.000000e+00> : vector<4x8x32xf32>
    %70 = vector.multi_reduction <add>, %69, %cst_34 [1] : vector<4x4x8x32xf32> to vector<4x8x32xf32>
    %c0_35 = arith.constant 0 : index
    %c0_36 = arith.constant 0 : index
    %71 = vector.load %arg8[%c0_35, %c0_36] : memref<1x32xf32, #tpu.memory_space<vmem>>, vector<1x32xf32>
    %72 = vector.shape_cast %71 : vector<1x32xf32> to vector<1x1x32xf32>
    %73 = vector.broadcast %72 : vector<1x1x32xf32> to vector<4x8x32xf32>
    %74 = arith.addf %70, %73 : vector<4x8x32xf32>
    %c0_37 = arith.constant 0 : index
    %c0_38 = arith.constant 0 : index
    %c0_39 = arith.constant 0 : index
    %75 = vector.load %arg9[%c0_37, %c0_38, %c0_39] : memref<4x8x32xf32, #tpu.memory_space<vmem>>, vector<4x8x32xf32>
    tpu.vector_store %arg9[%c0_37, %c0_38, %c0_39], %74 {strides = array<i32>} : memref<4x8x32xf32, #tpu.memory_space<vmem>>, vector<4x8x32xf32>,
    return
  }
  func.func @transform_0(%arg0: i32) -> (i32, i32, i32) {
    %c0_i32 = arith.constant 0 : i32
    %c0_i32_0 = arith.constant 0 : i32
    %c0_i32_1 = arith.constant 0 : i32
    return %arg0, %c0_i32, %c0_i32_0 : i32, i32, i32
  }
  func.func @transform_1(%arg0: i32) -> (i32, i32, i32) {
    %c0_i32 = arith.constant 0 : i32
    %c0_i32_0 = arith.constant 0 : i32
    %c0_i32_1 = arith.constant 0 : i32
    return %arg0, %c0_i32, %c0_i32_0 : i32, i32, i32
  }
  func.func @transform_2(%arg0: i32) -> (i32, i32, i32) {
    %c0_i32 = arith.constant 0 : i32
    %c0_i32_0 = arith.constant 0 : i32
    %c0_i32_1 = arith.constant 0 : i32
    %c0_i32_2 = arith.constant 0 : i32
    return %c0_i32, %c0_i32_0, %c0_i32_1 : i32, i32, i32
  }
  func.func @transform_3(%arg0: i32) -> (i32, i32, i32) {
    %c0_i32 = arith.constant 0 : i32
    %c0_i32_0 = arith.constant 0 : i32
    %c0_i32_1 = arith.constant 0 : i32
    %c0_i32_2 = arith.constant 0 : i32
    return %c0_i32, %c0_i32_0, %c0_i32_1 : i32, i32, i32
  }
  func.func @transform_4(%arg0: i32) -> (i32, i32, i32) {
    %c0_i32 = arith.constant 0 : i32
    %c0_i32_0 = arith.constant 0 : i32
    %c0_i32_1 = arith.constant 0 : i32
    %c0_i32_2 = arith.constant 0 : i32
    return %c0_i32, %c0_i32_0, %c0_i32_1 : i32, i32, i32
  }
  func.func @transform_5(%arg0: i32) -> (i32, i32, i32) {
    %c0_i32 = arith.constant 0 : i32
    %c0_i32_0 = arith.constant 0 : i32
    %c0_i32_1 = arith.constant 0 : i32
    %c0_i32_2 = arith.constant 0 : i32
    return %c0_i32, %c0_i32_0, %c0_i32_1 : i32, i32, i32
  }
  func.func @transform_6(%arg0: i32) -> (i32, i32, i32) {
    %c0_i32 = arith.constant 0 : i32
    %c0_i32_0 = arith.constant 0 : i32
    %c0_i32_1 = arith.constant 0 : i32
    %c0_i32_2 = arith.constant 0 : i32
    return %c0_i32, %c0_i32_0, %c0_i32_1 : i32, i32, i32
  }
  func.func @transform_7(%arg0: i32) -> (i32, i32) {
    %c0_i32 = arith.constant 0 : i32
    %c0_i32_0 = arith.constant 0 : i32
    %c0_i32_1 = arith.constant 0 : i32
    return %c0_i32, %c0_i32_0 : i32, i32
  }
  func.func @transform_8(%arg0: i32) -> (i32, i32, i32) {
    %c0_i32 = arith.constant 0 : i32
    %c0_i32_0 = arith.constant 0 : i32
    %c0_i32_1 = arith.constant 0 : i32
    return %arg0, %c0_i32, %c0_i32_0 : i32, i32, i32
  }
}

</mosaic_0001>

<llo_original>
// kernel: tpu_custom_call.1
$region0: #{tpu_custom_call.1}
  #allocation0 [shape = 'u32[]', space=smem, size = 0x4, offset = 0x4, fixed_abs, tag = 'smem constant byte address 0x4 - core index']
  #allocation1 [shape = 'u32[144,128]{1,0:T(1,128)}', space=vmem, size = 0x12000, scoped, tag = 'internal scratch']
  %s0 = inlined_call_operand.hbm [shape: f32[8,8,32], index: 0, kind: input, shape index: {}]
  %s1 = inlined_call_operand.hbm [shape: f32[8,8,32], index: 1, kind: input, shape index: {}]
  %s2 = inlined_call_operand.hbm [shape: f32[4,8,32], index: 2, kind: input, shape index: {}]
  %s3 = inlined_call_operand.hbm [shape: f32[4,8,32], index: 3, kind: input, shape index: {}]
  %s4 = inlined_call_operand.hbm [shape: f32[4,8,32], index: 4, kind: input, shape index: {}]
  %s5 = inlined_call_operand.hbm [shape: f32[4,8,32], index: 5, kind: input, shape index: {}]
  %s6 = inlined_call_operand.hbm [shape: f32[4,8,32], index: 6, kind: input, shape index: {}]
  %s7 = inlined_call_operand.vmem [shape: f32[1,32], index: 7, kind: input, shape index: {}]
  %s8 = inlined_call_operand.hbm [shape: f32[8,8,32], index: 8, kind: output, shape index: {}]
  %s9 = sld [smem:[#allocation0]]
  $region93: #{tpu_custom_call.1} parent=0
    _
  %s11 = ssub.s32 1, %s9
  %s12 = scalar_select 0, %s11, %s9
  $region1: #{tpu_custom_call.1} parent=0
    #allocation2 [shape = 'u8[32768]{0}', space=vmem, size = 0x8000, scoped, tag = 'input window, operand 0']
    #allocation3 [shape = 's32[2]{0}', space=sflag, size = 0x8, scoped, tag = 'scoped memory for tpu_custom_call.1']
    #allocation4 [shape = 's32[2]{0}', space=sflag, size = 0x8, scoped, tag = 'scoped memory for tpu_custom_call.1']
    #allocation5 [shape = 'u8[32768]{0}', space=vmem, size = 0x8000, scoped, tag = 'input window, operand 1']
    #allocation6 [shape = 's32[2]{0}', space=sflag, size = 0x8, scoped, tag = 'scoped memory for tpu_custom_call.1']
    #allocation7 [shape = 'u8[16384]{0}', space=vmem, size = 0x4000, scoped, tag = 'input window, operand 2, single buffered']
    #allocation8 [shape = 'u8[16384]{0}', space=vmem, size = 0x4000, scoped, tag = 'input window, operand 3, single buffered']
    #allocation9 [shape = 's32[1]{0}', space=sflag, size = 0x4, scoped, tag = 'scoped memory for tpu_custom_call.1']
    #allocation10 [shape = 'u8[16384]{0}', space=vmem, size = 0x4000, scoped, tag = 'input window, operand 4, single buffered']
    #allocation11 [shape = 'u8[16384]{0}', space=vmem, size = 0x4000, scoped, tag = 'input window, operand 5, single buffered']
    #allocation12 [shape = 's32[1]{0}', space=sflag, size = 0x4, scoped, tag = 'scoped memory for tpu_custom_call.1']
    #allocation13 [shape = 'u8[16384]{0}', space=vmem, size = 0x4000, scoped, tag = 'input window, operand 6, single buffered']
    #allocation14 [shape = 'u8[32768]{0}', space=vmem, size = 0x8000, scoped, tag = 'output window, operand 0']
    %13 = vsyncpa [#allocation3], 0
    %s14 = scalar_lea.sflag [#allocation3], 1
    %15 = vsyncpa %s14, 0
    %16 = vsyncpa [#allocation6], 0
    %s17 = scalar_lea.sflag [#allocation6], 1
    %18 = vsyncpa %s17, 0
    %19 = vsyncpa [#allocation9], 0
    %20 = vsyncpa [#allocation12], 0
    %21 = vsyncpa [#allocation4], 0
    %s22 = scalar_lea.sflag [#allocation4], 1
    %23 = vsyncpa %s22, 0
    loop: start=0, step=1, limit=4
    $region2: #{tpu_custom_call.1} parent=1 // loop_pre_header
      _
    $region3: #{tpu_custom_call.1} parent=1 // loop_header
      %s25 = sphi 0, %s29
      %p26 = scmp.ge.s32.totalorder %s25, 4
      %s35 = sphi 0, %s37
      %s38 = sphi 0, %s35
      %s39 = sphi 0, %s38
      %s55 = sphi 0, %s39
      %s61 = sphi 0, %s63
      %s64 = sphi 0, %s61
      %s65 = sphi 0, %s64
      %s81 = sphi 0, %s65
      %s85 = sphi 0, %s85
      %s87 = sphi 0, %s85
      %s88 = sphi 0, %s87
      %s102 = sphi 0, %s88
      %s106 = sphi 0, %s106
      %s108 = sphi 0, %s106
      %s109 = sphi 0, %s108
      %s123 = sphi 0, %s109
      %s127 = sphi 0, %s127
      %s129 = sphi 0, %s127
      %s130 = sphi 0, %s129
      %s144 = sphi 0, %s130
      %s148 = sphi 0, %s148
      %s150 = sphi 0, %s148
      %s151 = sphi 0, %s150
      %s165 = sphi 0, %s151
      %s169 = sphi 0, %s169
      %s171 = sphi 0, %s169
      %s172 = sphi 0, %s171
      %s186 = sphi 0, %s172
      %s190 = sphi 0, %s190
      %s192 = sphi 0, %s190
      %s193 = sphi 0, %s192
      %s207 = sphi 0, %s193
      %s213 = sphi 0, %s215
      %s216 = sphi 0, %s213
      %s217 = sphi 0, %s216
      %s233 = sphi 0, %s217
    $region4: #{tpu_custom_call.1} parent=1 // loop_header_branch
      %28 = sbr.rel (%p26) target = $region8
    $region5: #{tpu_custom_call.1} parent=1 // loop_body
      %s30 = ssub.s32 %s25, 1
      %s31 = ssub.s32 %s25, 2
      %s32 = sadd.s32 %s25, 1
      %s33 = ssub.s32 %s25, %s32
      %p34 = scmp.eq.s32.totalorder %s33, 0
      %s36 = sadd.s32 %s35, 1
      %s37 = scalar_select %p34, %s35, %s36
      %p40 = pneg %p34
      %p41 = scmp.eq.s32.totalorder %s25, 1
      %p42 = por %p40, %p41
      %p43 = scmp.ne.s32.totalorder %s35, %s38
      %p44 = scmp.eq.s32.totalorder %s25, 0
      %p45 = por %p43, %p44
      %p46 = scmp.ne.s32.totalorder %s35, %s38
      %p47 = scmp.eq.s32.totalorder %s30, 1
      %p48 = por %p46, %p47
      %p49 = scmp.ne.s32.totalorder %s38, %s39
      %p50 = scmp.eq.s32.totalorder %s30, 0
      %p51 = por %p49, %p50
      %p52 = scmp.ne.s32.totalorder %s38, %s39
      %p53 = scmp.eq.s32.totalorder %s31, 1
      %p54 = por %p52, %p53
      %p56 = scmp.ne.s32.totalorder %s39, %s55
      %p57 = scmp.eq.s32.totalorder %s31, 0
      %p58 = por %p56, %p57
      %s59 = ssub.s32 %s25, %s32
      %p60 = scmp.eq.s32.totalorder %s59, 0
      %s62 = sadd.s32 %s61, 1
      %s63 = scalar_select %p60, %s61, %s62
      %p66 = pneg %p60
      %p67 = scmp.eq.s32.totalorder %s25, 1
      %p68 = por %p66, %p67
      %p69 = scmp.ne.s32.totalorder %s61, %s64
      %p70 = scmp.eq.s32.totalorder %s25, 0
      %p71 = por %p69, %p70
      %p72 = scmp.ne.s32.totalorder %s61, %s64
      %p73 = scmp.eq.s32.totalorder %s30, 1
      %p74 = por %p72, %p73
      %p75 = scmp.ne.s32.totalorder %s64, %s65
      %p76 = scmp.eq.s32.totalorder %s30, 0
      %p77 = por %p75, %p76
      %p78 = scmp.ne.s32.totalorder %s64, %s65
      %p79 = scmp.eq.s32.totalorder %s31, 1
      %p80 = por %p78, %p79
      %p82 = scmp.ne.s32.totalorder %s65, %s81
      %p83 = scmp.eq.s32.totalorder %s31, 0
      %p84 = por %p82, %p83
      %s86 = sadd.s32 %s85, 1
      %p89 = scmp.eq.s32.totalorder %s25, 1
      %p90 = scmp.ne.s32.totalorder %s85, %s87
      %p91 = scmp.eq.s32.totalorder %s25, 0
      %p92 = por %p90, %p91
      %p93 = scmp.ne.s32.totalorder %s85, %s87
      %p94 = scmp.eq.s32.totalorder %s30, 1
      %p95 = por %p93, %p94
      %p96 = scmp.ne.s32.totalorder %s87, %s88
      %p97 = scmp.eq.s32.totalorder %s30, 0
      %p98 = por %p96, %p97
      %p99 = scmp.ne.s32.totalorder %s87, %s88
      %p100 = scmp.eq.s32.totalorder %s31, 1
      %p101 = por %p99, %p100
      %p103 = scmp.ne.s32.totalorder %s88, %s102
      %p104 = scmp.eq.s32.totalorder %s31, 0
      %p105 = por %p103, %p104
      %s107 = sadd.s32 %s106, 1
      %p110 = scmp.eq.s32.totalorder %s25, 1
      %p111 = scmp.ne.s32.totalorder %s106, %s108
      %p112 = scmp.eq.s32.totalorder %s25, 0
      %p113 = por %p111, %p112
      %p114 = scmp.ne.s32.totalorder %s106, %s108
      %p115 = scmp.eq.s32.totalorder %s30, 1
      %p116 = por %p114, %p115
      %p117 = scmp.ne.s32.totalorder %s108, %s109
      %p118 = scmp.eq.s32.totalorder %s30, 0
      %p119 = por %p117, %p118
      %p120 = scmp.ne.s32.totalorder %s108, %s109
      %p121 = scmp.eq.s32.totalorder %s31, 1
      %p122 = por %p120, %p121
      %p124 = scmp.ne.s32.totalorder %s109, %s123
      %p125 = scmp.eq.s32.totalorder %s31, 0
      %p126 = por %p124, %p125
      %s128 = sadd.s32 %s127, 1
      %p131 = scmp.eq.s32.totalorder %s25, 1
      %p132 = scmp.ne.s32.totalorder %s127, %s129
      %p133 = scmp.eq.s32.totalorder %s25, 0
      %p134 = por %p132, %p133
      %p135 = scmp.ne.s32.totalorder %s127, %s129
      %p136 = scmp.eq.s32.totalorder %s30, 1
      %p137 = por %p135, %p136
      %p138 = scmp.ne.s32.totalorder %s129, %s130
      %p139 = scmp.eq.s32.totalorder %s30, 0
      %p140 = por %p138, %p139
      %p141 = scmp.ne.s32.totalorder %s129, %s130
      %p142 = scmp.eq.s32.totalorder %s31, 1
      %p143 = por %p141, %p142
      %p145 = scmp.ne.s32.totalorder %s130, %s144
      %p146 = scmp.eq.s32.totalorder %s31, 0
      %p147 = por %p145, %p146
      %s149 = sadd.s32 %s148, 1
      %p152 = scmp.eq.s32.totalorder %s25, 1
      %p153 = scmp.ne.s32.totalorder %s148, %s150
      %p154 = scmp.eq.s32.totalorder %s25, 0
      %p155 = por %p153, %p154
      %p156 = scmp.ne.s32.totalorder %s148, %s150
      %p157 = scmp.eq.s32.totalorder %s30, 1
      %p158 = por %p156, %p157
      %p159 = scmp.ne.s32.totalorder %s150, %s151
      %p160 = scmp.eq.s32.totalorder %s30, 0
      %p161 = por %p159, %p160
      %p162 = scmp.ne.s32.totalorder %s150, %s151
      %p163 = scmp.eq.s32.totalorder %s31, 1
      %p164 = por %p162, %p163
      %p166 = scmp.ne.s32.totalorder %s151, %s165
      %p167 = scmp.eq.s32.totalorder %s31, 0
      %p168 = por %p166, %p167
      %s170 = sadd.s32 %s169, 1
      %p173 = scmp.eq.s32.totalorder %s25, 1
      %p174 = scmp.ne.s32.totalorder %s169, %s171
      %p175 = scmp.eq.s32.totalorder %s25, 0
      %p176 = por %p174, %p175
      %p177 = scmp.ne.s32.totalorder %s169, %s171
      %p178 = scmp.eq.s32.totalorder %s30, 1
      %p179 = por %p177, %p178
      %p180 = scmp.ne.s32.totalorder %s171, %s172
      %p181 = scmp.eq.s32.totalorder %s30, 0
      %p182 = por %p180, %p181
      %p183 = scmp.ne.s32.totalorder %s171, %s172
      %p184 = scmp.eq.s32.totalorder %s31, 1
      %p185 = por %p183, %p184
      %p187 = scmp.ne.s32.totalorder %s172, %s186
      %p188 = scmp.eq.s32.totalorder %s31, 0
      %p189 = por %p187, %p188
      %s191 = sadd.s32 %s190, 1
      %p194 = scmp.eq.s32.totalorder %s25, 1
      %p195 = scmp.ne.s32.totalorder %s190, %s192
      %p196 = scmp.eq.s32.totalorder %s25, 0
      %p197 = por %p195, %p196
      %p198 = scmp.ne.s32.totalorder %s190, %s192
      %p199 = scmp.eq.s32.totalorder %s30, 1
      %p200 = por %p198, %p199
      %p201 = scmp.ne.s32.totalorder %s192, %s193
      %p202 = scmp.eq.s32.totalorder %s30, 0
      %p203 = por %p201, %p202
      %p204 = scmp.ne.s32.totalorder %s192, %s193
      %p205 = scmp.eq.s32.totalorder %s31, 1
      %p206 = por %p204, %p205
      %p208 = scmp.ne.s32.totalorder %s193, %s207
      %p209 = scmp.eq.s32.totalorder %s31, 0
      %p210 = por %p208, %p209
      %s211 = ssub.s32 %s25, %s32
      %p212 = scmp.eq.s32.totalorder %s211, 0
      %s214 = sadd.s32 %s213, 1
      %s215 = scalar_select %p212, %s213, %s214
      %p218 = pneg %p212
      %p219 = scmp.eq.s32.totalorder %s25, 1
      %p220 = por %p218, %p219
      %p221 = scmp.ne.s32.totalorder %s213, %s216
      %p222 = scmp.eq.s32.totalorder %s25, 0
      %p223 = por %p221, %p222
      %p224 = scmp.ne.s32.totalorder %s213, %s216
      %p225 = scmp.eq.s32.totalorder %s30, 1
      %p226 = por %p224, %p225
      %p227 = scmp.ne.s32.totalorder %s216, %s217
      %p228 = scmp.eq.s32.totalorder %s30, 0
      %p229 = por %p227, %p228
      %p230 = scmp.ne.s32.totalorder %s216, %s217
      %p231 = scmp.eq.s32.totalorder %s31, 1
      %p232 = por %p230, %p231
      %p234 = scmp.ne.s32.totalorder %s217, %s233
      %p235 = scmp.eq.s32.totalorder %s31, 0
      %p236 = por %p234, %p235
      %p237 = scmp.le.s32.totalorder 1, %s25
      %p238 = scmp.lt.s32.totalorder %s25, 3
      %p239 = pnand %p237, %p238
      %p240 = pneg %p239
      // Predicated region
      $region9: #{tpu_custom_call.1} parent=5 // pred_check
        _
      $region10: #{tpu_custom_call.1} parent=5 // pred_check_branch
        %242 = sbr.rel (%p239) target = $region12
      $region11: #{tpu_custom_call.1} parent=5 // pred_region
        %s243 = ssub.s32 %s25, 1
        // Predicated region
        $region13: #{tpu_custom_call.1} parent=11 // pred_check
          %p244 = pneg %p98
        $region14: #{tpu_custom_call.1} parent=11 // pred_check_branch
          %246 = sbr.rel (%p244) target = $region16
        $region15: #{tpu_custom_call.1} parent=11 // pred_region
          %s248 = ssub.s32 512, 512
          %249 = vsyncadd [#allocation6], %s248
          %s250 = sshll.u32 [#allocation7], 4
          %s251 = int_to_ptr.vmem [resolvable:$true] %s250
          %256 = dma.hbm_to_vmem [thread:$0]  %s2, 512, %s251, [#allocation6], 128, 128, 8
        $region16: #{tpu_custom_call.1} parent=11 // pred_fallthru
          _
        // Predicated region
        $region17: #{tpu_custom_call.1} parent=11 // pred_check
          %p257 = pneg %p119
        $region18: #{tpu_custom_call.1} parent=11 // pred_check_branch
          %259 = sbr.rel (%p257) target = $region20
        $region19: #{tpu_custom_call.1} parent=11 // pred_region
          %s261 = ssub.s32 512, 512
          %262 = vsyncadd [#allocation9], %s261
          %s263 = sshll.u32 [#allocation8], 4
          %s264 = int_to_ptr.vmem [resolvable:$true] %s263
          %269 = dma.hbm_to_vmem [thread:$0]  %s3, 512, %s264, [#allocation9], 128, 128, 8
        $region20: #{tpu_custom_call.1} parent=11 // pred_fallthru
          _
        // Predicated region
        $region21: #{tpu_custom_call.1} parent=11 // pred_check
          %p270 = pneg %p140
        $region22: #{tpu_custom_call.1} parent=11 // pred_check_branch
          %272 = sbr.rel (%p270) target = $region24
        $region23: #{tpu_custom_call.1} parent=11 // pred_region
          %s274 = ssub.s32 512, 512
          %275 = vsyncadd [#allocation9], %s274
          %s276 = sshll.u32 [#allocation10], 4
          %s277 = int_to_ptr.vmem [resolvable:$true] %s276
          %282 = dma.hbm_to_vmem [thread:$0]  %s4, 512, %s277, [#allocation9], 128, 128, 8
        $region24: #{tpu_custom_call.1} parent=11 // pred_fallthru
          _
        // Predicated region
        $region25: #{tpu_custom_call.1} parent=11 // pred_check
          %p283 = pneg %p161
        $region26: #{tpu_custom_call.1} parent=11 // pred_check_branch
          %285 = sbr.rel (%p283) target = $region28
        $region27: #{tpu_custom_call.1} parent=11 // pred_region
          %s287 = ssub.s32 512, 512
          %288 = vsyncadd [#allocation12], %s287
          %s289 = sshll.u32 [#allocation11], 4
          %s290 = int_to_ptr.vmem [resolvable:$true] %s289
          %295 = dma.hbm_to_vmem [thread:$0]  %s5, 512, %s290, [#allocation12], 128, 128, 8
        $region28: #{tpu_custom_call.1} parent=11 // pred_fallthru
          _
        // Predicated region
        $region29: #{tpu_custom_call.1} parent=11 // pred_check
          %p296 = pneg %p182
        $region30: #{tpu_custom_call.1} parent=11 // pred_check_branch
          %298 = sbr.rel (%p296) target = $region32
        $region31: #{tpu_custom_call.1} parent=11 // pred_region
          %s300 = ssub.s32 512, 512
          %301 = vsyncadd [#allocation12], %s300
          %s302 = sshll.u32 [#allocation13], 4
          %s303 = int_to_ptr.vmem [resolvable:$true] %s302
          %308 = dma.hbm_to_vmem [thread:$0]  %s6, 512, %s303, [#allocation12], 128, 128, 8
        $region32: #{tpu_custom_call.1} parent=11 // pred_fallthru
          _
        // Predicated region
        $region33: #{tpu_custom_call.1} parent=11 // pred_check
          %p309 = pneg %p203
        $region34: #{tpu_custom_call.1} parent=11 // pred_check_branch
          %311 = sbr.rel (%p309) target = $region36
        $region35: #{tpu_custom_call.1} parent=11 // pred_region
          _
        $region36: #{tpu_custom_call.1} parent=11 // pred_fallthru
          _
      $region12: #{tpu_custom_call.1} parent=5 // pred_fallthru
        _
      %p312 = scmp.lt.s32.totalorder %s25, 2
      // Predicated region
      $region37: #{tpu_custom_call.1} parent=5 // pred_check
        %p313 = pneg %p312
      $region38: #{tpu_custom_call.1} parent=5 // pred_check_branch
        %315 = sbr.rel (%p313) target = $region40
      $region39: #{tpu_custom_call.1} parent=5 // pred_region
        // Predicated region
        $region41: #{tpu_custom_call.1} parent=39 // pred_check
          %p316 = pneg %p45
        $region42: #{tpu_custom_call.1} parent=39 // pred_check_branch
          %318 = sbr.rel (%p316) target = $region44
        $region43: #{tpu_custom_call.1} parent=39 // pred_region
          %s319 = sand.u32 %s35, 1
          %s320 = scalar_lea.sflag [#allocation3], %s319
          %s321 = sand.u32 %s35, 1
          %s322 = smul.addr %s321, 32
          %s323 = scalar_lea.vmem [#allocation2], %s322
          %s324 = smul.u32 4, %s25
          %s326 = ssub.s32 512, 512
          %327 = vsyncadd %s320, %s326
          %s328 = smul.addr %s324, 128
          %s329 = scalar_lea.hbm %s0, %s328
          %s330 = sshll.u32 %s323, 4
          %s331 = int_to_ptr.vmem [resolvable:$true] %s330
          %336 = dma.hbm_to_vmem [thread:$0]  %s329, 512, %s331, %s320, 128, 128, 8
        $region44: #{tpu_custom_call.1} parent=39 // pred_fallthru
          _
        // Predicated region
        $region45: #{tpu_custom_call.1} parent=39 // pred_check
          %p337 = pneg %p71
        $region46: #{tpu_custom_call.1} parent=39 // pred_check_branch
          %339 = sbr.rel (%p337) target = $region48
        $region47: #{tpu_custom_call.1} parent=39 // pred_region
          %s340 = sand.u32 %s25, 1
          %s341 = scalar_lea.sflag [#allocation6], %s340
          %s342 = sand.u32 %s61, 1
          %s343 = smul.addr %s342, 32
          %s344 = scalar_lea.vmem [#allocation5], %s343
          %s345 = smul.u32 4, %s25
          %s347 = ssub.s32 512, 512
          %348 = vsyncadd %s341, %s347
          %s349 = smul.addr %s345, 128
          %s350 = scalar_lea.hbm %s1, %s349
          %s351 = sshll.u32 %s344, 4
          %s352 = int_to_ptr.vmem [resolvable:$true] %s351
          %357 = dma.hbm_to_vmem [thread:$0]  %s350, 512, %s352, %s341, 128, 128, 8
        $region48: #{tpu_custom_call.1} parent=39 // pred_fallthru
          _
      $region40: #{tpu_custom_call.1} parent=5 // pred_fallthru
        _
      %p358 = scmp.le.s32.totalorder 1, %s25
      %p359 = scmp.lt.s32.totalorder %s25, 3
      %p360 = pnand %p358, %p359
      %p361 = pneg %p360
      // Predicated region
      $region49: #{tpu_custom_call.1} parent=5 // pred_check
        _
      $region50: #{tpu_custom_call.1} parent=5 // pred_check_branch
        %363 = sbr.rel (%p360) target = $region52
      $region51: #{tpu_custom_call.1} parent=5 // pred_region
        %s364 = ssub.s32 %s25, 1
        %s365 = sand.u32 %s38, 1
        %s366 = scalar_lea.sflag [#allocation3], %s365
        %s367 = sand.u32 %s38, 1
        %s368 = smul.addr %s367, 32
        %s369 = scalar_lea.vmem [#allocation2], %s368
        // Predicated region
        $region53: #{tpu_custom_call.1} parent=51 // pred_check
          %p370 = pneg %p51
        $region54: #{tpu_custom_call.1} parent=51 // pred_check_branch
          %372 = sbr.rel (%p370) target = $region56
        $region55: #{tpu_custom_call.1} parent=51 // pred_region
          %373 = dma.done %s366, 512
        $region56: #{tpu_custom_call.1} parent=51 // pred_fallthru
          _
        %s374 = sand.u32 %s30, 1
        %s375 = scalar_lea.sflag [#allocation6], %s374
        %s376 = sand.u32 %s64, 1
        %s377 = smul.addr %s376, 32
        %s378 = scalar_lea.vmem [#allocation5], %s377
        // Predicated region
        $region57: #{tpu_custom_call.1} parent=51 // pred_check
          %p379 = pneg %p77
        $region58: #{tpu_custom_call.1} parent=51 // pred_check_branch
          %381 = sbr.rel (%p379) target = $region60
        $region59: #{tpu_custom_call.1} parent=51 // pred_region
          %382 = dma.done %s375, 512
        $region60: #{tpu_custom_call.1} parent=51 // pred_fallthru
          _
        // Predicated region
        $region61: #{tpu_custom_call.1} parent=51 // pred_check
          %p383 = pneg %p98
        $region62: #{tpu_custom_call.1} parent=51 // pred_check_branch
          %385 = sbr.rel (%p383) target = $region64
        $region63: #{tpu_custom_call.1} parent=51 // pred_region
          %386 = dma.done [#allocation6], 512
        $region64: #{tpu_custom_call.1} parent=51 // pred_fallthru
          _
        // Predicated region
        $region65: #{tpu_custom_call.1} parent=51 // pred_check
          %p387 = pneg %p119
        $region66: #{tpu_custom_call.1} parent=51 // pred_check_branch
          %389 = sbr.rel (%p387) target = $region68
        $region67: #{tpu_custom_call.1} parent=51 // pred_region
          %390 = dma.done [#allocation9], 512
        $region68: #{tpu_custom_call.1} parent=51 // pred_fallthru
          _
        // Predicated region
        $region69: #{tpu_custom_call.1} parent=51 // pred_check
          %p391 = pneg %p140
        $region70: #{tpu_custom_call.1} parent=51 // pred_check_branch
          %393 = sbr.rel (%p391) target = $region72
        $region71: #{tpu_custom_call.1} parent=51 // pred_region
          %394 = dma.done [#allocation9], 512
        $region72: #{tpu_custom_call.1} parent=51 // pred_fallthru
          _
        // Predicated region
        $region73: #{tpu_custom_call.1} parent=51 // pred_check
          %p395 = pneg %p161
        $region74: #{tpu_custom_call.1} parent=51 // pred_check_branch
          %397 = sbr.rel (%p395) target = $region76
        $region75: #{tpu_custom_call.1} parent=51 // pred_region
          %398 = dma.done [#allocation12], 512
        $region76: #{tpu_custom_call.1} parent=51 // pred_fallthru
          _
        // Predicated region
        $region77: #{tpu_custom_call.1} parent=51 // pred_check
          %p399 = pneg %p182
        $region78: #{tpu_custom_call.1} parent=51 // pred_check_branch
          %401 = sbr.rel (%p399) target = $region80
        $region79: #{tpu_custom_call.1} parent=51 // pred_region
          %402 = dma.done [#allocation12], 512
        $region80: #{tpu_custom_call.1} parent=51 // pred_fallthru
          _
        %s403 = sand.u32 %s38, 1
        %s404 = scalar_lea.sflag [#allocation3], %s403
        %s405 = sand.u32 %s38, 1
        %s406 = smul.addr %s405, 32
        %s407 = scalar_lea.vmem [#allocation2], %s406
        %p408 = pneg %p51
        %p409 = pneg %p48
        %s410 = sand.u32 %s30, 1
        %s411 = scalar_lea.sflag [#allocation6], %s410
        %s412 = sand.u32 %s64, 1
        %s413 = smul.addr %s412, 32
        %s414 = scalar_lea.vmem [#allocation5], %s413
        %p415 = pneg %p77
        %p416 = pneg %p74
        %p417 = pneg %p98
        %p418 = pneg %p95
        %p419 = pneg %p119
        %p420 = pneg %p116
        %p421 = pneg %p140
        %p422 = pneg %p137
        %p423 = pneg %p161
        %p424 = pneg %p158
        %p425 = pneg %p182
        %p426 = pneg %p179
        %p427 = pneg %p203
        %p428 = pneg %p200
        %p429 = pneg %p229
        %p430 = pneg %p226
        %s431 = sand.u32 %s216, 1
        %s432 = scalar_lea.sflag [#allocation4], %s431
        %s433 = sand.u32 %s216, 1
        %s434 = smul.addr %s433, 32
        %s435 = scalar_lea.vmem [#allocation14], %s434
        %s436 = smul.u32 4, %s30
        %s437 = smul.u32 4, %s30
        %s438 = smul.u32 4, %s30
        %v439 = vld [vmem:[%s369] sm:$0xff]
        %v440 = vld [vmem:[%s369 + $0x8] sm:$0xff]
        %v441 = vld [vmem:[%s369 + $0x10] sm:$0xff]
        %v442 = vld [vmem:[%s369 + $0x18] sm:$0xff]
        %v443 = vld [vmem:[%s378] sm:$0xff]
        %v444 = vld [vmem:[%s378 + $0x8] sm:$0xff]
        %v445 = vld [vmem:[%s378 + $0x10] sm:$0xff]
        %v446 = vld [vmem:[%s378 + $0x18] sm:$0xff]
        %v447 = vld [vmem:[#allocation7] sm:$0xff]
        %v448 = vld [vmem:[#allocation7 + $0x8] sm:$0xff]
        %v449 = vld [vmem:[#allocation7 + $0x10] sm:$0xff]
        %v450 = vld [vmem:[#allocation7 + $0x18] sm:$0xff]
        %v451 = vld [vmem:[#allocation8] sm:$0xff]
        %v452 = vld [vmem:[#allocation8 + $0x8] sm:$0xff]
        %v453 = vld [vmem:[#allocation8 + $0x10] sm:$0xff]
        %v454 = vld [vmem:[#allocation8 + $0x18] sm:$0xff]
        %v455 = vld [vmem:[#allocation10] sm:$0xff]
        %v456 = vld [vmem:[#allocation10 + $0x8] sm:$0xff]
        %v457 = vld [vmem:[#allocation10 + $0x10] sm:$0xff]
        %v458 = vld [vmem:[#allocation10 + $0x18] sm:$0xff]
        %v459 = vld [vmem:[#allocation11] sm:$0xff]
        %v460 = vld [vmem:[#allocation11 + $0x8] sm:$0xff]
        %v461 = vld [vmem:[#allocation11 + $0x10] sm:$0xff]
        %v462 = vld [vmem:[#allocation11 + $0x18] sm:$0xff]
        %v463 = vld [vmem:[#allocation13] sm:$0xff]
        %v464 = vld [vmem:[#allocation13 + $0x8] sm:$0xff]
        %v465 = vld [vmem:[#allocation13 + $0x10] sm:$0xff]
        %v466 = vld [vmem:[#allocation13 + $0x18] sm:$0xff]
        %vm467 = vcmask 261120
        %v469 = vsel %vm467, %v443, 0
        %v472 = vsel %vm467, %v447, 0
        %474 = vmatprep.subr.mxu0 0.0
        %475 = vmatpush1.xpose.msra.mxu0 0.0
        %476 = vmatprep.subr.mxu0 0.0
        %477 = vmatpush1.xpose.msra.mxu0 0.0
        %478 = vmatprep.subr.mxu0 0.0
        %479 = vmatpush1.xpose.msra.mxu0 0.0
        %480 = vmatprep.subr.mxu0 0.0
        %481 = vmatpush1.xpose.msra.mxu0 0.0
        %482 = vmatprep.subr.mxu0 0.0
        %483 = vmatpush1.xpose.msra.mxu0 0.0
        %484 = vmatprep.subr.mxu0 0.0
        %485 = vmatpush1.xpose.msra.mxu0 0.0
        %486 = vmatprep.subr.mxu0 0.0
        %487 = vmatpush1.xpose.msra.mxu0 0.0
        %488 = vmatprep.subr.mxu0 0.0
        %489 = vmatpush1.xpose.msra.mxu0 0.0
        %490 = vmatprep.subr.mxu0 0.0
        %491 = vmatpush1.xpose.msra.mxu0 0.0
        %492 = vmatprep.subr.mxu0 0.0
        %493 = vmatpush1.xpose.msra.mxu0 0.0
        %494 = vmatprep.subr.mxu0 0.0
        %495 = vmatpush1.xpose.msra.mxu0 0.0
        %496 = vmatprep.subr.mxu0 0.0
        %497 = vmatpush1.xpose.msra.mxu0 0.0
        %498 = vmatprep.subr.mxu0 0.0
        %499 = vmatpush1.xpose.msra.mxu0 0.0
        %500 = vmatprep.subr.mxu0 0.0
        %501 = vmatpush1.xpose.msra.mxu0 0.0
        %502 = vmatprep.subr.mxu0 0.0
        %503 = vmatpush1.xpose.msra.mxu0 0.0
        %504 = vmatprep.subr.mxu0 0.0
        %505 = vmatpush1.xpose.msra.mxu0 %v472
        %506 = vmatprep.subr.mxu0 0.0
        %507 = vmatpush2.xpose.msra.mxu0 0.0
        %508 = vmatprep.subr.mxu0 0.0
        %509 = vmatpush2.xpose.msra.mxu0 0.0
        %510 = vmatprep.subr.mxu0 0.0
        %511 = vmatpush2.xpose.msra.mxu0 0.0
        %512 = vmatprep.subr.mxu0 0.0
        %513 = vmatpush2.xpose.msra.mxu0 0.0
        %514 = vmatprep.subr.mxu0 0.0
        %515 = vmatpush2.xpose.msra.mxu0 0.0
        %516 = vmatprep.subr.mxu0 0.0
        %517 = vmatpush2.xpose.msra.mxu0 0.0
        %518 = vmatprep.subr.mxu0 0.0
        %519 = vmatpush2.xpose.msra.mxu0 0.0
        %520 = vmatprep.subr.mxu0 0.0
        %521 = vmatpush2.xpose.msra.mxu0 0.0
        %522 = vmatprep.subr.mxu0 0.0
        %523 = vmatpush2.xpose.msra.mxu0 0.0
        %524 = vmatprep.subr.mxu0 0.0
        %525 = vmatpush2.xpose.msra.mxu0 0.0
        %526 = vmatprep.subr.mxu0 0.0
        %527 = vmatpush2.xpose.msra.mxu0 0.0
        %528 = vmatprep.subr.mxu0 0.0
        %529 = vmatpush2.xpose.msra.mxu0 0.0
        %530 = vmatprep.subr.mxu0 0.0
        %531 = vmatpush2.xpose.msra.mxu0 0.0
        %532 = vmatprep.subr.mxu0 0.0
        %533 = vmatpush2.xpose.msra.mxu0 0.0
        %534 = vmatprep.subr.mxu0 0.0
        %535 = vmatpush2.xpose.msra.mxu0 0.0
        %536 = vmatprep.subr.mxu0 0.0
        %537 = vmatpush2.xpose.msra.mxu0 0.0
        %538 = vmatprep.mubr.f32.mxu0 0.0
        %539 = vmatmul.mubr.f32.gmra.mxu0 %v469
        %v540 = vpop.f32.mrf.mxu0
        %v541 = vadd.f32 0.0, %v540
        %v542 = vpop.f32.mrf.mxu0
        %543 = vdwg.mxu0
        %v545 = vsel %vm467, %v448, 0
        %547 = vmatprep.subr.mxu0 0.0
        %548 = vmatpush1.xpose.msra.mxu0 0.0
        %549 = vmatprep.subr.mxu0 0.0
        %550 = vmatpush1.xpose.msra.mxu0 0.0
        %551 = vmatprep.subr.mxu0 0.0
        %552 = vmatpush1.xpose.msra.mxu0 0.0
        %553 = vmatprep.subr.mxu0 0.0
        %554 = vmatpush1.xpose.msra.mxu0 0.0
        %555 = vmatprep.subr.mxu0 0.0
        %556 = vmatpush1.xpose.msra.mxu0 0.0
        %557 = vmatprep.subr.mxu0 0.0
        %558 = vmatpush1.xpose.msra.mxu0 0.0
        %559 = vmatprep.subr.mxu0 0.0
        %560 = vmatpush1.xpose.msra.mxu0 0.0
        %561 = vmatprep.subr.mxu0 0.0
        %562 = vmatpush1.xpose.msra.mxu0 0.0
        %563 = vmatprep.subr.mxu0 0.0
        %564 = vmatpush1.xpose.msra.mxu0 0.0
        %565 = vmatprep.subr.mxu0 0.0
        %566 = vmatpush1.xpose.msra.mxu0 0.0
        %567 = vmatprep.subr.mxu0 0.0
        %568 = vmatpush1.xpose.msra.mxu0 0.0
        %569 = vmatprep.subr.mxu0 0.0
        %570 = vmatpush1.xpose.msra.mxu0 0.0
        %571 = vmatprep.subr.mxu0 0.0
        %572 = vmatpush1.xpose.msra.mxu0 0.0
        %573 = vmatprep.subr.mxu0 0.0
        %574 = vmatpush1.xpose.msra.mxu0 0.0
        %575 = vmatprep.subr.mxu0 0.0
        %576 = vmatpush1.xpose.msra.mxu0 0.0
        %577 = vmatprep.subr.mxu0 0.0
        %578 = vmatpush1.xpose.msra.mxu0 %v545
        %579 = vmatprep.subr.mxu0 0.0
        %580 = vmatpush2.xpose.msra.mxu0 0.0
        %581 = vmatprep.subr.mxu0 0.0
        %582 = vmatpush2.xpose.msra.mxu0 0.0
        %583 = vmatprep.subr.mxu0 0.0
        %584 = vmatpush2.xpose.msra.mxu0 0.0
        %585 = vmatprep.subr.mxu0 0.0
        %586 = vmatpush2.xpose.msra.mxu0 0.0
        %587 = vmatprep.subr.mxu0 0.0
        %588 = vmatpush2.xpose.msra.mxu0 0.0
        %589 = vmatprep.subr.mxu0 0.0
        %590 = vmatpush2.xpose.msra.mxu0 0.0
        %591 = vmatprep.subr.mxu0 0.0
        %592 = vmatpush2.xpose.msra.mxu0 0.0
        %593 = vmatprep.subr.mxu0 0.0
        %594 = vmatpush2.xpose.msra.mxu0 0.0
        %595 = vmatprep.subr.mxu0 0.0
        %596 = vmatpush2.xpose.msra.mxu0 0.0
        %597 = vmatprep.subr.mxu0 0.0
        %598 = vmatpush2.xpose.msra.mxu0 0.0
        %599 = vmatprep.subr.mxu0 0.0
        %600 = vmatpush2.xpose.msra.mxu0 0.0
        %601 = vmatprep.subr.mxu0 0.0
        %602 = vmatpush2.xpose.msra.mxu0 0.0
        %603 = vmatprep.subr.mxu0 0.0
        %604 = vmatpush2.xpose.msra.mxu0 0.0
        %605 = vmatprep.subr.mxu0 0.0
        %606 = vmatpush2.xpose.msra.mxu0 0.0
        %607 = vmatprep.subr.mxu0 0.0
        %608 = vmatpush2.xpose.msra.mxu0 0.0
        %609 = vmatprep.subr.mxu0 0.0
        %610 = vmatpush2.xpose.msra.mxu0 0.0
        %611 = vmatprep.mubr.f32.mxu0 0.0
        %612 = vmatmul.mubr.f32.gmra.mxu0 %v469
        %v613 = vpop.f32.mrf.mxu0
        %v614 = vadd.f32 0.0, %v613
        %v615 = vpop.f32.mrf.mxu0
        %616 = vdwg.mxu0
        %v618 = vsel %vm467, %v449, 0
        %620 = vmatprep.subr.mxu0 0.0
        %621 = vmatpush1.xpose.msra.mxu0 0.0
        %622 = vmatprep.subr.mxu0 0.0
        %623 = vmatpush1.xpose.msra.mxu0 0.0
        %624 = vmatprep.subr.mxu0 0.0
        %625 = vmatpush1.xpose.msra.mxu0 0.0
        %626 = vmatprep.subr.mxu0 0.0
        %627 = vmatpush1.xpose.msra.mxu0 0.0
        %628 = vmatprep.subr.mxu0 0.0
        %629 = vmatpush1.xpose.msra.mxu0 0.0
        %630 = vmatprep.subr.mxu0 0.0
        %631 = vmatpush1.xpose.msra.mxu0 0.0
        %632 = vmatprep.subr.mxu0 0.0
        %633 = vmatpush1.xpose.msra.mxu0 0.0
        %634 = vmatprep.subr.mxu0 0.0
        %635 = vmatpush1.xpose.msra.mxu0 0.0
        %636 = vmatprep.subr.mxu0 0.0
        %637 = vmatpush1.xpose.msra.mxu0 0.0
        %638 = vmatprep.subr.mxu0 0.0
        %639 = vmatpush1.xpose.msra.mxu0 0.0
        %640 = vmatprep.subr.mxu0 0.0
        %641 = vmatpush1.xpose.msra.mxu0 0.0
        %642 = vmatprep.subr.mxu0 0.0
        %643 = vmatpush1.xpose.msra.mxu0 0.0
        %644 = vmatprep.subr.mxu0 0.0
        %645 = vmatpush1.xpose.msra.mxu0 0.0
        %646 = vmatprep.subr.mxu0 0.0
        %647 = vmatpush1.xpose.msra.mxu0 0.0
        %648 = vmatprep.subr.mxu0 0.0
        %649 = vmatpush1.xpose.msra.mxu0 0.0
        %650 = vmatprep.subr.mxu0 0.0
        %651 = vmatpush1.xpose.msra.mxu0 %v618
        %652 = vmatprep.subr.mxu0 0.0
        %653 = vmatpush2.xpose.msra.mxu0 0.0
        %654 = vmatprep.subr.mxu0 0.0
        %655 = vmatpush2.xpose.msra.mxu0 0.0
        %656 = vmatprep.subr.mxu0 0.0
        %657 = vmatpush2.xpose.msra.mxu0 0.0
        %658 = vmatprep.subr.mxu0 0.0
        %659 = vmatpush2.xpose.msra.mxu0 0.0
        %660 = vmatprep.subr.mxu0 0.0
        %661 = vmatpush2.xpose.msra.mxu0 0.0
        %662 = vmatprep.subr.mxu0 0.0
        %663 = vmatpush2.xpose.msra.mxu0 0.0
        %664 = vmatprep.subr.mxu0 0.0
        %665 = vmatpush2.xpose.msra.mxu0 0.0
        %666 = vmatprep.subr.mxu0 0.0
        %667 = vmatpush2.xpose.msra.mxu0 0.0
        %668 = vmatprep.subr.mxu0 0.0
        %669 = vmatpush2.xpose.msra.mxu0 0.0
        %670 = vmatprep.subr.mxu0 0.0
        %671 = vmatpush2.xpose.msra.mxu0 0.0
        %672 = vmatprep.subr.mxu0 0.0
        %673 = vmatpush2.xpose.msra.mxu0 0.0
        %674 = vmatprep.subr.mxu0 0.0
        %675 = vmatpush2.xpose.msra.mxu0 0.0
        %676 = vmatprep.subr.mxu0 0.0
        %677 = vmatpush2.xpose.msra.mxu0 0.0
        %678 = vmatprep.subr.mxu0 0.0
        %679 = vmatpush2.xpose.msra.mxu0 0.0
        %680 = vmatprep.subr.mxu0 0.0
        %681 = vmatpush2.xpose.msra.mxu0 0.0
        %682 = vmatprep.subr.mxu0 0.0
        %683 = vmatpush2.xpose.msra.mxu0 0.0
        %684 = vmatprep.mubr.f32.mxu0 0.0
        %685 = vmatmul.mubr.f32.gmra.mxu0 %v469
        %v686 = vpop.f32.mrf.mxu0
        %v687 = vadd.f32 0.0, %v686
        %v688 = vpop.f32.mrf.mxu0
        %689 = vdwg.mxu0
        %v691 = vsel %vm467, %v450, 0
        %693 = vmatprep.subr.mxu0 0.0
        %694 = vmatpush1.xpose.msra.mxu0 0.0
        %695 = vmatprep.subr.mxu0 0.0
        %696 = vmatpush1.xpose.msra.mxu0 0.0
        %697 = vmatprep.subr.mxu0 0.0
        %698 = vmatpush1.xpose.msra.mxu0 0.0
        %699 = vmatprep.subr.mxu0 0.0
        %700 = vmatpush1.xpose.msra.mxu0 0.0
        %701 = vmatprep.subr.mxu0 0.0
        %702 = vmatpush1.xpose.msra.mxu0 0.0
        %703 = vmatprep.subr.mxu0 0.0
        %704 = vmatpush1.xpose.msra.mxu0 0.0
        %705 = vmatprep.subr.mxu0 0.0
        %706 = vmatpush1.xpose.msra.mxu0 0.0
        %707 = vmatprep.subr.mxu0 0.0
        %708 = vmatpush1.xpose.msra.mxu0 0.0
        %709 = vmatprep.subr.mxu0 0.0
        %710 = vmatpush1.xpose.msra.mxu0 0.0
        %711 = vmatprep.subr.mxu0 0.0
        %712 = vmatpush1.xpose.msra.mxu0 0.0
        %713 = vmatprep.subr.mxu0 0.0
        %714 = vmatpush1.xpose.msra.mxu0 0.0
        %715 = vmatprep.subr.mxu0 0.0
        %716 = vmatpush1.xpose.msra.mxu0 0.0
        %717 = vmatprep.subr.mxu0 0.0
        %718 = vmatpush1.xpose.msra.mxu0 0.0
        %719 = vmatprep.subr.mxu0 0.0
        %720 = vmatpush1.xpose.msra.mxu0 0.0
        %721 = vmatprep.subr.mxu0 0.0
        %722 = vmatpush1.xpose.msra.mxu0 0.0
        %723 = vmatprep.subr.mxu0 0.0
        %724 = vmatpush1.xpose.msra.mxu0 %v691
        %725 = vmatprep.subr.mxu0 0.0
        %726 = vmatpush2.xpose.msra.mxu0 0.0
        %727 = vmatprep.subr.mxu0 0.0
        %728 = vmatpush2.xpose.msra.mxu0 0.0
        %729 = vmatprep.subr.mxu0 0.0
        %730 = vmatpush2.xpose.msra.mxu0 0.0
        %731 = vmatprep.subr.mxu0 0.0
        %732 = vmatpush2.xpose.msra.mxu0 0.0
        %733 = vmatprep.subr.mxu0 0.0
        %734 = vmatpush2.xpose.msra.mxu0 0.0
        %735 = vmatprep.subr.mxu0 0.0
        %736 = vmatpush2.xpose.msra.mxu0 0.0
        %737 = vmatprep.subr.mxu0 0.0
        %738 = vmatpush2.xpose.msra.mxu0 0.0
        %739 = vmatprep.subr.mxu0 0.0
        %740 = vmatpush2.xpose.msra.mxu0 0.0
        %741 = vmatprep.subr.mxu0 0.0
        %742 = vmatpush2.xpose.msra.mxu0 0.0
        %743 = vmatprep.subr.mxu0 0.0
        %744 = vmatpush2.xpose.msra.mxu0 0.0
        %745 = vmatprep.subr.mxu0 0.0
        %746 = vmatpush2.xpose.msra.mxu0 0.0
        %747 = vmatprep.subr.mxu0 0.0
        %748 = vmatpush2.xpose.msra.mxu0 0.0
        %749 = vmatprep.subr.mxu0 0.0
        %750 = vmatpush2.xpose.msra.mxu0 0.0
        %751 = vmatprep.subr.mxu0 0.0
        %752 = vmatpush2.xpose.msra.mxu0 0.0
        %753 = vmatprep.subr.mxu0 0.0
        %754 = vmatpush2.xpose.msra.mxu0 0.0
        %755 = vmatprep.subr.mxu0 0.0
        %756 = vmatpush2.xpose.msra.mxu0 0.0
        %757 = vmatprep.mubr.f32.mxu0 0.0
        %758 = vmatmul.mubr.f32.gmra.mxu0 %v469
        %v759 = vpop.f32.mrf.mxu0
        %v760 = vadd.f32 0.0, %v759
        %v761 = vpop.f32.mrf.mxu0
        %762 = vdwg.mxu0
        %v764 = vsel %vm467, %v444, 0
        %766 = vmatprep.subr.mxu0 0.0
        %767 = vmatpush1.xpose.msra.mxu0 0.0
        %768 = vmatprep.subr.mxu0 0.0
        %769 = vmatpush1.xpose.msra.mxu0 0.0
        %770 = vmatprep.subr.mxu0 0.0
        %771 = vmatpush1.xpose.msra.mxu0 0.0
        %772 = vmatprep.subr.mxu0 0.0
        %773 = vmatpush1.xpose.msra.mxu0 0.0
        %774 = vmatprep.subr.mxu0 0.0
        %775 = vmatpush1.xpose.msra.mxu0 0.0
        %776 = vmatprep.subr.mxu0 0.0
        %777 = vmatpush1.xpose.msra.mxu0 0.0
        %778 = vmatprep.subr.mxu0 0.0
        %779 = vmatpush1.xpose.msra.mxu0 0.0
        %780 = vmatprep.subr.mxu0 0.0
        %781 = vmatpush1.xpose.msra.mxu0 0.0
        %782 = vmatprep.subr.mxu0 0.0
        %783 = vmatpush1.xpose.msra.mxu0 0.0
        %784 = vmatprep.subr.mxu0 0.0
        %785 = vmatpush1.xpose.msra.mxu0 0.0
        %786 = vmatprep.subr.mxu0 0.0
        %787 = vmatpush1.xpose.msra.mxu0 0.0
        %788 = vmatprep.subr.mxu0 0.0
        %789 = vmatpush1.xpose.msra.mxu0 0.0
        %790 = vmatprep.subr.mxu0 0.0
        %791 = vmatpush1.xpose.msra.mxu0 0.0
        %792 = vmatprep.subr.mxu0 0.0
        %793 = vmatpush1.xpose.msra.mxu0 0.0
        %794 = vmatprep.subr.mxu0 0.0
        %795 = vmatpush1.xpose.msra.mxu0 0.0
        %796 = vmatprep.subr.mxu0 0.0
        %797 = vmatpush1.xpose.msra.mxu0 %v472
        %798 = vmatprep.subr.mxu0 0.0
        %799 = vmatpush2.xpose.msra.mxu0 0.0
        %800 = vmatprep.subr.mxu0 0.0
        %801 = vmatpush2.xpose.msra.mxu0 0.0
        %802 = vmatprep.subr.mxu0 0.0
        %803 = vmatpush2.xpose.msra.mxu0 0.0
        %804 = vmatprep.subr.mxu0 0.0
        %805 = vmatpush2.xpose.msra.mxu0 0.0
        %806 = vmatprep.subr.mxu0 0.0
        %807 = vmatpush2.xpose.msra.mxu0 0.0
        %808 = vmatprep.subr.mxu0 0.0
        %809 = vmatpush2.xpose.msra.mxu0 0.0
        %810 = vmatprep.subr.mxu0 0.0
        %811 = vmatpush2.xpose.msra.mxu0 0.0
        %812 = vmatprep.subr.mxu0 0.0
        %813 = vmatpush2.xpose.msra.mxu0 0.0
        %814 = vmatprep.subr.mxu0 0.0
        %815 = vmatpush2.xpose.msra.mxu0 0.0
        %816 = vmatprep.subr.mxu0 0.0
        %817 = vmatpush2.xpose.msra.mxu0 0.0
        %818 = vmatprep.subr.mxu0 0.0
        %819 = vmatpush2.xpose.msra.mxu0 0.0
        %820 = vmatprep.subr.mxu0 0.0
        %821 = vmatpush2.xpose.msra.mxu0 0.0
        %822 = vmatprep.subr.mxu0 0.0
        %823 = vmatpush2.xpose.msra.mxu0 0.0
        %824 = vmatprep.subr.mxu0 0.0
        %825 = vmatpush2.xpose.msra.mxu0 0.0
        %826 = vmatprep.subr.mxu0 0.0
        %827 = vmatpush2.xpose.msra.mxu0 0.0
        %828 = vmatprep.subr.mxu0 0.0
        %829 = vmatpush2.xpose.msra.mxu0 0.0
        %830 = vmatprep.mubr.f32.mxu0 0.0
        %831 = vmatmul.mubr.f32.gmra.mxu0 %v764
        %v832 = vpop.f32.mrf.mxu0
        %v833 = vadd.f32 0.0, %v832
        %v834 = vpop.f32.mrf.mxu0
        %835 = vdwg.mxu0
        %836 = vmatprep.subr.mxu0 0.0
        %837 = vmatpush1.xpose.msra.mxu0 0.0
        %838 = vmatprep.subr.mxu0 0.0
        %839 = vmatpush1.xpose.msra.mxu0 0.0
        %840 = vmatprep.subr.mxu0 0.0
        %841 = vmatpush1.xpose.msra.mxu0 0.0
        %842 = vmatprep.subr.mxu0 0.0
        %843 = vmatpush1.xpose.msra.mxu0 0.0
        %844 = vmatprep.subr.mxu0 0.0
        %845 = vmatpush1.xpose.msra.mxu0 0.0
        %846 = vmatprep.subr.mxu0 0.0
        %847 = vmatpush1.xpose.msra.mxu0 0.0
        %848 = vmatprep.subr.mxu0 0.0
        %849 = vmatpush1.xpose.msra.mxu0 0.0
        %850 = vmatprep.subr.mxu0 0.0
        %851 = vmatpush1.xpose.msra.mxu0 0.0
        %852 = vmatprep.subr.mxu0 0.0
        %853 = vmatpush1.xpose.msra.mxu0 0.0
        %854 = vmatprep.subr.mxu0 0.0
        %855 = vmatpush1.xpose.msra.mxu0 0.0
        %856 = vmatprep.subr.mxu0 0.0
        %857 = vmatpush1.xpose.msra.mxu0 0.0
        %858 = vmatprep.subr.mxu0 0.0
        %859 = vmatpush1.xpose.msra.mxu0 0.0
        %860 = vmatprep.subr.mxu0 0.0
        %861 = vmatpush1.xpose.msra.mxu0 0.0
        %862 = vmatprep.subr.mxu0 0.0
        %863 = vmatpush1.xpose.msra.mxu0 0.0
        %864 = vmatprep.subr.mxu0 0.0
        %865 = vmatpush1.xpose.msra.mxu0 0.0
        %866 = vmatprep.subr.mxu0 0.0
        %867 = vmatpush1.xpose.msra.mxu0 %v545
        %868 = vmatprep.subr.mxu0 0.0
        %869 = vmatpush2.xpose.msra.mxu0 0.0
        %870 = vmatprep.subr.mxu0 0.0
        %871 = vmatpush2.xpose.msra.mxu0 0.0
        %872 = vmatprep.subr.mxu0 0.0
        %873 = vmatpush2.xpose.msra.mxu0 0.0
        %874 = vmatprep.subr.mxu0 0.0
        %875 = vmatpush2.xpose.msra.mxu0 0.0
        %876 = vmatprep.subr.mxu0 0.0
        %877 = vmatpush2.xpose.msra.mxu0 0.0
        %878 = vmatprep.subr.mxu0 0.0
        %879 = vmatpush2.xpose.msra.mxu0 0.0
        %880 = vmatprep.subr.mxu0 0.0
        %881 = vmatpush2.xpose.msra.mxu0 0.0
        %882 = vmatprep.subr.mxu0 0.0
        %883 = vmatpush2.xpose.msra.mxu0 0.0
        %884 = vmatprep.subr.mxu0 0.0
        %885 = vmatpush2.xpose.msra.mxu0 0.0
        %886 = vmatprep.subr.mxu0 0.0
        %887 = vmatpush2.xpose.msra.mxu0 0.0
        %888 = vmatprep.subr.mxu0 0.0
        %889 = vmatpush2.xpose.msra.mxu0 0.0
        %890 = vmatprep.subr.mxu0 0.0
        %891 = vmatpush2.xpose.msra.mxu0 0.0
        %892 = vmatprep.subr.mxu0 0.0
        %893 = vmatpush2.xpose.msra.mxu0 0.0
        %894 = vmatprep.subr.mxu0 0.0
        %895 = vmatpush2.xpose.msra.mxu0 0.0
        %896 = vmatprep.subr.mxu0 0.0
        %897 = vmatpush2.xpose.msra.mxu0 0.0
        %898 = vmatprep.subr.mxu0 0.0
        %899 = vmatpush2.xpose.msra.mxu0 0.0
        %900 = vmatprep.mubr.f32.mxu0 0.0
        %901 = vmatmul.mubr.f32.gmra.mxu0 %v764
        %v902 = vpop.f32.mrf.mxu0
        %v903 = vadd.f32 0.0, %v902
        %v904 = vpop.f32.mrf.mxu0
        %905 = vdwg.mxu0
        %906 = vmatprep.subr.mxu0 0.0
        %907 = vmatpush1.xpose.msra.mxu0 0.0
        %908 = vmatprep.subr.mxu0 0.0
        %909 = vmatpush1.xpose.msra.mxu0 0.0
        %910 = vmatprep.subr.mxu0 0.0
        %911 = vmatpush1.xpose.msra.mxu0 0.0
        %912 = vmatprep.subr.mxu0 0.0
        %913 = vmatpush1.xpose.msra.mxu0 0.0
        %914 = vmatprep.subr.mxu0 0.0
        %915 = vmatpush1.xpose.msra.mxu0 0.0
        %916 = vmatprep.subr.mxu0 0.0
        %917 = vmatpush1.xpose.msra.mxu0 0.0
        %918 = vmatprep.subr.mxu0 0.0
        %919 = vmatpush1.xpose.msra.mxu0 0.0
        %920 = vmatprep.subr.mxu0 0.0
        %921 = vmatpush1.xpose.msra.mxu0 0.0
        %922 = vmatprep.subr.mxu0 0.0
        %923 = vmatpush1.xpose.msra.mxu0 0.0
        %924 = vmatprep.subr.mxu0 0.0
        %925 = vmatpush1.xpose.msra.mxu0 0.0
        %926 = vmatprep.subr.mxu0 0.0
        %927 = vmatpush1.xpose.msra.mxu0 0.0
        %928 = vmatprep.subr.mxu0 0.0
        %929 = vmatpush1.xpose.msra.mxu0 0.0
        %930 = vmatprep.subr.mxu0 0.0
        %931 = vmatpush1.xpose.msra.mxu0 0.0
        %932 = vmatprep.subr.mxu0 0.0
        %933 = vmatpush1.xpose.msra.mxu0 0.0
        %934 = vmatprep.subr.mxu0 0.0
        %935 = vmatpush1.xpose.msra.mxu0 0.0
        %936 = vmatprep.subr.mxu0 0.0
        %937 = vmatpush1.xpose.msra.mxu0 %v618
        %938 = vmatprep.subr.mxu0 0.0
        %939 = vmatpush2.xpose.msra.mxu0 0.0
        %940 = vmatprep.subr.mxu0 0.0
        %941 = vmatpush2.xpose.msra.mxu0 0.0
        %942 = vmatprep.subr.mxu0 0.0
        %943 = vmatpush2.xpose.msra.mxu0 0.0
        %944 = vmatprep.subr.mxu0 0.0
        %945 = vmatpush2.xpose.msra.mxu0 0.0
        %946 = vmatprep.subr.mxu0 0.0
        %947 = vmatpush2.xpose.msra.mxu0 0.0
        %948 = vmatprep.subr.mxu0 0.0
        %949 = vmatpush2.xpose.msra.mxu0 0.0
        %950 = vmatprep.subr.mxu0 0.0
        %951 = vmatpush2.xpose.msra.mxu0 0.0
        %952 = vmatprep.subr.mxu0 0.0
        %953 = vmatpush2.xpose.msra.mxu0 0.0
        %954 = vmatprep.subr.mxu0 0.0
        %955 = vmatpush2.xpose.msra.mxu0 0.0
        %956 = vmatprep.subr.mxu0 0.0
        %957 = vmatpush2.xpose.msra.mxu0 0.0
        %958 = vmatprep.subr.mxu0 0.0
        %959 = vmatpush2.xpose.msra.mxu0 0.0
        %960 = vmatprep.subr.mxu0 0.0
        %961 = vmatpush2.xpose.msra.mxu0 0.0
        %962 = vmatprep.subr.mxu0 0.0
        %963 = vmatpush2.xpose.msra.mxu0 0.0
        %964 = vmatprep.subr.mxu0 0.0
        %965 = vmatpush2.xpose.msra.mxu0 0.0
        %966 = vmatprep.subr.mxu0 0.0
        %967 = vmatpush2.xpose.msra.mxu0 0.0
        %968 = vmatprep.subr.mxu0 0.0
        %969 = vmatpush2.xpose.msra.mxu0 0.0
        %970 = vmatprep.mubr.f32.mxu0 0.0
        %971 = vmatmul.mubr.f32.gmra.mxu0 %v764
        %v972 = vpop.f32.mrf.mxu0
        %v973 = vadd.f32 0.0, %v972
        %v974 = vpop.f32.mrf.mxu0
        %975 = vdwg.mxu0
        %976 = vmatprep.subr.mxu0 0.0
        %977 = vmatpush1.xpose.msra.mxu0 0.0
        %978 = vmatprep.subr.mxu0 0.0
        %979 = vmatpush1.xpose.msra.mxu0 0.0
        %980 = vmatprep.subr.mxu0 0.0
        %981 = vmatpush1.xpose.msra.mxu0 0.0
        %982 = vmatprep.subr.mxu0 0.0
        %983 = vmatpush1.xpose.msra.mxu0 0.0
        %984 = vmatprep.subr.mxu0 0.0
        %985 = vmatpush1.xpose.msra.mxu0 0.0
        %986 = vmatprep.subr.mxu0 0.0
        %987 = vmatpush1.xpose.msra.mxu0 0.0
        %988 = vmatprep.subr.mxu0 0.0
        %989 = vmatpush1.xpose.msra.mxu0 0.0
        %990 = vmatprep.subr.mxu0 0.0
        %991 = vmatpush1.xpose.msra.mxu0 0.0
        %992 = vmatprep.subr.mxu0 0.0
        %993 = vmatpush1.xpose.msra.mxu0 0.0
        %994 = vmatprep.subr.mxu0 0.0
        %995 = vmatpush1.xpose.msra.mxu0 0.0
        %996 = vmatprep.subr.mxu0 0.0
        %997 = vmatpush1.xpose.msra.mxu0 0.0
        %998 = vmatprep.subr.mxu0 0.0
        %999 = vmatpush1.xpose.msra.mxu0 0.0
        %1000 = vmatprep.subr.mxu0 0.0
        %1001 = vmatpush1.xpose.msra.mxu0 0.0
        %1002 = vmatprep.subr.mxu0 0.0
        %1003 = vmatpush1.xpose.msra.mxu0 0.0
        %1004 = vmatprep.subr.mxu0 0.0
        %1005 = vmatpush1.xpose.msra.mxu0 0.0
        %1006 = vmatprep.subr.mxu0 0.0
        %1007 = vmatpush1.xpose.msra.mxu0 %v691
        %1008 = vmatprep.subr.mxu0 0.0
        %1009 = vmatpush2.xpose.msra.mxu0 0.0
        %1010 = vmatprep.subr.mxu0 0.0
        %1011 = vmatpush2.xpose.msra.mxu0 0.0
        %1012 = vmatprep.subr.mxu0 0.0
        %1013 = vmatpush2.xpose.msra.mxu0 0.0
        %1014 = vmatprep.subr.mxu0 0.0
        %1015 = vmatpush2.xpose.msra.mxu0 0.0
        %1016 = vmatprep.subr.mxu0 0.0
        %1017 = vmatpush2.xpose.msra.mxu0 0.0
        %1018 = vmatprep.subr.mxu0 0.0
        %1019 = vmatpush2.xpose.msra.mxu0 0.0
        %1020 = vmatprep.subr.mxu0 0.0
        %1021 = vmatpush2.xpose.msra.mxu0 0.0
        %1022 = vmatprep.subr.mxu0 0.0
        %1023 = vmatpush2.xpose.msra.mxu0 0.0
        %1024 = vmatprep.subr.mxu0 0.0
        %1025 = vmatpush2.xpose.msra.mxu0 0.0
        %1026 = vmatprep.subr.mxu0 0.0
        %1027 = vmatpush2.xpose.msra.mxu0 0.0
        %1028 = vmatprep.subr.mxu0 0.0
        %1029 = vmatpush2.xpose.msra.mxu0 0.0
        %1030 = vmatprep.subr.mxu0 0.0
        %1031 = vmatpush2.xpose.msra.mxu0 0.0
        %1032 = vmatprep.subr.mxu0 0.0
        %1033 = vmatpush2.xpose.msra.mxu0 0.0
        %1034 = vmatprep.subr.mxu0 0.0
        %1035 = vmatpush2.xpose.msra.mxu0 0.0
        %1036 = vmatprep.subr.mxu0 0.0
        %1037 = vmatpush2.xpose.msra.mxu0 0.0
        %1038 = vmatprep.subr.mxu0 0.0
        %1039 = vmatpush2.xpose.msra.mxu0 0.0
        %1040 = vmatprep.mubr.f32.mxu0 0.0
        %1041 = vmatmul.mubr.f32.gmra.mxu0 %v764
        %v1042 = vpop.f32.mrf.mxu0
        %v1043 = vadd.f32 0.0, %v1042
        %v1044 = vpop.f32.mrf.mxu0
        %1045 = vdwg.mxu0
        %v1047 = vsel %vm467, %v445, 0
        %1049 = vmatprep.subr.mxu0 0.0
        %1050 = vmatpush1.xpose.msra.mxu0 0.0
        %1051 = vmatprep.subr.mxu0 0.0
        %1052 = vmatpush1.xpose.msra.mxu0 0.0
        %1053 = vmatprep.subr.mxu0 0.0
        %1054 = vmatpush1.xpose.msra.mxu0 0.0
        %1055 = vmatprep.subr.mxu0 0.0
        %1056 = vmatpush1.xpose.msra.mxu0 0.0
        %1057 = vmatprep.subr.mxu0 0.0
        %1058 = vmatpush1.xpose.msra.mxu0 0.0
        %1059 = vmatprep.subr.mxu0 0.0
        %1060 = vmatpush1.xpose.msra.mxu0 0.0
        %1061 = vmatprep.subr.mxu0 0.0
        %1062 = vmatpush1.xpose.msra.mxu0 0.0
        %1063 = vmatprep.subr.mxu0 0.0
        %1064 = vmatpush1.xpose.msra.mxu0 0.0
        %1065 = vmatprep.subr.mxu0 0.0
        %1066 = vmatpush1.xpose.msra.mxu0 0.0
        %1067 = vmatprep.subr.mxu0 0.0
        %1068 = vmatpush1.xpose.msra.mxu0 0.0
        %1069 = vmatprep.subr.mxu0 0.0
        %1070 = vmatpush1.xpose.msra.mxu0 0.0
        %1071 = vmatprep.subr.mxu0 0.0
        %1072 = vmatpush1.xpose.msra.mxu0 0.0
        %1073 = vmatprep.subr.mxu0 0.0
        %1074 = vmatpush1.xpose.msra.mxu0 0.0
        %1075 = vmatprep.subr.mxu0 0.0
        %1076 = vmatpush1.xpose.msra.mxu0 0.0
        %1077 = vmatprep.subr.mxu0 0.0
        %1078 = vmatpush1.xpose.msra.mxu0 0.0
        %1079 = vmatprep.subr.mxu0 0.0
        %1080 = vmatpush1.xpose.msra.mxu0 %v472
        %1081 = vmatprep.subr.mxu0 0.0
        %1082 = vmatpush2.xpose.msra.mxu0 0.0
        %1083 = vmatprep.subr.mxu0 0.0
        %1084 = vmatpush2.xpose.msra.mxu0 0.0
        %1085 = vmatprep.subr.mxu0 0.0
        %1086 = vmatpush2.xpose.msra.mxu0 0.0
        %1087 = vmatprep.subr.mxu0 0.0
        %1088 = vmatpush2.xpose.msra.mxu0 0.0
        %1089 = vmatprep.subr.mxu0 0.0
        %1090 = vmatpush2.xpose.msra.mxu0 0.0
        %1091 = vmatprep.subr.mxu0 0.0
        %1092 = vmatpush2.xpose.msra.mxu0 0.0
        %1093 = vmatprep.subr.mxu0 0.0
        %1094 = vmatpush2.xpose.msra.mxu0 0.0
        %1095 = vmatprep.subr.mxu0 0.0
        %1096 = vmatpush2.xpose.msra.mxu0 0.0
        %1097 = vmatprep.subr.mxu0 0.0
        %1098 = vmatpush2.xpose.msra.mxu0 0.0
        %1099 = vmatprep.subr.mxu0 0.0
        %1100 = vmatpush2.xpose.msra.mxu0 0.0
        %1101 = vmatprep.subr.mxu0 0.0
        %1102 = vmatpush2.xpose.msra.mxu0 0.0
        %1103 = vmatprep.subr.mxu0 0.0
        %1104 = vmatpush2.xpose.msra.mxu0 0.0
        %1105 = vmatprep.subr.mxu0 0.0
        %1106 = vmatpush2.xpose.msra.mxu0 0.0
        %1107 = vmatprep.subr.mxu0 0.0
        %1108 = vmatpush2.xpose.msra.mxu0 0.0
        %1109 = vmatprep.subr.mxu0 0.0
        %1110 = vmatpush2.xpose.msra.mxu0 0.0
        %1111 = vmatprep.subr.mxu0 0.0
        %1112 = vmatpush2.xpose.msra.mxu0 0.0
        %1113 = vmatprep.mubr.f32.mxu0 0.0
        %1114 = vmatmul.mubr.f32.gmra.mxu0 %v1047
        %v1115 = vpop.f32.mrf.mxu0
        %v1116 = vadd.f32 0.0, %v1115
        %v1117 = vpop.f32.mrf.mxu0
        %1118 = vdwg.mxu0
        %1119 = vmatprep.subr.mxu0 0.0
        %1120 = vmatpush1.xpose.msra.mxu0 0.0
        %1121 = vmatprep.subr.mxu0 0.0
        %1122 = vmatpush1.xpose.msra.mxu0 0.0
        %1123 = vmatprep.subr.mxu0 0.0
        %1124 = vmatpush1.xpose.msra.mxu0 0.0
        %1125 = vmatprep.subr.mxu0 0.0
        %1126 = vmatpush1.xpose.msra.mxu0 0.0
        %1127 = vmatprep.subr.mxu0 0.0
        %1128 = vmatpush1.xpose.msra.mxu0 0.0
        %1129 = vmatprep.subr.mxu0 0.0
        %1130 = vmatpush1.xpose.msra.mxu0 0.0
        %1131 = vmatprep.subr.mxu0 0.0
        %1132 = vmatpush1.xpose.msra.mxu0 0.0
        %1133 = vmatprep.subr.mxu0 0.0
        %1134 = vmatpush1.xpose.msra.mxu0 0.0
        %1135 = vmatprep.subr.mxu0 0.0
        %1136 = vmatpush1.xpose.msra.mxu0 0.0
        %1137 = vmatprep.subr.mxu0 0.0
        %1138 = vmatpush1.xpose.msra.mxu0 0.0
        %1139 = vmatprep.subr.mxu0 0.0
        %1140 = vmatpush1.xpose.msra.mxu0 0.0
        %1141 = vmatprep.subr.mxu0 0.0
        %1142 = vmatpush1.xpose.msra.mxu0 0.0
        %1143 = vmatprep.subr.mxu0 0.0
        %1144 = vmatpush1.xpose.msra.mxu0 0.0
        %1145 = vmatprep.subr.mxu0 0.0
        %1146 = vmatpush1.xpose.msra.mxu0 0.0
        %1147 = vmatprep.subr.mxu0 0.0
        %1148 = vmatpush1.xpose.msra.mxu0 0.0
        %1149 = vmatprep.subr.mxu0 0.0
        %1150 = vmatpush1.xpose.msra.mxu0 %v545
        %1151 = vmatprep.subr.mxu0 0.0
        %1152 = vmatpush2.xpose.msra.mxu0 0.0
        %1153 = vmatprep.subr.mxu0 0.0
        %1154 = vmatpush2.xpose.msra.mxu0 0.0
        %1155 = vmatprep.subr.mxu0 0.0
        %1156 = vmatpush2.xpose.msra.mxu0 0.0
        %1157 = vmatprep.subr.mxu0 0.0
        %1158 = vmatpush2.xpose.msra.mxu0 0.0
        %1159 = vmatprep.subr.mxu0 0.0
        %1160 = vmatpush2.xpose.msra.mxu0 0.0
        %1161 = vmatprep.subr.mxu0 0.0
        %1162 = vmatpush2.xpose.msra.mxu0 0.0
        %1163 = vmatprep.subr.mxu0 0.0
        %1164 = vmatpush2.xpose.msra.mxu0 0.0
        %1165 = vmatprep.subr.mxu0 0.0
        %1166 = vmatpush2.xpose.msra.mxu0 0.0
        %1167 = vmatprep.subr.mxu0 0.0
        %1168 = vmatpush2.xpose.msra.mxu0 0.0
        %1169 = vmatprep.subr.mxu0 0.0
        %1170 = vmatpush2.xpose.msra.mxu0 0.0
        %1171 = vmatprep.subr.mxu0 0.0
        %1172 = vmatpush2.xpose.msra.mxu0 0.0
        %1173 = vmatprep.subr.mxu0 0.0
        %1174 = vmatpush2.xpose.msra.mxu0 0.0
        %1175 = vmatprep.subr.mxu0 0.0
        %1176 = vmatpush2.xpose.msra.mxu0 0.0
        %1177 = vmatprep.subr.mxu0 0.0
        %1178 = vmatpush2.xpose.msra.mxu0 0.0
        %1179 = vmatprep.subr.mxu0 0.0
        %1180 = vmatpush2.xpose.msra.mxu0 0.0
        %1181 = vmatprep.subr.mxu0 0.0
        %1182 = vmatpush2.xpose.msra.mxu0 0.0
        %1183 = vmatprep.mubr.f32.mxu0 0.0
        %1184 = vmatmul.mubr.f32.gmra.mxu0 %v1047
        %v1185 = vpop.f32.mrf.mxu0
        %v1186 = vadd.f32 0.0, %v1185
        %v1187 = vpop.f32.mrf.mxu0
        %1188 = vdwg.mxu0
        %1189 = vmatprep.subr.mxu0 0.0
        %1190 = vmatpush1.xpose.msra.mxu0 0.0
        %1191 = vmatprep.subr.mxu0 0.0
        %1192 = vmatpush1.xpose.msra.mxu0 0.0
        %1193 = vmatprep.subr.mxu0 0.0
        %1194 = vmatpush1.xpose.msra.mxu0 0.0
        %1195 = vmatprep.subr.mxu0 0.0
        %1196 = vmatpush1.xpose.msra.mxu0 0.0
        %1197 = vmatprep.subr.mxu0 0.0
        %1198 = vmatpush1.xpose.msra.mxu0 0.0
        %1199 = vmatprep.subr.mxu0 0.0
        %1200 = vmatpush1.xpose.msra.mxu0 0.0
        %1201 = vmatprep.subr.mxu0 0.0
        %1202 = vmatpush1.xpose.msra.mxu0 0.0
        %1203 = vmatprep.subr.mxu0 0.0
        %1204 = vmatpush1.xpose.msra.mxu0 0.0
        %1205 = vmatprep.subr.mxu0 0.0
        %1206 = vmatpush1.xpose.msra.mxu0 0.0
        %1207 = vmatprep.subr.mxu0 0.0
        %1208 = vmatpush1.xpose.msra.mxu0 0.0
        %1209 = vmatprep.subr.mxu0 0.0
        %1210 = vmatpush1.xpose.msra.mxu0 0.0
        %1211 = vmatprep.subr.mxu0 0.0
        %1212 = vmatpush1.xpose.msra.mxu0 0.0
        %1213 = vmatprep.subr.mxu0 0.0
        %1214 = vmatpush1.xpose.msra.mxu0 0.0
        %1215 = vmatprep.subr.mxu0 0.0
        %1216 = vmatpush1.xpose.msra.mxu0 0.0
        %1217 = vmatprep.subr.mxu0 0.0
        %1218 = vmatpush1.xpose.msra.mxu0 0.0
        %1219 = vmatprep.subr.mxu0 0.0
        %1220 = vmatpush1.xpose.msra.mxu0 %v618
        %1221 = vmatprep.subr.mxu0 0.0
        %1222 = vmatpush2.xpose.msra.mxu0 0.0
        %1223 = vmatprep.subr.mxu0 0.0
        %1224 = vmatpush2.xpose.msra.mxu0 0.0
        %1225 = vmatprep.subr.mxu0 0.0
        %1226 = vmatpush2.xpose.msra.mxu0 0.0
        %1227 = vmatprep.subr.mxu0 0.0
        %1228 = vmatpush2.xpose.msra.mxu0 0.0
        %1229 = vmatprep.subr.mxu0 0.0
        %1230 = vmatpush2.xpose.msra.mxu0 0.0
        %1231 = vmatprep.subr.mxu0 0.0
        %1232 = vmatpush2.xpose.msra.mxu0 0.0
        %1233 = vmatprep.subr.mxu0 0.0
        %1234 = vmatpush2.xpose.msra.mxu0 0.0
        %1235 = vmatprep.subr.mxu0 0.0
        %1236 = vmatpush2.xpose.msra.mxu0 0.0
        %1237 = vmatprep.subr.mxu0 0.0
        %1238 = vmatpush2.xpose.msra.mxu0 0.0
        %1239 = vmatprep.subr.mxu0 0.0
        %1240 = vmatpush2.xpose.msra.mxu0 0.0
        %1241 = vmatprep.subr.mxu0 0.0
        %1242 = vmatpush2.xpose.msra.mxu0 0.0
        %1243 = vmatprep.subr.mxu0 0.0
        %1244 = vmatpush2.xpose.msra.mxu0 0.0
        %1245 = vmatprep.subr.mxu0 0.0
        %1246 = vmatpush2.xpose.msra.mxu0 0.0
        %1247 = vmatprep.subr.mxu0 0.0
        %1248 = vmatpush2.xpose.msra.mxu0 0.0
        %1249 = vmatprep.subr.mxu0 0.0
        %1250 = vmatpush2.xpose.msra.mxu0 0.0
        %1251 = vmatprep.subr.mxu0 0.0
        %1252 = vmatpush2.xpose.msra.mxu0 0.0
        %1253 = vmatprep.mubr.f32.mxu0 0.0
        %1254 = vmatmul.mubr.f32.gmra.mxu0 %v1047
        %v1255 = vpop.f32.mrf.mxu0
        %v1256 = vadd.f32 0.0, %v1255
        %v1257 = vpop.f32.mrf.mxu0
        %1258 = vdwg.mxu0
        %1259 = vmatprep.subr.mxu0 0.0
        %1260 = vmatpush1.xpose.msra.mxu0 0.0
        %1261 = vmatprep.subr.mxu0 0.0
        %1262 = vmatpush1.xpose.msra.mxu0 0.0
        %1263 = vmatprep.subr.mxu0 0.0
        %1264 = vmatpush1.xpose.msra.mxu0 0.0
        %1265 = vmatprep.subr.mxu0 0.0
        %1266 = vmatpush1.xpose.msra.mxu0 0.0
        %1267 = vmatprep.subr.mxu0 0.0
        %1268 = vmatpush1.xpose.msra.mxu0 0.0
        %1269 = vmatprep.subr.mxu0 0.0
        %1270 = vmatpush1.xpose.msra.mxu0 0.0
        %1271 = vmatprep.subr.mxu0 0.0
        %1272 = vmatpush1.xpose.msra.mxu0 0.0
        %1273 = vmatprep.subr.mxu0 0.0
        %1274 = vmatpush1.xpose.msra.mxu0 0.0
        %1275 = vmatprep.subr.mxu0 0.0
        %1276 = vmatpush1.xpose.msra.mxu0 0.0
        %1277 = vmatprep.subr.mxu0 0.0
        %1278 = vmatpush1.xpose.msra.mxu0 0.0
        %1279 = vmatprep.subr.mxu0 0.0
        %1280 = vmatpush1.xpose.msra.mxu0 0.0
        %1281 = vmatprep.subr.mxu0 0.0
        %1282 = vmatpush1.xpose.msra.mxu0 0.0
        %1283 = vmatprep.subr.mxu0 0.0
        %1284 = vmatpush1.xpose.msra.mxu0 0.0
        %1285 = vmatprep.subr.mxu0 0.0
        %1286 = vmatpush1.xpose.msra.mxu0 0.0
        %1287 = vmatprep.subr.mxu0 0.0
        %1288 = vmatpush1.xpose.msra.mxu0 0.0
        %1289 = vmatprep.subr.mxu0 0.0
        %1290 = vmatpush1.xpose.msra.mxu0 %v691
        %1291 = vmatprep.subr.mxu0 0.0
        %1292 = vmatpush2.xpose.msra.mxu0 0.0
        %1293 = vmatprep.subr.mxu0 0.0
        %1294 = vmatpush2.xpose.msra.mxu0 0.0
        %1295 = vmatprep.subr.mxu0 0.0
        %1296 = vmatpush2.xpose.msra.mxu0 0.0
        %1297 = vmatprep.subr.mxu0 0.0
        %1298 = vmatpush2.xpose.msra.mxu0 0.0
        %1299 = vmatprep.subr.mxu0 0.0
        %1300 = vmatpush2.xpose.msra.mxu0 0.0
        %1301 = vmatprep.subr.mxu0 0.0
        %1302 = vmatpush2.xpose.msra.mxu0 0.0
        %1303 = vmatprep.subr.mxu0 0.0
        %1304 = vmatpush2.xpose.msra.mxu0 0.0
        %1305 = vmatprep.subr.mxu0 0.0
        %1306 = vmatpush2.xpose.msra.mxu0 0.0
        %1307 = vmatprep.subr.mxu0 0.0
        %1308 = vmatpush2.xpose.msra.mxu0 0.0
        %1309 = vmatprep.subr.mxu0 0.0
        %1310 = vmatpush2.xpose.msra.mxu0 0.0
        %1311 = vmatprep.subr.mxu0 0.0
        %1312 = vmatpush2.xpose.msra.mxu0 0.0
        %1313 = vmatprep.subr.mxu0 0.0
        %1314 = vmatpush2.xpose.msra.mxu0 0.0
        %1315 = vmatprep.subr.mxu0 0.0
        %1316 = vmatpush2.xpose.msra.mxu0 0.0
        %1317 = vmatprep.subr.mxu0 0.0
        %1318 = vmatpush2.xpose.msra.mxu0 0.0
        %1319 = vmatprep.subr.mxu0 0.0
        %1320 = vmatpush2.xpose.msra.mxu0 0.0
        %1321 = vmatprep.subr.mxu0 0.0
        %1322 = vmatpush2.xpose.msra.mxu0 0.0
        %1323 = vmatprep.mubr.f32.mxu0 0.0
        %1324 = vmatmul.mubr.f32.gmra.mxu0 %v1047
        %v1325 = vpop.f32.mrf.mxu0
        %v1326 = vadd.f32 0.0, %v1325
        %v1327 = vpop.f32.mrf.mxu0
        %1328 = vdwg.mxu0
        %v1330 = vsel %vm467, %v446, 0
        %1332 = vmatprep.subr.mxu0 0.0
        %1333 = vmatpush1.xpose.msra.mxu0 0.0
        %1334 = vmatprep.subr.mxu0 0.0
        %1335 = vmatpush1.xpose.msra.mxu0 0.0
        %1336 = vmatprep.subr.mxu0 0.0
        %1337 = vmatpush1.xpose.msra.mxu0 0.0
        %1338 = vmatprep.subr.mxu0 0.0
        %1339 = vmatpush1.xpose.msra.mxu0 0.0
        %1340 = vmatprep.subr.mxu0 0.0
        %1341 = vmatpush1.xpose.msra.mxu0 0.0
        %1342 = vmatprep.subr.mxu0 0.0
        %1343 = vmatpush1.xpose.msra.mxu0 0.0
        %1344 = vmatprep.subr.mxu0 0.0
        %1345 = vmatpush1.xpose.msra.mxu0 0.0
        %1346 = vmatprep.subr.mxu0 0.0
        %1347 = vmatpush1.xpose.msra.mxu0 0.0
        %1348 = vmatprep.subr.mxu0 0.0
        %1349 = vmatpush1.xpose.msra.mxu0 0.0
        %1350 = vmatprep.subr.mxu0 0.0
        %1351 = vmatpush1.xpose.msra.mxu0 0.0
        %1352 = vmatprep.subr.mxu0 0.0
        %1353 = vmatpush1.xpose.msra.mxu0 0.0
        %1354 = vmatprep.subr.mxu0 0.0
        %1355 = vmatpush1.xpose.msra.mxu0 0.0
        %1356 = vmatprep.subr.mxu0 0.0
        %1357 = vmatpush1.xpose.msra.mxu0 0.0
        %1358 = vmatprep.subr.mxu0 0.0
        %1359 = vmatpush1.xpose.msra.mxu0 0.0
        %1360 = vmatprep.subr.mxu0 0.0
        %1361 = vmatpush1.xpose.msra.mxu0 0.0
        %1362 = vmatprep.subr.mxu0 0.0
        %1363 = vmatpush1.xpose.msra.mxu0 %v472
        %1364 = vmatprep.subr.mxu0 0.0
        %1365 = vmatpush2.xpose.msra.mxu0 0.0
        %1366 = vmatprep.subr.mxu0 0.0
        %1367 = vmatpush2.xpose.msra.mxu0 0.0
        %1368 = vmatprep.subr.mxu0 0.0
        %1369 = vmatpush2.xpose.msra.mxu0 0.0
        %1370 = vmatprep.subr.mxu0 0.0
        %1371 = vmatpush2.xpose.msra.mxu0 0.0
        %1372 = vmatprep.subr.mxu0 0.0
        %1373 = vmatpush2.xpose.msra.mxu0 0.0
        %1374 = vmatprep.subr.mxu0 0.0
        %1375 = vmatpush2.xpose.msra.mxu0 0.0
        %1376 = vmatprep.subr.mxu0 0.0
        %1377 = vmatpush2.xpose.msra.mxu0 0.0
        %1378 = vmatprep.subr.mxu0 0.0
        %1379 = vmatpush2.xpose.msra.mxu0 0.0
        %1380 = vmatprep.subr.mxu0 0.0
        %1381 = vmatpush2.xpose.msra.mxu0 0.0
        %1382 = vmatprep.subr.mxu0 0.0
        %1383 = vmatpush2.xpose.msra.mxu0 0.0
        %1384 = vmatprep.subr.mxu0 0.0
        %1385 = vmatpush2.xpose.msra.mxu0 0.0
        %1386 = vmatprep.subr.mxu0 0.0
        %1387 = vmatpush2.xpose.msra.mxu0 0.0
        %1388 = vmatprep.subr.mxu0 0.0
        %1389 = vmatpush2.xpose.msra.mxu0 0.0
        %1390 = vmatprep.subr.mxu0 0.0
        %1391 = vmatpush2.xpose.msra.mxu0 0.0
        %1392 = vmatprep.subr.mxu0 0.0
        %1393 = vmatpush2.xpose.msra.mxu0 0.0
        %1394 = vmatprep.subr.mxu0 0.0
        %1395 = vmatpush2.xpose.msra.mxu0 0.0
        %1396 = vmatprep.mubr.f32.mxu0 0.0
        %1397 = vmatmul.mubr.f32.gmra.mxu0 %v1330
        %v1398 = vpop.f32.mrf.mxu0
        %v1399 = vadd.f32 0.0, %v1398
        %v1400 = vpop.f32.mrf.mxu0
        %1401 = vdwg.mxu0
        %1402 = vmatprep.subr.mxu0 0.0
        %1403 = vmatpush1.xpose.msra.mxu0 0.0
        %1404 = vmatprep.subr.mxu0 0.0
        %1405 = vmatpush1.xpose.msra.mxu0 0.0
        %1406 = vmatprep.subr.mxu0 0.0
        %1407 = vmatpush1.xpose.msra.mxu0 0.0
        %1408 = vmatprep.subr.mxu0 0.0
        %1409 = vmatpush1.xpose.msra.mxu0 0.0
        %1410 = vmatprep.subr.mxu0 0.0
        %1411 = vmatpush1.xpose.msra.mxu0 0.0
        %1412 = vmatprep.subr.mxu0 0.0
        %1413 = vmatpush1.xpose.msra.mxu0 0.0
        %1414 = vmatprep.subr.mxu0 0.0
        %1415 = vmatpush1.xpose.msra.mxu0 0.0
        %1416 = vmatprep.subr.mxu0 0.0
        %1417 = vmatpush1.xpose.msra.mxu0 0.0
        %1418 = vmatprep.subr.mxu0 0.0
        %1419 = vmatpush1.xpose.msra.mxu0 0.0
        %1420 = vmatprep.subr.mxu0 0.0
        %1421 = vmatpush1.xpose.msra.mxu0 0.0
        %1422 = vmatprep.subr.mxu0 0.0
        %1423 = vmatpush1.xpose.msra.mxu0 0.0
        %1424 = vmatprep.subr.mxu0 0.0
        %1425 = vmatpush1.xpose.msra.mxu0 0.0
        %1426 = vmatprep.subr.mxu0 0.0
        %1427 = vmatpush1.xpose.msra.mxu0 0.0
        %1428 = vmatprep.subr.mxu0 0.0
        %1429 = vmatpush1.xpose.msra.mxu0 0.0
        %1430 = vmatprep.subr.mxu0 0.0
        %1431 = vmatpush1.xpose.msra.mxu0 0.0
        %1432 = vmatprep.subr.mxu0 0.0
        %1433 = vmatpush1.xpose.msra.mxu0 %v545
        %1434 = vmatprep.subr.mxu0 0.0
        %1435 = vmatpush2.xpose.msra.mxu0 0.0
        %1436 = vmatprep.subr.mxu0 0.0
        %1437 = vmatpush2.xpose.msra.mxu0 0.0
        %1438 = vmatprep.subr.mxu0 0.0
        %1439 = vmatpush2.xpose.msra.mxu0 0.0
        %1440 = vmatprep.subr.mxu0 0.0
        %1441 = vmatpush2.xpose.msra.mxu0 0.0
        %1442 = vmatprep.subr.mxu0 0.0
        %1443 = vmatpush2.xpose.msra.mxu0 0.0
        %1444 = vmatprep.subr.mxu0 0.0
        %1445 = vmatpush2.xpose.msra.mxu0 0.0
        %1446 = vmatprep.subr.mxu0 0.0
        %1447 = vmatpush2.xpose.msra.mxu0 0.0
        %1448 = vmatprep.subr.mxu0 0.0
        %1449 = vmatpush2.xpose.msra.mxu0 0.0
        %1450 = vmatprep.subr.mxu0 0.0
        %1451 = vmatpush2.xpose.msra.mxu0 0.0
        %1452 = vmatprep.subr.mxu0 0.0
        %1453 = vmatpush2.xpose.msra.mxu0 0.0
        %1454 = vmatprep.subr.mxu0 0.0
        %1455 = vmatpush2.xpose.msra.mxu0 0.0
        %1456 = vmatprep.subr.mxu0 0.0
        %1457 = vmatpush2.xpose.msra.mxu0 0.0
        %1458 = vmatprep.subr.mxu0 0.0
        %1459 = vmatpush2.xpose.msra.mxu0 0.0
        %1460 = vmatprep.subr.mxu0 0.0
        %1461 = vmatpush2.xpose.msra.mxu0 0.0
        %1462 = vmatprep.subr.mxu0 0.0
        %1463 = vmatpush2.xpose.msra.mxu0 0.0
        %1464 = vmatprep.subr.mxu0 0.0
        %1465 = vmatpush2.xpose.msra.mxu0 0.0
        %1466 = vmatprep.mubr.f32.mxu0 0.0
        %1467 = vmatmul.mubr.f32.gmra.mxu0 %v1330
        %v1468 = vpop.f32.mrf.mxu0
        %v1469 = vadd.f32 0.0, %v1468
        %v1470 = vpop.f32.mrf.mxu0
        %1471 = vdwg.mxu0
        %1472 = vmatprep.subr.mxu0 0.0
        %1473 = vmatpush1.xpose.msra.mxu0 0.0
        %1474 = vmatprep.subr.mxu0 0.0
        %1475 = vmatpush1.xpose.msra.mxu0 0.0
        %1476 = vmatprep.subr.mxu0 0.0
        %1477 = vmatpush1.xpose.msra.mxu0 0.0
        %1478 = vmatprep.subr.mxu0 0.0
        %1479 = vmatpush1.xpose.msra.mxu0 0.0
        %1480 = vmatprep.subr.mxu0 0.0
        %1481 = vmatpush1.xpose.msra.mxu0 0.0
        %1482 = vmatprep.subr.mxu0 0.0
        %1483 = vmatpush1.xpose.msra.mxu0 0.0
        %1484 = vmatprep.subr.mxu0 0.0
        %1485 = vmatpush1.xpose.msra.mxu0 0.0
        %1486 = vmatprep.subr.mxu0 0.0
        %1487 = vmatpush1.xpose.msra.mxu0 0.0
        %1488 = vmatprep.subr.mxu0 0.0
        %1489 = vmatpush1.xpose.msra.mxu0 0.0
        %1490 = vmatprep.subr.mxu0 0.0
        %1491 = vmatpush1.xpose.msra.mxu0 0.0
        %1492 = vmatprep.subr.mxu0 0.0
        %1493 = vmatpush1.xpose.msra.mxu0 0.0
        %1494 = vmatprep.subr.mxu0 0.0
        %1495 = vmatpush1.xpose.msra.mxu0 0.0
        %1496 = vmatprep.subr.mxu0 0.0
        %1497 = vmatpush1.xpose.msra.mxu0 0.0
        %1498 = vmatprep.subr.mxu0 0.0
        %1499 = vmatpush1.xpose.msra.mxu0 0.0
        %1500 = vmatprep.subr.mxu0 0.0
        %1501 = vmatpush1.xpose.msra.mxu0 0.0
        %1502 = vmatprep.subr.mxu0 0.0
        %1503 = vmatpush1.xpose.msra.mxu0 %v618
        %1504 = vmatprep.subr.mxu0 0.0
        %1505 = vmatpush2.xpose.msra.mxu0 0.0
        %1506 = vmatprep.subr.mxu0 0.0
        %1507 = vmatpush2.xpose.msra.mxu0 0.0
        %1508 = vmatprep.subr.mxu0 0.0
        %1509 = vmatpush2.xpose.msra.mxu0 0.0
        %1510 = vmatprep.subr.mxu0 0.0
        %1511 = vmatpush2.xpose.msra.mxu0 0.0
        %1512 = vmatprep.subr.mxu0 0.0
        %1513 = vmatpush2.xpose.msra.mxu0 0.0
        %1514 = vmatprep.subr.mxu0 0.0
        %1515 = vmatpush2.xpose.msra.mxu0 0.0
        %1516 = vmatprep.subr.mxu0 0.0
        %1517 = vmatpush2.xpose.msra.mxu0 0.0
        %1518 = vmatprep.subr.mxu0 0.0
        %1519 = vmatpush2.xpose.msra.mxu0 0.0
        %1520 = vmatprep.subr.mxu0 0.0
        %1521 = vmatpush2.xpose.msra.mxu0 0.0
        %1522 = vmatprep.subr.mxu0 0.0
        %1523 = vmatpush2.xpose.msra.mxu0 0.0
        %1524 = vmatprep.subr.mxu0 0.0
        %1525 = vmatpush2.xpose.msra.mxu0 0.0
        %1526 = vmatprep.subr.mxu0 0.0
        %1527 = vmatpush2.xpose.msra.mxu0 0.0
        %1528 = vmatprep.subr.mxu0 0.0
        %1529 = vmatpush2.xpose.msra.mxu0 0.0
        %1530 = vmatprep.subr.mxu0 0.0
        %1531 = vmatpush2.xpose.msra.mxu0 0.0
        %1532 = vmatprep.subr.mxu0 0.0
        %1533 = vmatpush2.xpose.msra.mxu0 0.0
        %1534 = vmatprep.subr.mxu0 0.0
        %1535 = vmatpush2.xpose.msra.mxu0 0.0
        %1536 = vmatprep.mubr.f32.mxu0 0.0
        %1537 = vmatmul.mubr.f32.gmra.mxu0 %v1330
        %v1538 = vpop.f32.mrf.mxu0
        %v1539 = vadd.f32 0.0, %v1538
        %v1540 = vpop.f32.mrf.mxu0
        %1541 = vdwg.mxu0
        %1542 = vmatprep.subr.mxu0 0.0
        %1543 = vmatpush1.xpose.msra.mxu0 0.0
        %1544 = vmatprep.subr.mxu0 0.0
        %1545 = vmatpush1.xpose.msra.mxu0 0.0
        %1546 = vmatprep.subr.mxu0 0.0
        %1547 = vmatpush1.xpose.msra.mxu0 0.0
        %1548 = vmatprep.subr.mxu0 0.0
        %1549 = vmatpush1.xpose.msra.mxu0 0.0
        %1550 = vmatprep.subr.mxu0 0.0
        %1551 = vmatpush1.xpose.msra.mxu0 0.0
        %1552 = vmatprep.subr.mxu0 0.0
        %1553 = vmatpush1.xpose.msra.mxu0 0.0
        %1554 = vmatprep.subr.mxu0 0.0
        %1555 = vmatpush1.xpose.msra.mxu0 0.0
        %1556 = vmatprep.subr.mxu0 0.0
        %1557 = vmatpush1.xpose.msra.mxu0 0.0
        %1558 = vmatprep.subr.mxu0 0.0
        %1559 = vmatpush1.xpose.msra.mxu0 0.0
        %1560 = vmatprep.subr.mxu0 0.0
        %1561 = vmatpush1.xpose.msra.mxu0 0.0
        %1562 = vmatprep.subr.mxu0 0.0
        %1563 = vmatpush1.xpose.msra.mxu0 0.0
        %1564 = vmatprep.subr.mxu0 0.0
        %1565 = vmatpush1.xpose.msra.mxu0 0.0
        %1566 = vmatprep.subr.mxu0 0.0
        %1567 = vmatpush1.xpose.msra.mxu0 0.0
        %1568 = vmatprep.subr.mxu0 0.0
        %1569 = vmatpush1.xpose.msra.mxu0 0.0
        %1570 = vmatprep.subr.mxu0 0.0
        %1571 = vmatpush1.xpose.msra.mxu0 0.0
        %1572 = vmatprep.subr.mxu0 0.0
        %1573 = vmatpush1.xpose.msra.mxu0 %v691
        %1574 = vmatprep.subr.mxu0 0.0
        %1575 = vmatpush2.xpose.msra.mxu0 0.0
        %1576 = vmatprep.subr.mxu0 0.0
        %1577 = vmatpush2.xpose.msra.mxu0 0.0
        %1578 = vmatprep.subr.mxu0 0.0
        %1579 = vmatpush2.xpose.msra.mxu0 0.0
        %1580 = vmatprep.subr.mxu0 0.0
        %1581 = vmatpush2.xpose.msra.mxu0 0.0
        %1582 = vmatprep.subr.mxu0 0.0
        %1583 = vmatpush2.xpose.msra.mxu0 0.0
        %1584 = vmatprep.subr.mxu0 0.0
        %1585 = vmatpush2.xpose.msra.mxu0 0.0
        %1586 = vmatprep.subr.mxu0 0.0
        %1587 = vmatpush2.xpose.msra.mxu0 0.0
        %1588 = vmatprep.subr.mxu0 0.0
        %1589 = vmatpush2.xpose.msra.mxu0 0.0
        %1590 = vmatprep.subr.mxu0 0.0
        %1591 = vmatpush2.xpose.msra.mxu0 0.0
        %1592 = vmatprep.subr.mxu0 0.0
        %1593 = vmatpush2.xpose.msra.mxu0 0.0
        %1594 = vmatprep.subr.mxu0 0.0
        %1595 = vmatpush2.xpose.msra.mxu0 0.0
        %1596 = vmatprep.subr.mxu0 0.0
        %1597 = vmatpush2.xpose.msra.mxu0 0.0
        %1598 = vmatprep.subr.mxu0 0.0
        %1599 = vmatpush2.xpose.msra.mxu0 0.0
        %1600 = vmatprep.subr.mxu0 0.0
        %1601 = vmatpush2.xpose.msra.mxu0 0.0
        %1602 = vmatprep.subr.mxu0 0.0
        %1603 = vmatpush2.xpose.msra.mxu0 0.0
        %1604 = vmatprep.subr.mxu0 0.0
        %1605 = vmatpush2.xpose.msra.mxu0 0.0
        %1606 = vmatprep.mubr.f32.mxu0 0.0
        %1607 = vmatmul.mubr.f32.gmra.mxu0 %v1330
        %v1608 = vpop.f32.mrf.mxu0
        %v1609 = vadd.f32 0.0, %v1608
        %v1610 = vpop.f32.mrf.mxu0
        %1611 = vdwg.mxu0
        %v1613 = vsel %vm467, %v451, 0
        %1615 = vmatprep.subr.mxu0 0.0
        %1616 = vmatpush1.xpose.msra.mxu0 0.0
        %1617 = vmatprep.subr.mxu0 0.0
        %1618 = vmatpush1.xpose.msra.mxu0 0.0
        %1619 = vmatprep.subr.mxu0 0.0
        %1620 = vmatpush1.xpose.msra.mxu0 0.0
        %1621 = vmatprep.subr.mxu0 0.0
        %1622 = vmatpush1.xpose.msra.mxu0 0.0
        %1623 = vmatprep.subr.mxu0 0.0
        %1624 = vmatpush1.xpose.msra.mxu0 0.0
        %1625 = vmatprep.subr.mxu0 0.0
        %1626 = vmatpush1.xpose.msra.mxu0 0.0
        %1627 = vmatprep.subr.mxu0 0.0
        %1628 = vmatpush1.xpose.msra.mxu0 0.0
        %1629 = vmatprep.subr.mxu0 0.0
        %1630 = vmatpush1.xpose.msra.mxu0 0.0
        %1631 = vmatprep.subr.mxu0 0.0
        %1632 = vmatpush1.xpose.msra.mxu0 0.0
        %1633 = vmatprep.subr.mxu0 0.0
        %1634 = vmatpush1.xpose.msra.mxu0 0.0
        %1635 = vmatprep.subr.mxu0 0.0
        %1636 = vmatpush1.xpose.msra.mxu0 0.0
        %1637 = vmatprep.subr.mxu0 0.0
        %1638 = vmatpush1.xpose.msra.mxu0 0.0
        %1639 = vmatprep.subr.mxu0 0.0
        %1640 = vmatpush1.xpose.msra.mxu0 0.0
        %1641 = vmatprep.subr.mxu0 0.0
        %1642 = vmatpush1.xpose.msra.mxu0 0.0
        %1643 = vmatprep.subr.mxu0 0.0
        %1644 = vmatpush1.xpose.msra.mxu0 0.0
        %1645 = vmatprep.subr.mxu0 0.0
        %1646 = vmatpush1.xpose.msra.mxu0 %v1613
        %1647 = vmatprep.subr.mxu0 0.0
        %1648 = vmatpush2.xpose.msra.mxu0 0.0
        %1649 = vmatprep.subr.mxu0 0.0
        %1650 = vmatpush2.xpose.msra.mxu0 0.0
        %1651 = vmatprep.subr.mxu0 0.0
        %1652 = vmatpush2.xpose.msra.mxu0 0.0
        %1653 = vmatprep.subr.mxu0 0.0
        %1654 = vmatpush2.xpose.msra.mxu0 0.0
        %1655 = vmatprep.subr.mxu0 0.0
        %1656 = vmatpush2.xpose.msra.mxu0 0.0
        %1657 = vmatprep.subr.mxu0 0.0
        %1658 = vmatpush2.xpose.msra.mxu0 0.0
        %1659 = vmatprep.subr.mxu0 0.0
        %1660 = vmatpush2.xpose.msra.mxu0 0.0
        %1661 = vmatprep.subr.mxu0 0.0
        %1662 = vmatpush2.xpose.msra.mxu0 0.0
        %1663 = vmatprep.subr.mxu0 0.0
        %1664 = vmatpush2.xpose.msra.mxu0 0.0
        %1665 = vmatprep.subr.mxu0 0.0
        %1666 = vmatpush2.xpose.msra.mxu0 0.0
        %1667 = vmatprep.subr.mxu0 0.0
        %1668 = vmatpush2.xpose.msra.mxu0 0.0
        %1669 = vmatprep.subr.mxu0 0.0
        %1670 = vmatpush2.xpose.msra.mxu0 0.0
        %1671 = vmatprep.subr.mxu0 0.0
        %1672 = vmatpush2.xpose.msra.mxu0 0.0
        %1673 = vmatprep.subr.mxu0 0.0
        %1674 = vmatpush2.xpose.msra.mxu0 0.0
        %1675 = vmatprep.subr.mxu0 0.0
        %1676 = vmatpush2.xpose.msra.mxu0 0.0
        %1677 = vmatprep.subr.mxu0 0.0
        %1678 = vmatpush2.xpose.msra.mxu0 0.0
        %1679 = vmatprep.mubr.f32.mxu0 0.0
        %1680 = vmatmul.mubr.f32.gmra.mxu0 %v469
        %v1681 = vpop.f32.mrf.mxu0
        %v1682 = vadd.f32 0.0, %v1681
        %v1683 = vpop.f32.mrf.mxu0
        %1684 = vdwg.mxu0
        %v1686 = vsel %vm467, %v452, 0
        %1688 = vmatprep.subr.mxu0 0.0
        %1689 = vmatpush1.xpose.msra.mxu0 0.0
        %1690 = vmatprep.subr.mxu0 0.0
        %1691 = vmatpush1.xpose.msra.mxu0 0.0
        %1692 = vmatprep.subr.mxu0 0.0
        %1693 = vmatpush1.xpose.msra.mxu0 0.0
        %1694 = vmatprep.subr.mxu0 0.0
        %1695 = vmatpush1.xpose.msra.mxu0 0.0
        %1696 = vmatprep.subr.mxu0 0.0
        %1697 = vmatpush1.xpose.msra.mxu0 0.0
        %1698 = vmatprep.subr.mxu0 0.0
        %1699 = vmatpush1.xpose.msra.mxu0 0.0
        %1700 = vmatprep.subr.mxu0 0.0
        %1701 = vmatpush1.xpose.msra.mxu0 0.0
        %1702 = vmatprep.subr.mxu0 0.0
        %1703 = vmatpush1.xpose.msra.mxu0 0.0
        %1704 = vmatprep.subr.mxu0 0.0
        %1705 = vmatpush1.xpose.msra.mxu0 0.0
        %1706 = vmatprep.subr.mxu0 0.0
        %1707 = vmatpush1.xpose.msra.mxu0 0.0
        %1708 = vmatprep.subr.mxu0 0.0
        %1709 = vmatpush1.xpose.msra.mxu0 0.0
        %1710 = vmatprep.subr.mxu0 0.0
        %1711 = vmatpush1.xpose.msra.mxu0 0.0
        %1712 = vmatprep.subr.mxu0 0.0
        %1713 = vmatpush1.xpose.msra.mxu0 0.0
        %1714 = vmatprep.subr.mxu0 0.0
        %1715 = vmatpush1.xpose.msra.mxu0 0.0
        %1716 = vmatprep.subr.mxu0 0.0
        %1717 = vmatpush1.xpose.msra.mxu0 0.0
        %1718 = vmatprep.subr.mxu0 0.0
        %1719 = vmatpush1.xpose.msra.mxu0 %v1686
        %1720 = vmatprep.subr.mxu0 0.0
        %1721 = vmatpush2.xpose.msra.mxu0 0.0
        %1722 = vmatprep.subr.mxu0 0.0
        %1723 = vmatpush2.xpose.msra.mxu0 0.0
        %1724 = vmatprep.subr.mxu0 0.0
        %1725 = vmatpush2.xpose.msra.mxu0 0.0
        %1726 = vmatprep.subr.mxu0 0.0
        %1727 = vmatpush2.xpose.msra.mxu0 0.0
        %1728 = vmatprep.subr.mxu0 0.0
        %1729 = vmatpush2.xpose.msra.mxu0 0.0
        %1730 = vmatprep.subr.mxu0 0.0
        %1731 = vmatpush2.xpose.msra.mxu0 0.0
        %1732 = vmatprep.subr.mxu0 0.0
        %1733 = vmatpush2.xpose.msra.mxu0 0.0
        %1734 = vmatprep.subr.mxu0 0.0
        %1735 = vmatpush2.xpose.msra.mxu0 0.0
        %1736 = vmatprep.subr.mxu0 0.0
        %1737 = vmatpush2.xpose.msra.mxu0 0.0
        %1738 = vmatprep.subr.mxu0 0.0
        %1739 = vmatpush2.xpose.msra.mxu0 0.0
        %1740 = vmatprep.subr.mxu0 0.0
        %1741 = vmatpush2.xpose.msra.mxu0 0.0
        %1742 = vmatprep.subr.mxu0 0.0
        %1743 = vmatpush2.xpose.msra.mxu0 0.0
        %1744 = vmatprep.subr.mxu0 0.0
        %1745 = vmatpush2.xpose.msra.mxu0 0.0
        %1746 = vmatprep.subr.mxu0 0.0
        %1747 = vmatpush2.xpose.msra.mxu0 0.0
        %1748 = vmatprep.subr.mxu0 0.0
        %1749 = vmatpush2.xpose.msra.mxu0 0.0
        %1750 = vmatprep.subr.mxu0 0.0
        %1751 = vmatpush2.xpose.msra.mxu0 0.0
        %1752 = vmatprep.mubr.f32.mxu0 0.0
        %1753 = vmatmul.mubr.f32.gmra.mxu0 %v469
        %v1754 = vpop.f32.mrf.mxu0
        %v1755 = vadd.f32 0.0, %v1754
        %v1756 = vpop.f32.mrf.mxu0
        %1757 = vdwg.mxu0
        %v1759 = vsel %vm467, %v453, 0
        %1761 = vmatprep.subr.mxu0 0.0
        %1762 = vmatpush1.xpose.msra.mxu0 0.0
        %1763 = vmatprep.subr.mxu0 0.0
        %1764 = vmatpush1.xpose.msra.mxu0 0.0
        %1765 = vmatprep.subr.mxu0 0.0
        %1766 = vmatpush1.xpose.msra.mxu0 0.0
        %1767 = vmatprep.subr.mxu0 0.0
        %1768 = vmatpush1.xpose.msra.mxu0 0.0
        %1769 = vmatprep.subr.mxu0 0.0
        %1770 = vmatpush1.xpose.msra.mxu0 0.0
        %1771 = vmatprep.subr.mxu0 0.0
        %1772 = vmatpush1.xpose.msra.mxu0 0.0
        %1773 = vmatprep.subr.mxu0 0.0
        %1774 = vmatpush1.xpose.msra.mxu0 0.0
        %1775 = vmatprep.subr.mxu0 0.0
        %1776 = vmatpush1.xpose.msra.mxu0 0.0
        %1777 = vmatprep.subr.mxu0 0.0
        %1778 = vmatpush1.xpose.msra.mxu0 0.0
        %1779 = vmatprep.subr.mxu0 0.0
        %1780 = vmatpush1.xpose.msra.mxu0 0.0
        %1781 = vmatprep.subr.mxu0 0.0
        %1782 = vmatpush1.xpose.msra.mxu0 0.0
        %1783 = vmatprep.subr.mxu0 0.0
        %1784 = vmatpush1.xpose.msra.mxu0 0.0
        %1785 = vmatprep.subr.mxu0 0.0
        %1786 = vmatpush1.xpose.msra.mxu0 0.0
        %1787 = vmatprep.subr.mxu0 0.0
        %1788 = vmatpush1.xpose.msra.mxu0 0.0
        %1789 = vmatprep.subr.mxu0 0.0
        %1790 = vmatpush1.xpose.msra.mxu0 0.0
        %1791 = vmatprep.subr.mxu0 0.0
        %1792 = vmatpush1.xpose.msra.mxu0 %v1759
        %1793 = vmatprep.subr.mxu0 0.0
        %1794 = vmatpush2.xpose.msra.mxu0 0.0
        %1795 = vmatprep.subr.mxu0 0.0
        %1796 = vmatpush2.xpose.msra.mxu0 0.0
        %1797 = vmatprep.subr.mxu0 0.0
        %1798 = vmatpush2.xpose.msra.mxu0 0.0
        %1799 = vmatprep.subr.mxu0 0.0
        %1800 = vmatpush2.xpose.msra.mxu0 0.0
        %1801 = vmatprep.subr.mxu0 0.0
        %1802 = vmatpush2.xpose.msra.mxu0 0.0
        %1803 = vmatprep.subr.mxu0 0.0
        %1804 = vmatpush2.xpose.msra.mxu0 0.0
        %1805 = vmatprep.subr.mxu0 0.0
        %1806 = vmatpush2.xpose.msra.mxu0 0.0
        %1807 = vmatprep.subr.mxu0 0.0
        %1808 = vmatpush2.xpose.msra.mxu0 0.0
        %1809 = vmatprep.subr.mxu0 0.0
        %1810 = vmatpush2.xpose.msra.mxu0 0.0
        %1811 = vmatprep.subr.mxu0 0.0
        %1812 = vmatpush2.xpose.msra.mxu0 0.0
        %1813 = vmatprep.subr.mxu0 0.0
        %1814 = vmatpush2.xpose.msra.mxu0 0.0
        %1815 = vmatprep.subr.mxu0 0.0
        %1816 = vmatpush2.xpose.msra.mxu0 0.0
        %1817 = vmatprep.subr.mxu0 0.0
        %1818 = vmatpush2.xpose.msra.mxu0 0.0
        %1819 = vmatprep.subr.mxu0 0.0
        %1820 = vmatpush2.xpose.msra.mxu0 0.0
        %1821 = vmatprep.subr.mxu0 0.0
        %1822 = vmatpush2.xpose.msra.mxu0 0.0
        %1823 = vmatprep.subr.mxu0 0.0
        %1824 = vmatpush2.xpose.msra.mxu0 0.0
        %1825 = vmatprep.mubr.f32.mxu0 0.0
        %1826 = vmatmul.mubr.f32.gmra.mxu0 %v469
        %v1827 = vpop.f32.mrf.mxu0
        %v1828 = vadd.f32 0.0, %v1827
        %v1829 = vpop.f32.mrf.mxu0
        %1830 = vdwg.mxu0
        %v1832 = vsel %vm467, %v454, 0
        %1834 = vmatprep.subr.mxu0 0.0
        %1835 = vmatpush1.xpose.msra.mxu0 0.0
        %1836 = vmatprep.subr.mxu0 0.0
        %1837 = vmatpush1.xpose.msra.mxu0 0.0
        %1838 = vmatprep.subr.mxu0 0.0
        %1839 = vmatpush1.xpose.msra.mxu0 0.0
        %1840 = vmatprep.subr.mxu0 0.0
        %1841 = vmatpush1.xpose.msra.mxu0 0.0
        %1842 = vmatprep.subr.mxu0 0.0
        %1843 = vmatpush1.xpose.msra.mxu0 0.0
        %1844 = vmatprep.subr.mxu0 0.0
        %1845 = vmatpush1.xpose.msra.mxu0 0.0
        %1846 = vmatprep.subr.mxu0 0.0
        %1847 = vmatpush1.xpose.msra.mxu0 0.0
        %1848 = vmatprep.subr.mxu0 0.0
        %1849 = vmatpush1.xpose.msra.mxu0 0.0
        %1850 = vmatprep.subr.mxu0 0.0
        %1851 = vmatpush1.xpose.msra.mxu0 0.0
        %1852 = vmatprep.subr.mxu0 0.0
        %1853 = vmatpush1.xpose.msra.mxu0 0.0
        %1854 = vmatprep.subr.mxu0 0.0
        %1855 = vmatpush1.xpose.msra.mxu0 0.0
        %1856 = vmatprep.subr.mxu0 0.0
        %1857 = vmatpush1.xpose.msra.mxu0 0.0
        %1858 = vmatprep.subr.mxu0 0.0
        %1859 = vmatpush1.xpose.msra.mxu0 0.0
        %1860 = vmatprep.subr.mxu0 0.0
        %1861 = vmatpush1.xpose.msra.mxu0 0.0
        %1862 = vmatprep.subr.mxu0 0.0
        %1863 = vmatpush1.xpose.msra.mxu0 0.0
        %1864 = vmatprep.subr.mxu0 0.0
        %1865 = vmatpush1.xpose.msra.mxu0 %v1832
        %1866 = vmatprep.subr.mxu0 0.0
        %1867 = vmatpush2.xpose.msra.mxu0 0.0
        %1868 = vmatprep.subr.mxu0 0.0
        %1869 = vmatpush2.xpose.msra.mxu0 0.0
        %1870 = vmatprep.subr.mxu0 0.0
        %1871 = vmatpush2.xpose.msra.mxu0 0.0
        %1872 = vmatprep.subr.mxu0 0.0
        %1873 = vmatpush2.xpose.msra.mxu0 0.0
        %1874 = vmatprep.subr.mxu0 0.0
        %1875 = vmatpush2.xpose.msra.mxu0 0.0
        %1876 = vmatprep.subr.mxu0 0.0
        %1877 = vmatpush2.xpose.msra.mxu0 0.0
        %1878 = vmatprep.subr.mxu0 0.0
        %1879 = vmatpush2.xpose.msra.mxu0 0.0
        %1880 = vmatprep.subr.mxu0 0.0
        %1881 = vmatpush2.xpose.msra.mxu0 0.0
        %1882 = vmatprep.subr.mxu0 0.0
        %1883 = vmatpush2.xpose.msra.mxu0 0.0
        %1884 = vmatprep.subr.mxu0 0.0
        %1885 = vmatpush2.xpose.msra.mxu0 0.0
        %1886 = vmatprep.subr.mxu0 0.0
        %1887 = vmatpush2.xpose.msra.mxu0 0.0
        %1888 = vmatprep.subr.mxu0 0.0
        %1889 = vmatpush2.xpose.msra.mxu0 0.0
        %1890 = vmatprep.subr.mxu0 0.0
        %1891 = vmatpush2.xpose.msra.mxu0 0.0
        %1892 = vmatprep.subr.mxu0 0.0
        %1893 = vmatpush2.xpose.msra.mxu0 0.0
        %1894 = vmatprep.subr.mxu0 0.0
        %1895 = vmatpush2.xpose.msra.mxu0 0.0
        %1896 = vmatprep.subr.mxu0 0.0
        %1897 = vmatpush2.xpose.msra.mxu0 0.0
        %1898 = vmatprep.mubr.f32.mxu0 0.0
        %1899 = vmatmul.mubr.f32.gmra.mxu0 %v469
        %v1900 = vpop.f32.mrf.mxu0
        %v1901 = vadd.f32 0.0, %v1900
        %v1902 = vpop.f32.mrf.mxu0
        %1903 = vdwg.mxu0
        %1904 = vmatprep.subr.mxu0 0.0
        %1905 = vmatpush1.xpose.msra.mxu0 0.0
        %1906 = vmatprep.subr.mxu0 0.0
        %1907 = vmatpush1.xpose.msra.mxu0 0.0
        %1908 = vmatprep.subr.mxu0 0.0
        %1909 = vmatpush1.xpose.msra.mxu0 0.0
        %1910 = vmatprep.subr.mxu0 0.0
        %1911 = vmatpush1.xpose.msra.mxu0 0.0
        %1912 = vmatprep.subr.mxu0 0.0
        %1913 = vmatpush1.xpose.msra.mxu0 0.0
        %1914 = vmatprep.subr.mxu0 0.0
        %1915 = vmatpush1.xpose.msra.mxu0 0.0
        %1916 = vmatprep.subr.mxu0 0.0
        %1917 = vmatpush1.xpose.msra.mxu0 0.0
        %1918 = vmatprep.subr.mxu0 0.0
        %1919 = vmatpush1.xpose.msra.mxu0 0.0
        %1920 = vmatprep.subr.mxu0 0.0
        %1921 = vmatpush1.xpose.msra.mxu0 0.0
        %1922 = vmatprep.subr.mxu0 0.0
        %1923 = vmatpush1.xpose.msra.mxu0 0.0
        %1924 = vmatprep.subr.mxu0 0.0
        %1925 = vmatpush1.xpose.msra.mxu0 0.0
        %1926 = vmatprep.subr.mxu0 0.0
        %1927 = vmatpush1.xpose.msra.mxu0 0.0
        %1928 = vmatprep.subr.mxu0 0.0
        %1929 = vmatpush1.xpose.msra.mxu0 0.0
        %1930 = vmatprep.subr.mxu0 0.0
        %1931 = vmatpush1.xpose.msra.mxu0 0.0
        %1932 = vmatprep.subr.mxu0 0.0
        %1933 = vmatpush1.xpose.msra.mxu0 0.0
        %1934 = vmatprep.subr.mxu0 0.0
        %1935 = vmatpush1.xpose.msra.mxu0 %v1613
        %1936 = vmatprep.subr.mxu0 0.0
        %1937 = vmatpush2.xpose.msra.mxu0 0.0
        %1938 = vmatprep.subr.mxu0 0.0
        %1939 = vmatpush2.xpose.msra.mxu0 0.0
        %1940 = vmatprep.subr.mxu0 0.0
        %1941 = vmatpush2.xpose.msra.mxu0 0.0
        %1942 = vmatprep.subr.mxu0 0.0
        %1943 = vmatpush2.xpose.msra.mxu0 0.0
        %1944 = vmatprep.subr.mxu0 0.0
        %1945 = vmatpush2.xpose.msra.mxu0 0.0
        %1946 = vmatprep.subr.mxu0 0.0
        %1947 = vmatpush2.xpose.msra.mxu0 0.0
        %1948 = vmatprep.subr.mxu0 0.0
        %1949 = vmatpush2.xpose.msra.mxu0 0.0
        %1950 = vmatprep.subr.mxu0 0.0
        %1951 = vmatpush2.xpose.msra.mxu0 0.0
        %1952 = vmatprep.subr.mxu0 0.0
        %1953 = vmatpush2.xpose.msra.mxu0 0.0
        %1954 = vmatprep.subr.mxu0 0.0
        %1955 = vmatpush2.xpose.msra.mxu0 0.0
        %1956 = vmatprep.subr.mxu0 0.0
        %1957 = vmatpush2.xpose.msra.mxu0 0.0
        %1958 = vmatprep.subr.mxu0 0.0
        %1959 = vmatpush2.xpose.msra.mxu0 0.0
        %1960 = vmatprep.subr.mxu0 0.0
        %1961 = vmatpush2.xpose.msra.mxu0 0.0
        %1962 = vmatprep.subr.mxu0 0.0
        %1963 = vmatpush2.xpose.msra.mxu0 0.0
        %1964 = vmatprep.subr.mxu0 0.0
        %1965 = vmatpush2.xpose.msra.mxu0 0.0
        %1966 = vmatprep.subr.mxu0 0.0
        %1967 = vmatpush2.xpose.msra.mxu0 0.0
        %1968 = vmatprep.mubr.f32.mxu0 0.0
        %1969 = vmatmul.mubr.f32.gmra.mxu0 %v764
        %v1970 = vpop.f32.mrf.mxu0
        %v1971 = vadd.f32 0.0, %v1970
        %v1972 = vpop.f32.mrf.mxu0
        %1973 = vdwg.mxu0
        %1974 = vmatprep.subr.mxu0 0.0
        %1975 = vmatpush1.xpose.msra.mxu0 0.0
        %1976 = vmatprep.subr.mxu0 0.0
        %1977 = vmatpush1.xpose.msra.mxu0 0.0
        %1978 = vmatprep.subr.mxu0 0.0
        %1979 = vmatpush1.xpose.msra.mxu0 0.0
        %1980 = vmatprep.subr.mxu0 0.0
        %1981 = vmatpush1.xpose.msra.mxu0 0.0
        %1982 = vmatprep.subr.mxu0 0.0
        %1983 = vmatpush1.xpose.msra.mxu0 0.0
        %1984 = vmatprep.subr.mxu0 0.0
        %1985 = vmatpush1.xpose.msra.mxu0 0.0
        %1986 = vmatprep.subr.mxu0 0.0
        %1987 = vmatpush1.xpose.msra.mxu0 0.0
        %1988 = vmatprep.subr.mxu0 0.0
        %1989 = vmatpush1.xpose.msra.mxu0 0.0
        %1990 = vmatprep.subr.mxu0 0.0
        %1991 = vmatpush1.xpose.msra.mxu0 0.0
        %1992 = vmatprep.subr.mxu0 0.0
        %1993 = vmatpush1.xpose.msra.mxu0 0.0
        %1994 = vmatprep.subr.mxu0 0.0
        %1995 = vmatpush1.xpose.msra.mxu0 0.0
        %1996 = vmatprep.subr.mxu0 0.0
        %1997 = vmatpush1.xpose.msra.mxu0 0.0
        %1998 = vmatprep.subr.mxu0 0.0
        %1999 = vmatpush1.xpose.msra.mxu0 0.0
        %2000 = vmatprep.subr.mxu0 0.0
        %2001 = vmatpush1.xpose.msra.mxu0 0.0
        %2002 = vmatprep.subr.mxu0 0.0
        %2003 = vmatpush1.xpose.msra.mxu0 0.0
        %2004 = vmatprep.subr.mxu0 0.0
        %2005 = vmatpush1.xpose.msra.mxu0 %v1686
        %2006 = vmatprep.subr.mxu0 0.0
        %2007 = vmatpush2.xpose.msra.mxu0 0.0
        %2008 = vmatprep.subr.mxu0 0.0
        %2009 = vmatpush2.xpose.msra.mxu0 0.0
        %2010 = vmatprep.subr.mxu0 0.0
        %2011 = vmatpush2.xpose.msra.mxu0 0.0
        %2012 = vmatprep.subr.mxu0 0.0
        %2013 = vmatpush2.xpose.msra.mxu0 0.0
        %2014 = vmatprep.subr.mxu0 0.0
        %2015 = vmatpush2.xpose.msra.mxu0 0.0
        %2016 = vmatprep.subr.mxu0 0.0
        %2017 = vmatpush2.xpose.msra.mxu0 0.0
        %2018 = vmatprep.subr.mxu0 0.0
        %2019 = vmatpush2.xpose.msra.mxu0 0.0
        %2020 = vmatprep.subr.mxu0 0.0
        %2021 = vmatpush2.xpose.msra.mxu0 0.0
        %2022 = vmatprep.subr.mxu0 0.0
        %2023 = vmatpush2.xpose.msra.mxu0 0.0
        %2024 = vmatprep.subr.mxu0 0.0
        %2025 = vmatpush2.xpose.msra.mxu0 0.0
        %2026 = vmatprep.subr.mxu0 0.0
        %2027 = vmatpush2.xpose.msra.mxu0 0.0
        %2028 = vmatprep.subr.mxu0 0.0
        %2029 = vmatpush2.xpose.msra.mxu0 0.0
        %2030 = vmatprep.subr.mxu0 0.0
        %2031 = vmatpush2.xpose.msra.mxu0 0.0
        %2032 = vmatprep.subr.mxu0 0.0
        %2033 = vmatpush2.xpose.msra.mxu0 0.0
        %2034 = vmatprep.subr.mxu0 0.0
        %2035 = vmatpush2.xpose.msra.mxu0 0.0
        %2036 = vmatprep.subr.mxu0 0.0
        %2037 = vmatpush2.xpose.msra.mxu0 0.0
        %2038 = vmatprep.mubr.f32.mxu0 0.0
        %2039 = vmatmul.mubr.f32.gmra.mxu0 %v764
        %v2040 = vpop.f32.mrf.mxu0
        %v2041 = vadd.f32 0.0, %v2040
        %v2042 = vpop.f32.mrf.mxu0
        %2043 = vdwg.mxu0
        %2044 = vmatprep.subr.mxu0 0.0
        %2045 = vmatpush1.xpose.msra.mxu0 0.0
        %2046 = vmatprep.subr.mxu0 0.0
        %2047 = vmatpush1.xpose.msra.mxu0 0.0
        %2048 = vmatprep.subr.mxu0 0.0
        %2049 = vmatpush1.xpose.msra.mxu0 0.0
        %2050 = vmatprep.subr.mxu0 0.0
        %2051 = vmatpush1.xpose.msra.mxu0 0.0
        %2052 = vmatprep.subr.mxu0 0.0
        %2053 = vmatpush1.xpose.msra.mxu0 0.0
        %2054 = vmatprep.subr.mxu0 0.0
        %2055 = vmatpush1.xpose.msra.mxu0 0.0
        %2056 = vmatprep.subr.mxu0 0.0
        %2057 = vmatpush1.xpose.msra.mxu0 0.0
        %2058 = vmatprep.subr.mxu0 0.0
        %2059 = vmatpush1.xpose.msra.mxu0 0.0
        %2060 = vmatprep.subr.mxu0 0.0
        %2061 = vmatpush1.xpose.msra.mxu0 0.0
        %2062 = vmatprep.subr.mxu0 0.0
        %2063 = vmatpush1.xpose.msra.mxu0 0.0
        %2064 = vmatprep.subr.mxu0 0.0
        %2065 = vmatpush1.xpose.msra.mxu0 0.0
        %2066 = vmatprep.subr.mxu0 0.0
        %2067 = vmatpush1.xpose.msra.mxu0 0.0
        %2068 = vmatprep.subr.mxu0 0.0
        %2069 = vmatpush1.xpose.msra.mxu0 0.0
        %2070 = vmatprep.subr.mxu0 0.0
        %2071 = vmatpush1.xpose.msra.mxu0 0.0
        %2072 = vmatprep.subr.mxu0 0.0
        %2073 = vmatpush1.xpose.msra.mxu0 0.0
        %2074 = vmatprep.subr.mxu0 0.0
        %2075 = vmatpush1.xpose.msra.mxu0 %v1759
        %2076 = vmatprep.subr.mxu0 0.0
        %2077 = vmatpush2.xpose.msra.mxu0 0.0
        %2078 = vmatprep.subr.mxu0 0.0
        %2079 = vmatpush2.xpose.msra.mxu0 0.0
        %2080 = vmatprep.subr.mxu0 0.0
        %2081 = vmatpush2.xpose.msra.mxu0 0.0
        %2082 = vmatprep.subr.mxu0 0.0
        %2083 = vmatpush2.xpose.msra.mxu0 0.0
        %2084 = vmatprep.subr.mxu0 0.0
        %2085 = vmatpush2.xpose.msra.mxu0 0.0
        %2086 = vmatprep.subr.mxu0 0.0
        %2087 = vmatpush2.xpose.msra.mxu0 0.0
        %2088 = vmatprep.subr.mxu0 0.0
        %2089 = vmatpush2.xpose.msra.mxu0 0.0
        %2090 = vmatprep.subr.mxu0 0.0
        %2091 = vmatpush2.xpose.msra.mxu0 0.0
        %2092 = vmatprep.subr.mxu0 0.0
        %2093 = vmatpush2.xpose.msra.mxu0 0.0
        %2094 = vmatprep.subr.mxu0 0.0
        %2095 = vmatpush2.xpose.msra.mxu0 0.0
        %2096 = vmatprep.subr.mxu0 0.0
        %2097 = vmatpush2.xpose.msra.mxu0 0.0
        %2098 = vmatprep.subr.mxu0 0.0
        %2099 = vmatpush2.xpose.msra.mxu0 0.0
        %2100 = vmatprep.subr.mxu0 0.0
        %2101 = vmatpush2.xpose.msra.mxu0 0.0
        %2102 = vmatprep.subr.mxu0 0.0
        %2103 = vmatpush2.xpose.msra.mxu0 0.0
        %2104 = vmatprep.subr.mxu0 0.0
        %2105 = vmatpush2.xpose.msra.mxu0 0.0
        %2106 = vmatprep.subr.mxu0 0.0
        %2107 = vmatpush2.xpose.msra.mxu0 0.0
        %2108 = vmatprep.mubr.f32.mxu0 0.0
        %2109 = vmatmul.mubr.f32.gmra.mxu0 %v764
        %v2110 = vpop.f32.mrf.mxu0
        %v2111 = vadd.f32 0.0, %v2110
        %v2112 = vpop.f32.mrf.mxu0
        %2113 = vdwg.mxu0
        %2114 = vmatprep.subr.mxu0 0.0
        %2115 = vmatpush1.xpose.msra.mxu0 0.0
        %2116 = vmatprep.subr.mxu0 0.0
        %2117 = vmatpush1.xpose.msra.mxu0 0.0
        %2118 = vmatprep.subr.mxu0 0.0
        %2119 = vmatpush1.xpose.msra.mxu0 0.0
        %2120 = vmatprep.subr.mxu0 0.0
        %2121 = vmatpush1.xpose.msra.mxu0 0.0
        %2122 = vmatprep.subr.mxu0 0.0
        %2123 = vmatpush1.xpose.msra.mxu0 0.0
        %2124 = vmatprep.subr.mxu0 0.0
        %2125 = vmatpush1.xpose.msra.mxu0 0.0
        %2126 = vmatprep.subr.mxu0 0.0
        %2127 = vmatpush1.xpose.msra.mxu0 0.0
        %2128 = vmatprep.subr.mxu0 0.0
        %2129 = vmatpush1.xpose.msra.mxu0 0.0
        %2130 = vmatprep.subr.mxu0 0.0
        %2131 = vmatpush1.xpose.msra.mxu0 0.0
        %2132 = vmatprep.subr.mxu0 0.0
        %2133 = vmatpush1.xpose.msra.mxu0 0.0
        %2134 = vmatprep.subr.mxu0 0.0
        %2135 = vmatpush1.xpose.msra.mxu0 0.0
        %2136 = vmatprep.subr.mxu0 0.0
        %2137 = vmatpush1.xpose.msra.mxu0 0.0
        %2138 = vmatprep.subr.mxu0 0.0
        %2139 = vmatpush1.xpose.msra.mxu0 0.0
        %2140 = vmatprep.subr.mxu0 0.0
        %2141 = vmatpush1.xpose.msra.mxu0 0.0
        %2142 = vmatprep.subr.mxu0 0.0
        %2143 = vmatpush1.xpose.msra.mxu0 0.0
        %2144 = vmatprep.subr.mxu0 0.0
        %2145 = vmatpush1.xpose.msra.mxu0 %v1832
        %2146 = vmatprep.subr.mxu0 0.0
        %2147 = vmatpush2.xpose.msra.mxu0 0.0
        %2148 = vmatprep.subr.mxu0 0.0
        %2149 = vmatpush2.xpose.msra.mxu0 0.0
        %2150 = vmatprep.subr.mxu0 0.0
        %2151 = vmatpush2.xpose.msra.mxu0 0.0
        %2152 = vmatprep.subr.mxu0 0.0
        %2153 = vmatpush2.xpose.msra.mxu0 0.0
        %2154 = vmatprep.subr.mxu0 0.0
        %2155 = vmatpush2.xpose.msra.mxu0 0.0
        %2156 = vmatprep.subr.mxu0 0.0
        %2157 = vmatpush2.xpose.msra.mxu0 0.0
        %2158 = vmatprep.subr.mxu0 0.0
        %2159 = vmatpush2.xpose.msra.mxu0 0.0
        %2160 = vmatprep.subr.mxu0 0.0
        %2161 = vmatpush2.xpose.msra.mxu0 0.0
        %2162 = vmatprep.subr.mxu0 0.0
        %2163 = vmatpush2.xpose.msra.mxu0 0.0
        %2164 = vmatprep.subr.mxu0 0.0
        %2165 = vmatpush2.xpose.msra.mxu0 0.0
        %2166 = vmatprep.subr.mxu0 0.0
        %2167 = vmatpush2.xpose.msra.mxu0 0.0
        %2168 = vmatprep.subr.mxu0 0.0
        %2169 = vmatpush2.xpose.msra.mxu0 0.0
        %2170 = vmatprep.subr.mxu0 0.0
        %2171 = vmatpush2.xpose.msra.mxu0 0.0
        %2172 = vmatprep.subr.mxu0 0.0
        %2173 = vmatpush2.xpose.msra.mxu0 0.0
        %2174 = vmatprep.subr.mxu0 0.0
        %2175 = vmatpush2.xpose.msra.mxu0 0.0
        %2176 = vmatprep.subr.mxu0 0.0
        %2177 = vmatpush2.xpose.msra.mxu0 0.0
        %2178 = vmatprep.mubr.f32.mxu0 0.0
        %2179 = vmatmul.mubr.f32.gmra.mxu0 %v764
        %v2180 = vpop.f32.mrf.mxu0
        %v2181 = vadd.f32 0.0, %v2180
        %v2182 = vpop.f32.mrf.mxu0
        %2183 = vdwg.mxu0
        %2184 = vmatprep.subr.mxu0 0.0
        %2185 = vmatpush1.xpose.msra.mxu0 0.0
        %2186 = vmatprep.subr.mxu0 0.0
        %2187 = vmatpush1.xpose.msra.mxu0 0.0
        %2188 = vmatprep.subr.mxu0 0.0
        %2189 = vmatpush1.xpose.msra.mxu0 0.0
        %2190 = vmatprep.subr.mxu0 0.0
        %2191 = vmatpush1.xpose.msra.mxu0 0.0
        %2192 = vmatprep.subr.mxu0 0.0
        %2193 = vmatpush1.xpose.msra.mxu0 0.0
        %2194 = vmatprep.subr.mxu0 0.0
        %2195 = vmatpush1.xpose.msra.mxu0 0.0
        %2196 = vmatprep.subr.mxu0 0.0
        %2197 = vmatpush1.xpose.msra.mxu0 0.0
        %2198 = vmatprep.subr.mxu0 0.0
        %2199 = vmatpush1.xpose.msra.mxu0 0.0
        %2200 = vmatprep.subr.mxu0 0.0
        %2201 = vmatpush1.xpose.msra.mxu0 0.0
        %2202 = vmatprep.subr.mxu0 0.0
        %2203 = vmatpush1.xpose.msra.mxu0 0.0
        %2204 = vmatprep.subr.mxu0 0.0
        %2205 = vmatpush1.xpose.msra.mxu0 0.0
        %2206 = vmatprep.subr.mxu0 0.0
        %2207 = vmatpush1.xpose.msra.mxu0 0.0
        %2208 = vmatprep.subr.mxu0 0.0
        %2209 = vmatpush1.xpose.msra.mxu0 0.0
        %2210 = vmatprep.subr.mxu0 0.0
        %2211 = vmatpush1.xpose.msra.mxu0 0.0
        %2212 = vmatprep.subr.mxu0 0.0
        %2213 = vmatpush1.xpose.msra.mxu0 0.0
        %2214 = vmatprep.subr.mxu0 0.0
        %2215 = vmatpush1.xpose.msra.mxu0 %v1613
        %2216 = vmatprep.subr.mxu0 0.0
        %2217 = vmatpush2.xpose.msra.mxu0 0.0
        %2218 = vmatprep.subr.mxu0 0.0
        %2219 = vmatpush2.xpose.msra.mxu0 0.0
        %2220 = vmatprep.subr.mxu0 0.0
        %2221 = vmatpush2.xpose.msra.mxu0 0.0
        %2222 = vmatprep.subr.mxu0 0.0
        %2223 = vmatpush2.xpose.msra.mxu0 0.0
        %2224 = vmatprep.subr.mxu0 0.0
        %2225 = vmatpush2.xpose.msra.mxu0 0.0
        %2226 = vmatprep.subr.mxu0 0.0
        %2227 = vmatpush2.xpose.msra.mxu0 0.0
        %2228 = vmatprep.subr.mxu0 0.0
        %2229 = vmatpush2.xpose.msra.mxu0 0.0
        %2230 = vmatprep.subr.mxu0 0.0
        %2231 = vmatpush2.xpose.msra.mxu0 0.0
        %2232 = vmatprep.subr.mxu0 0.0
        %2233 = vmatpush2.xpose.msra.mxu0 0.0
        %2234 = vmatprep.subr.mxu0 0.0
        %2235 = vmatpush2.xpose.msra.mxu0 0.0
        %2236 = vmatprep.subr.mxu0 0.0
        %2237 = vmatpush2.xpose.msra.mxu0 0.0
        %2238 = vmatprep.subr.mxu0 0.0
        %2239 = vmatpush2.xpose.msra.mxu0 0.0
        %2240 = vmatprep.subr.mxu0 0.0
        %2241 = vmatpush2.xpose.msra.mxu0 0.0
        %2242 = vmatprep.subr.mxu0 0.0
        %2243 = vmatpush2.xpose.msra.mxu0 0.0
        %2244 = vmatprep.subr.mxu0 0.0
        %2245 = vmatpush2.xpose.msra.mxu0 0.0
        %2246 = vmatprep.subr.mxu0 0.0
        %2247 = vmatpush2.xpose.msra.mxu0 0.0
        %2248 = vmatprep.mubr.f32.mxu0 0.0
        %2249 = vmatmul.mubr.f32.gmra.mxu0 %v1047
        %v2250 = vpop.f32.mrf.mxu0
        %v2251 = vadd.f32 0.0, %v2250
        %v2252 = vpop.f32.mrf.mxu0
        %2253 = vdwg.mxu0
        %2254 = vmatprep.subr.mxu0 0.0
        %2255 = vmatpush1.xpose.msra.mxu0 0.0
        %2256 = vmatprep.subr.mxu0 0.0
        %2257 = vmatpush1.xpose.msra.mxu0 0.0
        %2258 = vmatprep.subr.mxu0 0.0
        %2259 = vmatpush1.xpose.msra.mxu0 0.0
        %2260 = vmatprep.subr.mxu0 0.0
        %2261 = vmatpush1.xpose.msra.mxu0 0.0
        %2262 = vmatprep.subr.mxu0 0.0
        %2263 = vmatpush1.xpose.msra.mxu0 0.0
        %2264 = vmatprep.subr.mxu0 0.0
        %2265 = vmatpush1.xpose.msra.mxu0 0.0
        %2266 = vmatprep.subr.mxu0 0.0
        %2267 = vmatpush1.xpose.msra.mxu0 0.0
        %2268 = vmatprep.subr.mxu0 0.0
        %2269 = vmatpush1.xpose.msra.mxu0 0.0
        %2270 = vmatprep.subr.mxu0 0.0
        %2271 = vmatpush1.xpose.msra.mxu0 0.0
        %2272 = vmatprep.subr.mxu0 0.0
        %2273 = vmatpush1.xpose.msra.mxu0 0.0
        %2274 = vmatprep.subr.mxu0 0.0
        %2275 = vmatpush1.xpose.msra.mxu0 0.0
        %2276 = vmatprep.subr.mxu0 0.0
        %2277 = vmatpush1.xpose.msra.mxu0 0.0
        %2278 = vmatprep.subr.mxu0 0.0
        %2279 = vmatpush1.xpose.msra.mxu0 0.0
        %2280 = vmatprep.subr.mxu0 0.0
        %2281 = vmatpush1.xpose.msra.mxu0 0.0
        %2282 = vmatprep.subr.mxu0 0.0
        %2283 = vmatpush1.xpose.msra.mxu0 0.0
        %2284 = vmatprep.subr.mxu0 0.0
        %2285 = vmatpush1.xpose.msra.mxu0 %v1686
        %2286 = vmatprep.subr.mxu0 0.0
        %2287 = vmatpush2.xpose.msra.mxu0 0.0
        %2288 = vmatprep.subr.mxu0 0.0
        %2289 = vmatpush2.xpose.msra.mxu0 0.0
        %2290 = vmatprep.subr.mxu0 0.0
        %2291 = vmatpush2.xpose.msra.mxu0 0.0
        %2292 = vmatprep.subr.mxu0 0.0
        %2293 = vmatpush2.xpose.msra.mxu0 0.0
        %2294 = vmatprep.subr.mxu0 0.0
        %2295 = vmatpush2.xpose.msra.mxu0 0.0
        %2296 = vmatprep.subr.mxu0 0.0
        %2297 = vmatpush2.xpose.msra.mxu0 0.0
        %2298 = vmatprep.subr.mxu0 0.0
        %2299 = vmatpush2.xpose.msra.mxu0 0.0
        %2300 = vmatprep.subr.mxu0 0.0
        %2301 = vmatpush2.xpose.msra.mxu0 0.0
        %2302 = vmatprep.subr.mxu0 0.0
        %2303 = vmatpush2.xpose.msra.mxu0 0.0
        %2304 = vmatprep.subr.mxu0 0.0
        %2305 = vmatpush2.xpose.msra.mxu0 0.0
        %2306 = vmatprep.subr.mxu0 0.0
        %2307 = vmatpush2.xpose.msra.mxu0 0.0
        %2308 = vmatprep.subr.mxu0 0.0
        %2309 = vmatpush2.xpose.msra.mxu0 0.0
        %2310 = vmatprep.subr.mxu0 0.0
        %2311 = vmatpush2.xpose.msra.mxu0 0.0
        %2312 = vmatprep.subr.mxu0 0.0
        %2313 = vmatpush2.xpose.msra.mxu0 0.0
        %2314 = vmatprep.subr.mxu0 0.0
        %2315 = vmatpush2.xpose.msra.mxu0 0.0
        %2316 = vmatprep.subr.mxu0 0.0
        %2317 = vmatpush2.xpose.msra.mxu0 0.0
        %2318 = vmatprep.mubr.f32.mxu0 0.0
        %2319 = vmatmul.mubr.f32.gmra.mxu0 %v1047
        %v2320 = vpop.f32.mrf.mxu0
        %v2321 = vadd.f32 0.0, %v2320
        %v2322 = vpop.f32.mrf.mxu0
        %2323 = vdwg.mxu0
        %2324 = vmatprep.subr.mxu0 0.0
        %2325 = vmatpush1.xpose.msra.mxu0 0.0
        %2326 = vmatprep.subr.mxu0 0.0
        %2327 = vmatpush1.xpose.msra.mxu0 0.0
        %2328 = vmatprep.subr.mxu0 0.0
        %2329 = vmatpush1.xpose.msra.mxu0 0.0
        %2330 = vmatprep.subr.mxu0 0.0
        %2331 = vmatpush1.xpose.msra.mxu0 0.0
        %2332 = vmatprep.subr.mxu0 0.0
        %2333 = vmatpush1.xpose.msra.mxu0 0.0
        %2334 = vmatprep.subr.mxu0 0.0
        %2335 = vmatpush1.xpose.msra.mxu0 0.0
        %2336 = vmatprep.subr.mxu0 0.0
        %2337 = vmatpush1.xpose.msra.mxu0 0.0
        %2338 = vmatprep.subr.mxu0 0.0
        %2339 = vmatpush1.xpose.msra.mxu0 0.0
        %2340 = vmatprep.subr.mxu0 0.0
        %2341 = vmatpush1.xpose.msra.mxu0 0.0
        %2342 = vmatprep.subr.mxu0 0.0
        %2343 = vmatpush1.xpose.msra.mxu0 0.0
        %2344 = vmatprep.subr.mxu0 0.0
        %2345 = vmatpush1.xpose.msra.mxu0 0.0
        %2346 = vmatprep.subr.mxu0 0.0
        %2347 = vmatpush1.xpose.msra.mxu0 0.0
        %2348 = vmatprep.subr.mxu0 0.0
        %2349 = vmatpush1.xpose.msra.mxu0 0.0
        %2350 = vmatprep.subr.mxu0 0.0
        %2351 = vmatpush1.xpose.msra.mxu0 0.0
        %2352 = vmatprep.subr.mxu0 0.0
        %2353 = vmatpush1.xpose.msra.mxu0 0.0
        %2354 = vmatprep.subr.mxu0 0.0
        %2355 = vmatpush1.xpose.msra.mxu0 %v1759
        %2356 = vmatprep.subr.mxu0 0.0
        %2357 = vmatpush2.xpose.msra.mxu0 0.0
        %2358 = vmatprep.subr.mxu0 0.0
        %2359 = vmatpush2.xpose.msra.mxu0 0.0
        %2360 = vmatprep.subr.mxu0 0.0
        %2361 = vmatpush2.xpose.msra.mxu0 0.0
        %2362 = vmatprep.subr.mxu0 0.0
        %2363 = vmatpush2.xpose.msra.mxu0 0.0
        %2364 = vmatprep.subr.mxu0 0.0
        %2365 = vmatpush2.xpose.msra.mxu0 0.0
        %2366 = vmatprep.subr.mxu0 0.0
        %2367 = vmatpush2.xpose.msra.mxu0 0.0
        %2368 = vmatprep.subr.mxu0 0.0
        %2369 = vmatpush2.xpose.msra.mxu0 0.0
        %2370 = vmatprep.subr.mxu0 0.0
        %2371 = vmatpush2.xpose.msra.mxu0 0.0
        %2372 = vmatprep.subr.mxu0 0.0
        %2373 = vmatpush2.xpose.msra.mxu0 0.0
        %2374 = vmatprep.subr.mxu0 0.0
        %2375 = vmatpush2.xpose.msra.mxu0 0.0
        %2376 = vmatprep.subr.mxu0 0.0
        %2377 = vmatpush2.xpose.msra.mxu0 0.0
        %2378 = vmatprep.subr.mxu0 0.0
        %2379 = vmatpush2.xpose.msra.mxu0 0.0
        %2380 = vmatprep.subr.mxu0 0.0
        %2381 = vmatpush2.xpose.msra.mxu0 0.0
        %2382 = vmatprep.subr.mxu0 0.0
        %2383 = vmatpush2.xpose.msra.mxu0 0.0
        %2384 = vmatprep.subr.mxu0 0.0
        %2385 = vmatpush2.xpose.msra.mxu0 0.0
        %2386 = vmatprep.subr.mxu0 0.0
        %2387 = vmatpush2.xpose.msra.mxu0 0.0
        %2388 = vmatprep.mubr.f32.mxu0 0.0
        %2389 = vmatmul.mubr.f32.gmra.mxu0 %v1047
        %v2390 = vpop.f32.mrf.mxu0
        %v2391 = vadd.f32 0.0, %v2390
        %v2392 = vpop.f32.mrf.mxu0
        %2393 = vdwg.mxu0
        %2394 = vmatprep.subr.mxu0 0.0
        %2395 = vmatpush1.xpose.msra.mxu0 0.0
        %2396 = vmatprep.subr.mxu0 0.0
        %2397 = vmatpush1.xpose.msra.mxu0 0.0
        %2398 = vmatprep.subr.mxu0 0.0
        %2399 = vmatpush1.xpose.msra.mxu0 0.0
        %2400 = vmatprep.subr.mxu0 0.0
        %2401 = vmatpush1.xpose.msra.mxu0 0.0
        %2402 = vmatprep.subr.mxu0 0.0
        %2403 = vmatpush1.xpose.msra.mxu0 0.0
        %2404 = vmatprep.subr.mxu0 0.0
        %2405 = vmatpush1.xpose.msra.mxu0 0.0
        %2406 = vmatprep.subr.mxu0 0.0
        %2407 = vmatpush1.xpose.msra.mxu0 0.0
        %2408 = vmatprep.subr.mxu0 0.0
        %2409 = vmatpush1.xpose.msra.mxu0 0.0
        %2410 = vmatprep.subr.mxu0 0.0
        %2411 = vmatpush1.xpose.msra.mxu0 0.0
        %2412 = vmatprep.subr.mxu0 0.0
        %2413 = vmatpush1.xpose.msra.mxu0 0.0
        %2414 = vmatprep.subr.mxu0 0.0
        %2415 = vmatpush1.xpose.msra.mxu0 0.0
        %2416 = vmatprep.subr.mxu0 0.0
        %2417 = vmatpush1.xpose.msra.mxu0 0.0
        %2418 = vmatprep.subr.mxu0 0.0
        %2419 = vmatpush1.xpose.msra.mxu0 0.0
        %2420 = vmatprep.subr.mxu0 0.0
        %2421 = vmatpush1.xpose.msra.mxu0 0.0
        %2422 = vmatprep.subr.mxu0 0.0
        %2423 = vmatpush1.xpose.msra.mxu0 0.0
        %2424 = vmatprep.subr.mxu0 0.0
        %2425 = vmatpush1.xpose.msra.mxu0 %v1832
        %2426 = vmatprep.subr.mxu0 0.0
        %2427 = vmatpush2.xpose.msra.mxu0 0.0
        %2428 = vmatprep.subr.mxu0 0.0
        %2429 = vmatpush2.xpose.msra.mxu0 0.0
        %2430 = vmatprep.subr.mxu0 0.0
        %2431 = vmatpush2.xpose.msra.mxu0 0.0
        %2432 = vmatprep.subr.mxu0 0.0
        %2433 = vmatpush2.xpose.msra.mxu0 0.0
        %2434 = vmatprep.subr.mxu0 0.0
        %2435 = vmatpush2.xpose.msra.mxu0 0.0
        %2436 = vmatprep.subr.mxu0 0.0
        %2437 = vmatpush2.xpose.msra.mxu0 0.0
        %2438 = vmatprep.subr.mxu0 0.0
        %2439 = vmatpush2.xpose.msra.mxu0 0.0
        %2440 = vmatprep.subr.mxu0 0.0
        %2441 = vmatpush2.xpose.msra.mxu0 0.0
        %2442 = vmatprep.subr.mxu0 0.0
        %2443 = vmatpush2.xpose.msra.mxu0 0.0
        %2444 = vmatprep.subr.mxu0 0.0
        %2445 = vmatpush2.xpose.msra.mxu0 0.0
        %2446 = vmatprep.subr.mxu0 0.0
        %2447 = vmatpush2.xpose.msra.mxu0 0.0
        %2448 = vmatprep.subr.mxu0 0.0
        %2449 = vmatpush2.xpose.msra.mxu0 0.0
        %2450 = vmatprep.subr.mxu0 0.0
        %2451 = vmatpush2.xpose.msra.mxu0 0.0
        %2452 = vmatprep.subr.mxu0 0.0
        %2453 = vmatpush2.xpose.msra.mxu0 0.0
        %2454 = vmatprep.subr.mxu0 0.0
        %2455 = vmatpush2.xpose.msra.mxu0 0.0
        %2456 = vmatprep.subr.mxu0 0.0
        %2457 = vmatpush2.xpose.msra.mxu0 0.0
        %2458 = vmatprep.mubr.f32.mxu0 0.0
        %2459 = vmatmul.mubr.f32.gmra.mxu0 %v1047
        %v2460 = vpop.f32.mrf.mxu0
        %v2461 = vadd.f32 0.0, %v2460
        %v2462 = vpop.f32.mrf.mxu0
        %2463 = vdwg.mxu0
        %2464 = vmatprep.subr.mxu0 0.0
        %2465 = vmatpush1.xpose.msra.mxu0 0.0
        %2466 = vmatprep.subr.mxu0 0.0
        %2467 = vmatpush1.xpose.msra.mxu0 0.0
        %2468 = vmatprep.subr.mxu0 0.0
        %2469 = vmatpush1.xpose.msra.mxu0 0.0
        %2470 = vmatprep.subr.mxu0 0.0
        %2471 = vmatpush1.xpose.msra.mxu0 0.0
        %2472 = vmatprep.subr.mxu0 0.0
        %2473 = vmatpush1.xpose.msra.mxu0 0.0
        %2474 = vmatprep.subr.mxu0 0.0
        %2475 = vmatpush1.xpose.msra.mxu0 0.0
        %2476 = vmatprep.subr.mxu0 0.0
        %2477 = vmatpush1.xpose.msra.mxu0 0.0
        %2478 = vmatprep.subr.mxu0 0.0
        %2479 = vmatpush1.xpose.msra.mxu0 0.0
        %2480 = vmatprep.subr.mxu0 0.0
        %2481 = vmatpush1.xpose.msra.mxu0 0.0
        %2482 = vmatprep.subr.mxu0 0.0
        %2483 = vmatpush1.xpose.msra.mxu0 0.0
        %2484 = vmatprep.subr.mxu0 0.0
        %2485 = vmatpush1.xpose.msra.mxu0 0.0
        %2486 = vmatprep.subr.mxu0 0.0
        %2487 = vmatpush1.xpose.msra.mxu0 0.0
        %2488 = vmatprep.subr.mxu0 0.0
        %2489 = vmatpush1.xpose.msra.mxu0 0.0
        %2490 = vmatprep.subr.mxu0 0.0
        %2491 = vmatpush1.xpose.msra.mxu0 0.0
        %2492 = vmatprep.subr.mxu0 0.0
        %2493 = vmatpush1.xpose.msra.mxu0 0.0
        %2494 = vmatprep.subr.mxu0 0.0
        %2495 = vmatpush1.xpose.msra.mxu0 %v1613
        %2496 = vmatprep.subr.mxu0 0.0
        %2497 = vmatpush2.xpose.msra.mxu0 0.0
        %2498 = vmatprep.subr.mxu0 0.0
        %2499 = vmatpush2.xpose.msra.mxu0 0.0
        %2500 = vmatprep.subr.mxu0 0.0
        %2501 = vmatpush2.xpose.msra.mxu0 0.0
        %2502 = vmatprep.subr.mxu0 0.0
        %2503 = vmatpush2.xpose.msra.mxu0 0.0
        %2504 = vmatprep.subr.mxu0 0.0
        %2505 = vmatpush2.xpose.msra.mxu0 0.0
        %2506 = vmatprep.subr.mxu0 0.0
        %2507 = vmatpush2.xpose.msra.mxu0 0.0
        %2508 = vmatprep.subr.mxu0 0.0
        %2509 = vmatpush2.xpose.msra.mxu0 0.0
        %2510 = vmatprep.subr.mxu0 0.0
        %2511 = vmatpush2.xpose.msra.mxu0 0.0
        %2512 = vmatprep.subr.mxu0 0.0
        %2513 = vmatpush2.xpose.msra.mxu0 0.0
        %2514 = vmatprep.subr.mxu0 0.0
        %2515 = vmatpush2.xpose.msra.mxu0 0.0
        %2516 = vmatprep.subr.mxu0 0.0
        %2517 = vmatpush2.xpose.msra.mxu0 0.0
        %2518 = vmatprep.subr.mxu0 0.0
        %2519 = vmatpush2.xpose.msra.mxu0 0.0
        %2520 = vmatprep.subr.mxu0 0.0
        %2521 = vmatpush2.xpose.msra.mxu0 0.0
        %2522 = vmatprep.subr.mxu0 0.0
        %2523 = vmatpush2.xpose.msra.mxu0 0.0
        %2524 = vmatprep.subr.mxu0 0.0
        %2525 = vmatpush2.xpose.msra.mxu0 0.0
        %2526 = vmatprep.subr.mxu0 0.0
        %2527 = vmatpush2.xpose.msra.mxu0 0.0
        %2528 = vmatprep.mubr.f32.mxu0 0.0
        %2529 = vmatmul.mubr.f32.gmra.mxu0 %v1330
        %v2530 = vpop.f32.mrf.mxu0
        %v2531 = vadd.f32 0.0, %v2530
        %v2532 = vpop.f32.mrf.mxu0
        %2533 = vdwg.mxu0
        %2534 = vmatprep.subr.mxu0 0.0
        %2535 = vmatpush1.xpose.msra.mxu0 0.0
        %2536 = vmatprep.subr.mxu0 0.0
        %2537 = vmatpush1.xpose.msra.mxu0 0.0
        %2538 = vmatprep.subr.mxu0 0.0
        %2539 = vmatpush1.xpose.msra.mxu0 0.0
        %2540 = vmatprep.subr.mxu0 0.0
        %2541 = vmatpush1.xpose.msra.mxu0 0.0
        %2542 = vmatprep.subr.mxu0 0.0
        %2543 = vmatpush1.xpose.msra.mxu0 0.0
        %2544 = vmatprep.subr.mxu0 0.0
        %2545 = vmatpush1.xpose.msra.mxu0 0.0
        %2546 = vmatprep.subr.mxu0 0.0
        %2547 = vmatpush1.xpose.msra.mxu0 0.0
        %2548 = vmatprep.subr.mxu0 0.0
        %2549 = vmatpush1.xpose.msra.mxu0 0.0
        %2550 = vmatprep.subr.mxu0 0.0
        %2551 = vmatpush1.xpose.msra.mxu0 0.0
        %2552 = vmatprep.subr.mxu0 0.0
        %2553 = vmatpush1.xpose.msra.mxu0 0.0
        %2554 = vmatprep.subr.mxu0 0.0
        %2555 = vmatpush1.xpose.msra.mxu0 0.0
        %2556 = vmatprep.subr.mxu0 0.0
        %2557 = vmatpush1.xpose.msra.mxu0 0.0
        %2558 = vmatprep.subr.mxu0 0.0
        %2559 = vmatpush1.xpose.msra.mxu0 0.0
        %2560 = vmatprep.subr.mxu0 0.0
        %2561 = vmatpush1.xpose.msra.mxu0 0.0
        %2562 = vmatprep.subr.mxu0 0.0
        %2563 = vmatpush1.xpose.msra.mxu0 0.0
        %2564 = vmatprep.subr.mxu0 0.0
        %2565 = vmatpush1.xpose.msra.mxu0 %v1686
        %2566 = vmatprep.subr.mxu0 0.0
        %2567 = vmatpush2.xpose.msra.mxu0 0.0
        %2568 = vmatprep.subr.mxu0 0.0
        %2569 = vmatpush2.xpose.msra.mxu0 0.0
        %2570 = vmatprep.subr.mxu0 0.0
        %2571 = vmatpush2.xpose.msra.mxu0 0.0
        %2572 = vmatprep.subr.mxu0 0.0
        %2573 = vmatpush2.xpose.msra.mxu0 0.0
        %2574 = vmatprep.subr.mxu0 0.0
        %2575 = vmatpush2.xpose.msra.mxu0 0.0
        %2576 = vmatprep.subr.mxu0 0.0
        %2577 = vmatpush2.xpose.msra.mxu0 0.0
        %2578 = vmatprep.subr.mxu0 0.0
        %2579 = vmatpush2.xpose.msra.mxu0 0.0
        %2580 = vmatprep.subr.mxu0 0.0
        %2581 = vmatpush2.xpose.msra.mxu0 0.0
        %2582 = vmatprep.subr.mxu0 0.0
        %2583 = vmatpush2.xpose.msra.mxu0 0.0
        %2584 = vmatprep.subr.mxu0 0.0
        %2585 = vmatpush2.xpose.msra.mxu0 0.0
        %2586 = vmatprep.subr.mxu0 0.0
        %2587 = vmatpush2.xpose.msra.mxu0 0.0
        %2588 = vmatprep.subr.mxu0 0.0
        %2589 = vmatpush2.xpose.msra.mxu0 0.0
        %2590 = vmatprep.subr.mxu0 0.0
        %2591 = vmatpush2.xpose.msra.mxu0 0.0
        %2592 = vmatprep.subr.mxu0 0.0
        %2593 = vmatpush2.xpose.msra.mxu0 0.0
        %2594 = vmatprep.subr.mxu0 0.0
        %2595 = vmatpush2.xpose.msra.mxu0 0.0
        %2596 = vmatprep.subr.mxu0 0.0
        %2597 = vmatpush2.xpose.msra.mxu0 0.0
        %2598 = vmatprep.mubr.f32.mxu0 0.0
        %2599 = vmatmul.mubr.f32.gmra.mxu0 %v1330
        %v2600 = vpop.f32.mrf.mxu0
        %v2601 = vadd.f32 0.0, %v2600
        %v2602 = vpop.f32.mrf.mxu0
        %2603 = vdwg.mxu0
        %2604 = vmatprep.subr.mxu0 0.0
        %2605 = vmatpush1.xpose.msra.mxu0 0.0
        %2606 = vmatprep.subr.mxu0 0.0
        %2607 = vmatpush1.xpose.msra.mxu0 0.0
        %2608 = vmatprep.subr.mxu0 0.0
        %2609 = vmatpush1.xpose.msra.mxu0 0.0
        %2610 = vmatprep.subr.mxu0 0.0
        %2611 = vmatpush1.xpose.msra.mxu0 0.0
        %2612 = vmatprep.subr.mxu0 0.0
        %2613 = vmatpush1.xpose.msra.mxu0 0.0
        %2614 = vmatprep.subr.mxu0 0.0
        %2615 = vmatpush1.xpose.msra.mxu0 0.0
        %2616 = vmatprep.subr.mxu0 0.0
        %2617 = vmatpush1.xpose.msra.mxu0 0.0
        %2618 = vmatprep.subr.mxu0 0.0
        %2619 = vmatpush1.xpose.msra.mxu0 0.0
        %2620 = vmatprep.subr.mxu0 0.0
        %2621 = vmatpush1.xpose.msra.mxu0 0.0
        %2622 = vmatprep.subr.mxu0 0.0
        %2623 = vmatpush1.xpose.msra.mxu0 0.0
        %2624 = vmatprep.subr.mxu0 0.0
        %2625 = vmatpush1.xpose.msra.mxu0 0.0
        %2626 = vmatprep.subr.mxu0 0.0
        %2627 = vmatpush1.xpose.msra.mxu0 0.0
        %2628 = vmatprep.subr.mxu0 0.0
        %2629 = vmatpush1.xpose.msra.mxu0 0.0
        %2630 = vmatprep.subr.mxu0 0.0
        %2631 = vmatpush1.xpose.msra.mxu0 0.0
        %2632 = vmatprep.subr.mxu0 0.0
        %2633 = vmatpush1.xpose.msra.mxu0 0.0
        %2634 = vmatprep.subr.mxu0 0.0
        %2635 = vmatpush1.xpose.msra.mxu0 %v1759
        %2636 = vmatprep.subr.mxu0 0.0
        %2637 = vmatpush2.xpose.msra.mxu0 0.0
        %2638 = vmatprep.subr.mxu0 0.0
        %2639 = vmatpush2.xpose.msra.mxu0 0.0
        %2640 = vmatprep.subr.mxu0 0.0
        %2641 = vmatpush2.xpose.msra.mxu0 0.0
        %2642 = vmatprep.subr.mxu0 0.0
        %2643 = vmatpush2.xpose.msra.mxu0 0.0
        %2644 = vmatprep.subr.mxu0 0.0
        %2645 = vmatpush2.xpose.msra.mxu0 0.0
        %2646 = vmatprep.subr.mxu0 0.0
        %2647 = vmatpush2.xpose.msra.mxu0 0.0
        %2648 = vmatprep.subr.mxu0 0.0
        %2649 = vmatpush2.xpose.msra.mxu0 0.0
        %2650 = vmatprep.subr.mxu0 0.0
        %2651 = vmatpush2.xpose.msra.mxu0 0.0
        %2652 = vmatprep.subr.mxu0 0.0
        %2653 = vmatpush2.xpose.msra.mxu0 0.0
        %2654 = vmatprep.subr.mxu0 0.0
        %2655 = vmatpush2.xpose.msra.mxu0 0.0
        %2656 = vmatprep.subr.mxu0 0.0
        %2657 = vmatpush2.xpose.msra.mxu0 0.0
        %2658 = vmatprep.subr.mxu0 0.0
        %2659 = vmatpush2.xpose.msra.mxu0 0.0
        %2660 = vmatprep.subr.mxu0 0.0
        %2661 = vmatpush2.xpose.msra.mxu0 0.0
        %2662 = vmatprep.subr.mxu0 0.0
        %2663 = vmatpush2.xpose.msra.mxu0 0.0
        %2664 = vmatprep.subr.mxu0 0.0
        %2665 = vmatpush2.xpose.msra.mxu0 0.0
        %2666 = vmatprep.subr.mxu0 0.0
        %2667 = vmatpush2.xpose.msra.mxu0 0.0
        %2668 = vmatprep.mubr.f32.mxu0 0.0
        %2669 = vmatmul.mubr.f32.gmra.mxu0 %v1330
        %v2670 = vpop.f32.mrf.mxu0
        %v2671 = vadd.f32 0.0, %v2670
        %v2672 = vpop.f32.mrf.mxu0
        %2673 = vdwg.mxu0
        %2674 = vmatprep.subr.mxu0 0.0
        %2675 = vmatpush1.xpose.msra.mxu0 0.0
        %2676 = vmatprep.subr.mxu0 0.0
        %2677 = vmatpush1.xpose.msra.mxu0 0.0
        %2678 = vmatprep.subr.mxu0 0.0
        %2679 = vmatpush1.xpose.msra.mxu0 0.0
        %2680 = vmatprep.subr.mxu0 0.0
        %2681 = vmatpush1.xpose.msra.mxu0 0.0
        %2682 = vmatprep.subr.mxu0 0.0
        %2683 = vmatpush1.xpose.msra.mxu0 0.0
        %2684 = vmatprep.subr.mxu0 0.0
        %2685 = vmatpush1.xpose.msra.mxu0 0.0
        %2686 = vmatprep.subr.mxu0 0.0
        %2687 = vmatpush1.xpose.msra.mxu0 0.0
        %2688 = vmatprep.subr.mxu0 0.0
        %2689 = vmatpush1.xpose.msra.mxu0 0.0
        %2690 = vmatprep.subr.mxu0 0.0
        %2691 = vmatpush1.xpose.msra.mxu0 0.0
        %2692 = vmatprep.subr.mxu0 0.0
        %2693 = vmatpush1.xpose.msra.mxu0 0.0
        %2694 = vmatprep.subr.mxu0 0.0
        %2695 = vmatpush1.xpose.msra.mxu0 0.0
        %2696 = vmatprep.subr.mxu0 0.0
        %2697 = vmatpush1.xpose.msra.mxu0 0.0
        %2698 = vmatprep.subr.mxu0 0.0
        %2699 = vmatpush1.xpose.msra.mxu0 0.0
        %2700 = vmatprep.subr.mxu0 0.0
        %2701 = vmatpush1.xpose.msra.mxu0 0.0
        %2702 = vmatprep.subr.mxu0 0.0
        %2703 = vmatpush1.xpose.msra.mxu0 0.0
        %2704 = vmatprep.subr.mxu0 0.0
        %2705 = vmatpush1.xpose.msra.mxu0 %v1832
        %2706 = vmatprep.subr.mxu0 0.0
        %2707 = vmatpush2.xpose.msra.mxu0 0.0
        %2708 = vmatprep.subr.mxu0 0.0
        %2709 = vmatpush2.xpose.msra.mxu0 0.0
        %2710 = vmatprep.subr.mxu0 0.0
        %2711 = vmatpush2.xpose.msra.mxu0 0.0
        %2712 = vmatprep.subr.mxu0 0.0
        %2713 = vmatpush2.xpose.msra.mxu0 0.0
        %2714 = vmatprep.subr.mxu0 0.0
        %2715 = vmatpush2.xpose.msra.mxu0 0.0
        %2716 = vmatprep.subr.mxu0 0.0
        %2717 = vmatpush2.xpose.msra.mxu0 0.0
        %2718 = vmatprep.subr.mxu0 0.0
        %2719 = vmatpush2.xpose.msra.mxu0 0.0
        %2720 = vmatprep.subr.mxu0 0.0
        %2721 = vmatpush2.xpose.msra.mxu0 0.0
        %2722 = vmatprep.subr.mxu0 0.0
        %2723 = vmatpush2.xpose.msra.mxu0 0.0
        %2724 = vmatprep.subr.mxu0 0.0
        %2725 = vmatpush2.xpose.msra.mxu0 0.0
        %2726 = vmatprep.subr.mxu0 0.0
        %2727 = vmatpush2.xpose.msra.mxu0 0.0
        %2728 = vmatprep.subr.mxu0 0.0
        %2729 = vmatpush2.xpose.msra.mxu0 0.0
        %2730 = vmatprep.subr.mxu0 0.0
        %2731 = vmatpush2.xpose.msra.mxu0 0.0
        %2732 = vmatprep.subr.mxu0 0.0
        %2733 = vmatpush2.xpose.msra.mxu0 0.0
        %2734 = vmatprep.subr.mxu0 0.0
        %2735 = vmatpush2.xpose.msra.mxu0 0.0
        %2736 = vmatprep.subr.mxu0 0.0
        %2737 = vmatpush2.xpose.msra.mxu0 0.0
        %2738 = vmatprep.mubr.f32.mxu0 0.0
        %2739 = vmatmul.mubr.f32.gmra.mxu0 %v1330
        %v2740 = vpop.f32.mrf.mxu0
        %v2741 = vadd.f32 0.0, %v2740
        %v2742 = vpop.f32.mrf.mxu0
        %2743 = vdwg.mxu0
        %v2745 = vsel %vm467, %v455, 0
        %v2748 = vsel %vm467, %v439, 0
        %2750 = vmatprep.subr.mxu0 0.0
        %2751 = vmatpush1.xpose.msra.mxu0 0.0
        %2752 = vmatprep.subr.mxu0 0.0
        %2753 = vmatpush1.xpose.msra.mxu0 0.0
        %2754 = vmatprep.subr.mxu0 0.0
        %2755 = vmatpush1.xpose.msra.mxu0 0.0
        %2756 = vmatprep.subr.mxu0 0.0
        %2757 = vmatpush1.xpose.msra.mxu0 0.0
        %2758 = vmatprep.subr.mxu0 0.0
        %2759 = vmatpush1.xpose.msra.mxu0 0.0
        %2760 = vmatprep.subr.mxu0 0.0
        %2761 = vmatpush1.xpose.msra.mxu0 0.0
        %2762 = vmatprep.subr.mxu0 0.0
        %2763 = vmatpush1.xpose.msra.mxu0 0.0
        %2764 = vmatprep.subr.mxu0 0.0
        %2765 = vmatpush1.xpose.msra.mxu0 0.0
        %2766 = vmatprep.subr.mxu0 0.0
        %2767 = vmatpush1.xpose.msra.mxu0 0.0
        %2768 = vmatprep.subr.mxu0 0.0
        %2769 = vmatpush1.xpose.msra.mxu0 0.0
        %2770 = vmatprep.subr.mxu0 0.0
        %2771 = vmatpush1.xpose.msra.mxu0 0.0
        %2772 = vmatprep.subr.mxu0 0.0
        %2773 = vmatpush1.xpose.msra.mxu0 0.0
        %2774 = vmatprep.subr.mxu0 0.0
        %2775 = vmatpush1.xpose.msra.mxu0 0.0
        %2776 = vmatprep.subr.mxu0 0.0
        %2777 = vmatpush1.xpose.msra.mxu0 0.0
        %2778 = vmatprep.subr.mxu0 0.0
        %2779 = vmatpush1.xpose.msra.mxu0 0.0
        %2780 = vmatprep.subr.mxu0 0.0
        %2781 = vmatpush1.xpose.msra.mxu0 %v2748
        %2782 = vmatprep.subr.mxu0 0.0
        %2783 = vmatpush2.xpose.msra.mxu0 0.0
        %2784 = vmatprep.subr.mxu0 0.0
        %2785 = vmatpush2.xpose.msra.mxu0 0.0
        %2786 = vmatprep.subr.mxu0 0.0
        %2787 = vmatpush2.xpose.msra.mxu0 0.0
        %2788 = vmatprep.subr.mxu0 0.0
        %2789 = vmatpush2.xpose.msra.mxu0 0.0
        %2790 = vmatprep.subr.mxu0 0.0
        %2791 = vmatpush2.xpose.msra.mxu0 0.0
        %2792 = vmatprep.subr.mxu0 0.0
        %2793 = vmatpush2.xpose.msra.mxu0 0.0
        %2794 = vmatprep.subr.mxu0 0.0
        %2795 = vmatpush2.xpose.msra.mxu0 0.0
        %2796 = vmatprep.subr.mxu0 0.0
        %2797 = vmatpush2.xpose.msra.mxu0 0.0
        %2798 = vmatprep.subr.mxu0 0.0
        %2799 = vmatpush2.xpose.msra.mxu0 0.0
        %2800 = vmatprep.subr.mxu0 0.0
        %2801 = vmatpush2.xpose.msra.mxu0 0.0
        %2802 = vmatprep.subr.mxu0 0.0
        %2803 = vmatpush2.xpose.msra.mxu0 0.0
        %2804 = vmatprep.subr.mxu0 0.0
        %2805 = vmatpush2.xpose.msra.mxu0 0.0
        %2806 = vmatprep.subr.mxu0 0.0
        %2807 = vmatpush2.xpose.msra.mxu0 0.0
        %2808 = vmatprep.subr.mxu0 0.0
        %2809 = vmatpush2.xpose.msra.mxu0 0.0
        %2810 = vmatprep.subr.mxu0 0.0
        %2811 = vmatpush2.xpose.msra.mxu0 0.0
        %2812 = vmatprep.subr.mxu0 0.0
        %2813 = vmatpush2.xpose.msra.mxu0 0.0
        %2814 = vmatprep.mubr.f32.mxu0 0.0
        %2815 = vmatmul.mubr.f32.gmra.mxu0 %v2745
        %v2816 = vpop.f32.mrf.mxu0
        %v2817 = vadd.f32 0.0, %v2816
        %v2818 = vpop.f32.mrf.mxu0
        %2819 = vdwg.mxu0
        %v2821 = vsel %vm467, %v456, 0
        %2823 = vmatprep.subr.mxu0 0.0
        %2824 = vmatpush1.xpose.msra.mxu0 0.0
        %2825 = vmatprep.subr.mxu0 0.0
        %2826 = vmatpush1.xpose.msra.mxu0 0.0
        %2827 = vmatprep.subr.mxu0 0.0
        %2828 = vmatpush1.xpose.msra.mxu0 0.0
        %2829 = vmatprep.subr.mxu0 0.0
        %2830 = vmatpush1.xpose.msra.mxu0 0.0
        %2831 = vmatprep.subr.mxu0 0.0
        %2832 = vmatpush1.xpose.msra.mxu0 0.0
        %2833 = vmatprep.subr.mxu0 0.0
        %2834 = vmatpush1.xpose.msra.mxu0 0.0
        %2835 = vmatprep.subr.mxu0 0.0
        %2836 = vmatpush1.xpose.msra.mxu0 0.0
        %2837 = vmatprep.subr.mxu0 0.0
        %2838 = vmatpush1.xpose.msra.mxu0 0.0
        %2839 = vmatprep.subr.mxu0 0.0
        %2840 = vmatpush1.xpose.msra.mxu0 0.0
        %2841 = vmatprep.subr.mxu0 0.0
        %2842 = vmatpush1.xpose.msra.mxu0 0.0
        %2843 = vmatprep.subr.mxu0 0.0
        %2844 = vmatpush1.xpose.msra.mxu0 0.0
        %2845 = vmatprep.subr.mxu0 0.0
        %2846 = vmatpush1.xpose.msra.mxu0 0.0
        %2847 = vmatprep.subr.mxu0 0.0
        %2848 = vmatpush1.xpose.msra.mxu0 0.0
        %2849 = vmatprep.subr.mxu0 0.0
        %2850 = vmatpush1.xpose.msra.mxu0 0.0
        %2851 = vmatprep.subr.mxu0 0.0
        %2852 = vmatpush1.xpose.msra.mxu0 0.0
        %2853 = vmatprep.subr.mxu0 0.0
        %2854 = vmatpush1.xpose.msra.mxu0 %v2748
        %2855 = vmatprep.subr.mxu0 0.0
        %2856 = vmatpush2.xpose.msra.mxu0 0.0
        %2857 = vmatprep.subr.mxu0 0.0
        %2858 = vmatpush2.xpose.msra.mxu0 0.0
        %2859 = vmatprep.subr.mxu0 0.0
        %2860 = vmatpush2.xpose.msra.mxu0 0.0
        %2861 = vmatprep.subr.mxu0 0.0
        %2862 = vmatpush2.xpose.msra.mxu0 0.0
        %2863 = vmatprep.subr.mxu0 0.0
        %2864 = vmatpush2.xpose.msra.mxu0 0.0
        %2865 = vmatprep.subr.mxu0 0.0
        %2866 = vmatpush2.xpose.msra.mxu0 0.0
        %2867 = vmatprep.subr.mxu0 0.0
        %2868 = vmatpush2.xpose.msra.mxu0 0.0
        %2869 = vmatprep.subr.mxu0 0.0
        %2870 = vmatpush2.xpose.msra.mxu0 0.0
        %2871 = vmatprep.subr.mxu0 0.0
        %2872 = vmatpush2.xpose.msra.mxu0 0.0
        %2873 = vmatprep.subr.mxu0 0.0
        %2874 = vmatpush2.xpose.msra.mxu0 0.0
        %2875 = vmatprep.subr.mxu0 0.0
        %2876 = vmatpush2.xpose.msra.mxu0 0.0
        %2877 = vmatprep.subr.mxu0 0.0
        %2878 = vmatpush2.xpose.msra.mxu0 0.0
        %2879 = vmatprep.subr.mxu0 0.0
        %2880 = vmatpush2.xpose.msra.mxu0 0.0
        %2881 = vmatprep.subr.mxu0 0.0
        %2882 = vmatpush2.xpose.msra.mxu0 0.0
        %2883 = vmatprep.subr.mxu0 0.0
        %2884 = vmatpush2.xpose.msra.mxu0 0.0
        %2885 = vmatprep.subr.mxu0 0.0
        %2886 = vmatpush2.xpose.msra.mxu0 0.0
        %2887 = vmatprep.mubr.f32.mxu0 0.0
        %2888 = vmatmul.mubr.f32.gmra.mxu0 %v2821
        %v2889 = vpop.f32.mrf.mxu0
        %v2890 = vadd.f32 0.0, %v2889
        %v2891 = vpop.f32.mrf.mxu0
        %2892 = vdwg.mxu0
        %v2894 = vsel %vm467, %v457, 0
        %2896 = vmatprep.subr.mxu0 0.0
        %2897 = vmatpush1.xpose.msra.mxu0 0.0
        %2898 = vmatprep.subr.mxu0 0.0
        %2899 = vmatpush1.xpose.msra.mxu0 0.0
        %2900 = vmatprep.subr.mxu0 0.0
        %2901 = vmatpush1.xpose.msra.mxu0 0.0
        %2902 = vmatprep.subr.mxu0 0.0
        %2903 = vmatpush1.xpose.msra.mxu0 0.0
        %2904 = vmatprep.subr.mxu0 0.0
        %2905 = vmatpush1.xpose.msra.mxu0 0.0
        %2906 = vmatprep.subr.mxu0 0.0
        %2907 = vmatpush1.xpose.msra.mxu0 0.0
        %2908 = vmatprep.subr.mxu0 0.0
        %2909 = vmatpush1.xpose.msra.mxu0 0.0
        %2910 = vmatprep.subr.mxu0 0.0
        %2911 = vmatpush1.xpose.msra.mxu0 0.0
        %2912 = vmatprep.subr.mxu0 0.0
        %2913 = vmatpush1.xpose.msra.mxu0 0.0
        %2914 = vmatprep.subr.mxu0 0.0
        %2915 = vmatpush1.xpose.msra.mxu0 0.0
        %2916 = vmatprep.subr.mxu0 0.0
        %2917 = vmatpush1.xpose.msra.mxu0 0.0
        %2918 = vmatprep.subr.mxu0 0.0
        %2919 = vmatpush1.xpose.msra.mxu0 0.0
        %2920 = vmatprep.subr.mxu0 0.0
        %2921 = vmatpush1.xpose.msra.mxu0 0.0
        %2922 = vmatprep.subr.mxu0 0.0
        %2923 = vmatpush1.xpose.msra.mxu0 0.0
        %2924 = vmatprep.subr.mxu0 0.0
        %2925 = vmatpush1.xpose.msra.mxu0 0.0
        %2926 = vmatprep.subr.mxu0 0.0
        %2927 = vmatpush1.xpose.msra.mxu0 %v2748
        %2928 = vmatprep.subr.mxu0 0.0
        %2929 = vmatpush2.xpose.msra.mxu0 0.0
        %2930 = vmatprep.subr.mxu0 0.0
        %2931 = vmatpush2.xpose.msra.mxu0 0.0
        %2932 = vmatprep.subr.mxu0 0.0
        %2933 = vmatpush2.xpose.msra.mxu0 0.0
        %2934 = vmatprep.subr.mxu0 0.0
        %2935 = vmatpush2.xpose.msra.mxu0 0.0
        %2936 = vmatprep.subr.mxu0 0.0
        %2937 = vmatpush2.xpose.msra.mxu0 0.0
        %2938 = vmatprep.subr.mxu0 0.0
        %2939 = vmatpush2.xpose.msra.mxu0 0.0
        %2940 = vmatprep.subr.mxu0 0.0
        %2941 = vmatpush2.xpose.msra.mxu0 0.0
        %2942 = vmatprep.subr.mxu0 0.0
        %2943 = vmatpush2.xpose.msra.mxu0 0.0
        %2944 = vmatprep.subr.mxu0 0.0
        %2945 = vmatpush2.xpose.msra.mxu0 0.0
        %2946 = vmatprep.subr.mxu0 0.0
        %2947 = vmatpush2.xpose.msra.mxu0 0.0
        %2948 = vmatprep.subr.mxu0 0.0
        %2949 = vmatpush2.xpose.msra.mxu0 0.0
        %2950 = vmatprep.subr.mxu0 0.0
        %2951 = vmatpush2.xpose.msra.mxu0 0.0
        %2952 = vmatprep.subr.mxu0 0.0
        %2953 = vmatpush2.xpose.msra.mxu0 0.0
        %2954 = vmatprep.subr.mxu0 0.0
        %2955 = vmatpush2.xpose.msra.mxu0 0.0
        %2956 = vmatprep.subr.mxu0 0.0
        %2957 = vmatpush2.xpose.msra.mxu0 0.0
        %2958 = vmatprep.subr.mxu0 0.0
        %2959 = vmatpush2.xpose.msra.mxu0 0.0
        %2960 = vmatprep.mubr.f32.mxu0 0.0
        %2961 = vmatmul.mubr.f32.gmra.mxu0 %v2894
        %v2962 = vpop.f32.mrf.mxu0
        %v2963 = vadd.f32 0.0, %v2962
        %v2964 = vpop.f32.mrf.mxu0
        %2965 = vdwg.mxu0
        %v2967 = vsel %vm467, %v458, 0
        %2969 = vmatprep.subr.mxu0 0.0
        %2970 = vmatpush1.xpose.msra.mxu0 0.0
        %2971 = vmatprep.subr.mxu0 0.0
        %2972 = vmatpush1.xpose.msra.mxu0 0.0
        %2973 = vmatprep.subr.mxu0 0.0
        %2974 = vmatpush1.xpose.msra.mxu0 0.0
        %2975 = vmatprep.subr.mxu0 0.0
        %2976 = vmatpush1.xpose.msra.mxu0 0.0
        %2977 = vmatprep.subr.mxu0 0.0
        %2978 = vmatpush1.xpose.msra.mxu0 0.0
        %2979 = vmatprep.subr.mxu0 0.0
        %2980 = vmatpush1.xpose.msra.mxu0 0.0
        %2981 = vmatprep.subr.mxu0 0.0
        %2982 = vmatpush1.xpose.msra.mxu0 0.0
        %2983 = vmatprep.subr.mxu0 0.0
        %2984 = vmatpush1.xpose.msra.mxu0 0.0
        %2985 = vmatprep.subr.mxu0 0.0
        %2986 = vmatpush1.xpose.msra.mxu0 0.0
        %2987 = vmatprep.subr.mxu0 0.0
        %2988 = vmatpush1.xpose.msra.mxu0 0.0
        %2989 = vmatprep.subr.mxu0 0.0
        %2990 = vmatpush1.xpose.msra.mxu0 0.0
        %2991 = vmatprep.subr.mxu0 0.0
        %2992 = vmatpush1.xpose.msra.mxu0 0.0
        %2993 = vmatprep.subr.mxu0 0.0
        %2994 = vmatpush1.xpose.msra.mxu0 0.0
        %2995 = vmatprep.subr.mxu0 0.0
        %2996 = vmatpush1.xpose.msra.mxu0 0.0
        %2997 = vmatprep.subr.mxu0 0.0
        %2998 = vmatpush1.xpose.msra.mxu0 0.0
        %2999 = vmatprep.subr.mxu0 0.0
        %3000 = vmatpush1.xpose.msra.mxu0 %v2748
        %3001 = vmatprep.subr.mxu0 0.0
        %3002 = vmatpush2.xpose.msra.mxu0 0.0
        %3003 = vmatprep.subr.mxu0 0.0
        %3004 = vmatpush2.xpose.msra.mxu0 0.0
        %3005 = vmatprep.subr.mxu0 0.0
        %3006 = vmatpush2.xpose.msra.mxu0 0.0
        %3007 = vmatprep.subr.mxu0 0.0
        %3008 = vmatpush2.xpose.msra.mxu0 0.0
        %3009 = vmatprep.subr.mxu0 0.0
        %3010 = vmatpush2.xpose.msra.mxu0 0.0
        %3011 = vmatprep.subr.mxu0 0.0
        %3012 = vmatpush2.xpose.msra.mxu0 0.0
        %3013 = vmatprep.subr.mxu0 0.0
        %3014 = vmatpush2.xpose.msra.mxu0 0.0
        %3015 = vmatprep.subr.mxu0 0.0
        %3016 = vmatpush2.xpose.msra.mxu0 0.0
        %3017 = vmatprep.subr.mxu0 0.0
        %3018 = vmatpush2.xpose.msra.mxu0 0.0
        %3019 = vmatprep.subr.mxu0 0.0
        %3020 = vmatpush2.xpose.msra.mxu0 0.0
        %3021 = vmatprep.subr.mxu0 0.0
        %3022 = vmatpush2.xpose.msra.mxu0 0.0
        %3023 = vmatprep.subr.mxu0 0.0
        %3024 = vmatpush2.xpose.msra.mxu0 0.0
        %3025 = vmatprep.subr.mxu0 0.0
        %3026 = vmatpush2.xpose.msra.mxu0 0.0
        %3027 = vmatprep.subr.mxu0 0.0
        %3028 = vmatpush2.xpose.msra.mxu0 0.0
        %3029 = vmatprep.subr.mxu0 0.0
        %3030 = vmatpush2.xpose.msra.mxu0 0.0
        %3031 = vmatprep.subr.mxu0 0.0
        %3032 = vmatpush2.xpose.msra.mxu0 0.0
        %3033 = vmatprep.mubr.f32.mxu0 0.0
        %3034 = vmatmul.mubr.f32.gmra.mxu0 %v2967
        %v3035 = vpop.f32.mrf.mxu0
        %v3036 = vadd.f32 0.0, %v3035
        %v3037 = vpop.f32.mrf.mxu0
        %3038 = vdwg.mxu0
        %v3040 = vsel %vm467, %v440, 0
        %3042 = vmatprep.subr.mxu0 0.0
        %3043 = vmatpush1.xpose.msra.mxu0 0.0
        %3044 = vmatprep.subr.mxu0 0.0
        %3045 = vmatpush1.xpose.msra.mxu0 0.0
        %3046 = vmatprep.subr.mxu0 0.0
        %3047 = vmatpush1.xpose.msra.mxu0 0.0
        %3048 = vmatprep.subr.mxu0 0.0
        %3049 = vmatpush1.xpose.msra.mxu0 0.0
        %3050 = vmatprep.subr.mxu0 0.0
        %3051 = vmatpush1.xpose.msra.mxu0 0.0
        %3052 = vmatprep.subr.mxu0 0.0
        %3053 = vmatpush1.xpose.msra.mxu0 0.0
        %3054 = vmatprep.subr.mxu0 0.0
        %3055 = vmatpush1.xpose.msra.mxu0 0.0
        %3056 = vmatprep.subr.mxu0 0.0
        %3057 = vmatpush1.xpose.msra.mxu0 0.0
        %3058 = vmatprep.subr.mxu0 0.0
        %3059 = vmatpush1.xpose.msra.mxu0 0.0
        %3060 = vmatprep.subr.mxu0 0.0
        %3061 = vmatpush1.xpose.msra.mxu0 0.0
        %3062 = vmatprep.subr.mxu0 0.0
        %3063 = vmatpush1.xpose.msra.mxu0 0.0
        %3064 = vmatprep.subr.mxu0 0.0
        %3065 = vmatpush1.xpose.msra.mxu0 0.0
        %3066 = vmatprep.subr.mxu0 0.0
        %3067 = vmatpush1.xpose.msra.mxu0 0.0
        %3068 = vmatprep.subr.mxu0 0.0
        %3069 = vmatpush1.xpose.msra.mxu0 0.0
        %3070 = vmatprep.subr.mxu0 0.0
        %3071 = vmatpush1.xpose.msra.mxu0 0.0
        %3072 = vmatprep.subr.mxu0 0.0
        %3073 = vmatpush1.xpose.msra.mxu0 %v3040
        %3074 = vmatprep.subr.mxu0 0.0
        %3075 = vmatpush2.xpose.msra.mxu0 0.0
        %3076 = vmatprep.subr.mxu0 0.0
        %3077 = vmatpush2.xpose.msra.mxu0 0.0
        %3078 = vmatprep.subr.mxu0 0.0
        %3079 = vmatpush2.xpose.msra.mxu0 0.0
        %3080 = vmatprep.subr.mxu0 0.0
        %3081 = vmatpush2.xpose.msra.mxu0 0.0
        %3082 = vmatprep.subr.mxu0 0.0
        %3083 = vmatpush2.xpose.msra.mxu0 0.0
        %3084 = vmatprep.subr.mxu0 0.0
        %3085 = vmatpush2.xpose.msra.mxu0 0.0
        %3086 = vmatprep.subr.mxu0 0.0
        %3087 = vmatpush2.xpose.msra.mxu0 0.0
        %3088 = vmatprep.subr.mxu0 0.0
        %3089 = vmatpush2.xpose.msra.mxu0 0.0
        %3090 = vmatprep.subr.mxu0 0.0
        %3091 = vmatpush2.xpose.msra.mxu0 0.0
        %3092 = vmatprep.subr.mxu0 0.0
        %3093 = vmatpush2.xpose.msra.mxu0 0.0
        %3094 = vmatprep.subr.mxu0 0.0
        %3095 = vmatpush2.xpose.msra.mxu0 0.0
        %3096 = vmatprep.subr.mxu0 0.0
        %3097 = vmatpush2.xpose.msra.mxu0 0.0
        %3098 = vmatprep.subr.mxu0 0.0
        %3099 = vmatpush2.xpose.msra.mxu0 0.0
        %3100 = vmatprep.subr.mxu0 0.0
        %3101 = vmatpush2.xpose.msra.mxu0 0.0
        %3102 = vmatprep.subr.mxu0 0.0
        %3103 = vmatpush2.xpose.msra.mxu0 0.0
        %3104 = vmatprep.subr.mxu0 0.0
        %3105 = vmatpush2.xpose.msra.mxu0 0.0
        %3106 = vmatprep.mubr.f32.mxu0 0.0
        %3107 = vmatmul.mubr.f32.gmra.mxu0 %v2745
        %v3108 = vpop.f32.mrf.mxu0
        %v3109 = vadd.f32 0.0, %v3108
        %v3110 = vpop.f32.mrf.mxu0
        %3111 = vdwg.mxu0
        %3112 = vmatprep.subr.mxu0 0.0
        %3113 = vmatpush1.xpose.msra.mxu0 0.0
        %3114 = vmatprep.subr.mxu0 0.0
        %3115 = vmatpush1.xpose.msra.mxu0 0.0
        %3116 = vmatprep.subr.mxu0 0.0
        %3117 = vmatpush1.xpose.msra.mxu0 0.0
        %3118 = vmatprep.subr.mxu0 0.0
        %3119 = vmatpush1.xpose.msra.mxu0 0.0
        %3120 = vmatprep.subr.mxu0 0.0
        %3121 = vmatpush1.xpose.msra.mxu0 0.0
        %3122 = vmatprep.subr.mxu0 0.0
        %3123 = vmatpush1.xpose.msra.mxu0 0.0
        %3124 = vmatprep.subr.mxu0 0.0
        %3125 = vmatpush1.xpose.msra.mxu0 0.0
        %3126 = vmatprep.subr.mxu0 0.0
        %3127 = vmatpush1.xpose.msra.mxu0 0.0
        %3128 = vmatprep.subr.mxu0 0.0
        %3129 = vmatpush1.xpose.msra.mxu0 0.0
        %3130 = vmatprep.subr.mxu0 0.0
        %3131 = vmatpush1.xpose.msra.mxu0 0.0
        %3132 = vmatprep.subr.mxu0 0.0
        %3133 = vmatpush1.xpose.msra.mxu0 0.0
        %3134 = vmatprep.subr.mxu0 0.0
        %3135 = vmatpush1.xpose.msra.mxu0 0.0
        %3136 = vmatprep.subr.mxu0 0.0
        %3137 = vmatpush1.xpose.msra.mxu0 0.0
        %3138 = vmatprep.subr.mxu0 0.0
        %3139 = vmatpush1.xpose.msra.mxu0 0.0
        %3140 = vmatprep.subr.mxu0 0.0
        %3141 = vmatpush1.xpose.msra.mxu0 0.0
        %3142 = vmatprep.subr.mxu0 0.0
        %3143 = vmatpush1.xpose.msra.mxu0 %v3040
        %3144 = vmatprep.subr.mxu0 0.0
        %3145 = vmatpush2.xpose.msra.mxu0 0.0
        %3146 = vmatprep.subr.mxu0 0.0
        %3147 = vmatpush2.xpose.msra.mxu0 0.0
        %3148 = vmatprep.subr.mxu0 0.0
        %3149 = vmatpush2.xpose.msra.mxu0 0.0
        %3150 = vmatprep.subr.mxu0 0.0
        %3151 = vmatpush2.xpose.msra.mxu0 0.0
        %3152 = vmatprep.subr.mxu0 0.0
        %3153 = vmatpush2.xpose.msra.mxu0 0.0
        %3154 = vmatprep.subr.mxu0 0.0
        %3155 = vmatpush2.xpose.msra.mxu0 0.0
        %3156 = vmatprep.subr.mxu0 0.0
        %3157 = vmatpush2.xpose.msra.mxu0 0.0
        %3158 = vmatprep.subr.mxu0 0.0
        %3159 = vmatpush2.xpose.msra.mxu0 0.0
        %3160 = vmatprep.subr.mxu0 0.0
        %3161 = vmatpush2.xpose.msra.mxu0 0.0
        %3162 = vmatprep.subr.mxu0 0.0
        %3163 = vmatpush2.xpose.msra.mxu0 0.0
        %3164 = vmatprep.subr.mxu0 0.0
        %3165 = vmatpush2.xpose.msra.mxu0 0.0
        %3166 = vmatprep.subr.mxu0 0.0
        %3167 = vmatpush2.xpose.msra.mxu0 0.0
        %3168 = vmatprep.subr.mxu0 0.0
        %3169 = vmatpush2.xpose.msra.mxu0 0.0
        %3170 = vmatprep.subr.mxu0 0.0
        %3171 = vmatpush2.xpose.msra.mxu0 0.0
        %3172 = vmatprep.subr.mxu0 0.0
        %3173 = vmatpush2.xpose.msra.mxu0 0.0
        %3174 = vmatprep.subr.mxu0 0.0
        %3175 = vmatpush2.xpose.msra.mxu0 0.0
        %3176 = vmatprep.mubr.f32.mxu0 0.0
        %3177 = vmatmul.mubr.f32.gmra.mxu0 %v2821
        %v3178 = vpop.f32.mrf.mxu0
        %v3179 = vadd.f32 0.0, %v3178
        %v3180 = vpop.f32.mrf.mxu0
        %3181 = vdwg.mxu0
        %3182 = vmatprep.subr.mxu0 0.0
        %3183 = vmatpush1.xpose.msra.mxu0 0.0
        %3184 = vmatprep.subr.mxu0 0.0
        %3185 = vmatpush1.xpose.msra.mxu0 0.0
        %3186 = vmatprep.subr.mxu0 0.0
        %3187 = vmatpush1.xpose.msra.mxu0 0.0
        %3188 = vmatprep.subr.mxu0 0.0
        %3189 = vmatpush1.xpose.msra.mxu0 0.0
        %3190 = vmatprep.subr.mxu0 0.0
        %3191 = vmatpush1.xpose.msra.mxu0 0.0
        %3192 = vmatprep.subr.mxu0 0.0
        %3193 = vmatpush1.xpose.msra.mxu0 0.0
        %3194 = vmatprep.subr.mxu0 0.0
        %3195 = vmatpush1.xpose.msra.mxu0 0.0
        %3196 = vmatprep.subr.mxu0 0.0
        %3197 = vmatpush1.xpose.msra.mxu0 0.0
        %3198 = vmatprep.subr.mxu0 0.0
        %3199 = vmatpush1.xpose.msra.mxu0 0.0
        %3200 = vmatprep.subr.mxu0 0.0
        %3201 = vmatpush1.xpose.msra.mxu0 0.0
        %3202 = vmatprep.subr.mxu0 0.0
        %3203 = vmatpush1.xpose.msra.mxu0 0.0
        %3204 = vmatprep.subr.mxu0 0.0
        %3205 = vmatpush1.xpose.msra.mxu0 0.0
        %3206 = vmatprep.subr.mxu0 0.0
        %3207 = vmatpush1.xpose.msra.mxu0 0.0
        %3208 = vmatprep.subr.mxu0 0.0
        %3209 = vmatpush1.xpose.msra.mxu0 0.0
        %3210 = vmatprep.subr.mxu0 0.0
        %3211 = vmatpush1.xpose.msra.mxu0 0.0
        %3212 = vmatprep.subr.mxu0 0.0
        %3213 = vmatpush1.xpose.msra.mxu0 %v3040
        %3214 = vmatprep.subr.mxu0 0.0
        %3215 = vmatpush2.xpose.msra.mxu0 0.0
        %3216 = vmatprep.subr.mxu0 0.0
        %3217 = vmatpush2.xpose.msra.mxu0 0.0
        %3218 = vmatprep.subr.mxu0 0.0
        %3219 = vmatpush2.xpose.msra.mxu0 0.0
        %3220 = vmatprep.subr.mxu0 0.0
        %3221 = vmatpush2.xpose.msra.mxu0 0.0
        %3222 = vmatprep.subr.mxu0 0.0
        %3223 = vmatpush2.xpose.msra.mxu0 0.0
        %3224 = vmatprep.subr.mxu0 0.0
        %3225 = vmatpush2.xpose.msra.mxu0 0.0
        %3226 = vmatprep.subr.mxu0 0.0
        %3227 = vmatpush2.xpose.msra.mxu0 0.0
        %3228 = vmatprep.subr.mxu0 0.0
        %3229 = vmatpush2.xpose.msra.mxu0 0.0
        %3230 = vmatprep.subr.mxu0 0.0
        %3231 = vmatpush2.xpose.msra.mxu0 0.0
        %3232 = vmatprep.subr.mxu0 0.0
        %3233 = vmatpush2.xpose.msra.mxu0 0.0
        %3234 = vmatprep.subr.mxu0 0.0
        %3235 = vmatpush2.xpose.msra.mxu0 0.0
        %3236 = vmatprep.subr.mxu0 0.0
        %3237 = vmatpush2.xpose.msra.mxu0 0.0
        %3238 = vmatprep.subr.mxu0 0.0
        %3239 = vmatpush2.xpose.msra.mxu0 0.0
        %3240 = vmatprep.subr.mxu0 0.0
        %3241 = vmatpush2.xpose.msra.mxu0 0.0
        %3242 = vmatprep.subr.mxu0 0.0
        %3243 = vmatpush2.xpose.msra.mxu0 0.0
        %3244 = vmatprep.subr.mxu0 0.0
        %3245 = vmatpush2.xpose.msra.mxu0 0.0
        %3246 = vmatprep.mubr.f32.mxu0 0.0
        %3247 = vmatmul.mubr.f32.gmra.mxu0 %v2894
        %v3248 = vpop.f32.mrf.mxu0
        %v3249 = vadd.f32 0.0, %v3248
        %v3250 = vpop.f32.mrf.mxu0
        %3251 = vdwg.mxu0
        %3252 = vmatprep.subr.mxu0 0.0
        %3253 = vmatpush1.xpose.msra.mxu0 0.0
        %3254 = vmatprep.subr.mxu0 0.0
        %3255 = vmatpush1.xpose.msra.mxu0 0.0
        %3256 = vmatprep.subr.mxu0 0.0
        %3257 = vmatpush1.xpose.msra.mxu0 0.0
        %3258 = vmatprep.subr.mxu0 0.0
        %3259 = vmatpush1.xpose.msra.mxu0 0.0
        %3260 = vmatprep.subr.mxu0 0.0
        %3261 = vmatpush1.xpose.msra.mxu0 0.0
        %3262 = vmatprep.subr.mxu0 0.0
        %3263 = vmatpush1.xpose.msra.mxu0 0.0
        %3264 = vmatprep.subr.mxu0 0.0
        %3265 = vmatpush1.xpose.msra.mxu0 0.0
        %3266 = vmatprep.subr.mxu0 0.0
        %3267 = vmatpush1.xpose.msra.mxu0 0.0
        %3268 = vmatprep.subr.mxu0 0.0
        %3269 = vmatpush1.xpose.msra.mxu0 0.0
        %3270 = vmatprep.subr.mxu0 0.0
        %3271 = vmatpush1.xpose.msra.mxu0 0.0
        %3272 = vmatprep.subr.mxu0 0.0
        %3273 = vmatpush1.xpose.msra.mxu0 0.0
        %3274 = vmatprep.subr.mxu0 0.0
        %3275 = vmatpush1.xpose.msra.mxu0 0.0
        %3276 = vmatprep.subr.mxu0 0.0
        %3277 = vmatpush1.xpose.msra.mxu0 0.0
        %3278 = vmatprep.subr.mxu0 0.0
        %3279 = vmatpush1.xpose.msra.mxu0 0.0
        %3280 = vmatprep.subr.mxu0 0.0
        %3281 = vmatpush1.xpose.msra.mxu0 0.0
        %3282 = vmatprep.subr.mxu0 0.0
        %3283 = vmatpush1.xpose.msra.mxu0 %v3040
        %3284 = vmatprep.subr.mxu0 0.0
        %3285 = vmatpush2.xpose.msra.mxu0 0.0
        %3286 = vmatprep.subr.mxu0 0.0
        %3287 = vmatpush2.xpose.msra.mxu0 0.0
        %3288 = vmatprep.subr.mxu0 0.0
        %3289 = vmatpush2.xpose.msra.mxu0 0.0
        %3290 = vmatprep.subr.mxu0 0.0
        %3291 = vmatpush2.xpose.msra.mxu0 0.0
        %3292 = vmatprep.subr.mxu0 0.0
        %3293 = vmatpush2.xpose.msra.mxu0 0.0
        %3294 = vmatprep.subr.mxu0 0.0
        %3295 = vmatpush2.xpose.msra.mxu0 0.0
        %3296 = vmatprep.subr.mxu0 0.0
        %3297 = vmatpush2.xpose.msra.mxu0 0.0
        %3298 = vmatprep.subr.mxu0 0.0
        %3299 = vmatpush2.xpose.msra.mxu0 0.0
        %3300 = vmatprep.subr.mxu0 0.0
        %3301 = vmatpush2.xpose.msra.mxu0 0.0
        %3302 = vmatprep.subr.mxu0 0.0
        %3303 = vmatpush2.xpose.msra.mxu0 0.0
        %3304 = vmatprep.subr.mxu0 0.0
        %3305 = vmatpush2.xpose.msra.mxu0 0.0
        %3306 = vmatprep.subr.mxu0 0.0
        %3307 = vmatpush2.xpose.msra.mxu0 0.0
        %3308 = vmatprep.subr.mxu0 0.0
        %3309 = vmatpush2.xpose.msra.mxu0 0.0
        %3310 = vmatprep.subr.mxu0 0.0
        %3311 = vmatpush2.xpose.msra.mxu0 0.0
        %3312 = vmatprep.subr.mxu0 0.0
        %3313 = vmatpush2.xpose.msra.mxu0 0.0
        %3314 = vmatprep.subr.mxu0 0.0
        %3315 = vmatpush2.xpose.msra.mxu0 0.0
        %3316 = vmatprep.mubr.f32.mxu0 0.0
        %3317 = vmatmul.mubr.f32.gmra.mxu0 %v2967
        %v3318 = vpop.f32.mrf.mxu0
        %v3319 = vadd.f32 0.0, %v3318
        %v3320 = vpop.f32.mrf.mxu0
        %3321 = vdwg.mxu0
        %v3323 = vsel %vm467, %v441, 0
        %3325 = vmatprep.subr.mxu0 0.0
        %3326 = vmatpush1.xpose.msra.mxu0 0.0
        %3327 = vmatprep.subr.mxu0 0.0
        %3328 = vmatpush1.xpose.msra.mxu0 0.0
        %3329 = vmatprep.subr.mxu0 0.0
        %3330 = vmatpush1.xpose.msra.mxu0 0.0
        %3331 = vmatprep.subr.mxu0 0.0
        %3332 = vmatpush1.xpose.msra.mxu0 0.0
        %3333 = vmatprep.subr.mxu0 0.0
        %3334 = vmatpush1.xpose.msra.mxu0 0.0
        %3335 = vmatprep.subr.mxu0 0.0
        %3336 = vmatpush1.xpose.msra.mxu0 0.0
        %3337 = vmatprep.subr.mxu0 0.0
        %3338 = vmatpush1.xpose.msra.mxu0 0.0
        %3339 = vmatprep.subr.mxu0 0.0
        %3340 = vmatpush1.xpose.msra.mxu0 0.0
        %3341 = vmatprep.subr.mxu0 0.0
        %3342 = vmatpush1.xpose.msra.mxu0 0.0
        %3343 = vmatprep.subr.mxu0 0.0
        %3344 = vmatpush1.xpose.msra.mxu0 0.0
        %3345 = vmatprep.subr.mxu0 0.0
        %3346 = vmatpush1.xpose.msra.mxu0 0.0
        %3347 = vmatprep.subr.mxu0 0.0
        %3348 = vmatpush1.xpose.msra.mxu0 0.0
        %3349 = vmatprep.subr.mxu0 0.0
        %3350 = vmatpush1.xpose.msra.mxu0 0.0
        %3351 = vmatprep.subr.mxu0 0.0
        %3352 = vmatpush1.xpose.msra.mxu0 0.0
        %3353 = vmatprep.subr.mxu0 0.0
        %3354 = vmatpush1.xpose.msra.mxu0 0.0
        %3355 = vmatprep.subr.mxu0 0.0
        %3356 = vmatpush1.xpose.msra.mxu0 %v3323
        %3357 = vmatprep.subr.mxu0 0.0
        %3358 = vmatpush2.xpose.msra.mxu0 0.0
        %3359 = vmatprep.subr.mxu0 0.0
        %3360 = vmatpush2.xpose.msra.mxu0 0.0
        %3361 = vmatprep.subr.mxu0 0.0
        %3362 = vmatpush2.xpose.msra.mxu0 0.0
        %3363 = vmatprep.subr.mxu0 0.0
        %3364 = vmatpush2.xpose.msra.mxu0 0.0
        %3365 = vmatprep.subr.mxu0 0.0
        %3366 = vmatpush2.xpose.msra.mxu0 0.0
        %3367 = vmatprep.subr.mxu0 0.0
        %3368 = vmatpush2.xpose.msra.mxu0 0.0
        %3369 = vmatprep.subr.mxu0 0.0
        %3370 = vmatpush2.xpose.msra.mxu0 0.0
        %3371 = vmatprep.subr.mxu0 0.0
        %3372 = vmatpush2.xpose.msra.mxu0 0.0
        %3373 = vmatprep.subr.mxu0 0.0
        %3374 = vmatpush2.xpose.msra.mxu0 0.0
        %3375 = vmatprep.subr.mxu0 0.0
        %3376 = vmatpush2.xpose.msra.mxu0 0.0
        %3377 = vmatprep.subr.mxu0 0.0
        %3378 = vmatpush2.xpose.msra.mxu0 0.0
        %3379 = vmatprep.subr.mxu0 0.0
        %3380 = vmatpush2.xpose.msra.mxu0 0.0
        %3381 = vmatprep.subr.mxu0 0.0
        %3382 = vmatpush2.xpose.msra.mxu0 0.0
        %3383 = vmatprep.subr.mxu0 0.0
        %3384 = vmatpush2.xpose.msra.mxu0 0.0
        %3385 = vmatprep.subr.mxu0 0.0
        %3386 = vmatpush2.xpose.msra.mxu0 0.0
        %3387 = vmatprep.subr.mxu0 0.0
        %3388 = vmatpush2.xpose.msra.mxu0 0.0
        %3389 = vmatprep.mubr.f32.mxu0 0.0
        %3390 = vmatmul.mubr.f32.gmra.mxu0 %v2745
        %v3391 = vpop.f32.mrf.mxu0
        %v3392 = vadd.f32 0.0, %v3391
        %v3393 = vpop.f32.mrf.mxu0
        %3394 = vdwg.mxu0
        %3395 = vmatprep.subr.mxu0 0.0
        %3396 = vmatpush1.xpose.msra.mxu0 0.0
        %3397 = vmatprep.subr.mxu0 0.0
        %3398 = vmatpush1.xpose.msra.mxu0 0.0
        %3399 = vmatprep.subr.mxu0 0.0
        %3400 = vmatpush1.xpose.msra.mxu0 0.0
        %3401 = vmatprep.subr.mxu0 0.0
        %3402 = vmatpush1.xpose.msra.mxu0 0.0
        %3403 = vmatprep.subr.mxu0 0.0
        %3404 = vmatpush1.xpose.msra.mxu0 0.0
        %3405 = vmatprep.subr.mxu0 0.0
        %3406 = vmatpush1.xpose.msra.mxu0 0.0
        %3407 = vmatprep.subr.mxu0 0.0
        %3408 = vmatpush1.xpose.msra.mxu0 0.0
        %3409 = vmatprep.subr.mxu0 0.0
        %3410 = vmatpush1.xpose.msra.mxu0 0.0
        %3411 = vmatprep.subr.mxu0 0.0
        %3412 = vmatpush1.xpose.msra.mxu0 0.0
        %3413 = vmatprep.subr.mxu0 0.0
        %3414 = vmatpush1.xpose.msra.mxu0 0.0
        %3415 = vmatprep.subr.mxu0 0.0
        %3416 = vmatpush1.xpose.msra.mxu0 0.0
        %3417 = vmatprep.subr.mxu0 0.0
        %3418 = vmatpush1.xpose.msra.mxu0 0.0
        %3419 = vmatprep.subr.mxu0 0.0
        %3420 = vmatpush1.xpose.msra.mxu0 0.0
        %3421 = vmatprep.subr.mxu0 0.0
        %3422 = vmatpush1.xpose.msra.mxu0 0.0
        %3423 = vmatprep.subr.mxu0 0.0
        %3424 = vmatpush1.xpose.msra.mxu0 0.0
        %3425 = vmatprep.subr.mxu0 0.0
        %3426 = vmatpush1.xpose.msra.mxu0 %v3323
        %3427 = vmatprep.subr.mxu0 0.0
        %3428 = vmatpush2.xpose.msra.mxu0 0.0
        %3429 = vmatprep.subr.mxu0 0.0
        %3430 = vmatpush2.xpose.msra.mxu0 0.0
        %3431 = vmatprep.subr.mxu0 0.0
        %3432 = vmatpush2.xpose.msra.mxu0 0.0
        %3433 = vmatprep.subr.mxu0 0.0
        %3434 = vmatpush2.xpose.msra.mxu0 0.0
        %3435 = vmatprep.subr.mxu0 0.0
        %3436 = vmatpush2.xpose.msra.mxu0 0.0
        %3437 = vmatprep.subr.mxu0 0.0
        %3438 = vmatpush2.xpose.msra.mxu0 0.0
        %3439 = vmatprep.subr.mxu0 0.0
        %3440 = vmatpush2.xpose.msra.mxu0 0.0
        %3441 = vmatprep.subr.mxu0 0.0
        %3442 = vmatpush2.xpose.msra.mxu0 0.0
        %3443 = vmatprep.subr.mxu0 0.0
        %3444 = vmatpush2.xpose.msra.mxu0 0.0
        %3445 = vmatprep.subr.mxu0 0.0
        %3446 = vmatpush2.xpose.msra.mxu0 0.0
        %3447 = vmatprep.subr.mxu0 0.0
        %3448 = vmatpush2.xpose.msra.mxu0 0.0
        %3449 = vmatprep.subr.mxu0 0.0
        %3450 = vmatpush2.xpose.msra.mxu0 0.0
        %3451 = vmatprep.subr.mxu0 0.0
        %3452 = vmatpush2.xpose.msra.mxu0 0.0
        %3453 = vmatprep.subr.mxu0 0.0
        %3454 = vmatpush2.xpose.msra.mxu0 0.0
        %3455 = vmatprep.subr.mxu0 0.0
        %3456 = vmatpush2.xpose.msra.mxu0 0.0
        %3457 = vmatprep.subr.mxu0 0.0
        %3458 = vmatpush2.xpose.msra.mxu0 0.0
        %3459 = vmatprep.mubr.f32.mxu0 0.0
        %3460 = vmatmul.mubr.f32.gmra.mxu0 %v2821
        %v3461 = vpop.f32.mrf.mxu0
        %v3462 = vadd.f32 0.0, %v3461
        %v3463 = vpop.f32.mrf.mxu0
        %3464 = vdwg.mxu0
        %3465 = vmatprep.subr.mxu0 0.0
        %3466 = vmatpush1.xpose.msra.mxu0 0.0
        %3467 = vmatprep.subr.mxu0 0.0
        %3468 = vmatpush1.xpose.msra.mxu0 0.0
        %3469 = vmatprep.subr.mxu0 0.0
        %3470 = vmatpush1.xpose.msra.mxu0 0.0
        %3471 = vmatprep.subr.mxu0 0.0
        %3472 = vmatpush1.xpose.msra.mxu0 0.0
        %3473 = vmatprep.subr.mxu0 0.0
        %3474 = vmatpush1.xpose.msra.mxu0 0.0
        %3475 = vmatprep.subr.mxu0 0.0
        %3476 = vmatpush1.xpose.msra.mxu0 0.0
        %3477 = vmatprep.subr.mxu0 0.0
        %3478 = vmatpush1.xpose.msra.mxu0 0.0
        %3479 = vmatprep.subr.mxu0 0.0
        %3480 = vmatpush1.xpose.msra.mxu0 0.0
        %3481 = vmatprep.subr.mxu0 0.0
        %3482 = vmatpush1.xpose.msra.mxu0 0.0
        %3483 = vmatprep.subr.mxu0 0.0
        %3484 = vmatpush1.xpose.msra.mxu0 0.0
        %3485 = vmatprep.subr.mxu0 0.0
        %3486 = vmatpush1.xpose.msra.mxu0 0.0
        %3487 = vmatprep.subr.mxu0 0.0
        %3488 = vmatpush1.xpose.msra.mxu0 0.0
        %3489 = vmatprep.subr.mxu0 0.0
        %3490 = vmatpush1.xpose.msra.mxu0 0.0
        %3491 = vmatprep.subr.mxu0 0.0
        %3492 = vmatpush1.xpose.msra.mxu0 0.0
        %3493 = vmatprep.subr.mxu0 0.0
        %3494 = vmatpush1.xpose.msra.mxu0 0.0
        %3495 = vmatprep.subr.mxu0 0.0
        %3496 = vmatpush1.xpose.msra.mxu0 %v3323
        %3497 = vmatprep.subr.mxu0 0.0
        %3498 = vmatpush2.xpose.msra.mxu0 0.0
        %3499 = vmatprep.subr.mxu0 0.0
        %3500 = vmatpush2.xpose.msra.mxu0 0.0
        %3501 = vmatprep.subr.mxu0 0.0
        %3502 = vmatpush2.xpose.msra.mxu0 0.0
        %3503 = vmatprep.subr.mxu0 0.0
        %3504 = vmatpush2.xpose.msra.mxu0 0.0
        %3505 = vmatprep.subr.mxu0 0.0
        %3506 = vmatpush2.xpose.msra.mxu0 0.0
        %3507 = vmatprep.subr.mxu0 0.0
        %3508 = vmatpush2.xpose.msra.mxu0 0.0
        %3509 = vmatprep.subr.mxu0 0.0
        %3510 = vmatpush2.xpose.msra.mxu0 0.0
        %3511 = vmatprep.subr.mxu0 0.0
        %3512 = vmatpush2.xpose.msra.mxu0 0.0
        %3513 = vmatprep.subr.mxu0 0.0
        %3514 = vmatpush2.xpose.msra.mxu0 0.0
        %3515 = vmatprep.subr.mxu0 0.0
        %3516 = vmatpush2.xpose.msra.mxu0 0.0
        %3517 = vmatprep.subr.mxu0 0.0
        %3518 = vmatpush2.xpose.msra.mxu0 0.0
        %3519 = vmatprep.subr.mxu0 0.0
        %3520 = vmatpush2.xpose.msra.mxu0 0.0
        %3521 = vmatprep.subr.mxu0 0.0
        %3522 = vmatpush2.xpose.msra.mxu0 0.0
        %3523 = vmatprep.subr.mxu0 0.0
        %3524 = vmatpush2.xpose.msra.mxu0 0.0
        %3525 = vmatprep.subr.mxu0 0.0
        %3526 = vmatpush2.xpose.msra.mxu0 0.0
        %3527 = vmatprep.subr.mxu0 0.0
        %3528 = vmatpush2.xpose.msra.mxu0 0.0
        %3529 = vmatprep.mubr.f32.mxu0 0.0
        %3530 = vmatmul.mubr.f32.gmra.mxu0 %v2894
        %v3531 = vpop.f32.mrf.mxu0
        %v3532 = vadd.f32 0.0, %v3531
        %v3533 = vpop.f32.mrf.mxu0
        %3534 = vdwg.mxu0
        %3535 = vmatprep.subr.mxu0 0.0
        %3536 = vmatpush1.xpose.msra.mxu0 0.0
        %3537 = vmatprep.subr.mxu0 0.0
        %3538 = vmatpush1.xpose.msra.mxu0 0.0
        %3539 = vmatprep.subr.mxu0 0.0
        %3540 = vmatpush1.xpose.msra.mxu0 0.0
        %3541 = vmatprep.subr.mxu0 0.0
        %3542 = vmatpush1.xpose.msra.mxu0 0.0
        %3543 = vmatprep.subr.mxu0 0.0
        %3544 = vmatpush1.xpose.msra.mxu0 0.0
        %3545 = vmatprep.subr.mxu0 0.0
        %3546 = vmatpush1.xpose.msra.mxu0 0.0
        %3547 = vmatprep.subr.mxu0 0.0
        %3548 = vmatpush1.xpose.msra.mxu0 0.0
        %3549 = vmatprep.subr.mxu0 0.0
        %3550 = vmatpush1.xpose.msra.mxu0 0.0
        %3551 = vmatprep.subr.mxu0 0.0
        %3552 = vmatpush1.xpose.msra.mxu0 0.0
        %3553 = vmatprep.subr.mxu0 0.0
        %3554 = vmatpush1.xpose.msra.mxu0 0.0
        %3555 = vmatprep.subr.mxu0 0.0
        %3556 = vmatpush1.xpose.msra.mxu0 0.0
        %3557 = vmatprep.subr.mxu0 0.0
        %3558 = vmatpush1.xpose.msra.mxu0 0.0
        %3559 = vmatprep.subr.mxu0 0.0
        %3560 = vmatpush1.xpose.msra.mxu0 0.0
        %3561 = vmatprep.subr.mxu0 0.0
        %3562 = vmatpush1.xpose.msra.mxu0 0.0
        %3563 = vmatprep.subr.mxu0 0.0
        %3564 = vmatpush1.xpose.msra.mxu0 0.0
        %3565 = vmatprep.subr.mxu0 0.0
        %3566 = vmatpush1.xpose.msra.mxu0 %v3323
        %3567 = vmatprep.subr.mxu0 0.0
        %3568 = vmatpush2.xpose.msra.mxu0 0.0
        %3569 = vmatprep.subr.mxu0 0.0
        %3570 = vmatpush2.xpose.msra.mxu0 0.0
        %3571 = vmatprep.subr.mxu0 0.0
        %3572 = vmatpush2.xpose.msra.mxu0 0.0
        %3573 = vmatprep.subr.mxu0 0.0
        %3574 = vmatpush2.xpose.msra.mxu0 0.0
        %3575 = vmatprep.subr.mxu0 0.0
        %3576 = vmatpush2.xpose.msra.mxu0 0.0
        %3577 = vmatprep.subr.mxu0 0.0
        %3578 = vmatpush2.xpose.msra.mxu0 0.0
        %3579 = vmatprep.subr.mxu0 0.0
        %3580 = vmatpush2.xpose.msra.mxu0 0.0
        %3581 = vmatprep.subr.mxu0 0.0
        %3582 = vmatpush2.xpose.msra.mxu0 0.0
        %3583 = vmatprep.subr.mxu0 0.0
        %3584 = vmatpush2.xpose.msra.mxu0 0.0
        %3585 = vmatprep.subr.mxu0 0.0
        %3586 = vmatpush2.xpose.msra.mxu0 0.0
        %3587 = vmatprep.subr.mxu0 0.0
        %3588 = vmatpush2.xpose.msra.mxu0 0.0
        %3589 = vmatprep.subr.mxu0 0.0
        %3590 = vmatpush2.xpose.msra.mxu0 0.0
        %3591 = vmatprep.subr.mxu0 0.0
        %3592 = vmatpush2.xpose.msra.mxu0 0.0
        %3593 = vmatprep.subr.mxu0 0.0
        %3594 = vmatpush2.xpose.msra.mxu0 0.0
        %3595 = vmatprep.subr.mxu0 0.0
        %3596 = vmatpush2.xpose.msra.mxu0 0.0
        %3597 = vmatprep.subr.mxu0 0.0
        %3598 = vmatpush2.xpose.msra.mxu0 0.0
        %3599 = vmatprep.mubr.f32.mxu0 0.0
        %3600 = vmatmul.mubr.f32.gmra.mxu0 %v2967
        %v3601 = vpop.f32.mrf.mxu0
        %v3602 = vadd.f32 0.0, %v3601
        %v3603 = vpop.f32.mrf.mxu0
        %3604 = vdwg.mxu0
        %v3606 = vsel %vm467, %v442, 0
        %3608 = vmatprep.subr.mxu0 0.0
        %3609 = vmatpush1.xpose.msra.mxu0 0.0
        %3610 = vmatprep.subr.mxu0 0.0
        %3611 = vmatpush1.xpose.msra.mxu0 0.0
        %3612 = vmatprep.subr.mxu0 0.0
        %3613 = vmatpush1.xpose.msra.mxu0 0.0
        %3614 = vmatprep.subr.mxu0 0.0
        %3615 = vmatpush1.xpose.msra.mxu0 0.0
        %3616 = vmatprep.subr.mxu0 0.0
        %3617 = vmatpush1.xpose.msra.mxu0 0.0
        %3618 = vmatprep.subr.mxu0 0.0
        %3619 = vmatpush1.xpose.msra.mxu0 0.0
        %3620 = vmatprep.subr.mxu0 0.0
        %3621 = vmatpush1.xpose.msra.mxu0 0.0
        %3622 = vmatprep.subr.mxu0 0.0
        %3623 = vmatpush1.xpose.msra.mxu0 0.0
        %3624 = vmatprep.subr.mxu0 0.0
        %3625 = vmatpush1.xpose.msra.mxu0 0.0
        %3626 = vmatprep.subr.mxu0 0.0
        %3627 = vmatpush1.xpose.msra.mxu0 0.0
        %3628 = vmatprep.subr.mxu0 0.0
        %3629 = vmatpush1.xpose.msra.mxu0 0.0
        %3630 = vmatprep.subr.mxu0 0.0
        %3631 = vmatpush1.xpose.msra.mxu0 0.0
        %3632 = vmatprep.subr.mxu0 0.0
        %3633 = vmatpush1.xpose.msra.mxu0 0.0
        %3634 = vmatprep.subr.mxu0 0.0
        %3635 = vmatpush1.xpose.msra.mxu0 0.0
        %3636 = vmatprep.subr.mxu0 0.0
        %3637 = vmatpush1.xpose.msra.mxu0 0.0
        %3638 = vmatprep.subr.mxu0 0.0
        %3639 = vmatpush1.xpose.msra.mxu0 %v3606
        %3640 = vmatprep.subr.mxu0 0.0
        %3641 = vmatpush2.xpose.msra.mxu0 0.0
        %3642 = vmatprep.subr.mxu0 0.0
        %3643 = vmatpush2.xpose.msra.mxu0 0.0
        %3644 = vmatprep.subr.mxu0 0.0
        %3645 = vmatpush2.xpose.msra.mxu0 0.0
        %3646 = vmatprep.subr.mxu0 0.0
        %3647 = vmatpush2.xpose.msra.mxu0 0.0
        %3648 = vmatprep.subr.mxu0 0.0
        %3649 = vmatpush2.xpose.msra.mxu0 0.0
        %3650 = vmatprep.subr.mxu0 0.0
        %3651 = vmatpush2.xpose.msra.mxu0 0.0
        %3652 = vmatprep.subr.mxu0 0.0
        %3653 = vmatpush2.xpose.msra.mxu0 0.0
        %3654 = vmatprep.subr.mxu0 0.0
        %3655 = vmatpush2.xpose.msra.mxu0 0.0
        %3656 = vmatprep.subr.mxu0 0.0
        %3657 = vmatpush2.xpose.msra.mxu0 0.0
        %3658 = vmatprep.subr.mxu0 0.0
        %3659 = vmatpush2.xpose.msra.mxu0 0.0
        %3660 = vmatprep.subr.mxu0 0.0
        %3661 = vmatpush2.xpose.msra.mxu0 0.0
        %3662 = vmatprep.subr.mxu0 0.0
        %3663 = vmatpush2.xpose.msra.mxu0 0.0
        %3664 = vmatprep.subr.mxu0 0.0
        %3665 = vmatpush2.xpose.msra.mxu0 0.0
        %3666 = vmatprep.subr.mxu0 0.0
        %3667 = vmatpush2.xpose.msra.mxu0 0.0
        %3668 = vmatprep.subr.mxu0 0.0
        %3669 = vmatpush2.xpose.msra.mxu0 0.0
        %3670 = vmatprep.subr.mxu0 0.0
        %3671 = vmatpush2.xpose.msra.mxu0 0.0
        %3672 = vmatprep.mubr.f32.mxu0 0.0
        %3673 = vmatmul.mubr.f32.gmra.mxu0 %v2745
        %v3674 = vpop.f32.mrf.mxu0
        %v3675 = vadd.f32 0.0, %v3674
        %v3676 = vpop.f32.mrf.mxu0
        %3677 = vdwg.mxu0
        %3678 = vmatprep.subr.mxu0 0.0
        %3679 = vmatpush1.xpose.msra.mxu0 0.0
        %3680 = vmatprep.subr.mxu0 0.0
        %3681 = vmatpush1.xpose.msra.mxu0 0.0
        %3682 = vmatprep.subr.mxu0 0.0
        %3683 = vmatpush1.xpose.msra.mxu0 0.0
        %3684 = vmatprep.subr.mxu0 0.0
        %3685 = vmatpush1.xpose.msra.mxu0 0.0
        %3686 = vmatprep.subr.mxu0 0.0
        %3687 = vmatpush1.xpose.msra.mxu0 0.0
        %3688 = vmatprep.subr.mxu0 0.0
        %3689 = vmatpush1.xpose.msra.mxu0 0.0
        %3690 = vmatprep.subr.mxu0 0.0
        %3691 = vmatpush1.xpose.msra.mxu0 0.0
        %3692 = vmatprep.subr.mxu0 0.0
        %3693 = vmatpush1.xpose.msra.mxu0 0.0
        %3694 = vmatprep.subr.mxu0 0.0
        %3695 = vmatpush1.xpose.msra.mxu0 0.0
        %3696 = vmatprep.subr.mxu0 0.0
        %3697 = vmatpush1.xpose.msra.mxu0 0.0
        %3698 = vmatprep.subr.mxu0 0.0
        %3699 = vmatpush1.xpose.msra.mxu0 0.0
        %3700 = vmatprep.subr.mxu0 0.0
        %3701 = vmatpush1.xpose.msra.mxu0 0.0
        %3702 = vmatprep.subr.mxu0 0.0
        %3703 = vmatpush1.xpose.msra.mxu0 0.0
        %3704 = vmatprep.subr.mxu0 0.0
        %3705 = vmatpush1.xpose.msra.mxu0 0.0
        %3706 = vmatprep.subr.mxu0 0.0
        %3707 = vmatpush1.xpose.msra.mxu0 0.0
        %3708 = vmatprep.subr.mxu0 0.0
        %3709 = vmatpush1.xpose.msra.mxu0 %v3606
        %3710 = vmatprep.subr.mxu0 0.0
        %3711 = vmatpush2.xpose.msra.mxu0 0.0
        %3712 = vmatprep.subr.mxu0 0.0
        %3713 = vmatpush2.xpose.msra.mxu0 0.0
        %3714 = vmatprep.subr.mxu0 0.0
        %3715 = vmatpush2.xpose.msra.mxu0 0.0
        %3716 = vmatprep.subr.mxu0 0.0
        %3717 = vmatpush2.xpose.msra.mxu0 0.0
        %3718 = vmatprep.subr.mxu0 0.0
        %3719 = vmatpush2.xpose.msra.mxu0 0.0
        %3720 = vmatprep.subr.mxu0 0.0
        %3721 = vmatpush2.xpose.msra.mxu0 0.0
        %3722 = vmatprep.subr.mxu0 0.0
        %3723 = vmatpush2.xpose.msra.mxu0 0.0
        %3724 = vmatprep.subr.mxu0 0.0
        %3725 = vmatpush2.xpose.msra.mxu0 0.0
        %3726 = vmatprep.subr.mxu0 0.0
        %3727 = vmatpush2.xpose.msra.mxu0 0.0
        %3728 = vmatprep.subr.mxu0 0.0
        %3729 = vmatpush2.xpose.msra.mxu0 0.0
        %3730 = vmatprep.subr.mxu0 0.0
        %3731 = vmatpush2.xpose.msra.mxu0 0.0
        %3732 = vmatprep.subr.mxu0 0.0
        %3733 = vmatpush2.xpose.msra.mxu0 0.0
        %3734 = vmatprep.subr.mxu0 0.0
        %3735 = vmatpush2.xpose.msra.mxu0 0.0
        %3736 = vmatprep.subr.mxu0 0.0
        %3737 = vmatpush2.xpose.msra.mxu0 0.0
        %3738 = vmatprep.subr.mxu0 0.0
        %3739 = vmatpush2.xpose.msra.mxu0 0.0
        %3740 = vmatprep.subr.mxu0 0.0
        %3741 = vmatpush2.xpose.msra.mxu0 0.0
        %3742 = vmatprep.mubr.f32.mxu0 0.0
        %3743 = vmatmul.mubr.f32.gmra.mxu0 %v2821
        %v3744 = vpop.f32.mrf.mxu0
        %v3745 = vadd.f32 0.0, %v3744
        %v3746 = vpop.f32.mrf.mxu0
        %3747 = vdwg.mxu0
        %3748 = vmatprep.subr.mxu0 0.0
        %3749 = vmatpush1.xpose.msra.mxu0 0.0
        %3750 = vmatprep.subr.mxu0 0.0
        %3751 = vmatpush1.xpose.msra.mxu0 0.0
        %3752 = vmatprep.subr.mxu0 0.0
        %3753 = vmatpush1.xpose.msra.mxu0 0.0
        %3754 = vmatprep.subr.mxu0 0.0
        %3755 = vmatpush1.xpose.msra.mxu0 0.0
        %3756 = vmatprep.subr.mxu0 0.0
        %3757 = vmatpush1.xpose.msra.mxu0 0.0
        %3758 = vmatprep.subr.mxu0 0.0
        %3759 = vmatpush1.xpose.msra.mxu0 0.0
        %3760 = vmatprep.subr.mxu0 0.0
        %3761 = vmatpush1.xpose.msra.mxu0 0.0
        %3762 = vmatprep.subr.mxu0 0.0
        %3763 = vmatpush1.xpose.msra.mxu0 0.0
        %3764 = vmatprep.subr.mxu0 0.0
        %3765 = vmatpush1.xpose.msra.mxu0 0.0
        %3766 = vmatprep.subr.mxu0 0.0
        %3767 = vmatpush1.xpose.msra.mxu0 0.0
        %3768 = vmatprep.subr.mxu0 0.0
        %3769 = vmatpush1.xpose.msra.mxu0 0.0
        %3770 = vmatprep.subr.mxu0 0.0
        %3771 = vmatpush1.xpose.msra.mxu0 0.0
        %3772 = vmatprep.subr.mxu0 0.0
        %3773 = vmatpush1.xpose.msra.mxu0 0.0
        %3774 = vmatprep.subr.mxu0 0.0
        %3775 = vmatpush1.xpose.msra.mxu0 0.0
        %3776 = vmatprep.subr.mxu0 0.0
        %3777 = vmatpush1.xpose.msra.mxu0 0.0
        %3778 = vmatprep.subr.mxu0 0.0
        %3779 = vmatpush1.xpose.msra.mxu0 %v3606
        %3780 = vmatprep.subr.mxu0 0.0
        %3781 = vmatpush2.xpose.msra.mxu0 0.0
        %3782 = vmatprep.subr.mxu0 0.0
        %3783 = vmatpush2.xpose.msra.mxu0 0.0
        %3784 = vmatprep.subr.mxu0 0.0
        %3785 = vmatpush2.xpose.msra.mxu0 0.0
        %3786 = vmatprep.subr.mxu0 0.0
        %3787 = vmatpush2.xpose.msra.mxu0 0.0
        %3788 = vmatprep.subr.mxu0 0.0
        %3789 = vmatpush2.xpose.msra.mxu0 0.0
        %3790 = vmatprep.subr.mxu0 0.0
        %3791 = vmatpush2.xpose.msra.mxu0 0.0
        %3792 = vmatprep.subr.mxu0 0.0
        %3793 = vmatpush2.xpose.msra.mxu0 0.0
        %3794 = vmatprep.subr.mxu0 0.0
        %3795 = vmatpush2.xpose.msra.mxu0 0.0
        %3796 = vmatprep.subr.mxu0 0.0
        %3797 = vmatpush2.xpose.msra.mxu0 0.0
        %3798 = vmatprep.subr.mxu0 0.0
        %3799 = vmatpush2.xpose.msra.mxu0 0.0
        %3800 = vmatprep.subr.mxu0 0.0
        %3801 = vmatpush2.xpose.msra.mxu0 0.0
        %3802 = vmatprep.subr.mxu0 0.0
        %3803 = vmatpush2.xpose.msra.mxu0 0.0
        %3804 = vmatprep.subr.mxu0 0.0
        %3805 = vmatpush2.xpose.msra.mxu0 0.0
        %3806 = vmatprep.subr.mxu0 0.0
        %3807 = vmatpush2.xpose.msra.mxu0 0.0
        %3808 = vmatprep.subr.mxu0 0.0
        %3809 = vmatpush2.xpose.msra.mxu0 0.0
        %3810 = vmatprep.subr.mxu0 0.0
        %3811 = vmatpush2.xpose.msra.mxu0 0.0
        %3812 = vmatprep.mubr.f32.mxu0 0.0
        %3813 = vmatmul.mubr.f32.gmra.mxu0 %v2894
        %v3814 = vpop.f32.mrf.mxu0
        %v3815 = vadd.f32 0.0, %v3814
        %v3816 = vpop.f32.mrf.mxu0
        %3817 = vdwg.mxu0
        %3818 = vmatprep.subr.mxu0 0.0
        %3819 = vmatpush1.xpose.msra.mxu0 0.0
        %3820 = vmatprep.subr.mxu0 0.0
        %3821 = vmatpush1.xpose.msra.mxu0 0.0
        %3822 = vmatprep.subr.mxu0 0.0
        %3823 = vmatpush1.xpose.msra.mxu0 0.0
        %3824 = vmatprep.subr.mxu0 0.0
        %3825 = vmatpush1.xpose.msra.mxu0 0.0
        %3826 = vmatprep.subr.mxu0 0.0
        %3827 = vmatpush1.xpose.msra.mxu0 0.0
        %3828 = vmatprep.subr.mxu0 0.0
        %3829 = vmatpush1.xpose.msra.mxu0 0.0
        %3830 = vmatprep.subr.mxu0 0.0
        %3831 = vmatpush1.xpose.msra.mxu0 0.0
        %3832 = vmatprep.subr.mxu0 0.0
        %3833 = vmatpush1.xpose.msra.mxu0 0.0
        %3834 = vmatprep.subr.mxu0 0.0
        %3835 = vmatpush1.xpose.msra.mxu0 0.0
        %3836 = vmatprep.subr.mxu0 0.0
        %3837 = vmatpush1.xpose.msra.mxu0 0.0
        %3838 = vmatprep.subr.mxu0 0.0
        %3839 = vmatpush1.xpose.msra.mxu0 0.0
        %3840 = vmatprep.subr.mxu0 0.0
        %3841 = vmatpush1.xpose.msra.mxu0 0.0
        %3842 = vmatprep.subr.mxu0 0.0
        %3843 = vmatpush1.xpose.msra.mxu0 0.0
        %3844 = vmatprep.subr.mxu0 0.0
        %3845 = vmatpush1.xpose.msra.mxu0 0.0
        %3846 = vmatprep.subr.mxu0 0.0
        %3847 = vmatpush1.xpose.msra.mxu0 0.0
        %3848 = vmatprep.subr.mxu0 0.0
        %3849 = vmatpush1.xpose.msra.mxu0 %v3606
        %3850 = vmatprep.subr.mxu0 0.0
        %3851 = vmatpush2.xpose.msra.mxu0 0.0
        %3852 = vmatprep.subr.mxu0 0.0
        %3853 = vmatpush2.xpose.msra.mxu0 0.0
        %3854 = vmatprep.subr.mxu0 0.0
        %3855 = vmatpush2.xpose.msra.mxu0 0.0
        %3856 = vmatprep.subr.mxu0 0.0
        %3857 = vmatpush2.xpose.msra.mxu0 0.0
        %3858 = vmatprep.subr.mxu0 0.0
        %3859 = vmatpush2.xpose.msra.mxu0 0.0
        %3860 = vmatprep.subr.mxu0 0.0
        %3861 = vmatpush2.xpose.msra.mxu0 0.0
        %3862 = vmatprep.subr.mxu0 0.0
        %3863 = vmatpush2.xpose.msra.mxu0 0.0
        %3864 = vmatprep.subr.mxu0 0.0
        %3865 = vmatpush2.xpose.msra.mxu0 0.0
        %3866 = vmatprep.subr.mxu0 0.0
        %3867 = vmatpush2.xpose.msra.mxu0 0.0
        %3868 = vmatprep.subr.mxu0 0.0
        %3869 = vmatpush2.xpose.msra.mxu0 0.0
        %3870 = vmatprep.subr.mxu0 0.0
        %3871 = vmatpush2.xpose.msra.mxu0 0.0
        %3872 = vmatprep.subr.mxu0 0.0
        %3873 = vmatpush2.xpose.msra.mxu0 0.0
        %3874 = vmatprep.subr.mxu0 0.0
        %3875 = vmatpush2.xpose.msra.mxu0 0.0
        %3876 = vmatprep.subr.mxu0 0.0
        %3877 = vmatpush2.xpose.msra.mxu0 0.0
        %3878 = vmatprep.subr.mxu0 0.0
        %3879 = vmatpush2.xpose.msra.mxu0 0.0
        %3880 = vmatprep.subr.mxu0 0.0
        %3881 = vmatpush2.xpose.msra.mxu0 0.0
        %3882 = vmatprep.mubr.f32.mxu0 0.0
        %3883 = vmatmul.mubr.f32.gmra.mxu0 %v2967
        %v3884 = vpop.f32.mrf.mxu0
        %v3885 = vadd.f32 0.0, %v3884
        %v3886 = vpop.f32.mrf.mxu0
        %3887 = vdwg.mxu0
        %v3889 = vsel %vm467, %v459, 0
        %3891 = vmatprep.subr.mxu0 0.0
        %3892 = vmatpush1.xpose.msra.mxu0 0.0
        %3893 = vmatprep.subr.mxu0 0.0
        %3894 = vmatpush1.xpose.msra.mxu0 0.0
        %3895 = vmatprep.subr.mxu0 0.0
        %3896 = vmatpush1.xpose.msra.mxu0 0.0
        %3897 = vmatprep.subr.mxu0 0.0
        %3898 = vmatpush1.xpose.msra.mxu0 0.0
        %3899 = vmatprep.subr.mxu0 0.0
        %3900 = vmatpush1.xpose.msra.mxu0 0.0
        %3901 = vmatprep.subr.mxu0 0.0
        %3902 = vmatpush1.xpose.msra.mxu0 0.0
        %3903 = vmatprep.subr.mxu0 0.0
        %3904 = vmatpush1.xpose.msra.mxu0 0.0
        %3905 = vmatprep.subr.mxu0 0.0
        %3906 = vmatpush1.xpose.msra.mxu0 0.0
        %3907 = vmatprep.subr.mxu0 0.0
        %3908 = vmatpush1.xpose.msra.mxu0 0.0
        %3909 = vmatprep.subr.mxu0 0.0
        %3910 = vmatpush1.xpose.msra.mxu0 0.0
        %3911 = vmatprep.subr.mxu0 0.0
        %3912 = vmatpush1.xpose.msra.mxu0 0.0
        %3913 = vmatprep.subr.mxu0 0.0
        %3914 = vmatpush1.xpose.msra.mxu0 0.0
        %3915 = vmatprep.subr.mxu0 0.0
        %3916 = vmatpush1.xpose.msra.mxu0 0.0
        %3917 = vmatprep.subr.mxu0 0.0
        %3918 = vmatpush1.xpose.msra.mxu0 0.0
        %3919 = vmatprep.subr.mxu0 0.0
        %3920 = vmatpush1.xpose.msra.mxu0 0.0
        %3921 = vmatprep.subr.mxu0 0.0
        %3922 = vmatpush1.xpose.msra.mxu0 %v2748
        %3923 = vmatprep.subr.mxu0 0.0
        %3924 = vmatpush2.xpose.msra.mxu0 0.0
        %3925 = vmatprep.subr.mxu0 0.0
        %3926 = vmatpush2.xpose.msra.mxu0 0.0
        %3927 = vmatprep.subr.mxu0 0.0
        %3928 = vmatpush2.xpose.msra.mxu0 0.0
        %3929 = vmatprep.subr.mxu0 0.0
        %3930 = vmatpush2.xpose.msra.mxu0 0.0
        %3931 = vmatprep.subr.mxu0 0.0
        %3932 = vmatpush2.xpose.msra.mxu0 0.0
        %3933 = vmatprep.subr.mxu0 0.0
        %3934 = vmatpush2.xpose.msra.mxu0 0.0
        %3935 = vmatprep.subr.mxu0 0.0
        %3936 = vmatpush2.xpose.msra.mxu0 0.0
        %3937 = vmatprep.subr.mxu0 0.0
        %3938 = vmatpush2.xpose.msra.mxu0 0.0
        %3939 = vmatprep.subr.mxu0 0.0
        %3940 = vmatpush2.xpose.msra.mxu0 0.0
        %3941 = vmatprep.subr.mxu0 0.0
        %3942 = vmatpush2.xpose.msra.mxu0 0.0
        %3943 = vmatprep.subr.mxu0 0.0
        %3944 = vmatpush2.xpose.msra.mxu0 0.0
        %3945 = vmatprep.subr.mxu0 0.0
        %3946 = vmatpush2.xpose.msra.mxu0 0.0
        %3947 = vmatprep.subr.mxu0 0.0
        %3948 = vmatpush2.xpose.msra.mxu0 0.0
        %3949 = vmatprep.subr.mxu0 0.0
        %3950 = vmatpush2.xpose.msra.mxu0 0.0
        %3951 = vmatprep.subr.mxu0 0.0
        %3952 = vmatpush2.xpose.msra.mxu0 0.0
        %3953 = vmatprep.subr.mxu0 0.0
        %3954 = vmatpush2.xpose.msra.mxu0 0.0
        %3955 = vmatprep.mubr.f32.mxu0 0.0
        %3956 = vmatmul.mubr.f32.gmra.mxu0 %v3889
        %v3957 = vpop.f32.mrf.mxu0
        %v3958 = vadd.f32 0.0, %v3957
        %v3959 = vpop.f32.mrf.mxu0
        %3960 = vdwg.mxu0
        %v3962 = vsel %vm467, %v460, 0
        %3964 = vmatprep.subr.mxu0 0.0
        %3965 = vmatpush1.xpose.msra.mxu0 0.0
        %3966 = vmatprep.subr.mxu0 0.0
        %3967 = vmatpush1.xpose.msra.mxu0 0.0
        %3968 = vmatprep.subr.mxu0 0.0
        %3969 = vmatpush1.xpose.msra.mxu0 0.0
        %3970 = vmatprep.subr.mxu0 0.0
        %3971 = vmatpush1.xpose.msra.mxu0 0.0
        %3972 = vmatprep.subr.mxu0 0.0
        %3973 = vmatpush1.xpose.msra.mxu0 0.0
        %3974 = vmatprep.subr.mxu0 0.0
        %3975 = vmatpush1.xpose.msra.mxu0 0.0
        %3976 = vmatprep.subr.mxu0 0.0
        %3977 = vmatpush1.xpose.msra.mxu0 0.0
        %3978 = vmatprep.subr.mxu0 0.0
        %3979 = vmatpush1.xpose.msra.mxu0 0.0
        %3980 = vmatprep.subr.mxu0 0.0
        %3981 = vmatpush1.xpose.msra.mxu0 0.0
        %3982 = vmatprep.subr.mxu0 0.0
        %3983 = vmatpush1.xpose.msra.mxu0 0.0
        %3984 = vmatprep.subr.mxu0 0.0
        %3985 = vmatpush1.xpose.msra.mxu0 0.0
        %3986 = vmatprep.subr.mxu0 0.0
        %3987 = vmatpush1.xpose.msra.mxu0 0.0
        %3988 = vmatprep.subr.mxu0 0.0
        %3989 = vmatpush1.xpose.msra.mxu0 0.0
        %3990 = vmatprep.subr.mxu0 0.0
        %3991 = vmatpush1.xpose.msra.mxu0 0.0
        %3992 = vmatprep.subr.mxu0 0.0
        %3993 = vmatpush1.xpose.msra.mxu0 0.0
        %3994 = vmatprep.subr.mxu0 0.0
        %3995 = vmatpush1.xpose.msra.mxu0 %v2748
        %3996 = vmatprep.subr.mxu0 0.0
        %3997 = vmatpush2.xpose.msra.mxu0 0.0
        %3998 = vmatprep.subr.mxu0 0.0
        %3999 = vmatpush2.xpose.msra.mxu0 0.0
        %4000 = vmatprep.subr.mxu0 0.0
        %4001 = vmatpush2.xpose.msra.mxu0 0.0
        %4002 = vmatprep.subr.mxu0 0.0
        %4003 = vmatpush2.xpose.msra.mxu0 0.0
        %4004 = vmatprep.subr.mxu0 0.0
        %4005 = vmatpush2.xpose.msra.mxu0 0.0
        %4006 = vmatprep.subr.mxu0 0.0
        %4007 = vmatpush2.xpose.msra.mxu0 0.0
        %4008 = vmatprep.subr.mxu0 0.0
        %4009 = vmatpush2.xpose.msra.mxu0 0.0
        %4010 = vmatprep.subr.mxu0 0.0
        %4011 = vmatpush2.xpose.msra.mxu0 0.0
        %4012 = vmatprep.subr.mxu0 0.0
        %4013 = vmatpush2.xpose.msra.mxu0 0.0
        %4014 = vmatprep.subr.mxu0 0.0
        %4015 = vmatpush2.xpose.msra.mxu0 0.0
        %4016 = vmatprep.subr.mxu0 0.0
        %4017 = vmatpush2.xpose.msra.mxu0 0.0
        %4018 = vmatprep.subr.mxu0 0.0
        %4019 = vmatpush2.xpose.msra.mxu0 0.0
        %4020 = vmatprep.subr.mxu0 0.0
        %4021 = vmatpush2.xpose.msra.mxu0 0.0
        %4022 = vmatprep.subr.mxu0 0.0
        %4023 = vmatpush2.xpose.msra.mxu0 0.0
        %4024 = vmatprep.subr.mxu0 0.0
        %4025 = vmatpush2.xpose.msra.mxu0 0.0
        %4026 = vmatprep.subr.mxu0 0.0
        %4027 = vmatpush2.xpose.msra.mxu0 0.0
        %4028 = vmatprep.mubr.f32.mxu0 0.0
        %4029 = vmatmul.mubr.f32.gmra.mxu0 %v3962
        %v4030 = vpop.f32.mrf.mxu0
        %v4031 = vadd.f32 0.0, %v4030
        %v4032 = vpop.f32.mrf.mxu0
        %4033 = vdwg.mxu0
        %v4035 = vsel %vm467, %v461, 0
        %4037 = vmatprep.subr.mxu0 0.0
        %4038 = vmatpush1.xpose.msra.mxu0 0.0
        %4039 = vmatprep.subr.mxu0 0.0
        %4040 = vmatpush1.xpose.msra.mxu0 0.0
        %4041 = vmatprep.subr.mxu0 0.0
        %4042 = vmatpush1.xpose.msra.mxu0 0.0
        %4043 = vmatprep.subr.mxu0 0.0
        %4044 = vmatpush1.xpose.msra.mxu0 0.0
        %4045 = vmatprep.subr.mxu0 0.0
        %4046 = vmatpush1.xpose.msra.mxu0 0.0
        %4047 = vmatprep.subr.mxu0 0.0
        %4048 = vmatpush1.xpose.msra.mxu0 0.0
        %4049 = vmatprep.subr.mxu0 0.0
        %4050 = vmatpush1.xpose.msra.mxu0 0.0
        %4051 = vmatprep.subr.mxu0 0.0
        %4052 = vmatpush1.xpose.msra.mxu0 0.0
        %4053 = vmatprep.subr.mxu0 0.0
        %4054 = vmatpush1.xpose.msra.mxu0 0.0
        %4055 = vmatprep.subr.mxu0 0.0
        %4056 = vmatpush1.xpose.msra.mxu0 0.0
        %4057 = vmatprep.subr.mxu0 0.0
        %4058 = vmatpush1.xpose.msra.mxu0 0.0
        %4059 = vmatprep.subr.mxu0 0.0
        %4060 = vmatpush1.xpose.msra.mxu0 0.0
        %4061 = vmatprep.subr.mxu0 0.0
        %4062 = vmatpush1.xpose.msra.mxu0 0.0
        %4063 = vmatprep.subr.mxu0 0.0
        %4064 = vmatpush1.xpose.msra.mxu0 0.0
        %4065 = vmatprep.subr.mxu0 0.0
        %4066 = vmatpush1.xpose.msra.mxu0 0.0
        %4067 = vmatprep.subr.mxu0 0.0
        %4068 = vmatpush1.xpose.msra.mxu0 %v2748
        %4069 = vmatprep.subr.mxu0 0.0
        %4070 = vmatpush2.xpose.msra.mxu0 0.0
        %4071 = vmatprep.subr.mxu0 0.0
        %4072 = vmatpush2.xpose.msra.mxu0 0.0
        %4073 = vmatprep.subr.mxu0 0.0
        %4074 = vmatpush2.xpose.msra.mxu0 0.0
        %4075 = vmatprep.subr.mxu0 0.0
        %4076 = vmatpush2.xpose.msra.mxu0 0.0
        %4077 = vmatprep.subr.mxu0 0.0
        %4078 = vmatpush2.xpose.msra.mxu0 0.0
        %4079 = vmatprep.subr.mxu0 0.0
        %4080 = vmatpush2.xpose.msra.mxu0 0.0
        %4081 = vmatprep.subr.mxu0 0.0
        %4082 = vmatpush2.xpose.msra.mxu0 0.0
        %4083 = vmatprep.subr.mxu0 0.0
        %4084 = vmatpush2.xpose.msra.mxu0 0.0
        %4085 = vmatprep.subr.mxu0 0.0
        %4086 = vmatpush2.xpose.msra.mxu0 0.0
        %4087 = vmatprep.subr.mxu0 0.0
        %4088 = vmatpush2.xpose.msra.mxu0 0.0
        %4089 = vmatprep.subr.mxu0 0.0
        %4090 = vmatpush2.xpose.msra.mxu0 0.0
        %4091 = vmatprep.subr.mxu0 0.0
        %4092 = vmatpush2.xpose.msra.mxu0 0.0
        %4093 = vmatprep.subr.mxu0 0.0
        %4094 = vmatpush2.xpose.msra.mxu0 0.0
        %4095 = vmatprep.subr.mxu0 0.0
        %4096 = vmatpush2.xpose.msra.mxu0 0.0
        %4097 = vmatprep.subr.mxu0 0.0
        %4098 = vmatpush2.xpose.msra.mxu0 0.0
        %4099 = vmatprep.subr.mxu0 0.0
        %4100 = vmatpush2.xpose.msra.mxu0 0.0
        %4101 = vmatprep.mubr.f32.mxu0 0.0
        %4102 = vmatmul.mubr.f32.gmra.mxu0 %v4035
        %v4103 = vpop.f32.mrf.mxu0
        %v4104 = vadd.f32 0.0, %v4103
        %v4105 = vpop.f32.mrf.mxu0
        %4106 = vdwg.mxu0
        %v4108 = vsel %vm467, %v462, 0
        %4110 = vmatprep.subr.mxu0 0.0
        %4111 = vmatpush1.xpose.msra.mxu0 0.0
        %4112 = vmatprep.subr.mxu0 0.0
        %4113 = vmatpush1.xpose.msra.mxu0 0.0
        %4114 = vmatprep.subr.mxu0 0.0
        %4115 = vmatpush1.xpose.msra.mxu0 0.0
        %4116 = vmatprep.subr.mxu0 0.0
        %4117 = vmatpush1.xpose.msra.mxu0 0.0
        %4118 = vmatprep.subr.mxu0 0.0
        %4119 = vmatpush1.xpose.msra.mxu0 0.0
        %4120 = vmatprep.subr.mxu0 0.0
        %4121 = vmatpush1.xpose.msra.mxu0 0.0
        %4122 = vmatprep.subr.mxu0 0.0
        %4123 = vmatpush1.xpose.msra.mxu0 0.0
        %4124 = vmatprep.subr.mxu0 0.0
        %4125 = vmatpush1.xpose.msra.mxu0 0.0
        %4126 = vmatprep.subr.mxu0 0.0
        %4127 = vmatpush1.xpose.msra.mxu0 0.0
        %4128 = vmatprep.subr.mxu0 0.0
        %4129 = vmatpush1.xpose.msra.mxu0 0.0
        %4130 = vmatprep.subr.mxu0 0.0
        %4131 = vmatpush1.xpose.msra.mxu0 0.0
        %4132 = vmatprep.subr.mxu0 0.0
        %4133 = vmatpush1.xpose.msra.mxu0 0.0
        %4134 = vmatprep.subr.mxu0 0.0
        %4135 = vmatpush1.xpose.msra.mxu0 0.0
        %4136 = vmatprep.subr.mxu0 0.0
        %4137 = vmatpush1.xpose.msra.mxu0 0.0
        %4138 = vmatprep.subr.mxu0 0.0
        %4139 = vmatpush1.xpose.msra.mxu0 0.0
        %4140 = vmatprep.subr.mxu0 0.0
        %4141 = vmatpush1.xpose.msra.mxu0 %v2748
        %4142 = vmatprep.subr.mxu0 0.0
        %4143 = vmatpush2.xpose.msra.mxu0 0.0
        %4144 = vmatprep.subr.mxu0 0.0
        %4145 = vmatpush2.xpose.msra.mxu0 0.0
        %4146 = vmatprep.subr.mxu0 0.0
        %4147 = vmatpush2.xpose.msra.mxu0 0.0
        %4148 = vmatprep.subr.mxu0 0.0
        %4149 = vmatpush2.xpose.msra.mxu0 0.0
        %4150 = vmatprep.subr.mxu0 0.0
        %4151 = vmatpush2.xpose.msra.mxu0 0.0
        %4152 = vmatprep.subr.mxu0 0.0
        %4153 = vmatpush2.xpose.msra.mxu0 0.0
        %4154 = vmatprep.subr.mxu0 0.0
        %4155 = vmatpush2.xpose.msra.mxu0 0.0
        %4156 = vmatprep.subr.mxu0 0.0
        %4157 = vmatpush2.xpose.msra.mxu0 0.0
        %4158 = vmatprep.subr.mxu0 0.0
        %4159 = vmatpush2.xpose.msra.mxu0 0.0
        %4160 = vmatprep.subr.mxu0 0.0
        %4161 = vmatpush2.xpose.msra.mxu0 0.0
        %4162 = vmatprep.subr.mxu0 0.0
        %4163 = vmatpush2.xpose.msra.mxu0 0.0
        %4164 = vmatprep.subr.mxu0 0.0
        %4165 = vmatpush2.xpose.msra.mxu0 0.0
        %4166 = vmatprep.subr.mxu0 0.0
        %4167 = vmatpush2.xpose.msra.mxu0 0.0
        %4168 = vmatprep.subr.mxu0 0.0
        %4169 = vmatpush2.xpose.msra.mxu0 0.0
        %4170 = vmatprep.subr.mxu0 0.0
        %4171 = vmatpush2.xpose.msra.mxu0 0.0
        %4172 = vmatprep.subr.mxu0 0.0
        %4173 = vmatpush2.xpose.msra.mxu0 0.0
        %4174 = vmatprep.mubr.f32.mxu0 0.0
        %4175 = vmatmul.mubr.f32.gmra.mxu0 %v4108
        %v4176 = vpop.f32.mrf.mxu0
        %v4177 = vadd.f32 0.0, %v4176
        %v4178 = vpop.f32.mrf.mxu0
        %4179 = vdwg.mxu0
        %4180 = vmatprep.subr.mxu0 0.0
        %4181 = vmatpush1.xpose.msra.mxu0 0.0
        %4182 = vmatprep.subr.mxu0 0.0
        %4183 = vmatpush1.xpose.msra.mxu0 0.0
        %4184 = vmatprep.subr.mxu0 0.0
        %4185 = vmatpush1.xpose.msra.mxu0 0.0
        %4186 = vmatprep.subr.mxu0 0.0
        %4187 = vmatpush1.xpose.msra.mxu0 0.0
        %4188 = vmatprep.subr.mxu0 0.0
        %4189 = vmatpush1.xpose.msra.mxu0 0.0
        %4190 = vmatprep.subr.mxu0 0.0
        %4191 = vmatpush1.xpose.msra.mxu0 0.0
        %4192 = vmatprep.subr.mxu0 0.0
        %4193 = vmatpush1.xpose.msra.mxu0 0.0
        %4194 = vmatprep.subr.mxu0 0.0
        %4195 = vmatpush1.xpose.msra.mxu0 0.0
        %4196 = vmatprep.subr.mxu0 0.0
        %4197 = vmatpush1.xpose.msra.mxu0 0.0
        %4198 = vmatprep.subr.mxu0 0.0
        %4199 = vmatpush1.xpose.msra.mxu0 0.0
        %4200 = vmatprep.subr.mxu0 0.0
        %4201 = vmatpush1.xpose.msra.mxu0 0.0
        %4202 = vmatprep.subr.mxu0 0.0
        %4203 = vmatpush1.xpose.msra.mxu0 0.0
        %4204 = vmatprep.subr.mxu0 0.0
        %4205 = vmatpush1.xpose.msra.mxu0 0.0
        %4206 = vmatprep.subr.mxu0 0.0
        %4207 = vmatpush1.xpose.msra.mxu0 0.0
        %4208 = vmatprep.subr.mxu0 0.0
        %4209 = vmatpush1.xpose.msra.mxu0 0.0
        %4210 = vmatprep.subr.mxu0 0.0
        %4211 = vmatpush1.xpose.msra.mxu0 %v3040
        %4212 = vmatprep.subr.mxu0 0.0
        %4213 = vmatpush2.xpose.msra.mxu0 0.0
        %4214 = vmatprep.subr.mxu0 0.0
        %4215 = vmatpush2.xpose.msra.mxu0 0.0
        %4216 = vmatprep.subr.mxu0 0.0
        %4217 = vmatpush2.xpose.msra.mxu0 0.0
        %4218 = vmatprep.subr.mxu0 0.0
        %4219 = vmatpush2.xpose.msra.mxu0 0.0
        %4220 = vmatprep.subr.mxu0 0.0
        %4221 = vmatpush2.xpose.msra.mxu0 0.0
        %4222 = vmatprep.subr.mxu0 0.0
        %4223 = vmatpush2.xpose.msra.mxu0 0.0
        %4224 = vmatprep.subr.mxu0 0.0
        %4225 = vmatpush2.xpose.msra.mxu0 0.0
        %4226 = vmatprep.subr.mxu0 0.0
        %4227 = vmatpush2.xpose.msra.mxu0 0.0
        %4228 = vmatprep.subr.mxu0 0.0
        %4229 = vmatpush2.xpose.msra.mxu0 0.0
        %4230 = vmatprep.subr.mxu0 0.0
        %4231 = vmatpush2.xpose.msra.mxu0 0.0
        %4232 = vmatprep.subr.mxu0 0.0
        %4233 = vmatpush2.xpose.msra.mxu0 0.0
        %4234 = vmatprep.subr.mxu0 0.0
        %4235 = vmatpush2.xpose.msra.mxu0 0.0
        %4236 = vmatprep.subr.mxu0 0.0
        %4237 = vmatpush2.xpose.msra.mxu0 0.0
        %4238 = vmatprep.subr.mxu0 0.0
        %4239 = vmatpush2.xpose.msra.mxu0 0.0
        %4240 = vmatprep.subr.mxu0 0.0
        %4241 = vmatpush2.xpose.msra.mxu0 0.0
        %4242 = vmatprep.subr.mxu0 0.0
        %4243 = vmatpush2.xpose.msra.mxu0 0.0
        %4244 = vmatprep.mubr.f32.mxu0 0.0
        %4245 = vmatmul.mubr.f32.gmra.mxu0 %v3889
        %v4246 = vpop.f32.mrf.mxu0
        %v4247 = vadd.f32 0.0, %v4246
        %v4248 = vpop.f32.mrf.mxu0
        %4249 = vdwg.mxu0
        %4250 = vmatprep.subr.mxu0 0.0
        %4251 = vmatpush1.xpose.msra.mxu0 0.0
        %4252 = vmatprep.subr.mxu0 0.0
        %4253 = vmatpush1.xpose.msra.mxu0 0.0
        %4254 = vmatprep.subr.mxu0 0.0
        %4255 = vmatpush1.xpose.msra.mxu0 0.0
        %4256 = vmatprep.subr.mxu0 0.0
        %4257 = vmatpush1.xpose.msra.mxu0 0.0
        %4258 = vmatprep.subr.mxu0 0.0
        %4259 = vmatpush1.xpose.msra.mxu0 0.0
        %4260 = vmatprep.subr.mxu0 0.0
        %4261 = vmatpush1.xpose.msra.mxu0 0.0
        %4262 = vmatprep.subr.mxu0 0.0
        %4263 = vmatpush1.xpose.msra.mxu0 0.0
        %4264 = vmatprep.subr.mxu0 0.0
        %4265 = vmatpush1.xpose.msra.mxu0 0.0
        %4266 = vmatprep.subr.mxu0 0.0
        %4267 = vmatpush1.xpose.msra.mxu0 0.0
        %4268 = vmatprep.subr.mxu0 0.0
        %4269 = vmatpush1.xpose.msra.mxu0 0.0
        %4270 = vmatprep.subr.mxu0 0.0
        %4271 = vmatpush1.xpose.msra.mxu0 0.0
        %4272 = vmatprep.subr.mxu0 0.0
        %4273 = vmatpush1.xpose.msra.mxu0 0.0
        %4274 = vmatprep.subr.mxu0 0.0
        %4275 = vmatpush1.xpose.msra.mxu0 0.0
        %4276 = vmatprep.subr.mxu0 0.0
        %4277 = vmatpush1.xpose.msra.mxu0 0.0
        %4278 = vmatprep.subr.mxu0 0.0
        %4279 = vmatpush1.xpose.msra.mxu0 0.0
        %4280 = vmatprep.subr.mxu0 0.0
        %4281 = vmatpush1.xpose.msra.mxu0 %v3040
        %4282 = vmatprep.subr.mxu0 0.0
        %4283 = vmatpush2.xpose.msra.mxu0 0.0
        %4284 = vmatprep.subr.mxu0 0.0
        %4285 = vmatpush2.xpose.msra.mxu0 0.0
        %4286 = vmatprep.subr.mxu0 0.0
        %4287 = vmatpush2.xpose.msra.mxu0 0.0
        %4288 = vmatprep.subr.mxu0 0.0
        %4289 = vmatpush2.xpose.msra.mxu0 0.0
        %4290 = vmatprep.subr.mxu0 0.0
        %4291 = vmatpush2.xpose.msra.mxu0 0.0
        %4292 = vmatprep.subr.mxu0 0.0
        %4293 = vmatpush2.xpose.msra.mxu0 0.0
        %4294 = vmatprep.subr.mxu0 0.0
        %4295 = vmatpush2.xpose.msra.mxu0 0.0
        %4296 = vmatprep.subr.mxu0 0.0
        %4297 = vmatpush2.xpose.msra.mxu0 0.0
        %4298 = vmatprep.subr.mxu0 0.0
        %4299 = vmatpush2.xpose.msra.mxu0 0.0
        %4300 = vmatprep.subr.mxu0 0.0
        %4301 = vmatpush2.xpose.msra.mxu0 0.0
        %4302 = vmatprep.subr.mxu0 0.0
        %4303 = vmatpush2.xpose.msra.mxu0 0.0
        %4304 = vmatprep.subr.mxu0 0.0
        %4305 = vmatpush2.xpose.msra.mxu0 0.0
        %4306 = vmatprep.subr.mxu0 0.0
        %4307 = vmatpush2.xpose.msra.mxu0 0.0
        %4308 = vmatprep.subr.mxu0 0.0
        %4309 = vmatpush2.xpose.msra.mxu0 0.0
        %4310 = vmatprep.subr.mxu0 0.0
        %4311 = vmatpush2.xpose.msra.mxu0 0.0
        %4312 = vmatprep.subr.mxu0 0.0
        %4313 = vmatpush2.xpose.msra.mxu0 0.0
        %4314 = vmatprep.mubr.f32.mxu0 0.0
        %4315 = vmatmul.mubr.f32.gmra.mxu0 %v3962
        %v4316 = vpop.f32.mrf.mxu0
        %v4317 = vadd.f32 0.0, %v4316
        %v4318 = vpop.f32.mrf.mxu0
        %4319 = vdwg.mxu0
        %4320 = vmatprep.subr.mxu0 0.0
        %4321 = vmatpush1.xpose.msra.mxu0 0.0
        %4322 = vmatprep.subr.mxu0 0.0
        %4323 = vmatpush1.xpose.msra.mxu0 0.0
        %4324 = vmatprep.subr.mxu0 0.0
        %4325 = vmatpush1.xpose.msra.mxu0 0.0
        %4326 = vmatprep.subr.mxu0 0.0
        %4327 = vmatpush1.xpose.msra.mxu0 0.0
        %4328 = vmatprep.subr.mxu0 0.0
        %4329 = vmatpush1.xpose.msra.mxu0 0.0
        %4330 = vmatprep.subr.mxu0 0.0
        %4331 = vmatpush1.xpose.msra.mxu0 0.0
        %4332 = vmatprep.subr.mxu0 0.0
        %4333 = vmatpush1.xpose.msra.mxu0 0.0
        %4334 = vmatprep.subr.mxu0 0.0
        %4335 = vmatpush1.xpose.msra.mxu0 0.0
        %4336 = vmatprep.subr.mxu0 0.0
        %4337 = vmatpush1.xpose.msra.mxu0 0.0
        %4338 = vmatprep.subr.mxu0 0.0
        %4339 = vmatpush1.xpose.msra.mxu0 0.0
        %4340 = vmatprep.subr.mxu0 0.0
        %4341 = vmatpush1.xpose.msra.mxu0 0.0
        %4342 = vmatprep.subr.mxu0 0.0
        %4343 = vmatpush1.xpose.msra.mxu0 0.0
        %4344 = vmatprep.subr.mxu0 0.0
        %4345 = vmatpush1.xpose.msra.mxu0 0.0
        %4346 = vmatprep.subr.mxu0 0.0
        %4347 = vmatpush1.xpose.msra.mxu0 0.0
        %4348 = vmatprep.subr.mxu0 0.0
        %4349 = vmatpush1.xpose.msra.mxu0 0.0
        %4350 = vmatprep.subr.mxu0 0.0
        %4351 = vmatpush1.xpose.msra.mxu0 %v3040
        %4352 = vmatprep.subr.mxu0 0.0
        %4353 = vmatpush2.xpose.msra.mxu0 0.0
        %4354 = vmatprep.subr.mxu0 0.0
        %4355 = vmatpush2.xpose.msra.mxu0 0.0
        %4356 = vmatprep.subr.mxu0 0.0
        %4357 = vmatpush2.xpose.msra.mxu0 0.0
        %4358 = vmatprep.subr.mxu0 0.0
        %4359 = vmatpush2.xpose.msra.mxu0 0.0
        %4360 = vmatprep.subr.mxu0 0.0
        %4361 = vmatpush2.xpose.msra.mxu0 0.0
        %4362 = vmatprep.subr.mxu0 0.0
        %4363 = vmatpush2.xpose.msra.mxu0 0.0
        %4364 = vmatprep.subr.mxu0 0.0
        %4365 = vmatpush2.xpose.msra.mxu0 0.0
        %4366 = vmatprep.subr.mxu0 0.0
        %4367 = vmatpush2.xpose.msra.mxu0 0.0
        %4368 = vmatprep.subr.mxu0 0.0
        %4369 = vmatpush2.xpose.msra.mxu0 0.0
        %4370 = vmatprep.subr.mxu0 0.0
        %4371 = vmatpush2.xpose.msra.mxu0 0.0
        %4372 = vmatprep.subr.mxu0 0.0
        %4373 = vmatpush2.xpose.msra.mxu0 0.0
        %4374 = vmatprep.subr.mxu0 0.0
        %4375 = vmatpush2.xpose.msra.mxu0 0.0
        %4376 = vmatprep.subr.mxu0 0.0
        %4377 = vmatpush2.xpose.msra.mxu0 0.0
        %4378 = vmatprep.subr.mxu0 0.0
        %4379 = vmatpush2.xpose.msra.mxu0 0.0
        %4380 = vmatprep.subr.mxu0 0.0
        %4381 = vmatpush2.xpose.msra.mxu0 0.0
        %4382 = vmatprep.subr.mxu0 0.0
        %4383 = vmatpush2.xpose.msra.mxu0 0.0
        %4384 = vmatprep.mubr.f32.mxu0 0.0
        %4385 = vmatmul.mubr.f32.gmra.mxu0 %v4035
        %v4386 = vpop.f32.mrf.mxu0
        %v4387 = vadd.f32 0.0, %v4386
        %v4388 = vpop.f32.mrf.mxu0
        %4389 = vdwg.mxu0
        %4390 = vmatprep.subr.mxu0 0.0
        %4391 = vmatpush1.xpose.msra.mxu0 0.0
        %4392 = vmatprep.subr.mxu0 0.0
        %4393 = vmatpush1.xpose.msra.mxu0 0.0
        %4394 = vmatprep.subr.mxu0 0.0
        %4395 = vmatpush1.xpose.msra.mxu0 0.0
        %4396 = vmatprep.subr.mxu0 0.0
        %4397 = vmatpush1.xpose.msra.mxu0 0.0
        %4398 = vmatprep.subr.mxu0 0.0
        %4399 = vmatpush1.xpose.msra.mxu0 0.0
        %4400 = vmatprep.subr.mxu0 0.0
        %4401 = vmatpush1.xpose.msra.mxu0 0.0
        %4402 = vmatprep.subr.mxu0 0.0
        %4403 = vmatpush1.xpose.msra.mxu0 0.0
        %4404 = vmatprep.subr.mxu0 0.0
        %4405 = vmatpush1.xpose.msra.mxu0 0.0
        %4406 = vmatprep.subr.mxu0 0.0
        %4407 = vmatpush1.xpose.msra.mxu0 0.0
        %4408 = vmatprep.subr.mxu0 0.0
        %4409 = vmatpush1.xpose.msra.mxu0 0.0
        %4410 = vmatprep.subr.mxu0 0.0
        %4411 = vmatpush1.xpose.msra.mxu0 0.0
        %4412 = vmatprep.subr.mxu0 0.0
        %4413 = vmatpush1.xpose.msra.mxu0 0.0
        %4414 = vmatprep.subr.mxu0 0.0
        %4415 = vmatpush1.xpose.msra.mxu0 0.0
        %4416 = vmatprep.subr.mxu0 0.0
        %4417 = vmatpush1.xpose.msra.mxu0 0.0
        %4418 = vmatprep.subr.mxu0 0.0
        %4419 = vmatpush1.xpose.msra.mxu0 0.0
        %4420 = vmatprep.subr.mxu0 0.0
        %4421 = vmatpush1.xpose.msra.mxu0 %v3040
        %4422 = vmatprep.subr.mxu0 0.0
        %4423 = vmatpush2.xpose.msra.mxu0 0.0
        %4424 = vmatprep.subr.mxu0 0.0
        %4425 = vmatpush2.xpose.msra.mxu0 0.0
        %4426 = vmatprep.subr.mxu0 0.0
        %4427 = vmatpush2.xpose.msra.mxu0 0.0
        %4428 = vmatprep.subr.mxu0 0.0
        %4429 = vmatpush2.xpose.msra.mxu0 0.0
        %4430 = vmatprep.subr.mxu0 0.0
        %4431 = vmatpush2.xpose.msra.mxu0 0.0
        %4432 = vmatprep.subr.mxu0 0.0
        %4433 = vmatpush2.xpose.msra.mxu0 0.0
        %4434 = vmatprep.subr.mxu0 0.0
        %4435 = vmatpush2.xpose.msra.mxu0 0.0
        %4436 = vmatprep.subr.mxu0 0.0
        %4437 = vmatpush2.xpose.msra.mxu0 0.0
        %4438 = vmatprep.subr.mxu0 0.0
        %4439 = vmatpush2.xpose.msra.mxu0 0.0
        %4440 = vmatprep.subr.mxu0 0.0
        %4441 = vmatpush2.xpose.msra.mxu0 0.0
        %4442 = vmatprep.subr.mxu0 0.0
        %4443 = vmatpush2.xpose.msra.mxu0 0.0
        %4444 = vmatprep.subr.mxu0 0.0
        %4445 = vmatpush2.xpose.msra.mxu0 0.0
        %4446 = vmatprep.subr.mxu0 0.0
        %4447 = vmatpush2.xpose.msra.mxu0 0.0
        %4448 = vmatprep.subr.mxu0 0.0
        %4449 = vmatpush2.xpose.msra.mxu0 0.0
        %4450 = vmatprep.subr.mxu0 0.0
        %4451 = vmatpush2.xpose.msra.mxu0 0.0
        %4452 = vmatprep.subr.mxu0 0.0
        %4453 = vmatpush2.xpose.msra.mxu0 0.0
        %4454 = vmatprep.mubr.f32.mxu0 0.0
        %4455 = vmatmul.mubr.f32.gmra.mxu0 %v4108
        %v4456 = vpop.f32.mrf.mxu0
        %v4457 = vadd.f32 0.0, %v4456
        %v4458 = vpop.f32.mrf.mxu0
        %4459 = vdwg.mxu0
        %4460 = vmatprep.subr.mxu0 0.0
        %4461 = vmatpush1.xpose.msra.mxu0 0.0
        %4462 = vmatprep.subr.mxu0 0.0
        %4463 = vmatpush1.xpose.msra.mxu0 0.0
        %4464 = vmatprep.subr.mxu0 0.0
        %4465 = vmatpush1.xpose.msra.mxu0 0.0
        %4466 = vmatprep.subr.mxu0 0.0
        %4467 = vmatpush1.xpose.msra.mxu0 0.0
        %4468 = vmatprep.subr.mxu0 0.0
        %4469 = vmatpush1.xpose.msra.mxu0 0.0
        %4470 = vmatprep.subr.mxu0 0.0
        %4471 = vmatpush1.xpose.msra.mxu0 0.0
        %4472 = vmatprep.subr.mxu0 0.0
        %4473 = vmatpush1.xpose.msra.mxu0 0.0
        %4474 = vmatprep.subr.mxu0 0.0
        %4475 = vmatpush1.xpose.msra.mxu0 0.0
        %4476 = vmatprep.subr.mxu0 0.0
        %4477 = vmatpush1.xpose.msra.mxu0 0.0
        %4478 = vmatprep.subr.mxu0 0.0
        %4479 = vmatpush1.xpose.msra.mxu0 0.0
        %4480 = vmatprep.subr.mxu0 0.0
        %4481 = vmatpush1.xpose.msra.mxu0 0.0
        %4482 = vmatprep.subr.mxu0 0.0
        %4483 = vmatpush1.xpose.msra.mxu0 0.0
        %4484 = vmatprep.subr.mxu0 0.0
        %4485 = vmatpush1.xpose.msra.mxu0 0.0
        %4486 = vmatprep.subr.mxu0 0.0
        %4487 = vmatpush1.xpose.msra.mxu0 0.0
        %4488 = vmatprep.subr.mxu0 0.0
        %4489 = vmatpush1.xpose.msra.mxu0 0.0
        %4490 = vmatprep.subr.mxu0 0.0
        %4491 = vmatpush1.xpose.msra.mxu0 %v3323
        %4492 = vmatprep.subr.mxu0 0.0
        %4493 = vmatpush2.xpose.msra.mxu0 0.0
        %4494 = vmatprep.subr.mxu0 0.0
        %4495 = vmatpush2.xpose.msra.mxu0 0.0
        %4496 = vmatprep.subr.mxu0 0.0
        %4497 = vmatpush2.xpose.msra.mxu0 0.0
        %4498 = vmatprep.subr.mxu0 0.0
        %4499 = vmatpush2.xpose.msra.mxu0 0.0
        %4500 = vmatprep.subr.mxu0 0.0
        %4501 = vmatpush2.xpose.msra.mxu0 0.0
        %4502 = vmatprep.subr.mxu0 0.0
        %4503 = vmatpush2.xpose.msra.mxu0 0.0
        %4504 = vmatprep.subr.mxu0 0.0
        %4505 = vmatpush2.xpose.msra.mxu0 0.0
        %4506 = vmatprep.subr.mxu0 0.0
        %4507 = vmatpush2.xpose.msra.mxu0 0.0
        %4508 = vmatprep.subr.mxu0 0.0
        %4509 = vmatpush2.xpose.msra.mxu0 0.0
        %4510 = vmatprep.subr.mxu0 0.0
        %4511 = vmatpush2.xpose.msra.mxu0 0.0
        %4512 = vmatprep.subr.mxu0 0.0
        %4513 = vmatpush2.xpose.msra.mxu0 0.0
        %4514 = vmatprep.subr.mxu0 0.0
        %4515 = vmatpush2.xpose.msra.mxu0 0.0
        %4516 = vmatprep.subr.mxu0 0.0
        %4517 = vmatpush2.xpose.msra.mxu0 0.0
        %4518 = vmatprep.subr.mxu0 0.0
        %4519 = vmatpush2.xpose.msra.mxu0 0.0
        %4520 = vmatprep.subr.mxu0 0.0
        %4521 = vmatpush2.xpose.msra.mxu0 0.0
        %4522 = vmatprep.subr.mxu0 0.0
        %4523 = vmatpush2.xpose.msra.mxu0 0.0
        %4524 = vmatprep.mubr.f32.mxu0 0.0
        %4525 = vmatmul.mubr.f32.gmra.mxu0 %v3889
        %v4526 = vpop.f32.mrf.mxu0
        %v4527 = vadd.f32 0.0, %v4526
        %v4528 = vpop.f32.mrf.mxu0
        %4529 = vdwg.mxu0
        %4530 = vmatprep.subr.mxu0 0.0
        %4531 = vmatpush1.xpose.msra.mxu0 0.0
        %4532 = vmatprep.subr.mxu0 0.0
        %4533 = vmatpush1.xpose.msra.mxu0 0.0
        %4534 = vmatprep.subr.mxu0 0.0
        %4535 = vmatpush1.xpose.msra.mxu0 0.0
        %4536 = vmatprep.subr.mxu0 0.0
        %4537 = vmatpush1.xpose.msra.mxu0 0.0
        %4538 = vmatprep.subr.mxu0 0.0
        %4539 = vmatpush1.xpose.msra.mxu0 0.0
        %4540 = vmatprep.subr.mxu0 0.0
        %4541 = vmatpush1.xpose.msra.mxu0 0.0
        %4542 = vmatprep.subr.mxu0 0.0
        %4543 = vmatpush1.xpose.msra.mxu0 0.0
        %4544 = vmatprep.subr.mxu0 0.0
        %4545 = vmatpush1.xpose.msra.mxu0 0.0
        %4546 = vmatprep.subr.mxu0 0.0
        %4547 = vmatpush1.xpose.msra.mxu0 0.0
        %4548 = vmatprep.subr.mxu0 0.0
        %4549 = vmatpush1.xpose.msra.mxu0 0.0
        %4550 = vmatprep.subr.mxu0 0.0
        %4551 = vmatpush1.xpose.msra.mxu0 0.0
        %4552 = vmatprep.subr.mxu0 0.0
        %4553 = vmatpush1.xpose.msra.mxu0 0.0
        %4554 = vmatprep.subr.mxu0 0.0
        %4555 = vmatpush1.xpose.msra.mxu0 0.0
        %4556 = vmatprep.subr.mxu0 0.0
        %4557 = vmatpush1.xpose.msra.mxu0 0.0
        %4558 = vmatprep.subr.mxu0 0.0
        %4559 = vmatpush1.xpose.msra.mxu0 0.0
        %4560 = vmatprep.subr.mxu0 0.0
        %4561 = vmatpush1.xpose.msra.mxu0 %v3323
        %4562 = vmatprep.subr.mxu0 0.0
        %4563 = vmatpush2.xpose.msra.mxu0 0.0
        %4564 = vmatprep.subr.mxu0 0.0
        %4565 = vmatpush2.xpose.msra.mxu0 0.0
        %4566 = vmatprep.subr.mxu0 0.0
        %4567 = vmatpush2.xpose.msra.mxu0 0.0
        %4568 = vmatprep.subr.mxu0 0.0
        %4569 = vmatpush2.xpose.msra.mxu0 0.0
        %4570 = vmatprep.subr.mxu0 0.0
        %4571 = vmatpush2.xpose.msra.mxu0 0.0
        %4572 = vmatprep.subr.mxu0 0.0
        %4573 = vmatpush2.xpose.msra.mxu0 0.0
        %4574 = vmatprep.subr.mxu0 0.0
        %4575 = vmatpush2.xpose.msra.mxu0 0.0
        %4576 = vmatprep.subr.mxu0 0.0
        %4577 = vmatpush2.xpose.msra.mxu0 0.0
        %4578 = vmatprep.subr.mxu0 0.0
        %4579 = vmatpush2.xpose.msra.mxu0 0.0
        %4580 = vmatprep.subr.mxu0 0.0
        %4581 = vmatpush2.xpose.msra.mxu0 0.0
        %4582 = vmatprep.subr.mxu0 0.0
        %4583 = vmatpush2.xpose.msra.mxu0 0.0
        %4584 = vmatprep.subr.mxu0 0.0
        %4585 = vmatpush2.xpose.msra.mxu0 0.0
        %4586 = vmatprep.subr.mxu0 0.0
        %4587 = vmatpush2.xpose.msra.mxu0 0.0
        %4588 = vmatprep.subr.mxu0 0.0
        %4589 = vmatpush2.xpose.msra.mxu0 0.0
        %4590 = vmatprep.subr.mxu0 0.0
        %4591 = vmatpush2.xpose.msra.mxu0 0.0
        %4592 = vmatprep.subr.mxu0 0.0
        %4593 = vmatpush2.xpose.msra.mxu0 0.0
        %4594 = vmatprep.mubr.f32.mxu0 0.0
        %4595 = vmatmul.mubr.f32.gmra.mxu0 %v3962
        %v4596 = vpop.f32.mrf.mxu0
        %v4597 = vadd.f32 0.0, %v4596
        %v4598 = vpop.f32.mrf.mxu0
        %4599 = vdwg.mxu0
        %4600 = vmatprep.subr.mxu0 0.0
        %4601 = vmatpush1.xpose.msra.mxu0 0.0
        %4602 = vmatprep.subr.mxu0 0.0
        %4603 = vmatpush1.xpose.msra.mxu0 0.0
        %4604 = vmatprep.subr.mxu0 0.0
        %4605 = vmatpush1.xpose.msra.mxu0 0.0
        %4606 = vmatprep.subr.mxu0 0.0
        %4607 = vmatpush1.xpose.msra.mxu0 0.0
        %4608 = vmatprep.subr.mxu0 0.0
        %4609 = vmatpush1.xpose.msra.mxu0 0.0
        %4610 = vmatprep.subr.mxu0 0.0
        %4611 = vmatpush1.xpose.msra.mxu0 0.0
        %4612 = vmatprep.subr.mxu0 0.0
        %4613 = vmatpush1.xpose.msra.mxu0 0.0
        %4614 = vmatprep.subr.mxu0 0.0
        %4615 = vmatpush1.xpose.msra.mxu0 0.0
        %4616 = vmatprep.subr.mxu0 0.0
        %4617 = vmatpush1.xpose.msra.mxu0 0.0
        %4618 = vmatprep.subr.mxu0 0.0
        %4619 = vmatpush1.xpose.msra.mxu0 0.0
        %4620 = vmatprep.subr.mxu0 0.0
        %4621 = vmatpush1.xpose.msra.mxu0 0.0
        %4622 = vmatprep.subr.mxu0 0.0
        %4623 = vmatpush1.xpose.msra.mxu0 0.0
        %4624 = vmatprep.subr.mxu0 0.0
        %4625 = vmatpush1.xpose.msra.mxu0 0.0
        %4626 = vmatprep.subr.mxu0 0.0
        %4627 = vmatpush1.xpose.msra.mxu0 0.0
        %4628 = vmatprep.subr.mxu0 0.0
        %4629 = vmatpush1.xpose.msra.mxu0 0.0
        %4630 = vmatprep.subr.mxu0 0.0
        %4631 = vmatpush1.xpose.msra.mxu0 %v3323
        %4632 = vmatprep.subr.mxu0 0.0
        %4633 = vmatpush2.xpose.msra.mxu0 0.0
        %4634 = vmatprep.subr.mxu0 0.0
        %4635 = vmatpush2.xpose.msra.mxu0 0.0
        %4636 = vmatprep.subr.mxu0 0.0
        %4637 = vmatpush2.xpose.msra.mxu0 0.0
        %4638 = vmatprep.subr.mxu0 0.0
        %4639 = vmatpush2.xpose.msra.mxu0 0.0
        %4640 = vmatprep.subr.mxu0 0.0
        %4641 = vmatpush2.xpose.msra.mxu0 0.0
        %4642 = vmatprep.subr.mxu0 0.0
        %4643 = vmatpush2.xpose.msra.mxu0 0.0
        %4644 = vmatprep.subr.mxu0 0.0
        %4645 = vmatpush2.xpose.msra.mxu0 0.0
        %4646 = vmatprep.subr.mxu0 0.0
        %4647 = vmatpush2.xpose.msra.mxu0 0.0
        %4648 = vmatprep.subr.mxu0 0.0
        %4649 = vmatpush2.xpose.msra.mxu0 0.0
        %4650 = vmatprep.subr.mxu0 0.0
        %4651 = vmatpush2.xpose.msra.mxu0 0.0
        %4652 = vmatprep.subr.mxu0 0.0
        %4653 = vmatpush2.xpose.msra.mxu0 0.0
        %4654 = vmatprep.subr.mxu0 0.0
        %4655 = vmatpush2.xpose.msra.mxu0 0.0
        %4656 = vmatprep.subr.mxu0 0.0
        %4657 = vmatpush2.xpose.msra.mxu0 0.0
        %4658 = vmatprep.subr.mxu0 0.0
        %4659 = vmatpush2.xpose.msra.mxu0 0.0
        %4660 = vmatprep.subr.mxu0 0.0
        %4661 = vmatpush2.xpose.msra.mxu0 0.0
        %4662 = vmatprep.subr.mxu0 0.0
        %4663 = vmatpush2.xpose.msra.mxu0 0.0
        %4664 = vmatprep.mubr.f32.mxu0 0.0
        %4665 = vmatmul.mubr.f32.gmra.mxu0 %v4035
        %v4666 = vpop.f32.mrf.mxu0
        %v4667 = vadd.f32 0.0, %v4666
        %v4668 = vpop.f32.mrf.mxu0
        %4669 = vdwg.mxu0
        %4670 = vmatprep.subr.mxu0 0.0
        %4671 = vmatpush1.xpose.msra.mxu0 0.0
        %4672 = vmatprep.subr.mxu0 0.0
        %4673 = vmatpush1.xpose.msra.mxu0 0.0
        %4674 = vmatprep.subr.mxu0 0.0
        %4675 = vmatpush1.xpose.msra.mxu0 0.0
        %4676 = vmatprep.subr.mxu0 0.0
        %4677 = vmatpush1.xpose.msra.mxu0 0.0
        %4678 = vmatprep.subr.mxu0 0.0
        %4679 = vmatpush1.xpose.msra.mxu0 0.0
        %4680 = vmatprep.subr.mxu0 0.0
        %4681 = vmatpush1.xpose.msra.mxu0 0.0
        %4682 = vmatprep.subr.mxu0 0.0
        %4683 = vmatpush1.xpose.msra.mxu0 0.0
        %4684 = vmatprep.subr.mxu0 0.0
        %4685 = vmatpush1.xpose.msra.mxu0 0.0
        %4686 = vmatprep.subr.mxu0 0.0
        %4687 = vmatpush1.xpose.msra.mxu0 0.0
        %4688 = vmatprep.subr.mxu0 0.0
        %4689 = vmatpush1.xpose.msra.mxu0 0.0
        %4690 = vmatprep.subr.mxu0 0.0
        %4691 = vmatpush1.xpose.msra.mxu0 0.0
        %4692 = vmatprep.subr.mxu0 0.0
        %4693 = vmatpush1.xpose.msra.mxu0 0.0
        %4694 = vmatprep.subr.mxu0 0.0
        %4695 = vmatpush1.xpose.msra.mxu0 0.0
        %4696 = vmatprep.subr.mxu0 0.0
        %4697 = vmatpush1.xpose.msra.mxu0 0.0
        %4698 = vmatprep.subr.mxu0 0.0
        %4699 = vmatpush1.xpose.msra.mxu0 0.0
        %4700 = vmatprep.subr.mxu0 0.0
        %4701 = vmatpush1.xpose.msra.mxu0 %v3323
        %4702 = vmatprep.subr.mxu0 0.0
        %4703 = vmatpush2.xpose.msra.mxu0 0.0
        %4704 = vmatprep.subr.mxu0 0.0
        %4705 = vmatpush2.xpose.msra.mxu0 0.0
        %4706 = vmatprep.subr.mxu0 0.0
        %4707 = vmatpush2.xpose.msra.mxu0 0.0
        %4708 = vmatprep.subr.mxu0 0.0
        %4709 = vmatpush2.xpose.msra.mxu0 0.0
        %4710 = vmatprep.subr.mxu0 0.0
        %4711 = vmatpush2.xpose.msra.mxu0 0.0
        %4712 = vmatprep.subr.mxu0 0.0
        %4713 = vmatpush2.xpose.msra.mxu0 0.0
        %4714 = vmatprep.subr.mxu0 0.0
        %4715 = vmatpush2.xpose.msra.mxu0 0.0
        %4716 = vmatprep.subr.mxu0 0.0
        %4717 = vmatpush2.xpose.msra.mxu0 0.0
        %4718 = vmatprep.subr.mxu0 0.0
        %4719 = vmatpush2.xpose.msra.mxu0 0.0
        %4720 = vmatprep.subr.mxu0 0.0
        %4721 = vmatpush2.xpose.msra.mxu0 0.0
        %4722 = vmatprep.subr.mxu0 0.0
        %4723 = vmatpush2.xpose.msra.mxu0 0.0
        %4724 = vmatprep.subr.mxu0 0.0
        %4725 = vmatpush2.xpose.msra.mxu0 0.0
        %4726 = vmatprep.subr.mxu0 0.0
        %4727 = vmatpush2.xpose.msra.mxu0 0.0
        %4728 = vmatprep.subr.mxu0 0.0
        %4729 = vmatpush2.xpose.msra.mxu0 0.0
        %4730 = vmatprep.subr.mxu0 0.0
        %4731 = vmatpush2.xpose.msra.mxu0 0.0
        %4732 = vmatprep.subr.mxu0 0.0
        %4733 = vmatpush2.xpose.msra.mxu0 0.0
        %4734 = vmatprep.mubr.f32.mxu0 0.0
        %4735 = vmatmul.mubr.f32.gmra.mxu0 %v4108
        %v4736 = vpop.f32.mrf.mxu0
        %v4737 = vadd.f32 0.0, %v4736
        %v4738 = vpop.f32.mrf.mxu0
        %4739 = vdwg.mxu0
        %4740 = vmatprep.subr.mxu0 0.0
        %4741 = vmatpush1.xpose.msra.mxu0 0.0
        %4742 = vmatprep.subr.mxu0 0.0
        %4743 = vmatpush1.xpose.msra.mxu0 0.0
        %4744 = vmatprep.subr.mxu0 0.0
        %4745 = vmatpush1.xpose.msra.mxu0 0.0
        %4746 = vmatprep.subr.mxu0 0.0
        %4747 = vmatpush1.xpose.msra.mxu0 0.0
        %4748 = vmatprep.subr.mxu0 0.0
        %4749 = vmatpush1.xpose.msra.mxu0 0.0
        %4750 = vmatprep.subr.mxu0 0.0
        %4751 = vmatpush1.xpose.msra.mxu0 0.0
        %4752 = vmatprep.subr.mxu0 0.0
        %4753 = vmatpush1.xpose.msra.mxu0 0.0
        %4754 = vmatprep.subr.mxu0 0.0
        %4755 = vmatpush1.xpose.msra.mxu0 0.0
        %4756 = vmatprep.subr.mxu0 0.0
        %4757 = vmatpush1.xpose.msra.mxu0 0.0
        %4758 = vmatprep.subr.mxu0 0.0
        %4759 = vmatpush1.xpose.msra.mxu0 0.0
        %4760 = vmatprep.subr.mxu0 0.0
        %4761 = vmatpush1.xpose.msra.mxu0 0.0
        %4762 = vmatprep.subr.mxu0 0.0
        %4763 = vmatpush1.xpose.msra.mxu0 0.0
        %4764 = vmatprep.subr.mxu0 0.0
        %4765 = vmatpush1.xpose.msra.mxu0 0.0
        %4766 = vmatprep.subr.mxu0 0.0
        %4767 = vmatpush1.xpose.msra.mxu0 0.0
        %4768 = vmatprep.subr.mxu0 0.0
        %4769 = vmatpush1.xpose.msra.mxu0 0.0
        %4770 = vmatprep.subr.mxu0 0.0
        %4771 = vmatpush1.xpose.msra.mxu0 %v3606
        %4772 = vmatprep.subr.mxu0 0.0
        %4773 = vmatpush2.xpose.msra.mxu0 0.0
        %4774 = vmatprep.subr.mxu0 0.0
        %4775 = vmatpush2.xpose.msra.mxu0 0.0
        %4776 = vmatprep.subr.mxu0 0.0
        %4777 = vmatpush2.xpose.msra.mxu0 0.0
        %4778 = vmatprep.subr.mxu0 0.0
        %4779 = vmatpush2.xpose.msra.mxu0 0.0
        %4780 = vmatprep.subr.mxu0 0.0
        %4781 = vmatpush2.xpose.msra.mxu0 0.0
        %4782 = vmatprep.subr.mxu0 0.0
        %4783 = vmatpush2.xpose.msra.mxu0 0.0
        %4784 = vmatprep.subr.mxu0 0.0
        %4785 = vmatpush2.xpose.msra.mxu0 0.0
        %4786 = vmatprep.subr.mxu0 0.0
        %4787 = vmatpush2.xpose.msra.mxu0 0.0
        %4788 = vmatprep.subr.mxu0 0.0
        %4789 = vmatpush2.xpose.msra.mxu0 0.0
        %4790 = vmatprep.subr.mxu0 0.0
        %4791 = vmatpush2.xpose.msra.mxu0 0.0
        %4792 = vmatprep.subr.mxu0 0.0
        %4793 = vmatpush2.xpose.msra.mxu0 0.0
        %4794 = vmatprep.subr.mxu0 0.0
        %4795 = vmatpush2.xpose.msra.mxu0 0.0
        %4796 = vmatprep.subr.mxu0 0.0
        %4797 = vmatpush2.xpose.msra.mxu0 0.0
        %4798 = vmatprep.subr.mxu0 0.0
        %4799 = vmatpush2.xpose.msra.mxu0 0.0
        %4800 = vmatprep.subr.mxu0 0.0
        %4801 = vmatpush2.xpose.msra.mxu0 0.0
        %4802 = vmatprep.subr.mxu0 0.0
        %4803 = vmatpush2.xpose.msra.mxu0 0.0
        %4804 = vmatprep.mubr.f32.mxu0 0.0
        %4805 = vmatmul.mubr.f32.gmra.mxu0 %v3889
        %v4806 = vpop.f32.mrf.mxu0
        %v4807 = vadd.f32 0.0, %v4806
        %v4808 = vpop.f32.mrf.mxu0
        %4809 = vdwg.mxu0
        %4810 = vmatprep.subr.mxu0 0.0
        %4811 = vmatpush1.xpose.msra.mxu0 0.0
        %4812 = vmatprep.subr.mxu0 0.0
        %4813 = vmatpush1.xpose.msra.mxu0 0.0
        %4814 = vmatprep.subr.mxu0 0.0
        %4815 = vmatpush1.xpose.msra.mxu0 0.0
        %4816 = vmatprep.subr.mxu0 0.0
        %4817 = vmatpush1.xpose.msra.mxu0 0.0
        %4818 = vmatprep.subr.mxu0 0.0
        %4819 = vmatpush1.xpose.msra.mxu0 0.0
        %4820 = vmatprep.subr.mxu0 0.0
        %4821 = vmatpush1.xpose.msra.mxu0 0.0
        %4822 = vmatprep.subr.mxu0 0.0
        %4823 = vmatpush1.xpose.msra.mxu0 0.0
        %4824 = vmatprep.subr.mxu0 0.0
        %4825 = vmatpush1.xpose.msra.mxu0 0.0
        %4826 = vmatprep.subr.mxu0 0.0
        %4827 = vmatpush1.xpose.msra.mxu0 0.0
        %4828 = vmatprep.subr.mxu0 0.0
        %4829 = vmatpush1.xpose.msra.mxu0 0.0
        %4830 = vmatprep.subr.mxu0 0.0
        %4831 = vmatpush1.xpose.msra.mxu0 0.0
        %4832 = vmatprep.subr.mxu0 0.0
        %4833 = vmatpush1.xpose.msra.mxu0 0.0
        %4834 = vmatprep.subr.mxu0 0.0
        %4835 = vmatpush1.xpose.msra.mxu0 0.0
        %4836 = vmatprep.subr.mxu0 0.0
        %4837 = vmatpush1.xpose.msra.mxu0 0.0
        %4838 = vmatprep.subr.mxu0 0.0
        %4839 = vmatpush1.xpose.msra.mxu0 0.0
        %4840 = vmatprep.subr.mxu0 0.0
        %4841 = vmatpush1.xpose.msra.mxu0 %v3606
        %4842 = vmatprep.subr.mxu0 0.0
        %4843 = vmatpush2.xpose.msra.mxu0 0.0
        %4844 = vmatprep.subr.mxu0 0.0
        %4845 = vmatpush2.xpose.msra.mxu0 0.0
        %4846 = vmatprep.subr.mxu0 0.0
        %4847 = vmatpush2.xpose.msra.mxu0 0.0
        %4848 = vmatprep.subr.mxu0 0.0
        %4849 = vmatpush2.xpose.msra.mxu0 0.0
        %4850 = vmatprep.subr.mxu0 0.0
        %4851 = vmatpush2.xpose.msra.mxu0 0.0
        %4852 = vmatprep.subr.mxu0 0.0
        %4853 = vmatpush2.xpose.msra.mxu0 0.0
        %4854 = vmatprep.subr.mxu0 0.0
        %4855 = vmatpush2.xpose.msra.mxu0 0.0
        %4856 = vmatprep.subr.mxu0 0.0
        %4857 = vmatpush2.xpose.msra.mxu0 0.0
        %4858 = vmatprep.subr.mxu0 0.0
        %4859 = vmatpush2.xpose.msra.mxu0 0.0
        %4860 = vmatprep.subr.mxu0 0.0
        %4861 = vmatpush2.xpose.msra.mxu0 0.0
        %4862 = vmatprep.subr.mxu0 0.0
        %4863 = vmatpush2.xpose.msra.mxu0 0.0
        %4864 = vmatprep.subr.mxu0 0.0
        %4865 = vmatpush2.xpose.msra.mxu0 0.0
        %4866 = vmatprep.subr.mxu0 0.0
        %4867 = vmatpush2.xpose.msra.mxu0 0.0
        %4868 = vmatprep.subr.mxu0 0.0
        %4869 = vmatpush2.xpose.msra.mxu0 0.0
        %4870 = vmatprep.subr.mxu0 0.0
        %4871 = vmatpush2.xpose.msra.mxu0 0.0
        %4872 = vmatprep.subr.mxu0 0.0
        %4873 = vmatpush2.xpose.msra.mxu0 0.0
        %4874 = vmatprep.mubr.f32.mxu0 0.0
        %4875 = vmatmul.mubr.f32.gmra.mxu0 %v3962
        %v4876 = vpop.f32.mrf.mxu0
        %v4877 = vadd.f32 0.0, %v4876
        %v4878 = vpop.f32.mrf.mxu0
        %4879 = vdwg.mxu0
        %4880 = vmatprep.subr.mxu0 0.0
        %4881 = vmatpush1.xpose.msra.mxu0 0.0
        %4882 = vmatprep.subr.mxu0 0.0
        %4883 = vmatpush1.xpose.msra.mxu0 0.0
        %4884 = vmatprep.subr.mxu0 0.0
        %4885 = vmatpush1.xpose.msra.mxu0 0.0
        %4886 = vmatprep.subr.mxu0 0.0
        %4887 = vmatpush1.xpose.msra.mxu0 0.0
        %4888 = vmatprep.subr.mxu0 0.0
        %4889 = vmatpush1.xpose.msra.mxu0 0.0
        %4890 = vmatprep.subr.mxu0 0.0
        %4891 = vmatpush1.xpose.msra.mxu0 0.0
        %4892 = vmatprep.subr.mxu0 0.0
        %4893 = vmatpush1.xpose.msra.mxu0 0.0
        %4894 = vmatprep.subr.mxu0 0.0
        %4895 = vmatpush1.xpose.msra.mxu0 0.0
        %4896 = vmatprep.subr.mxu0 0.0
        %4897 = vmatpush1.xpose.msra.mxu0 0.0
        %4898 = vmatprep.subr.mxu0 0.0
        %4899 = vmatpush1.xpose.msra.mxu0 0.0
        %4900 = vmatprep.subr.mxu0 0.0
        %4901 = vmatpush1.xpose.msra.mxu0 0.0
        %4902 = vmatprep.subr.mxu0 0.0
        %4903 = vmatpush1.xpose.msra.mxu0 0.0
        %4904 = vmatprep.subr.mxu0 0.0
        %4905 = vmatpush1.xpose.msra.mxu0 0.0
        %4906 = vmatprep.subr.mxu0 0.0
        %4907 = vmatpush1.xpose.msra.mxu0 0.0
        %4908 = vmatprep.subr.mxu0 0.0
        %4909 = vmatpush1.xpose.msra.mxu0 0.0
        %4910 = vmatprep.subr.mxu0 0.0
        %4911 = vmatpush1.xpose.msra.mxu0 %v3606
        %4912 = vmatprep.subr.mxu0 0.0
        %4913 = vmatpush2.xpose.msra.mxu0 0.0
        %4914 = vmatprep.subr.mxu0 0.0
        %4915 = vmatpush2.xpose.msra.mxu0 0.0
        %4916 = vmatprep.subr.mxu0 0.0
        %4917 = vmatpush2.xpose.msra.mxu0 0.0
        %4918 = vmatprep.subr.mxu0 0.0
        %4919 = vmatpush2.xpose.msra.mxu0 0.0
        %4920 = vmatprep.subr.mxu0 0.0
        %4921 = vmatpush2.xpose.msra.mxu0 0.0
        %4922 = vmatprep.subr.mxu0 0.0
        %4923 = vmatpush2.xpose.msra.mxu0 0.0
        %4924 = vmatprep.subr.mxu0 0.0
        %4925 = vmatpush2.xpose.msra.mxu0 0.0
        %4926 = vmatprep.subr.mxu0 0.0
        %4927 = vmatpush2.xpose.msra.mxu0 0.0
        %4928 = vmatprep.subr.mxu0 0.0
        %4929 = vmatpush2.xpose.msra.mxu0 0.0
        %4930 = vmatprep.subr.mxu0 0.0
        %4931 = vmatpush2.xpose.msra.mxu0 0.0
        %4932 = vmatprep.subr.mxu0 0.0
        %4933 = vmatpush2.xpose.msra.mxu0 0.0
        %4934 = vmatprep.subr.mxu0 0.0
        %4935 = vmatpush2.xpose.msra.mxu0 0.0
        %4936 = vmatprep.subr.mxu0 0.0
        %4937 = vmatpush2.xpose.msra.mxu0 0.0
        %4938 = vmatprep.subr.mxu0 0.0
        %4939 = vmatpush2.xpose.msra.mxu0 0.0
        %4940 = vmatprep.subr.mxu0 0.0
        %4941 = vmatpush2.xpose.msra.mxu0 0.0
        %4942 = vmatprep.subr.mxu0 0.0
        %4943 = vmatpush2.xpose.msra.mxu0 0.0
        %4944 = vmatprep.mubr.f32.mxu0 0.0
        %4945 = vmatmul.mubr.f32.gmra.mxu0 %v4035
        %v4946 = vpop.f32.mrf.mxu0
        %v4947 = vadd.f32 0.0, %v4946
        %v4948 = vpop.f32.mrf.mxu0
        %4949 = vdwg.mxu0
        %4950 = vmatprep.subr.mxu0 0.0
        %4951 = vmatpush1.xpose.msra.mxu0 0.0
        %4952 = vmatprep.subr.mxu0 0.0
        %4953 = vmatpush1.xpose.msra.mxu0 0.0
        %4954 = vmatprep.subr.mxu0 0.0
        %4955 = vmatpush1.xpose.msra.mxu0 0.0
        %4956 = vmatprep.subr.mxu0 0.0
        %4957 = vmatpush1.xpose.msra.mxu0 0.0
        %4958 = vmatprep.subr.mxu0 0.0
        %4959 = vmatpush1.xpose.msra.mxu0 0.0
        %4960 = vmatprep.subr.mxu0 0.0
        %4961 = vmatpush1.xpose.msra.mxu0 0.0
        %4962 = vmatprep.subr.mxu0 0.0
        %4963 = vmatpush1.xpose.msra.mxu0 0.0
        %4964 = vmatprep.subr.mxu0 0.0
        %4965 = vmatpush1.xpose.msra.mxu0 0.0
        %4966 = vmatprep.subr.mxu0 0.0
        %4967 = vmatpush1.xpose.msra.mxu0 0.0
        %4968 = vmatprep.subr.mxu0 0.0
        %4969 = vmatpush1.xpose.msra.mxu0 0.0
        %4970 = vmatprep.subr.mxu0 0.0
        %4971 = vmatpush1.xpose.msra.mxu0 0.0
        %4972 = vmatprep.subr.mxu0 0.0
        %4973 = vmatpush1.xpose.msra.mxu0 0.0
        %4974 = vmatprep.subr.mxu0 0.0
        %4975 = vmatpush1.xpose.msra.mxu0 0.0
        %4976 = vmatprep.subr.mxu0 0.0
        %4977 = vmatpush1.xpose.msra.mxu0 0.0
        %4978 = vmatprep.subr.mxu0 0.0
        %4979 = vmatpush1.xpose.msra.mxu0 0.0
        %4980 = vmatprep.subr.mxu0 0.0
        %4981 = vmatpush1.xpose.msra.mxu0 %v3606
        %4982 = vmatprep.subr.mxu0 0.0
        %4983 = vmatpush2.xpose.msra.mxu0 0.0
        %4984 = vmatprep.subr.mxu0 0.0
        %4985 = vmatpush2.xpose.msra.mxu0 0.0
        %4986 = vmatprep.subr.mxu0 0.0
        %4987 = vmatpush2.xpose.msra.mxu0 0.0
        %4988 = vmatprep.subr.mxu0 0.0
        %4989 = vmatpush2.xpose.msra.mxu0 0.0
        %4990 = vmatprep.subr.mxu0 0.0
        %4991 = vmatpush2.xpose.msra.mxu0 0.0
        %4992 = vmatprep.subr.mxu0 0.0
        %4993 = vmatpush2.xpose.msra.mxu0 0.0
        %4994 = vmatprep.subr.mxu0 0.0
        %4995 = vmatpush2.xpose.msra.mxu0 0.0
        %4996 = vmatprep.subr.mxu0 0.0
        %4997 = vmatpush2.xpose.msra.mxu0 0.0
        %4998 = vmatprep.subr.mxu0 0.0
        %4999 = vmatpush2.xpose.msra.mxu0 0.0
        %5000 = vmatprep.subr.mxu0 0.0
        %5001 = vmatpush2.xpose.msra.mxu0 0.0
        %5002 = vmatprep.subr.mxu0 0.0
        %5003 = vmatpush2.xpose.msra.mxu0 0.0
        %5004 = vmatprep.subr.mxu0 0.0
        %5005 = vmatpush2.xpose.msra.mxu0 0.0
        %5006 = vmatprep.subr.mxu0 0.0
        %5007 = vmatpush2.xpose.msra.mxu0 0.0
        %5008 = vmatprep.subr.mxu0 0.0
        %5009 = vmatpush2.xpose.msra.mxu0 0.0
        %5010 = vmatprep.subr.mxu0 0.0
        %5011 = vmatpush2.xpose.msra.mxu0 0.0
        %5012 = vmatprep.subr.mxu0 0.0
        %5013 = vmatpush2.xpose.msra.mxu0 0.0
        %5014 = vmatprep.mubr.f32.mxu0 0.0
        %5015 = vmatmul.mubr.f32.gmra.mxu0 %v4108
        %v5016 = vpop.f32.mrf.mxu0
        %v5017 = vadd.f32 0.0, %v5016
        %v5018 = vpop.f32.mrf.mxu0
        %5019 = vdwg.mxu0
        %vm5020 = vcmask 64512
        %v5022 = vsel %vm5020, %v541, 0
        %v5025 = vsel %vm5020, %v1682, 0
        %5027 = vmatprep.subr.mxu0 0.0
        %5028 = vmatpush1.xpose.msra.mxu0 0.0
        %5029 = vmatprep.subr.mxu0 0.0
        %5030 = vmatpush1.xpose.msra.mxu0 0.0
        %5031 = vmatprep.subr.mxu0 0.0
        %5032 = vmatpush1.xpose.msra.mxu0 0.0
        %5033 = vmatprep.subr.mxu0 0.0
        %5034 = vmatpush1.xpose.msra.mxu0 0.0
        %5035 = vmatprep.subr.mxu0 0.0
        %5036 = vmatpush1.xpose.msra.mxu0 0.0
        %5037 = vmatprep.subr.mxu0 0.0
        %5038 = vmatpush1.xpose.msra.mxu0 0.0
        %5039 = vmatprep.subr.mxu0 0.0
        %5040 = vmatpush1.xpose.msra.mxu0 0.0
        %5041 = vmatprep.subr.mxu0 0.0
        %5042 = vmatpush1.xpose.msra.mxu0 0.0
        %5043 = vmatprep.subr.mxu0 0.0
        %5044 = vmatpush1.xpose.msra.mxu0 0.0
        %5045 = vmatprep.subr.mxu0 0.0
        %5046 = vmatpush1.xpose.msra.mxu0 0.0
        %5047 = vmatprep.subr.mxu0 0.0
        %5048 = vmatpush1.xpose.msra.mxu0 0.0
        %5049 = vmatprep.subr.mxu0 0.0
        %5050 = vmatpush1.xpose.msra.mxu0 0.0
        %5051 = vmatprep.subr.mxu0 0.0
        %5052 = vmatpush1.xpose.msra.mxu0 0.0
        %5053 = vmatprep.subr.mxu0 0.0
        %5054 = vmatpush1.xpose.msra.mxu0 0.0
        %5055 = vmatprep.subr.mxu0 0.0
        %5056 = vmatpush1.xpose.msra.mxu0 0.0
        %5057 = vmatprep.subr.mxu0 0.0
        %5058 = vmatpush1.xpose.msra.mxu0 %v5025
        %5059 = vmatprep.subr.mxu0 0.0
        %5060 = vmatpush2.xpose.msra.mxu0 0.0
        %5061 = vmatprep.subr.mxu0 0.0
        %5062 = vmatpush2.xpose.msra.mxu0 0.0
        %5063 = vmatprep.subr.mxu0 0.0
        %5064 = vmatpush2.xpose.msra.mxu0 0.0
        %5065 = vmatprep.subr.mxu0 0.0
        %5066 = vmatpush2.xpose.msra.mxu0 0.0
        %5067 = vmatprep.subr.mxu0 0.0
        %5068 = vmatpush2.xpose.msra.mxu0 0.0
        %5069 = vmatprep.subr.mxu0 0.0
        %5070 = vmatpush2.xpose.msra.mxu0 0.0
        %5071 = vmatprep.subr.mxu0 0.0
        %5072 = vmatpush2.xpose.msra.mxu0 0.0
        %5073 = vmatprep.subr.mxu0 0.0
        %5074 = vmatpush2.xpose.msra.mxu0 0.0
        %5075 = vmatprep.subr.mxu0 0.0
        %5076 = vmatpush2.xpose.msra.mxu0 0.0
        %5077 = vmatprep.subr.mxu0 0.0
        %5078 = vmatpush2.xpose.msra.mxu0 0.0
        %5079 = vmatprep.subr.mxu0 0.0
        %5080 = vmatpush2.xpose.msra.mxu0 0.0
        %5081 = vmatprep.subr.mxu0 0.0
        %5082 = vmatpush2.xpose.msra.mxu0 0.0
        %5083 = vmatprep.subr.mxu0 0.0
        %5084 = vmatpush2.xpose.msra.mxu0 0.0
        %5085 = vmatprep.subr.mxu0 0.0
        %5086 = vmatpush2.xpose.msra.mxu0 0.0
        %5087 = vmatprep.subr.mxu0 0.0
        %5088 = vmatpush2.xpose.msra.mxu0 0.0
        %5089 = vmatprep.subr.mxu0 0.0
        %5090 = vmatpush2.xpose.msra.mxu0 0.0
        %5091 = vmatprep.mubr.f32.mxu0 0.0
        %5092 = vmatmul.mubr.f32.gmra.mxu0 %v5022
        %v5093 = vpop.f32.mrf.mxu0
        %v5094 = vadd.f32 0.0, %v5093
        %v5095 = vpop.f32.mrf.mxu0
        %5096 = vdwg.mxu0
        %v5098 = vsel %vm5020, %v614, 0
        %v5101 = vsel %vm5020, %v1755, 0
        %5103 = vmatprep.subr.mxu0 0.0
        %5104 = vmatpush1.xpose.msra.mxu0 0.0
        %5105 = vmatprep.subr.mxu0 0.0
        %5106 = vmatpush1.xpose.msra.mxu0 0.0
        %5107 = vmatprep.subr.mxu0 0.0
        %5108 = vmatpush1.xpose.msra.mxu0 0.0
        %5109 = vmatprep.subr.mxu0 0.0
        %5110 = vmatpush1.xpose.msra.mxu0 0.0
        %5111 = vmatprep.subr.mxu0 0.0
        %5112 = vmatpush1.xpose.msra.mxu0 0.0
        %5113 = vmatprep.subr.mxu0 0.0
        %5114 = vmatpush1.xpose.msra.mxu0 0.0
        %5115 = vmatprep.subr.mxu0 0.0
        %5116 = vmatpush1.xpose.msra.mxu0 0.0
        %5117 = vmatprep.subr.mxu0 0.0
        %5118 = vmatpush1.xpose.msra.mxu0 0.0
        %5119 = vmatprep.subr.mxu0 0.0
        %5120 = vmatpush1.xpose.msra.mxu0 0.0
        %5121 = vmatprep.subr.mxu0 0.0
        %5122 = vmatpush1.xpose.msra.mxu0 0.0
        %5123 = vmatprep.subr.mxu0 0.0
        %5124 = vmatpush1.xpose.msra.mxu0 0.0
        %5125 = vmatprep.subr.mxu0 0.0
        %5126 = vmatpush1.xpose.msra.mxu0 0.0
        %5127 = vmatprep.subr.mxu0 0.0
        %5128 = vmatpush1.xpose.msra.mxu0 0.0
        %5129 = vmatprep.subr.mxu0 0.0
        %5130 = vmatpush1.xpose.msra.mxu0 0.0
        %5131 = vmatprep.subr.mxu0 0.0
        %5132 = vmatpush1.xpose.msra.mxu0 0.0
        %5133 = vmatprep.subr.mxu0 0.0
        %5134 = vmatpush1.xpose.msra.mxu0 %v5101
        %5135 = vmatprep.subr.mxu0 0.0
        %5136 = vmatpush2.xpose.msra.mxu0 0.0
        %5137 = vmatprep.subr.mxu0 0.0
        %5138 = vmatpush2.xpose.msra.mxu0 0.0
        %5139 = vmatprep.subr.mxu0 0.0
        %5140 = vmatpush2.xpose.msra.mxu0 0.0
        %5141 = vmatprep.subr.mxu0 0.0
        %5142 = vmatpush2.xpose.msra.mxu0 0.0
        %5143 = vmatprep.subr.mxu0 0.0
        %5144 = vmatpush2.xpose.msra.mxu0 0.0
        %5145 = vmatprep.subr.mxu0 0.0
        %5146 = vmatpush2.xpose.msra.mxu0 0.0
        %5147 = vmatprep.subr.mxu0 0.0
        %5148 = vmatpush2.xpose.msra.mxu0 0.0
        %5149 = vmatprep.subr.mxu0 0.0
        %5150 = vmatpush2.xpose.msra.mxu0 0.0
        %5151 = vmatprep.subr.mxu0 0.0
        %5152 = vmatpush2.xpose.msra.mxu0 0.0
        %5153 = vmatprep.subr.mxu0 0.0
        %5154 = vmatpush2.xpose.msra.mxu0 0.0
        %5155 = vmatprep.subr.mxu0 0.0
        %5156 = vmatpush2.xpose.msra.mxu0 0.0
        %5157 = vmatprep.subr.mxu0 0.0
        %5158 = vmatpush2.xpose.msra.mxu0 0.0
        %5159 = vmatprep.subr.mxu0 0.0
        %5160 = vmatpush2.xpose.msra.mxu0 0.0
        %5161 = vmatprep.subr.mxu0 0.0
        %5162 = vmatpush2.xpose.msra.mxu0 0.0
        %5163 = vmatprep.subr.mxu0 0.0
        %5164 = vmatpush2.xpose.msra.mxu0 0.0
        %5165 = vmatprep.subr.mxu0 0.0
        %5166 = vmatpush2.xpose.msra.mxu0 0.0
        %5167 = vmatprep.mubr.f32.mxu0 0.0
        %5168 = vmatmul.mubr.f32.gmra.mxu0 %v5098
        %v5169 = vpop.f32.mrf.mxu0
        %v5170 = vadd.f32 0.0, %v5169
        %v5171 = vpop.f32.mrf.mxu0
        %5172 = vdwg.mxu0
        %v5174 = vsel %vm5020, %v687, 0
        %v5177 = vsel %vm5020, %v1828, 0
        %5179 = vmatprep.subr.mxu0 0.0
        %5180 = vmatpush1.xpose.msra.mxu0 0.0
        %5181 = vmatprep.subr.mxu0 0.0
        %5182 = vmatpush1.xpose.msra.mxu0 0.0
        %5183 = vmatprep.subr.mxu0 0.0
        %5184 = vmatpush1.xpose.msra.mxu0 0.0
        %5185 = vmatprep.subr.mxu0 0.0
        %5186 = vmatpush1.xpose.msra.mxu0 0.0
        %5187 = vmatprep.subr.mxu0 0.0
        %5188 = vmatpush1.xpose.msra.mxu0 0.0
        %5189 = vmatprep.subr.mxu0 0.0
        %5190 = vmatpush1.xpose.msra.mxu0 0.0
        %5191 = vmatprep.subr.mxu0 0.0
        %5192 = vmatpush1.xpose.msra.mxu0 0.0
        %5193 = vmatprep.subr.mxu0 0.0
        %5194 = vmatpush1.xpose.msra.mxu0 0.0
        %5195 = vmatprep.subr.mxu0 0.0
        %5196 = vmatpush1.xpose.msra.mxu0 0.0
        %5197 = vmatprep.subr.mxu0 0.0
        %5198 = vmatpush1.xpose.msra.mxu0 0.0
        %5199 = vmatprep.subr.mxu0 0.0
        %5200 = vmatpush1.xpose.msra.mxu0 0.0
        %5201 = vmatprep.subr.mxu0 0.0
        %5202 = vmatpush1.xpose.msra.mxu0 0.0
        %5203 = vmatprep.subr.mxu0 0.0
        %5204 = vmatpush1.xpose.msra.mxu0 0.0
        %5205 = vmatprep.subr.mxu0 0.0
        %5206 = vmatpush1.xpose.msra.mxu0 0.0
        %5207 = vmatprep.subr.mxu0 0.0
        %5208 = vmatpush1.xpose.msra.mxu0 0.0
        %5209 = vmatprep.subr.mxu0 0.0
        %5210 = vmatpush1.xpose.msra.mxu0 %v5177
        %5211 = vmatprep.subr.mxu0 0.0
        %5212 = vmatpush2.xpose.msra.mxu0 0.0
        %5213 = vmatprep.subr.mxu0 0.0
        %5214 = vmatpush2.xpose.msra.mxu0 0.0
        %5215 = vmatprep.subr.mxu0 0.0
        %5216 = vmatpush2.xpose.msra.mxu0 0.0
        %5217 = vmatprep.subr.mxu0 0.0
        %5218 = vmatpush2.xpose.msra.mxu0 0.0
        %5219 = vmatprep.subr.mxu0 0.0
        %5220 = vmatpush2.xpose.msra.mxu0 0.0
        %5221 = vmatprep.subr.mxu0 0.0
        %5222 = vmatpush2.xpose.msra.mxu0 0.0
        %5223 = vmatprep.subr.mxu0 0.0
        %5224 = vmatpush2.xpose.msra.mxu0 0.0
        %5225 = vmatprep.subr.mxu0 0.0
        %5226 = vmatpush2.xpose.msra.mxu0 0.0
        %5227 = vmatprep.subr.mxu0 0.0
        %5228 = vmatpush2.xpose.msra.mxu0 0.0
        %5229 = vmatprep.subr.mxu0 0.0
        %5230 = vmatpush2.xpose.msra.mxu0 0.0
        %5231 = vmatprep.subr.mxu0 0.0
        %5232 = vmatpush2.xpose.msra.mxu0 0.0
        %5233 = vmatprep.subr.mxu0 0.0
        %5234 = vmatpush2.xpose.msra.mxu0 0.0
        %5235 = vmatprep.subr.mxu0 0.0
        %5236 = vmatpush2.xpose.msra.mxu0 0.0
        %5237 = vmatprep.subr.mxu0 0.0
        %5238 = vmatpush2.xpose.msra.mxu0 0.0
        %5239 = vmatprep.subr.mxu0 0.0
        %5240 = vmatpush2.xpose.msra.mxu0 0.0
        %5241 = vmatprep.subr.mxu0 0.0
        %5242 = vmatpush2.xpose.msra.mxu0 0.0
        %5243 = vmatprep.mubr.f32.mxu0 0.0
        %5244 = vmatmul.mubr.f32.gmra.mxu0 %v5174
        %v5245 = vpop.f32.mrf.mxu0
        %v5246 = vadd.f32 0.0, %v5245
        %v5247 = vpop.f32.mrf.mxu0
        %5248 = vdwg.mxu0
        %v5250 = vsel %vm5020, %v760, 0
        %v5253 = vsel %vm5020, %v1901, 0
        %5255 = vmatprep.subr.mxu0 0.0
        %5256 = vmatpush1.xpose.msra.mxu0 0.0
        %5257 = vmatprep.subr.mxu0 0.0
        %5258 = vmatpush1.xpose.msra.mxu0 0.0
        %5259 = vmatprep.subr.mxu0 0.0
        %5260 = vmatpush1.xpose.msra.mxu0 0.0
        %5261 = vmatprep.subr.mxu0 0.0
        %5262 = vmatpush1.xpose.msra.mxu0 0.0
        %5263 = vmatprep.subr.mxu0 0.0
        %5264 = vmatpush1.xpose.msra.mxu0 0.0
        %5265 = vmatprep.subr.mxu0 0.0
        %5266 = vmatpush1.xpose.msra.mxu0 0.0
        %5267 = vmatprep.subr.mxu0 0.0
        %5268 = vmatpush1.xpose.msra.mxu0 0.0
        %5269 = vmatprep.subr.mxu0 0.0
        %5270 = vmatpush1.xpose.msra.mxu0 0.0
        %5271 = vmatprep.subr.mxu0 0.0
        %5272 = vmatpush1.xpose.msra.mxu0 0.0
        %5273 = vmatprep.subr.mxu0 0.0
        %5274 = vmatpush1.xpose.msra.mxu0 0.0
        %5275 = vmatprep.subr.mxu0 0.0
        %5276 = vmatpush1.xpose.msra.mxu0 0.0
        %5277 = vmatprep.subr.mxu0 0.0
        %5278 = vmatpush1.xpose.msra.mxu0 0.0
        %5279 = vmatprep.subr.mxu0 0.0
        %5280 = vmatpush1.xpose.msra.mxu0 0.0
        %5281 = vmatprep.subr.mxu0 0.0
        %5282 = vmatpush1.xpose.msra.mxu0 0.0
        %5283 = vmatprep.subr.mxu0 0.0
        %5284 = vmatpush1.xpose.msra.mxu0 0.0
        %5285 = vmatprep.subr.mxu0 0.0
        %5286 = vmatpush1.xpose.msra.mxu0 %v5253
        %5287 = vmatprep.subr.mxu0 0.0
        %5288 = vmatpush2.xpose.msra.mxu0 0.0
        %5289 = vmatprep.subr.mxu0 0.0
        %5290 = vmatpush2.xpose.msra.mxu0 0.0
        %5291 = vmatprep.subr.mxu0 0.0
        %5292 = vmatpush2.xpose.msra.mxu0 0.0
        %5293 = vmatprep.subr.mxu0 0.0
        %5294 = vmatpush2.xpose.msra.mxu0 0.0
        %5295 = vmatprep.subr.mxu0 0.0
        %5296 = vmatpush2.xpose.msra.mxu0 0.0
        %5297 = vmatprep.subr.mxu0 0.0
        %5298 = vmatpush2.xpose.msra.mxu0 0.0
        %5299 = vmatprep.subr.mxu0 0.0
        %5300 = vmatpush2.xpose.msra.mxu0 0.0
        %5301 = vmatprep.subr.mxu0 0.0
        %5302 = vmatpush2.xpose.msra.mxu0 0.0
        %5303 = vmatprep.subr.mxu0 0.0
        %5304 = vmatpush2.xpose.msra.mxu0 0.0
        %5305 = vmatprep.subr.mxu0 0.0
        %5306 = vmatpush2.xpose.msra.mxu0 0.0
        %5307 = vmatprep.subr.mxu0 0.0
        %5308 = vmatpush2.xpose.msra.mxu0 0.0
        %5309 = vmatprep.subr.mxu0 0.0
        %5310 = vmatpush2.xpose.msra.mxu0 0.0
        %5311 = vmatprep.subr.mxu0 0.0
        %5312 = vmatpush2.xpose.msra.mxu0 0.0
        %5313 = vmatprep.subr.mxu0 0.0
        %5314 = vmatpush2.xpose.msra.mxu0 0.0
        %5315 = vmatprep.subr.mxu0 0.0
        %5316 = vmatpush2.xpose.msra.mxu0 0.0
        %5317 = vmatprep.subr.mxu0 0.0
        %5318 = vmatpush2.xpose.msra.mxu0 0.0
        %5319 = vmatprep.mubr.f32.mxu0 0.0
        %5320 = vmatmul.mubr.f32.gmra.mxu0 %v5250
        %v5321 = vpop.f32.mrf.mxu0
        %v5322 = vadd.f32 0.0, %v5321
        %v5323 = vpop.f32.mrf.mxu0
        %5324 = vdwg.mxu0
        %v5326 = vsel %vm5020, %v833, 0
        %v5329 = vsel %vm5020, %v1971, 0
        %5331 = vmatprep.subr.mxu0 0.0
        %5332 = vmatpush1.xpose.msra.mxu0 0.0
        %5333 = vmatprep.subr.mxu0 0.0
        %5334 = vmatpush1.xpose.msra.mxu0 0.0
        %5335 = vmatprep.subr.mxu0 0.0
        %5336 = vmatpush1.xpose.msra.mxu0 0.0
        %5337 = vmatprep.subr.mxu0 0.0
        %5338 = vmatpush1.xpose.msra.mxu0 0.0
        %5339 = vmatprep.subr.mxu0 0.0
        %5340 = vmatpush1.xpose.msra.mxu0 0.0
        %5341 = vmatprep.subr.mxu0 0.0
        %5342 = vmatpush1.xpose.msra.mxu0 0.0
        %5343 = vmatprep.subr.mxu0 0.0
        %5344 = vmatpush1.xpose.msra.mxu0 0.0
        %5345 = vmatprep.subr.mxu0 0.0
        %5346 = vmatpush1.xpose.msra.mxu0 0.0
        %5347 = vmatprep.subr.mxu0 0.0
        %5348 = vmatpush1.xpose.msra.mxu0 0.0
        %5349 = vmatprep.subr.mxu0 0.0
        %5350 = vmatpush1.xpose.msra.mxu0 0.0
        %5351 = vmatprep.subr.mxu0 0.0
        %5352 = vmatpush1.xpose.msra.mxu0 0.0
        %5353 = vmatprep.subr.mxu0 0.0
        %5354 = vmatpush1.xpose.msra.mxu0 0.0
        %5355 = vmatprep.subr.mxu0 0.0
        %5356 = vmatpush1.xpose.msra.mxu0 0.0
        %5357 = vmatprep.subr.mxu0 0.0
        %5358 = vmatpush1.xpose.msra.mxu0 0.0
        %5359 = vmatprep.subr.mxu0 0.0
        %5360 = vmatpush1.xpose.msra.mxu0 0.0
        %5361 = vmatprep.subr.mxu0 0.0
        %5362 = vmatpush1.xpose.msra.mxu0 %v5329
        %5363 = vmatprep.subr.mxu0 0.0
        %5364 = vmatpush2.xpose.msra.mxu0 0.0
        %5365 = vmatprep.subr.mxu0 0.0
        %5366 = vmatpush2.xpose.msra.mxu0 0.0
        %5367 = vmatprep.subr.mxu0 0.0
        %5368 = vmatpush2.xpose.msra.mxu0 0.0
        %5369 = vmatprep.subr.mxu0 0.0
        %5370 = vmatpush2.xpose.msra.mxu0 0.0
        %5371 = vmatprep.subr.mxu0 0.0
        %5372 = vmatpush2.xpose.msra.mxu0 0.0
        %5373 = vmatprep.subr.mxu0 0.0
        %5374 = vmatpush2.xpose.msra.mxu0 0.0
        %5375 = vmatprep.subr.mxu0 0.0
        %5376 = vmatpush2.xpose.msra.mxu0 0.0
        %5377 = vmatprep.subr.mxu0 0.0
        %5378 = vmatpush2.xpose.msra.mxu0 0.0
        %5379 = vmatprep.subr.mxu0 0.0
        %5380 = vmatpush2.xpose.msra.mxu0 0.0
        %5381 = vmatprep.subr.mxu0 0.0
        %5382 = vmatpush2.xpose.msra.mxu0 0.0
        %5383 = vmatprep.subr.mxu0 0.0
        %5384 = vmatpush2.xpose.msra.mxu0 0.0
        %5385 = vmatprep.subr.mxu0 0.0
        %5386 = vmatpush2.xpose.msra.mxu0 0.0
        %5387 = vmatprep.subr.mxu0 0.0
        %5388 = vmatpush2.xpose.msra.mxu0 0.0
        %5389 = vmatprep.subr.mxu0 0.0
        %5390 = vmatpush2.xpose.msra.mxu0 0.0
        %5391 = vmatprep.subr.mxu0 0.0
        %5392 = vmatpush2.xpose.msra.mxu0 0.0
        %5393 = vmatprep.subr.mxu0 0.0
        %5394 = vmatpush2.xpose.msra.mxu0 0.0
        %5395 = vmatprep.mubr.f32.mxu0 0.0
        %5396 = vmatmul.mubr.f32.gmra.mxu0 %v5326
        %v5397 = vpop.f32.mrf.mxu0
        %v5398 = vadd.f32 0.0, %v5397
        %v5399 = vpop.f32.mrf.mxu0
        %5400 = vdwg.mxu0
        %v5402 = vsel %vm5020, %v903, 0
        %v5405 = vsel %vm5020, %v2041, 0
        %5407 = vmatprep.subr.mxu0 0.0
        %5408 = vmatpush1.xpose.msra.mxu0 0.0
        %5409 = vmatprep.subr.mxu0 0.0
        %5410 = vmatpush1.xpose.msra.mxu0 0.0
        %5411 = vmatprep.subr.mxu0 0.0
        %5412 = vmatpush1.xpose.msra.mxu0 0.0
        %5413 = vmatprep.subr.mxu0 0.0
        %5414 = vmatpush1.xpose.msra.mxu0 0.0
        %5415 = vmatprep.subr.mxu0 0.0
        %5416 = vmatpush1.xpose.msra.mxu0 0.0
        %5417 = vmatprep.subr.mxu0 0.0
        %5418 = vmatpush1.xpose.msra.mxu0 0.0
        %5419 = vmatprep.subr.mxu0 0.0
        %5420 = vmatpush1.xpose.msra.mxu0 0.0
        %5421 = vmatprep.subr.mxu0 0.0
        %5422 = vmatpush1.xpose.msra.mxu0 0.0
        %5423 = vmatprep.subr.mxu0 0.0
        %5424 = vmatpush1.xpose.msra.mxu0 0.0
        %5425 = vmatprep.subr.mxu0 0.0
        %5426 = vmatpush1.xpose.msra.mxu0 0.0
        %5427 = vmatprep.subr.mxu0 0.0
        %5428 = vmatpush1.xpose.msra.mxu0 0.0
        %5429 = vmatprep.subr.mxu0 0.0
        %5430 = vmatpush1.xpose.msra.mxu0 0.0
        %5431 = vmatprep.subr.mxu0 0.0
        %5432 = vmatpush1.xpose.msra.mxu0 0.0
        %5433 = vmatprep.subr.mxu0 0.0
        %5434 = vmatpush1.xpose.msra.mxu0 0.0
        %5435 = vmatprep.subr.mxu0 0.0
        %5436 = vmatpush1.xpose.msra.mxu0 0.0
        %5437 = vmatprep.subr.mxu0 0.0
        %5438 = vmatpush1.xpose.msra.mxu0 %v5405
        %5439 = vmatprep.subr.mxu0 0.0
        %5440 = vmatpush2.xpose.msra.mxu0 0.0
        %5441 = vmatprep.subr.mxu0 0.0
        %5442 = vmatpush2.xpose.msra.mxu0 0.0
        %5443 = vmatprep.subr.mxu0 0.0
        %5444 = vmatpush2.xpose.msra.mxu0 0.0
        %5445 = vmatprep.subr.mxu0 0.0
        %5446 = vmatpush2.xpose.msra.mxu0 0.0
        %5447 = vmatprep.subr.mxu0 0.0
        %5448 = vmatpush2.xpose.msra.mxu0 0.0
        %5449 = vmatprep.subr.mxu0 0.0
        %5450 = vmatpush2.xpose.msra.mxu0 0.0
        %5451 = vmatprep.subr.mxu0 0.0
        %5452 = vmatpush2.xpose.msra.mxu0 0.0
        %5453 = vmatprep.subr.mxu0 0.0
        %5454 = vmatpush2.xpose.msra.mxu0 0.0
        %5455 = vmatprep.subr.mxu0 0.0
        %5456 = vmatpush2.xpose.msra.mxu0 0.0
        %5457 = vmatprep.subr.mxu0 0.0
        %5458 = vmatpush2.xpose.msra.mxu0 0.0
        %5459 = vmatprep.subr.mxu0 0.0
        %5460 = vmatpush2.xpose.msra.mxu0 0.0
        %5461 = vmatprep.subr.mxu0 0.0
        %5462 = vmatpush2.xpose.msra.mxu0 0.0
        %5463 = vmatprep.subr.mxu0 0.0
        %5464 = vmatpush2.xpose.msra.mxu0 0.0
        %5465 = vmatprep.subr.mxu0 0.0
        %5466 = vmatpush2.xpose.msra.mxu0 0.0
        %5467 = vmatprep.subr.mxu0 0.0
        %5468 = vmatpush2.xpose.msra.mxu0 0.0
        %5469 = vmatprep.subr.mxu0 0.0
        %5470 = vmatpush2.xpose.msra.mxu0 0.0
        %5471 = vmatprep.mubr.f32.mxu0 0.0
        %5472 = vmatmul.mubr.f32.gmra.mxu0 %v5402
        %v5473 = vpop.f32.mrf.mxu0
        %v5474 = vadd.f32 0.0, %v5473
        %v5475 = vpop.f32.mrf.mxu0
        %5476 = vdwg.mxu0
        %v5478 = vsel %vm5020, %v973, 0
        %v5481 = vsel %vm5020, %v2111, 0
        %5483 = vmatprep.subr.mxu0 0.0
        %5484 = vmatpush1.xpose.msra.mxu0 0.0
        %5485 = vmatprep.subr.mxu0 0.0
        %5486 = vmatpush1.xpose.msra.mxu0 0.0
        %5487 = vmatprep.subr.mxu0 0.0
        %5488 = vmatpush1.xpose.msra.mxu0 0.0
        %5489 = vmatprep.subr.mxu0 0.0
        %5490 = vmatpush1.xpose.msra.mxu0 0.0
        %5491 = vmatprep.subr.mxu0 0.0
        %5492 = vmatpush1.xpose.msra.mxu0 0.0
        %5493 = vmatprep.subr.mxu0 0.0
        %5494 = vmatpush1.xpose.msra.mxu0 0.0
        %5495 = vmatprep.subr.mxu0 0.0
        %5496 = vmatpush1.xpose.msra.mxu0 0.0
        %5497 = vmatprep.subr.mxu0 0.0
        %5498 = vmatpush1.xpose.msra.mxu0 0.0
        %5499 = vmatprep.subr.mxu0 0.0
        %5500 = vmatpush1.xpose.msra.mxu0 0.0
        %5501 = vmatprep.subr.mxu0 0.0
        %5502 = vmatpush1.xpose.msra.mxu0 0.0
        %5503 = vmatprep.subr.mxu0 0.0
        %5504 = vmatpush1.xpose.msra.mxu0 0.0
        %5505 = vmatprep.subr.mxu0 0.0
        %5506 = vmatpush1.xpose.msra.mxu0 0.0
        %5507 = vmatprep.subr.mxu0 0.0
        %5508 = vmatpush1.xpose.msra.mxu0 0.0
        %5509 = vmatprep.subr.mxu0 0.0
        %5510 = vmatpush1.xpose.msra.mxu0 0.0
        %5511 = vmatprep.subr.mxu0 0.0
        %5512 = vmatpush1.xpose.msra.mxu0 0.0
        %5513 = vmatprep.subr.mxu0 0.0
        %5514 = vmatpush1.xpose.msra.mxu0 %v5481
        %5515 = vmatprep.subr.mxu0 0.0
        %5516 = vmatpush2.xpose.msra.mxu0 0.0
        %5517 = vmatprep.subr.mxu0 0.0
        %5518 = vmatpush2.xpose.msra.mxu0 0.0
        %5519 = vmatprep.subr.mxu0 0.0
        %5520 = vmatpush2.xpose.msra.mxu0 0.0
        %5521 = vmatprep.subr.mxu0 0.0
        %5522 = vmatpush2.xpose.msra.mxu0 0.0
        %5523 = vmatprep.subr.mxu0 0.0
        %5524 = vmatpush2.xpose.msra.mxu0 0.0
        %5525 = vmatprep.subr.mxu0 0.0
        %5526 = vmatpush2.xpose.msra.mxu0 0.0
        %5527 = vmatprep.subr.mxu0 0.0
        %5528 = vmatpush2.xpose.msra.mxu0 0.0
        %5529 = vmatprep.subr.mxu0 0.0
        %5530 = vmatpush2.xpose.msra.mxu0 0.0
        %5531 = vmatprep.subr.mxu0 0.0
        %5532 = vmatpush2.xpose.msra.mxu0 0.0
        %5533 = vmatprep.subr.mxu0 0.0
        %5534 = vmatpush2.xpose.msra.mxu0 0.0
        %5535 = vmatprep.subr.mxu0 0.0
        %5536 = vmatpush2.xpose.msra.mxu0 0.0
        %5537 = vmatprep.subr.mxu0 0.0
        %5538 = vmatpush2.xpose.msra.mxu0 0.0
        %5539 = vmatprep.subr.mxu0 0.0
        %5540 = vmatpush2.xpose.msra.mxu0 0.0
        %5541 = vmatprep.subr.mxu0 0.0
        %5542 = vmatpush2.xpose.msra.mxu0 0.0
        %5543 = vmatprep.subr.mxu0 0.0
        %5544 = vmatpush2.xpose.msra.mxu0 0.0
        %5545 = vmatprep.subr.mxu0 0.0
        %5546 = vmatpush2.xpose.msra.mxu0 0.0
        %5547 = vmatprep.mubr.f32.mxu0 0.0
        %5548 = vmatmul.mubr.f32.gmra.mxu0 %v5478
        %v5549 = vpop.f32.mrf.mxu0
        %v5550 = vadd.f32 0.0, %v5549
        %v5551 = vpop.f32.mrf.mxu0
        %5552 = vdwg.mxu0
        %v5554 = vsel %vm5020, %v1043, 0
        %v5557 = vsel %vm5020, %v2181, 0
        %5559 = vmatprep.subr.mxu0 0.0
        %5560 = vmatpush1.xpose.msra.mxu0 0.0
        %5561 = vmatprep.subr.mxu0 0.0
        %5562 = vmatpush1.xpose.msra.mxu0 0.0
        %5563 = vmatprep.subr.mxu0 0.0
        %5564 = vmatpush1.xpose.msra.mxu0 0.0
        %5565 = vmatprep.subr.mxu0 0.0
        %5566 = vmatpush1.xpose.msra.mxu0 0.0
        %5567 = vmatprep.subr.mxu0 0.0
        %5568 = vmatpush1.xpose.msra.mxu0 0.0
        %5569 = vmatprep.subr.mxu0 0.0
        %5570 = vmatpush1.xpose.msra.mxu0 0.0
        %5571 = vmatprep.subr.mxu0 0.0
        %5572 = vmatpush1.xpose.msra.mxu0 0.0
        %5573 = vmatprep.subr.mxu0 0.0
        %5574 = vmatpush1.xpose.msra.mxu0 0.0
        %5575 = vmatprep.subr.mxu0 0.0
        %5576 = vmatpush1.xpose.msra.mxu0 0.0
        %5577 = vmatprep.subr.mxu0 0.0
        %5578 = vmatpush1.xpose.msra.mxu0 0.0
        %5579 = vmatprep.subr.mxu0 0.0
        %5580 = vmatpush1.xpose.msra.mxu0 0.0
        %5581 = vmatprep.subr.mxu0 0.0
        %5582 = vmatpush1.xpose.msra.mxu0 0.0
        %5583 = vmatprep.subr.mxu0 0.0
        %5584 = vmatpush1.xpose.msra.mxu0 0.0
        %5585 = vmatprep.subr.mxu0 0.0
        %5586 = vmatpush1.xpose.msra.mxu0 0.0
        %5587 = vmatprep.subr.mxu0 0.0
        %5588 = vmatpush1.xpose.msra.mxu0 0.0
        %5589 = vmatprep.subr.mxu0 0.0
        %5590 = vmatpush1.xpose.msra.mxu0 %v5557
        %5591 = vmatprep.subr.mxu0 0.0
        %5592 = vmatpush2.xpose.msra.mxu0 0.0
        %5593 = vmatprep.subr.mxu0 0.0
        %5594 = vmatpush2.xpose.msra.mxu0 0.0
        %5595 = vmatprep.subr.mxu0 0.0
        %5596 = vmatpush2.xpose.msra.mxu0 0.0
        %5597 = vmatprep.subr.mxu0 0.0
        %5598 = vmatpush2.xpose.msra.mxu0 0.0
        %5599 = vmatprep.subr.mxu0 0.0
        %5600 = vmatpush2.xpose.msra.mxu0 0.0
        %5601 = vmatprep.subr.mxu0 0.0
        %5602 = vmatpush2.xpose.msra.mxu0 0.0
        %5603 = vmatprep.subr.mxu0 0.0
        %5604 = vmatpush2.xpose.msra.mxu0 0.0
        %5605 = vmatprep.subr.mxu0 0.0
        %5606 = vmatpush2.xpose.msra.mxu0 0.0
        %5607 = vmatprep.subr.mxu0 0.0
        %5608 = vmatpush2.xpose.msra.mxu0 0.0
        %5609 = vmatprep.subr.mxu0 0.0
        %5610 = vmatpush2.xpose.msra.mxu0 0.0
        %5611 = vmatprep.subr.mxu0 0.0
        %5612 = vmatpush2.xpose.msra.mxu0 0.0
        %5613 = vmatprep.subr.mxu0 0.0
        %5614 = vmatpush2.xpose.msra.mxu0 0.0
        %5615 = vmatprep.subr.mxu0 0.0
        %5616 = vmatpush2.xpose.msra.mxu0 0.0
        %5617 = vmatprep.subr.mxu0 0.0
        %5618 = vmatpush2.xpose.msra.mxu0 0.0
        %5619 = vmatprep.subr.mxu0 0.0
        %5620 = vmatpush2.xpose.msra.mxu0 0.0
        %5621 = vmatprep.subr.mxu0 0.0
        %5622 = vmatpush2.xpose.msra.mxu0 0.0
        %5623 = vmatprep.mubr.f32.mxu0 0.0
        %5624 = vmatmul.mubr.f32.gmra.mxu0 %v5554
        %v5625 = vpop.f32.mrf.mxu0
        %v5626 = vadd.f32 0.0, %v5625
        %v5627 = vpop.f32.mrf.mxu0
        %5628 = vdwg.mxu0
        %v5630 = vsel %vm5020, %v1116, 0
        %v5633 = vsel %vm5020, %v2251, 0
        %5635 = vmatprep.subr.mxu0 0.0
        %5636 = vmatpush1.xpose.msra.mxu0 0.0
        %5637 = vmatprep.subr.mxu0 0.0
        %5638 = vmatpush1.xpose.msra.mxu0 0.0
        %5639 = vmatprep.subr.mxu0 0.0
        %5640 = vmatpush1.xpose.msra.mxu0 0.0
        %5641 = vmatprep.subr.mxu0 0.0
        %5642 = vmatpush1.xpose.msra.mxu0 0.0
        %5643 = vmatprep.subr.mxu0 0.0
        %5644 = vmatpush1.xpose.msra.mxu0 0.0
        %5645 = vmatprep.subr.mxu0 0.0
        %5646 = vmatpush1.xpose.msra.mxu0 0.0
        %5647 = vmatprep.subr.mxu0 0.0
        %5648 = vmatpush1.xpose.msra.mxu0 0.0
        %5649 = vmatprep.subr.mxu0 0.0
        %5650 = vmatpush1.xpose.msra.mxu0 0.0
        %5651 = vmatprep.subr.mxu0 0.0
        %5652 = vmatpush1.xpose.msra.mxu0 0.0
        %5653 = vmatprep.subr.mxu0 0.0
        %5654 = vmatpush1.xpose.msra.mxu0 0.0
        %5655 = vmatprep.subr.mxu0 0.0
        %5656 = vmatpush1.xpose.msra.mxu0 0.0
        %5657 = vmatprep.subr.mxu0 0.0
        %5658 = vmatpush1.xpose.msra.mxu0 0.0
        %5659 = vmatprep.subr.mxu0 0.0
        %5660 = vmatpush1.xpose.msra.mxu0 0.0
        %5661 = vmatprep.subr.mxu0 0.0
        %5662 = vmatpush1.xpose.msra.mxu0 0.0
        %5663 = vmatprep.subr.mxu0 0.0
        %5664 = vmatpush1.xpose.msra.mxu0 0.0
        %5665 = vmatprep.subr.mxu0 0.0
        %5666 = vmatpush1.xpose.msra.mxu0 %v5633
        %5667 = vmatprep.subr.mxu0 0.0
        %5668 = vmatpush2.xpose.msra.mxu0 0.0
        %5669 = vmatprep.subr.mxu0 0.0
        %5670 = vmatpush2.xpose.msra.mxu0 0.0
        %5671 = vmatprep.subr.mxu0 0.0
        %5672 = vmatpush2.xpose.msra.mxu0 0.0
        %5673 = vmatprep.subr.mxu0 0.0
        %5674 = vmatpush2.xpose.msra.mxu0 0.0
        %5675 = vmatprep.subr.mxu0 0.0
        %5676 = vmatpush2.xpose.msra.mxu0 0.0
        %5677 = vmatprep.subr.mxu0 0.0
        %5678 = vmatpush2.xpose.msra.mxu0 0.0
        %5679 = vmatprep.subr.mxu0 0.0
        %5680 = vmatpush2.xpose.msra.mxu0 0.0
        %5681 = vmatprep.subr.mxu0 0.0
        %5682 = vmatpush2.xpose.msra.mxu0 0.0
        %5683 = vmatprep.subr.mxu0 0.0
        %5684 = vmatpush2.xpose.msra.mxu0 0.0
        %5685 = vmatprep.subr.mxu0 0.0
        %5686 = vmatpush2.xpose.msra.mxu0 0.0
        %5687 = vmatprep.subr.mxu0 0.0
        %5688 = vmatpush2.xpose.msra.mxu0 0.0
        %5689 = vmatprep.subr.mxu0 0.0
        %5690 = vmatpush2.xpose.msra.mxu0 0.0
        %5691 = vmatprep.subr.mxu0 0.0
        %5692 = vmatpush2.xpose.msra.mxu0 0.0
        %5693 = vmatprep.subr.mxu0 0.0
        %5694 = vmatpush2.xpose.msra.mxu0 0.0
        %5695 = vmatprep.subr.mxu0 0.0
        %5696 = vmatpush2.xpose.msra.mxu0 0.0
        %5697 = vmatprep.subr.mxu0 0.0
        %5698 = vmatpush2.xpose.msra.mxu0 0.0
        %5699 = vmatprep.mubr.f32.mxu0 0.0
        %5700 = vmatmul.mubr.f32.gmra.mxu0 %v5630
        %v5701 = vpop.f32.mrf.mxu0
        %v5702 = vadd.f32 0.0, %v5701
        %v5703 = vpop.f32.mrf.mxu0
        %5704 = vdwg.mxu0
        %v5706 = vsel %vm5020, %v1186, 0
        %v5709 = vsel %vm5020, %v2321, 0
        %5711 = vmatprep.subr.mxu0 0.0
        %5712 = vmatpush1.xpose.msra.mxu0 0.0
        %5713 = vmatprep.subr.mxu0 0.0
        %5714 = vmatpush1.xpose.msra.mxu0 0.0
        %5715 = vmatprep.subr.mxu0 0.0
        %5716 = vmatpush1.xpose.msra.mxu0 0.0
        %5717 = vmatprep.subr.mxu0 0.0
        %5718 = vmatpush1.xpose.msra.mxu0 0.0
        %5719 = vmatprep.subr.mxu0 0.0
        %5720 = vmatpush1.xpose.msra.mxu0 0.0
        %5721 = vmatprep.subr.mxu0 0.0
        %5722 = vmatpush1.xpose.msra.mxu0 0.0
        %5723 = vmatprep.subr.mxu0 0.0
        %5724 = vmatpush1.xpose.msra.mxu0 0.0
        %5725 = vmatprep.subr.mxu0 0.0
        %5726 = vmatpush1.xpose.msra.mxu0 0.0
        %5727 = vmatprep.subr.mxu0 0.0
        %5728 = vmatpush1.xpose.msra.mxu0 0.0
        %5729 = vmatprep.subr.mxu0 0.0
        %5730 = vmatpush1.xpose.msra.mxu0 0.0
        %5731 = vmatprep.subr.mxu0 0.0
        %5732 = vmatpush1.xpose.msra.mxu0 0.0
        %5733 = vmatprep.subr.mxu0 0.0
        %5734 = vmatpush1.xpose.msra.mxu0 0.0
        %5735 = vmatprep.subr.mxu0 0.0
        %5736 = vmatpush1.xpose.msra.mxu0 0.0
        %5737 = vmatprep.subr.mxu0 0.0
        %5738 = vmatpush1.xpose.msra.mxu0 0.0
        %5739 = vmatprep.subr.mxu0 0.0
        %5740 = vmatpush1.xpose.msra.mxu0 0.0
        %5741 = vmatprep.subr.mxu0 0.0
        %5742 = vmatpush1.xpose.msra.mxu0 %v5709
        %5743 = vmatprep.subr.mxu0 0.0
        %5744 = vmatpush2.xpose.msra.mxu0 0.0
        %5745 = vmatprep.subr.mxu0 0.0
        %5746 = vmatpush2.xpose.msra.mxu0 0.0
        %5747 = vmatprep.subr.mxu0 0.0
        %5748 = vmatpush2.xpose.msra.mxu0 0.0
        %5749 = vmatprep.subr.mxu0 0.0
        %5750 = vmatpush2.xpose.msra.mxu0 0.0
        %5751 = vmatprep.subr.mxu0 0.0
        %5752 = vmatpush2.xpose.msra.mxu0 0.0
        %5753 = vmatprep.subr.mxu0 0.0
        %5754 = vmatpush2.xpose.msra.mxu0 0.0
        %5755 = vmatprep.subr.mxu0 0.0
        %5756 = vmatpush2.xpose.msra.mxu0 0.0
        %5757 = vmatprep.subr.mxu0 0.0
        %5758 = vmatpush2.xpose.msra.mxu0 0.0
        %5759 = vmatprep.subr.mxu0 0.0
        %5760 = vmatpush2.xpose.msra.mxu0 0.0
        %5761 = vmatprep.subr.mxu0 0.0
        %5762 = vmatpush2.xpose.msra.mxu0 0.0
        %5763 = vmatprep.subr.mxu0 0.0
        %5764 = vmatpush2.xpose.msra.mxu0 0.0
        %5765 = vmatprep.subr.mxu0 0.0
        %5766 = vmatpush2.xpose.msra.mxu0 0.0
        %5767 = vmatprep.subr.mxu0 0.0
        %5768 = vmatpush2.xpose.msra.mxu0 0.0
        %5769 = vmatprep.subr.mxu0 0.0
        %5770 = vmatpush2.xpose.msra.mxu0 0.0
        %5771 = vmatprep.subr.mxu0 0.0
        %5772 = vmatpush2.xpose.msra.mxu0 0.0
        %5773 = vmatprep.subr.mxu0 0.0
        %5774 = vmatpush2.xpose.msra.mxu0 0.0
        %5775 = vmatprep.mubr.f32.mxu0 0.0
        %5776 = vmatmul.mubr.f32.gmra.mxu0 %v5706
        %v5777 = vpop.f32.mrf.mxu0
        %v5778 = vadd.f32 0.0, %v5777
        %v5779 = vpop.f32.mrf.mxu0
        %5780 = vdwg.mxu0
        %v5782 = vsel %vm5020, %v1256, 0
        %v5785 = vsel %vm5020, %v2391, 0
        %5787 = vmatprep.subr.mxu0 0.0
        %5788 = vmatpush1.xpose.msra.mxu0 0.0
        %5789 = vmatprep.subr.mxu0 0.0
        %5790 = vmatpush1.xpose.msra.mxu0 0.0
        %5791 = vmatprep.subr.mxu0 0.0
        %5792 = vmatpush1.xpose.msra.mxu0 0.0
        %5793 = vmatprep.subr.mxu0 0.0
        %5794 = vmatpush1.xpose.msra.mxu0 0.0
        %5795 = vmatprep.subr.mxu0 0.0
        %5796 = vmatpush1.xpose.msra.mxu0 0.0
        %5797 = vmatprep.subr.mxu0 0.0
        %5798 = vmatpush1.xpose.msra.mxu0 0.0
        %5799 = vmatprep.subr.mxu0 0.0
        %5800 = vmatpush1.xpose.msra.mxu0 0.0
        %5801 = vmatprep.subr.mxu0 0.0
        %5802 = vmatpush1.xpose.msra.mxu0 0.0
        %5803 = vmatprep.subr.mxu0 0.0
        %5804 = vmatpush1.xpose.msra.mxu0 0.0
        %5805 = vmatprep.subr.mxu0 0.0
        %5806 = vmatpush1.xpose.msra.mxu0 0.0
        %5807 = vmatprep.subr.mxu0 0.0
        %5808 = vmatpush1.xpose.msra.mxu0 0.0
        %5809 = vmatprep.subr.mxu0 0.0
        %5810 = vmatpush1.xpose.msra.mxu0 0.0
        %5811 = vmatprep.subr.mxu0 0.0
        %5812 = vmatpush1.xpose.msra.mxu0 0.0
        %5813 = vmatprep.subr.mxu0 0.0
        %5814 = vmatpush1.xpose.msra.mxu0 0.0
        %5815 = vmatprep.subr.mxu0 0.0
        %5816 = vmatpush1.xpose.msra.mxu0 0.0
        %5817 = vmatprep.subr.mxu0 0.0
        %5818 = vmatpush1.xpose.msra.mxu0 %v5785
        %5819 = vmatprep.subr.mxu0 0.0
        %5820 = vmatpush2.xpose.msra.mxu0 0.0
        %5821 = vmatprep.subr.mxu0 0.0
        %5822 = vmatpush2.xpose.msra.mxu0 0.0
        %5823 = vmatprep.subr.mxu0 0.0
        %5824 = vmatpush2.xpose.msra.mxu0 0.0
        %5825 = vmatprep.subr.mxu0 0.0
        %5826 = vmatpush2.xpose.msra.mxu0 0.0
        %5827 = vmatprep.subr.mxu0 0.0
        %5828 = vmatpush2.xpose.msra.mxu0 0.0
        %5829 = vmatprep.subr.mxu0 0.0
        %5830 = vmatpush2.xpose.msra.mxu0 0.0
        %5831 = vmatprep.subr.mxu0 0.0
        %5832 = vmatpush2.xpose.msra.mxu0 0.0
        %5833 = vmatprep.subr.mxu0 0.0
        %5834 = vmatpush2.xpose.msra.mxu0 0.0
        %5835 = vmatprep.subr.mxu0 0.0
        %5836 = vmatpush2.xpose.msra.mxu0 0.0
        %5837 = vmatprep.subr.mxu0 0.0
        %5838 = vmatpush2.xpose.msra.mxu0 0.0
        %5839 = vmatprep.subr.mxu0 0.0
        %5840 = vmatpush2.xpose.msra.mxu0 0.0
        %5841 = vmatprep.subr.mxu0 0.0
        %5842 = vmatpush2.xpose.msra.mxu0 0.0
        %5843 = vmatprep.subr.mxu0 0.0
        %5844 = vmatpush2.xpose.msra.mxu0 0.0
        %5845 = vmatprep.subr.mxu0 0.0
        %5846 = vmatpush2.xpose.msra.mxu0 0.0
        %5847 = vmatprep.subr.mxu0 0.0
        %5848 = vmatpush2.xpose.msra.mxu0 0.0
        %5849 = vmatprep.subr.mxu0 0.0
        %5850 = vmatpush2.xpose.msra.mxu0 0.0
        %5851 = vmatprep.mubr.f32.mxu0 0.0
        %5852 = vmatmul.mubr.f32.gmra.mxu0 %v5782
        %v5853 = vpop.f32.mrf.mxu0
        %v5854 = vadd.f32 0.0, %v5853
        %v5855 = vpop.f32.mrf.mxu0
        %5856 = vdwg.mxu0
        %v5858 = vsel %vm5020, %v1326, 0
        %v5861 = vsel %vm5020, %v2461, 0
        %5863 = vmatprep.subr.mxu0 0.0
        %5864 = vmatpush1.xpose.msra.mxu0 0.0
        %5865 = vmatprep.subr.mxu0 0.0
        %5866 = vmatpush1.xpose.msra.mxu0 0.0
        %5867 = vmatprep.subr.mxu0 0.0
        %5868 = vmatpush1.xpose.msra.mxu0 0.0
        %5869 = vmatprep.subr.mxu0 0.0
        %5870 = vmatpush1.xpose.msra.mxu0 0.0
        %5871 = vmatprep.subr.mxu0 0.0
        %5872 = vmatpush1.xpose.msra.mxu0 0.0
        %5873 = vmatprep.subr.mxu0 0.0
        %5874 = vmatpush1.xpose.msra.mxu0 0.0
        %5875 = vmatprep.subr.mxu0 0.0
        %5876 = vmatpush1.xpose.msra.mxu0 0.0
        %5877 = vmatprep.subr.mxu0 0.0
        %5878 = vmatpush1.xpose.msra.mxu0 0.0
        %5879 = vmatprep.subr.mxu0 0.0
        %5880 = vmatpush1.xpose.msra.mxu0 0.0
        %5881 = vmatprep.subr.mxu0 0.0
        %5882 = vmatpush1.xpose.msra.mxu0 0.0
        %5883 = vmatprep.subr.mxu0 0.0
        %5884 = vmatpush1.xpose.msra.mxu0 0.0
        %5885 = vmatprep.subr.mxu0 0.0
        %5886 = vmatpush1.xpose.msra.mxu0 0.0
        %5887 = vmatprep.subr.mxu0 0.0
        %5888 = vmatpush1.xpose.msra.mxu0 0.0
        %5889 = vmatprep.subr.mxu0 0.0
        %5890 = vmatpush1.xpose.msra.mxu0 0.0
        %5891 = vmatprep.subr.mxu0 0.0
        %5892 = vmatpush1.xpose.msra.mxu0 0.0
        %5893 = vmatprep.subr.mxu0 0.0
        %5894 = vmatpush1.xpose.msra.mxu0 %v5861
        %5895 = vmatprep.subr.mxu0 0.0
        %5896 = vmatpush2.xpose.msra.mxu0 0.0
        %5897 = vmatprep.subr.mxu0 0.0
        %5898 = vmatpush2.xpose.msra.mxu0 0.0
        %5899 = vmatprep.subr.mxu0 0.0
        %5900 = vmatpush2.xpose.msra.mxu0 0.0
        %5901 = vmatprep.subr.mxu0 0.0
        %5902 = vmatpush2.xpose.msra.mxu0 0.0
        %5903 = vmatprep.subr.mxu0 0.0
        %5904 = vmatpush2.xpose.msra.mxu0 0.0
        %5905 = vmatprep.subr.mxu0 0.0
        %5906 = vmatpush2.xpose.msra.mxu0 0.0
        %5907 = vmatprep.subr.mxu0 0.0
        %5908 = vmatpush2.xpose.msra.mxu0 0.0
        %5909 = vmatprep.subr.mxu0 0.0
        %5910 = vmatpush2.xpose.msra.mxu0 0.0
        %5911 = vmatprep.subr.mxu0 0.0
        %5912 = vmatpush2.xpose.msra.mxu0 0.0
        %5913 = vmatprep.subr.mxu0 0.0
        %5914 = vmatpush2.xpose.msra.mxu0 0.0
        %5915 = vmatprep.subr.mxu0 0.0
        %5916 = vmatpush2.xpose.msra.mxu0 0.0
        %5917 = vmatprep.subr.mxu0 0.0
        %5918 = vmatpush2.xpose.msra.mxu0 0.0
        %5919 = vmatprep.subr.mxu0 0.0
        %5920 = vmatpush2.xpose.msra.mxu0 0.0
        %5921 = vmatprep.subr.mxu0 0.0
        %5922 = vmatpush2.xpose.msra.mxu0 0.0
        %5923 = vmatprep.subr.mxu0 0.0
        %5924 = vmatpush2.xpose.msra.mxu0 0.0
        %5925 = vmatprep.subr.mxu0 0.0
        %5926 = vmatpush2.xpose.msra.mxu0 0.0
        %5927 = vmatprep.mubr.f32.mxu0 0.0
        %5928 = vmatmul.mubr.f32.gmra.mxu0 %v5858
        %v5929 = vpop.f32.mrf.mxu0
        %v5930 = vadd.f32 0.0, %v5929
        %v5931 = vpop.f32.mrf.mxu0
        %5932 = vdwg.mxu0
        %v5934 = vsel %vm5020, %v1399, 0
        %v5937 = vsel %vm5020, %v2531, 0
        %5939 = vmatprep.subr.mxu0 0.0
        %5940 = vmatpush1.xpose.msra.mxu0 0.0
        %5941 = vmatprep.subr.mxu0 0.0
        %5942 = vmatpush1.xpose.msra.mxu0 0.0
        %5943 = vmatprep.subr.mxu0 0.0
        %5944 = vmatpush1.xpose.msra.mxu0 0.0
        %5945 = vmatprep.subr.mxu0 0.0
        %5946 = vmatpush1.xpose.msra.mxu0 0.0
        %5947 = vmatprep.subr.mxu0 0.0
        %5948 = vmatpush1.xpose.msra.mxu0 0.0
        %5949 = vmatprep.subr.mxu0 0.0
        %5950 = vmatpush1.xpose.msra.mxu0 0.0
        %5951 = vmatprep.subr.mxu0 0.0
        %5952 = vmatpush1.xpose.msra.mxu0 0.0
        %5953 = vmatprep.subr.mxu0 0.0
        %5954 = vmatpush1.xpose.msra.mxu0 0.0
        %5955 = vmatprep.subr.mxu0 0.0
        %5956 = vmatpush1.xpose.msra.mxu0 0.0
        %5957 = vmatprep.subr.mxu0 0.0
        %5958 = vmatpush1.xpose.msra.mxu0 0.0
        %5959 = vmatprep.subr.mxu0 0.0
        %5960 = vmatpush1.xpose.msra.mxu0 0.0
        %5961 = vmatprep.subr.mxu0 0.0
        %5962 = vmatpush1.xpose.msra.mxu0 0.0
        %5963 = vmatprep.subr.mxu0 0.0
        %5964 = vmatpush1.xpose.msra.mxu0 0.0
        %5965 = vmatprep.subr.mxu0 0.0
        %5966 = vmatpush1.xpose.msra.mxu0 0.0
        %5967 = vmatprep.subr.mxu0 0.0
        %5968 = vmatpush1.xpose.msra.mxu0 0.0
        %5969 = vmatprep.subr.mxu0 0.0
        %5970 = vmatpush1.xpose.msra.mxu0 %v5937
        %5971 = vmatprep.subr.mxu0 0.0
        %5972 = vmatpush2.xpose.msra.mxu0 0.0
        %5973 = vmatprep.subr.mxu0 0.0
        %5974 = vmatpush2.xpose.msra.mxu0 0.0
        %5975 = vmatprep.subr.mxu0 0.0
        %5976 = vmatpush2.xpose.msra.mxu0 0.0
        %5977 = vmatprep.subr.mxu0 0.0
        %5978 = vmatpush2.xpose.msra.mxu0 0.0
        %5979 = vmatprep.subr.mxu0 0.0
        %5980 = vmatpush2.xpose.msra.mxu0 0.0
        %5981 = vmatprep.subr.mxu0 0.0
        %5982 = vmatpush2.xpose.msra.mxu0 0.0
        %5983 = vmatprep.subr.mxu0 0.0
        %5984 = vmatpush2.xpose.msra.mxu0 0.0
        %5985 = vmatprep.subr.mxu0 0.0
        %5986 = vmatpush2.xpose.msra.mxu0 0.0
        %5987 = vmatprep.subr.mxu0 0.0
        %5988 = vmatpush2.xpose.msra.mxu0 0.0
        %5989 = vmatprep.subr.mxu0 0.0
        %5990 = vmatpush2.xpose.msra.mxu0 0.0
        %5991 = vmatprep.subr.mxu0 0.0
        %5992 = vmatpush2.xpose.msra.mxu0 0.0
        %5993 = vmatprep.subr.mxu0 0.0
        %5994 = vmatpush2.xpose.msra.mxu0 0.0
        %5995 = vmatprep.subr.mxu0 0.0
        %5996 = vmatpush2.xpose.msra.mxu0 0.0
        %5997 = vmatprep.subr.mxu0 0.0
        %5998 = vmatpush2.xpose.msra.mxu0 0.0
        %5999 = vmatprep.subr.mxu0 0.0
        %6000 = vmatpush2.xpose.msra.mxu0 0.0
        %6001 = vmatprep.subr.mxu0 0.0
        %6002 = vmatpush2.xpose.msra.mxu0 0.0
        %6003 = vmatprep.mubr.f32.mxu0 0.0
        %6004 = vmatmul.mubr.f32.gmra.mxu0 %v5934
        %v6005 = vpop.f32.mrf.mxu0
        %v6006 = vadd.f32 0.0, %v6005
        %v6007 = vpop.f32.mrf.mxu0
        %6008 = vdwg.mxu0
        %v6010 = vsel %vm5020, %v1469, 0
        %v6013 = vsel %vm5020, %v2601, 0
        %6015 = vmatprep.subr.mxu0 0.0
        %6016 = vmatpush1.xpose.msra.mxu0 0.0
        %6017 = vmatprep.subr.mxu0 0.0
        %6018 = vmatpush1.xpose.msra.mxu0 0.0
        %6019 = vmatprep.subr.mxu0 0.0
        %6020 = vmatpush1.xpose.msra.mxu0 0.0
        %6021 = vmatprep.subr.mxu0 0.0
        %6022 = vmatpush1.xpose.msra.mxu0 0.0
        %6023 = vmatprep.subr.mxu0 0.0
        %6024 = vmatpush1.xpose.msra.mxu0 0.0
        %6025 = vmatprep.subr.mxu0 0.0
        %6026 = vmatpush1.xpose.msra.mxu0 0.0
        %6027 = vmatprep.subr.mxu0 0.0
        %6028 = vmatpush1.xpose.msra.mxu0 0.0
        %6029 = vmatprep.subr.mxu0 0.0
        %6030 = vmatpush1.xpose.msra.mxu0 0.0
        %6031 = vmatprep.subr.mxu0 0.0
        %6032 = vmatpush1.xpose.msra.mxu0 0.0
        %6033 = vmatprep.subr.mxu0 0.0
        %6034 = vmatpush1.xpose.msra.mxu0 0.0
        %6035 = vmatprep.subr.mxu0 0.0
        %6036 = vmatpush1.xpose.msra.mxu0 0.0
        %6037 = vmatprep.subr.mxu0 0.0
        %6038 = vmatpush1.xpose.msra.mxu0 0.0
        %6039 = vmatprep.subr.mxu0 0.0
        %6040 = vmatpush1.xpose.msra.mxu0 0.0
        %6041 = vmatprep.subr.mxu0 0.0
        %6042 = vmatpush1.xpose.msra.mxu0 0.0
        %6043 = vmatprep.subr.mxu0 0.0
        %6044 = vmatpush1.xpose.msra.mxu0 0.0
        %6045 = vmatprep.subr.mxu0 0.0
        %6046 = vmatpush1.xpose.msra.mxu0 %v6013
        %6047 = vmatprep.subr.mxu0 0.0
        %6048 = vmatpush2.xpose.msra.mxu0 0.0
        %6049 = vmatprep.subr.mxu0 0.0
        %6050 = vmatpush2.xpose.msra.mxu0 0.0
        %6051 = vmatprep.subr.mxu0 0.0
        %6052 = vmatpush2.xpose.msra.mxu0 0.0
        %6053 = vmatprep.subr.mxu0 0.0
        %6054 = vmatpush2.xpose.msra.mxu0 0.0
        %6055 = vmatprep.subr.mxu0 0.0
        %6056 = vmatpush2.xpose.msra.mxu0 0.0
        %6057 = vmatprep.subr.mxu0 0.0
        %6058 = vmatpush2.xpose.msra.mxu0 0.0
        %6059 = vmatprep.subr.mxu0 0.0
        %6060 = vmatpush2.xpose.msra.mxu0 0.0
        %6061 = vmatprep.subr.mxu0 0.0
        %6062 = vmatpush2.xpose.msra.mxu0 0.0
        %6063 = vmatprep.subr.mxu0 0.0
        %6064 = vmatpush2.xpose.msra.mxu0 0.0
        %6065 = vmatprep.subr.mxu0 0.0
        %6066 = vmatpush2.xpose.msra.mxu0 0.0
        %6067 = vmatprep.subr.mxu0 0.0
        %6068 = vmatpush2.xpose.msra.mxu0 0.0
        %6069 = vmatprep.subr.mxu0 0.0
        %6070 = vmatpush2.xpose.msra.mxu0 0.0
        %6071 = vmatprep.subr.mxu0 0.0
        %6072 = vmatpush2.xpose.msra.mxu0 0.0
        %6073 = vmatprep.subr.mxu0 0.0
        %6074 = vmatpush2.xpose.msra.mxu0 0.0
        %6075 = vmatprep.subr.mxu0 0.0
        %6076 = vmatpush2.xpose.msra.mxu0 0.0
        %6077 = vmatprep.subr.mxu0 0.0
        %6078 = vmatpush2.xpose.msra.mxu0 0.0
        %6079 = vmatprep.mubr.f32.mxu0 0.0
        %6080 = vmatmul.mubr.f32.gmra.mxu0 %v6010
        %v6081 = vpop.f32.mrf.mxu0
        %v6082 = vadd.f32 0.0, %v6081
        %v6083 = vpop.f32.mrf.mxu0
        %6084 = vdwg.mxu0
        %v6086 = vsel %vm5020, %v1539, 0
        %v6089 = vsel %vm5020, %v2671, 0
        %6091 = vmatprep.subr.mxu0 0.0
        %6092 = vmatpush1.xpose.msra.mxu0 0.0
        %6093 = vmatprep.subr.mxu0 0.0
        %6094 = vmatpush1.xpose.msra.mxu0 0.0
        %6095 = vmatprep.subr.mxu0 0.0
        %6096 = vmatpush1.xpose.msra.mxu0 0.0
        %6097 = vmatprep.subr.mxu0 0.0
        %6098 = vmatpush1.xpose.msra.mxu0 0.0
        %6099 = vmatprep.subr.mxu0 0.0
        %6100 = vmatpush1.xpose.msra.mxu0 0.0
        %6101 = vmatprep.subr.mxu0 0.0
        %6102 = vmatpush1.xpose.msra.mxu0 0.0
        %6103 = vmatprep.subr.mxu0 0.0
        %6104 = vmatpush1.xpose.msra.mxu0 0.0
        %6105 = vmatprep.subr.mxu0 0.0
        %6106 = vmatpush1.xpose.msra.mxu0 0.0
        %6107 = vmatprep.subr.mxu0 0.0
        %6108 = vmatpush1.xpose.msra.mxu0 0.0
        %6109 = vmatprep.subr.mxu0 0.0
        %6110 = vmatpush1.xpose.msra.mxu0 0.0
        %6111 = vmatprep.subr.mxu0 0.0
        %6112 = vmatpush1.xpose.msra.mxu0 0.0
        %6113 = vmatprep.subr.mxu0 0.0
        %6114 = vmatpush1.xpose.msra.mxu0 0.0
        %6115 = vmatprep.subr.mxu0 0.0
        %6116 = vmatpush1.xpose.msra.mxu0 0.0
        %6117 = vmatprep.subr.mxu0 0.0
        %6118 = vmatpush1.xpose.msra.mxu0 0.0
        %6119 = vmatprep.subr.mxu0 0.0
        %6120 = vmatpush1.xpose.msra.mxu0 0.0
        %6121 = vmatprep.subr.mxu0 0.0
        %6122 = vmatpush1.xpose.msra.mxu0 %v6089
        %6123 = vmatprep.subr.mxu0 0.0
        %6124 = vmatpush2.xpose.msra.mxu0 0.0
        %6125 = vmatprep.subr.mxu0 0.0
        %6126 = vmatpush2.xpose.msra.mxu0 0.0
        %6127 = vmatprep.subr.mxu0 0.0
        %6128 = vmatpush2.xpose.msra.mxu0 0.0
        %6129 = vmatprep.subr.mxu0 0.0
        %6130 = vmatpush2.xpose.msra.mxu0 0.0
        %6131 = vmatprep.subr.mxu0 0.0
        %6132 = vmatpush2.xpose.msra.mxu0 0.0
        %6133 = vmatprep.subr.mxu0 0.0
        %6134 = vmatpush2.xpose.msra.mxu0 0.0
        %6135 = vmatprep.subr.mxu0 0.0
        %6136 = vmatpush2.xpose.msra.mxu0 0.0
        %6137 = vmatprep.subr.mxu0 0.0
        %6138 = vmatpush2.xpose.msra.mxu0 0.0
        %6139 = vmatprep.subr.mxu0 0.0
        %6140 = vmatpush2.xpose.msra.mxu0 0.0
        %6141 = vmatprep.subr.mxu0 0.0
        %6142 = vmatpush2.xpose.msra.mxu0 0.0
        %6143 = vmatprep.subr.mxu0 0.0
        %6144 = vmatpush2.xpose.msra.mxu0 0.0
        %6145 = vmatprep.subr.mxu0 0.0
        %6146 = vmatpush2.xpose.msra.mxu0 0.0
        %6147 = vmatprep.subr.mxu0 0.0
        %6148 = vmatpush2.xpose.msra.mxu0 0.0
        %6149 = vmatprep.subr.mxu0 0.0
        %6150 = vmatpush2.xpose.msra.mxu0 0.0
        %6151 = vmatprep.subr.mxu0 0.0
        %6152 = vmatpush2.xpose.msra.mxu0 0.0
        %6153 = vmatprep.subr.mxu0 0.0
        %6154 = vmatpush2.xpose.msra.mxu0 0.0
        %6155 = vmatprep.mubr.f32.mxu0 0.0
        %6156 = vmatmul.mubr.f32.gmra.mxu0 %v6086
        %v6157 = vpop.f32.mrf.mxu0
        %v6158 = vadd.f32 0.0, %v6157
        %v6159 = vpop.f32.mrf.mxu0
        %6160 = vdwg.mxu0
        %v6162 = vsel %vm5020, %v1609, 0
        %v6165 = vsel %vm5020, %v2741, 0
        %6167 = vmatprep.subr.mxu0 0.0
        %6168 = vmatpush1.xpose.msra.mxu0 0.0
        %6169 = vmatprep.subr.mxu0 0.0
        %6170 = vmatpush1.xpose.msra.mxu0 0.0
        %6171 = vmatprep.subr.mxu0 0.0
        %6172 = vmatpush1.xpose.msra.mxu0 0.0
        %6173 = vmatprep.subr.mxu0 0.0
        %6174 = vmatpush1.xpose.msra.mxu0 0.0
        %6175 = vmatprep.subr.mxu0 0.0
        %6176 = vmatpush1.xpose.msra.mxu0 0.0
        %6177 = vmatprep.subr.mxu0 0.0
        %6178 = vmatpush1.xpose.msra.mxu0 0.0
        %6179 = vmatprep.subr.mxu0 0.0
        %6180 = vmatpush1.xpose.msra.mxu0 0.0
        %6181 = vmatprep.subr.mxu0 0.0
        %6182 = vmatpush1.xpose.msra.mxu0 0.0
        %6183 = vmatprep.subr.mxu0 0.0
        %6184 = vmatpush1.xpose.msra.mxu0 0.0
        %6185 = vmatprep.subr.mxu0 0.0
        %6186 = vmatpush1.xpose.msra.mxu0 0.0
        %6187 = vmatprep.subr.mxu0 0.0
        %6188 = vmatpush1.xpose.msra.mxu0 0.0
        %6189 = vmatprep.subr.mxu0 0.0
        %6190 = vmatpush1.xpose.msra.mxu0 0.0
        %6191 = vmatprep.subr.mxu0 0.0
        %6192 = vmatpush1.xpose.msra.mxu0 0.0
        %6193 = vmatprep.subr.mxu0 0.0
        %6194 = vmatpush1.xpose.msra.mxu0 0.0
        %6195 = vmatprep.subr.mxu0 0.0
        %6196 = vmatpush1.xpose.msra.mxu0 0.0
        %6197 = vmatprep.subr.mxu0 0.0
        %6198 = vmatpush1.xpose.msra.mxu0 %v6165
        %6199 = vmatprep.subr.mxu0 0.0
        %6200 = vmatpush2.xpose.msra.mxu0 0.0
        %6201 = vmatprep.subr.mxu0 0.0
        %6202 = vmatpush2.xpose.msra.mxu0 0.0
        %6203 = vmatprep.subr.mxu0 0.0
        %6204 = vmatpush2.xpose.msra.mxu0 0.0
        %6205 = vmatprep.subr.mxu0 0.0
        %6206 = vmatpush2.xpose.msra.mxu0 0.0
        %6207 = vmatprep.subr.mxu0 0.0
        %6208 = vmatpush2.xpose.msra.mxu0 0.0
        %6209 = vmatprep.subr.mxu0 0.0
        %6210 = vmatpush2.xpose.msra.mxu0 0.0
        %6211 = vmatprep.subr.mxu0 0.0
        %6212 = vmatpush2.xpose.msra.mxu0 0.0
        %6213 = vmatprep.subr.mxu0 0.0
        %6214 = vmatpush2.xpose.msra.mxu0 0.0
        %6215 = vmatprep.subr.mxu0 0.0
        %6216 = vmatpush2.xpose.msra.mxu0 0.0
        %6217 = vmatprep.subr.mxu0 0.0
        %6218 = vmatpush2.xpose.msra.mxu0 0.0
        %6219 = vmatprep.subr.mxu0 0.0
        %6220 = vmatpush2.xpose.msra.mxu0 0.0
        %6221 = vmatprep.subr.mxu0 0.0
        %6222 = vmatpush2.xpose.msra.mxu0 0.0
        %6223 = vmatprep.subr.mxu0 0.0
        %6224 = vmatpush2.xpose.msra.mxu0 0.0
        %6225 = vmatprep.subr.mxu0 0.0
        %6226 = vmatpush2.xpose.msra.mxu0 0.0
        %6227 = vmatprep.subr.mxu0 0.0
        %6228 = vmatpush2.xpose.msra.mxu0 0.0
        %6229 = vmatprep.subr.mxu0 0.0
        %6230 = vmatpush2.xpose.msra.mxu0 0.0
        %6231 = vmatprep.mubr.f32.mxu0 0.0
        %6232 = vmatmul.mubr.f32.gmra.mxu0 %v6162
        %v6233 = vpop.f32.mrf.mxu0
        %v6234 = vadd.f32 0.0, %v6233
        %v6235 = vpop.f32.mrf.mxu0
        %6236 = vdwg.mxu0
        %v6237 = vmul.f32 %v5094, 0.35355338
        %v6238 = vmul.f32 %v5170, 0.35355338
        %v6239 = vmul.f32 %v5246, 0.35355338
        %v6240 = vmul.f32 %v5322, 0.35355338
        %v6241 = vmul.f32 %v5398, 0.35355338
        %v6242 = vmul.f32 %v5474, 0.35355338
        %v6243 = vmul.f32 %v5550, 0.35355338
        %v6244 = vmul.f32 %v5626, 0.35355338
        %v6245 = vmul.f32 %v5702, 0.35355338
        %v6246 = vmul.f32 %v5778, 0.35355338
        %v6247 = vmul.f32 %v5854, 0.35355338
        %v6248 = vmul.f32 %v5930, 0.35355338
        %v6249 = vmul.f32 %v6006, 0.35355338
        %v6250 = vmul.f32 %v6082, 0.35355338
        %v6251 = vmul.f32 %v6158, 0.35355338
        %v6252 = vmul.f32 %v6234, 0.35355338
        %v6253 = vsel %vm5020, %v6237, -inf
        %6254 = vmax.xlane.f32.xlu0 %v6253
        %v6255 = vpop.xlane.xlu0 %6254
        %v6256 = vsel %vm5020, %v6238, -inf
        %6257 = vmax.xlane.f32.xlu0 %v6256
        %v6258 = vpop.xlane.xlu0 %6257
        %v6259 = vsel %vm5020, %v6239, -inf
        %6260 = vmax.xlane.f32.xlu0 %v6259
        %v6261 = vpop.xlane.xlu0 %6260
        %v6262 = vsel %vm5020, %v6240, -inf
        %6263 = vmax.xlane.f32.xlu0 %v6262
        %v6264 = vpop.xlane.xlu0 %6263
        %v6265 = vsel %vm5020, %v6241, -inf
        %6266 = vmax.xlane.f32.xlu0 %v6265
        %v6267 = vpop.xlane.xlu0 %6266
        %v6268 = vsel %vm5020, %v6242, -inf
        %6269 = vmax.xlane.f32.xlu0 %v6268
        %v6270 = vpop.xlane.xlu0 %6269
        %v6271 = vsel %vm5020, %v6243, -inf
        %6272 = vmax.xlane.f32.xlu0 %v6271
        %v6273 = vpop.xlane.xlu0 %6272
        %v6274 = vsel %vm5020, %v6244, -inf
        %6275 = vmax.xlane.f32.xlu0 %v6274
        %v6276 = vpop.xlane.xlu0 %6275
        %v6277 = vsel %vm5020, %v6245, -inf
        %6278 = vmax.xlane.f32.xlu0 %v6277
        %v6279 = vpop.xlane.xlu0 %6278
        %v6280 = vsel %vm5020, %v6246, -inf
        %6281 = vmax.xlane.f32.xlu0 %v6280
        %v6282 = vpop.xlane.xlu0 %6281
        %v6283 = vsel %vm5020, %v6247, -inf
        %6284 = vmax.xlane.f32.xlu0 %v6283
        %v6285 = vpop.xlane.xlu0 %6284
        %v6286 = vsel %vm5020, %v6248, -inf
        %6287 = vmax.xlane.f32.xlu0 %v6286
        %v6288 = vpop.xlane.xlu0 %6287
        %v6289 = vsel %vm5020, %v6249, -inf
        %6290 = vmax.xlane.f32.xlu0 %v6289
        %v6291 = vpop.xlane.xlu0 %6290
        %v6292 = vsel %vm5020, %v6250, -inf
        %6293 = vmax.xlane.f32.xlu0 %v6292
        %v6294 = vpop.xlane.xlu0 %6293
        %v6295 = vsel %vm5020, %v6251, -inf
        %6296 = vmax.xlane.f32.xlu0 %v6295
        %v6297 = vpop.xlane.xlu0 %6296
        %v6298 = vsel %vm5020, %v6252, -inf
        %6299 = vmax.xlane.f32.xlu0 %v6298
        %v6300 = vpop.xlane.xlu0 %6299
        %v6301 = vsub.f32 %v6237, %v6255
        %v6302 = vsub.f32 %v6238, %v6258
        %v6303 = vsub.f32 %v6239, %v6261
        %v6304 = vsub.f32 %v6240, %v6264
        %v6305 = vsub.f32 %v6241, %v6267
        %v6306 = vsub.f32 %v6242, %v6270
        %v6307 = vsub.f32 %v6243, %v6273
        %v6308 = vsub.f32 %v6244, %v6276
        %v6309 = vsub.f32 %v6245, %v6279
        %v6310 = vsub.f32 %v6246, %v6282
        %v6311 = vsub.f32 %v6247, %v6285
        %v6312 = vsub.f32 %v6248, %v6288
        %v6313 = vsub.f32 %v6249, %v6291
        %v6314 = vsub.f32 %v6250, %v6294
        %v6315 = vsub.f32 %v6251, %v6297
        %v6316 = vsub.f32 %v6252, %v6300
        %v6317 = vmul.f32 %v6301, 1.442695
        %v6318 = vpow.pop %v6317
        %v6319 = vmul.f32 %v6302, 1.442695
        %v6320 = vpow.pop %v6319
        %v6321 = vmul.f32 %v6303, 1.442695
        %v6322 = vpow.pop %v6321
        %v6323 = vmul.f32 %v6304, 1.442695
        %v6324 = vpow.pop %v6323
        %v6325 = vmul.f32 %v6305, 1.442695
        %v6326 = vpow.pop %v6325
        %v6327 = vmul.f32 %v6306, 1.442695
        %v6328 = vpow.pop %v6327
        %v6329 = vmul.f32 %v6307, 1.442695
        %v6330 = vpow.pop %v6329
        %v6331 = vmul.f32 %v6308, 1.442695
        %v6332 = vpow.pop %v6331
        %v6333 = vmul.f32 %v6309, 1.442695
        %v6334 = vpow.pop %v6333
        %v6335 = vmul.f32 %v6310, 1.442695
        %v6336 = vpow.pop %v6335
        %v6337 = vmul.f32 %v6311, 1.442695
        %v6338 = vpow.pop %v6337
        %v6339 = vmul.f32 %v6312, 1.442695
        %v6340 = vpow.pop %v6339
        %v6341 = vmul.f32 %v6313, 1.442695
        %v6342 = vpow.pop %v6341
        %v6343 = vmul.f32 %v6314, 1.442695
        %v6344 = vpow.pop %v6343
        %v6345 = vmul.f32 %v6315, 1.442695
        %v6346 = vpow.pop %v6345
        %v6347 = vmul.f32 %v6316, 1.442695
        %v6348 = vpow.pop %v6347
        %v6349 = vsel %vm5020, %v6318, 0.0
        %6350 = vadd.xlane.f32.xlu0 %v6349
        %v6351 = vpop.xlane.xlu0 %6350
        %v6352 = vsel %vm5020, %v6320, 0.0
        %6353 = vadd.xlane.f32.xlu0 %v6352
        %v6354 = vpop.xlane.xlu0 %6353
        %v6355 = vsel %vm5020, %v6322, 0.0
        %6356 = vadd.xlane.f32.xlu0 %v6355
        %v6357 = vpop.xlane.xlu0 %6356
        %v6358 = vsel %vm5020, %v6324, 0.0
        %6359 = vadd.xlane.f32.xlu0 %v6358
        %v6360 = vpop.xlane.xlu0 %6359
        %v6361 = vsel %vm5020, %v6326, 0.0
        %6362 = vadd.xlane.f32.xlu0 %v6361
        %v6363 = vpop.xlane.xlu0 %6362
        %v6364 = vsel %vm5020, %v6328, 0.0
        %6365 = vadd.xlane.f32.xlu0 %v6364
        %v6366 = vpop.xlane.xlu0 %6365
        %v6367 = vsel %vm5020, %v6330, 0.0
        %6368 = vadd.xlane.f32.xlu0 %v6367
        %v6369 = vpop.xlane.xlu0 %6368
        %v6370 = vsel %vm5020, %v6332, 0.0
        %6371 = vadd.xlane.f32.xlu0 %v6370
        %v6372 = vpop.xlane.xlu0 %6371
        %v6373 = vsel %vm5020, %v6334, 0.0
        %6374 = vadd.xlane.f32.xlu0 %v6373
        %v6375 = vpop.xlane.xlu0 %6374
        %v6376 = vsel %vm5020, %v6336, 0.0
        %6377 = vadd.xlane.f32.xlu0 %v6376
        %v6378 = vpop.xlane.xlu0 %6377
        %v6379 = vsel %vm5020, %v6338, 0.0
        %6380 = vadd.xlane.f32.xlu0 %v6379
        %v6381 = vpop.xlane.xlu0 %6380
        %v6382 = vsel %vm5020, %v6340, 0.0
        %6383 = vadd.xlane.f32.xlu0 %v6382
        %v6384 = vpop.xlane.xlu0 %6383
        %v6385 = vsel %vm5020, %v6342, 0.0
        %6386 = vadd.xlane.f32.xlu0 %v6385
        %v6387 = vpop.xlane.xlu0 %6386
        %v6388 = vsel %vm5020, %v6344, 0.0
        %6389 = vadd.xlane.f32.xlu0 %v6388
        %v6390 = vpop.xlane.xlu0 %6389
        %v6391 = vsel %vm5020, %v6346, 0.0
        %6392 = vadd.xlane.f32.xlu0 %v6391
        %v6393 = vpop.xlane.xlu0 %6392
        %v6394 = vsel %vm5020, %v6348, 0.0
        %6395 = vadd.xlane.f32.xlu0 %v6394
        %v6396 = vpop.xlane.xlu0 %6395
        %v6397 = vrcp.pop %v6351
        %v6398 = vrcp.pop %v6354
        %v6399 = vrcp.pop %v6357
        %v6400 = vrcp.pop %v6360
        %v6401 = vrcp.pop %v6363
        %v6402 = vrcp.pop %v6366
        %v6403 = vrcp.pop %v6369
        %v6404 = vrcp.pop %v6372
        %v6405 = vrcp.pop %v6375
        %v6406 = vrcp.pop %v6378
        %v6407 = vrcp.pop %v6381
        %v6408 = vrcp.pop %v6384
        %v6409 = vrcp.pop %v6387
        %v6410 = vrcp.pop %v6390
        %v6411 = vrcp.pop %v6393
        %v6412 = vrcp.pop %v6396
        %v6413 = vmul.f32 %v6318, %v6397
        %v6414 = vmul.f32 %v6320, %v6398
        %v6415 = vmul.f32 %v6322, %v6399
        %v6416 = vmul.f32 %v6324, %v6400
        %v6417 = vmul.f32 %v6326, %v6401
        %v6418 = vmul.f32 %v6328, %v6402
        %v6419 = vmul.f32 %v6330, %v6403
        %v6420 = vmul.f32 %v6332, %v6404
        %v6421 = vmul.f32 %v6334, %v6405
        %v6422 = vmul.f32 %v6336, %v6406
        %v6423 = vmul.f32 %v6338, %v6407
        %v6424 = vmul.f32 %v6340, %v6408
        %v6425 = vmul.f32 %v6342, %v6409
        %v6426 = vmul.f32 %v6344, %v6410
        %v6427 = vmul.f32 %v6346, %v6411
        %v6428 = vmul.f32 %v6348, %v6412
        %v6430 = vsel %vm5020, %v2817, 0
        %v6433 = vsel %vm5020, %v3958, 0
        %6435 = vmatprep.subr.mxu0 0.0
        %6436 = vmatpush1.xpose.msra.mxu0 0.0
        %6437 = vmatprep.subr.mxu0 0.0
        %6438 = vmatpush1.xpose.msra.mxu0 0.0
        %6439 = vmatprep.subr.mxu0 0.0
        %6440 = vmatpush1.xpose.msra.mxu0 0.0
        %6441 = vmatprep.subr.mxu0 0.0
        %6442 = vmatpush1.xpose.msra.mxu0 0.0
        %6443 = vmatprep.subr.mxu0 0.0
        %6444 = vmatpush1.xpose.msra.mxu0 0.0
        %6445 = vmatprep.subr.mxu0 0.0
        %6446 = vmatpush1.xpose.msra.mxu0 0.0
        %6447 = vmatprep.subr.mxu0 0.0
        %6448 = vmatpush1.xpose.msra.mxu0 0.0
        %6449 = vmatprep.subr.mxu0 0.0
        %6450 = vmatpush1.xpose.msra.mxu0 0.0
        %6451 = vmatprep.subr.mxu0 0.0
        %6452 = vmatpush1.xpose.msra.mxu0 0.0
        %6453 = vmatprep.subr.mxu0 0.0
        %6454 = vmatpush1.xpose.msra.mxu0 0.0
        %6455 = vmatprep.subr.mxu0 0.0
        %6456 = vmatpush1.xpose.msra.mxu0 0.0
        %6457 = vmatprep.subr.mxu0 0.0
        %6458 = vmatpush1.xpose.msra.mxu0 0.0
        %6459 = vmatprep.subr.mxu0 0.0
        %6460 = vmatpush1.xpose.msra.mxu0 0.0
        %6461 = vmatprep.subr.mxu0 0.0
        %6462 = vmatpush1.xpose.msra.mxu0 0.0
        %6463 = vmatprep.subr.mxu0 0.0
        %6464 = vmatpush1.xpose.msra.mxu0 0.0
        %6465 = vmatprep.subr.mxu0 0.0
        %6466 = vmatpush1.xpose.msra.mxu0 %v6433
        %6467 = vmatprep.subr.mxu0 0.0
        %6468 = vmatpush2.xpose.msra.mxu0 0.0
        %6469 = vmatprep.subr.mxu0 0.0
        %6470 = vmatpush2.xpose.msra.mxu0 0.0
        %6471 = vmatprep.subr.mxu0 0.0
        %6472 = vmatpush2.xpose.msra.mxu0 0.0
        %6473 = vmatprep.subr.mxu0 0.0
        %6474 = vmatpush2.xpose.msra.mxu0 0.0
        %6475 = vmatprep.subr.mxu0 0.0
        %6476 = vmatpush2.xpose.msra.mxu0 0.0
        %6477 = vmatprep.subr.mxu0 0.0
        %6478 = vmatpush2.xpose.msra.mxu0 0.0
        %6479 = vmatprep.subr.mxu0 0.0
        %6480 = vmatpush2.xpose.msra.mxu0 0.0
        %6481 = vmatprep.subr.mxu0 0.0
        %6482 = vmatpush2.xpose.msra.mxu0 0.0
        %6483 = vmatprep.subr.mxu0 0.0
        %6484 = vmatpush2.xpose.msra.mxu0 0.0
        %6485 = vmatprep.subr.mxu0 0.0
        %6486 = vmatpush2.xpose.msra.mxu0 0.0
        %6487 = vmatprep.subr.mxu0 0.0
        %6488 = vmatpush2.xpose.msra.mxu0 0.0
        %6489 = vmatprep.subr.mxu0 0.0
        %6490 = vmatpush2.xpose.msra.mxu0 0.0
        %6491 = vmatprep.subr.mxu0 0.0
        %6492 = vmatpush2.xpose.msra.mxu0 0.0
        %6493 = vmatprep.subr.mxu0 0.0
        %6494 = vmatpush2.xpose.msra.mxu0 0.0
        %6495 = vmatprep.subr.mxu0 0.0
        %6496 = vmatpush2.xpose.msra.mxu0 0.0
        %6497 = vmatprep.subr.mxu0 0.0
        %6498 = vmatpush2.xpose.msra.mxu0 0.0
        %6499 = vmatprep.mubr.f32.mxu0 0.0
        %6500 = vmatmul.mubr.f32.gmra.mxu0 %v6430
        %v6501 = vpop.f32.mrf.mxu0
        %v6502 = vadd.f32 0.0, %v6501
        %v6503 = vpop.f32.mrf.mxu0
        %6504 = vdwg.mxu0
        %v6506 = vsel %vm5020, %v2890, 0
        %v6509 = vsel %vm5020, %v4031, 0
        %6511 = vmatprep.subr.mxu0 0.0
        %6512 = vmatpush1.xpose.msra.mxu0 0.0
        %6513 = vmatprep.subr.mxu0 0.0
        %6514 = vmatpush1.xpose.msra.mxu0 0.0
        %6515 = vmatprep.subr.mxu0 0.0
        %6516 = vmatpush1.xpose.msra.mxu0 0.0
        %6517 = vmatprep.subr.mxu0 0.0
        %6518 = vmatpush1.xpose.msra.mxu0 0.0
        %6519 = vmatprep.subr.mxu0 0.0
        %6520 = vmatpush1.xpose.msra.mxu0 0.0
        %6521 = vmatprep.subr.mxu0 0.0
        %6522 = vmatpush1.xpose.msra.mxu0 0.0
        %6523 = vmatprep.subr.mxu0 0.0
        %6524 = vmatpush1.xpose.msra.mxu0 0.0
        %6525 = vmatprep.subr.mxu0 0.0
        %6526 = vmatpush1.xpose.msra.mxu0 0.0
        %6527 = vmatprep.subr.mxu0 0.0
        %6528 = vmatpush1.xpose.msra.mxu0 0.0
        %6529 = vmatprep.subr.mxu0 0.0
        %6530 = vmatpush1.xpose.msra.mxu0 0.0
        %6531 = vmatprep.subr.mxu0 0.0
        %6532 = vmatpush1.xpose.msra.mxu0 0.0
        %6533 = vmatprep.subr.mxu0 0.0
        %6534 = vmatpush1.xpose.msra.mxu0 0.0
        %6535 = vmatprep.subr.mxu0 0.0
        %6536 = vmatpush1.xpose.msra.mxu0 0.0
        %6537 = vmatprep.subr.mxu0 0.0
        %6538 = vmatpush1.xpose.msra.mxu0 0.0
        %6539 = vmatprep.subr.mxu0 0.0
        %6540 = vmatpush1.xpose.msra.mxu0 0.0
        %6541 = vmatprep.subr.mxu0 0.0
        %6542 = vmatpush1.xpose.msra.mxu0 %v6509
        %6543 = vmatprep.subr.mxu0 0.0
        %6544 = vmatpush2.xpose.msra.mxu0 0.0
        %6545 = vmatprep.subr.mxu0 0.0
        %6546 = vmatpush2.xpose.msra.mxu0 0.0
        %6547 = vmatprep.subr.mxu0 0.0
        %6548 = vmatpush2.xpose.msra.mxu0 0.0
        %6549 = vmatprep.subr.mxu0 0.0
        %6550 = vmatpush2.xpose.msra.mxu0 0.0
        %6551 = vmatprep.subr.mxu0 0.0
        %6552 = vmatpush2.xpose.msra.mxu0 0.0
        %6553 = vmatprep.subr.mxu0 0.0
        %6554 = vmatpush2.xpose.msra.mxu0 0.0
        %6555 = vmatprep.subr.mxu0 0.0
        %6556 = vmatpush2.xpose.msra.mxu0 0.0
        %6557 = vmatprep.subr.mxu0 0.0
        %6558 = vmatpush2.xpose.msra.mxu0 0.0
        %6559 = vmatprep.subr.mxu0 0.0
        %6560 = vmatpush2.xpose.msra.mxu0 0.0
        %6561 = vmatprep.subr.mxu0 0.0
        %6562 = vmatpush2.xpose.msra.mxu0 0.0
        %6563 = vmatprep.subr.mxu0 0.0
        %6564 = vmatpush2.xpose.msra.mxu0 0.0
        %6565 = vmatprep.subr.mxu0 0.0
        %6566 = vmatpush2.xpose.msra.mxu0 0.0
        %6567 = vmatprep.subr.mxu0 0.0
        %6568 = vmatpush2.xpose.msra.mxu0 0.0
        %6569 = vmatprep.subr.mxu0 0.0
        %6570 = vmatpush2.xpose.msra.mxu0 0.0
        %6571 = vmatprep.subr.mxu0 0.0
        %6572 = vmatpush2.xpose.msra.mxu0 0.0
        %6573 = vmatprep.subr.mxu0 0.0
        %6574 = vmatpush2.xpose.msra.mxu0 0.0
        %6575 = vmatprep.mubr.f32.mxu0 0.0
        %6576 = vmatmul.mubr.f32.gmra.mxu0 %v6506
        %v6577 = vpop.f32.mrf.mxu0
        %v6578 = vadd.f32 0.0, %v6577
        %v6579 = vpop.f32.mrf.mxu0
        %6580 = vdwg.mxu0
        %v6582 = vsel %vm5020, %v2963, 0
        %v6585 = vsel %vm5020, %v4104, 0
        %6587 = vmatprep.subr.mxu0 0.0
        %6588 = vmatpush1.xpose.msra.mxu0 0.0
        %6589 = vmatprep.subr.mxu0 0.0
        %6590 = vmatpush1.xpose.msra.mxu0 0.0
        %6591 = vmatprep.subr.mxu0 0.0
        %6592 = vmatpush1.xpose.msra.mxu0 0.0
        %6593 = vmatprep.subr.mxu0 0.0
        %6594 = vmatpush1.xpose.msra.mxu0 0.0
        %6595 = vmatprep.subr.mxu0 0.0
        %6596 = vmatpush1.xpose.msra.mxu0 0.0
        %6597 = vmatprep.subr.mxu0 0.0
        %6598 = vmatpush1.xpose.msra.mxu0 0.0
        %6599 = vmatprep.subr.mxu0 0.0
        %6600 = vmatpush1.xpose.msra.mxu0 0.0
        %6601 = vmatprep.subr.mxu0 0.0
        %6602 = vmatpush1.xpose.msra.mxu0 0.0
        %6603 = vmatprep.subr.mxu0 0.0
        %6604 = vmatpush1.xpose.msra.mxu0 0.0
        %6605 = vmatprep.subr.mxu0 0.0
        %6606 = vmatpush1.xpose.msra.mxu0 0.0
        %6607 = vmatprep.subr.mxu0 0.0
        %6608 = vmatpush1.xpose.msra.mxu0 0.0
        %6609 = vmatprep.subr.mxu0 0.0
        %6610 = vmatpush1.xpose.msra.mxu0 0.0
        %6611 = vmatprep.subr.mxu0 0.0
        %6612 = vmatpush1.xpose.msra.mxu0 0.0
        %6613 = vmatprep.subr.mxu0 0.0
        %6614 = vmatpush1.xpose.msra.mxu0 0.0
        %6615 = vmatprep.subr.mxu0 0.0
        %6616 = vmatpush1.xpose.msra.mxu0 0.0
        %6617 = vmatprep.subr.mxu0 0.0
        %6618 = vmatpush1.xpose.msra.mxu0 %v6585
        %6619 = vmatprep.subr.mxu0 0.0
        %6620 = vmatpush2.xpose.msra.mxu0 0.0
        %6621 = vmatprep.subr.mxu0 0.0
        %6622 = vmatpush2.xpose.msra.mxu0 0.0
        %6623 = vmatprep.subr.mxu0 0.0
        %6624 = vmatpush2.xpose.msra.mxu0 0.0
        %6625 = vmatprep.subr.mxu0 0.0
        %6626 = vmatpush2.xpose.msra.mxu0 0.0
        %6627 = vmatprep.subr.mxu0 0.0
        %6628 = vmatpush2.xpose.msra.mxu0 0.0
        %6629 = vmatprep.subr.mxu0 0.0
        %6630 = vmatpush2.xpose.msra.mxu0 0.0
        %6631 = vmatprep.subr.mxu0 0.0
        %6632 = vmatpush2.xpose.msra.mxu0 0.0
        %6633 = vmatprep.subr.mxu0 0.0
        %6634 = vmatpush2.xpose.msra.mxu0 0.0
        %6635 = vmatprep.subr.mxu0 0.0
        %6636 = vmatpush2.xpose.msra.mxu0 0.0
        %6637 = vmatprep.subr.mxu0 0.0
        %6638 = vmatpush2.xpose.msra.mxu0 0.0
        %6639 = vmatprep.subr.mxu0 0.0
        %6640 = vmatpush2.xpose.msra.mxu0 0.0
        %6641 = vmatprep.subr.mxu0 0.0
        %6642 = vmatpush2.xpose.msra.mxu0 0.0
        %6643 = vmatprep.subr.mxu0 0.0
        %6644 = vmatpush2.xpose.msra.mxu0 0.0
        %6645 = vmatprep.subr.mxu0 0.0
        %6646 = vmatpush2.xpose.msra.mxu0 0.0
        %6647 = vmatprep.subr.mxu0 0.0
        %6648 = vmatpush2.xpose.msra.mxu0 0.0
        %6649 = vmatprep.subr.mxu0 0.0
        %6650 = vmatpush2.xpose.msra.mxu0 0.0
        %6651 = vmatprep.mubr.f32.mxu0 0.0
        %6652 = vmatmul.mubr.f32.gmra.mxu0 %v6582
        %v6653 = vpop.f32.mrf.mxu0
        %v6654 = vadd.f32 0.0, %v6653
        %v6655 = vpop.f32.mrf.mxu0
        %6656 = vdwg.mxu0
        %v6658 = vsel %vm5020, %v3036, 0
        %v6661 = vsel %vm5020, %v4177, 0
        %6663 = vmatprep.subr.mxu0 0.0
        %6664 = vmatpush1.xpose.msra.mxu0 0.0
        %6665 = vmatprep.subr.mxu0 0.0
        %6666 = vmatpush1.xpose.msra.mxu0 0.0
        %6667 = vmatprep.subr.mxu0 0.0
        %6668 = vmatpush1.xpose.msra.mxu0 0.0
        %6669 = vmatprep.subr.mxu0 0.0
        %6670 = vmatpush1.xpose.msra.mxu0 0.0
        %6671 = vmatprep.subr.mxu0 0.0
        %6672 = vmatpush1.xpose.msra.mxu0 0.0
        %6673 = vmatprep.subr.mxu0 0.0
        %6674 = vmatpush1.xpose.msra.mxu0 0.0
        %6675 = vmatprep.subr.mxu0 0.0
        %6676 = vmatpush1.xpose.msra.mxu0 0.0
        %6677 = vmatprep.subr.mxu0 0.0
        %6678 = vmatpush1.xpose.msra.mxu0 0.0
        %6679 = vmatprep.subr.mxu0 0.0
        %6680 = vmatpush1.xpose.msra.mxu0 0.0
        %6681 = vmatprep.subr.mxu0 0.0
        %6682 = vmatpush1.xpose.msra.mxu0 0.0
        %6683 = vmatprep.subr.mxu0 0.0
        %6684 = vmatpush1.xpose.msra.mxu0 0.0
        %6685 = vmatprep.subr.mxu0 0.0
        %6686 = vmatpush1.xpose.msra.mxu0 0.0
        %6687 = vmatprep.subr.mxu0 0.0
        %6688 = vmatpush1.xpose.msra.mxu0 0.0
        %6689 = vmatprep.subr.mxu0 0.0
        %6690 = vmatpush1.xpose.msra.mxu0 0.0
        %6691 = vmatprep.subr.mxu0 0.0
        %6692 = vmatpush1.xpose.msra.mxu0 0.0
        %6693 = vmatprep.subr.mxu0 0.0
        %6694 = vmatpush1.xpose.msra.mxu0 %v6661
        %6695 = vmatprep.subr.mxu0 0.0
        %6696 = vmatpush2.xpose.msra.mxu0 0.0
        %6697 = vmatprep.subr.mxu0 0.0
        %6698 = vmatpush2.xpose.msra.mxu0 0.0
        %6699 = vmatprep.subr.mxu0 0.0
        %6700 = vmatpush2.xpose.msra.mxu0 0.0
        %6701 = vmatprep.subr.mxu0 0.0
        %6702 = vmatpush2.xpose.msra.mxu0 0.0
        %6703 = vmatprep.subr.mxu0 0.0
        %6704 = vmatpush2.xpose.msra.mxu0 0.0
        %6705 = vmatprep.subr.mxu0 0.0
        %6706 = vmatpush2.xpose.msra.mxu0 0.0
        %6707 = vmatprep.subr.mxu0 0.0
        %6708 = vmatpush2.xpose.msra.mxu0 0.0
        %6709 = vmatprep.subr.mxu0 0.0
        %6710 = vmatpush2.xpose.msra.mxu0 0.0
        %6711 = vmatprep.subr.mxu0 0.0
        %6712 = vmatpush2.xpose.msra.mxu0 0.0
        %6713 = vmatprep.subr.mxu0 0.0
        %6714 = vmatpush2.xpose.msra.mxu0 0.0
        %6715 = vmatprep.subr.mxu0 0.0
        %6716 = vmatpush2.xpose.msra.mxu0 0.0
        %6717 = vmatprep.subr.mxu0 0.0
        %6718 = vmatpush2.xpose.msra.mxu0 0.0
        %6719 = vmatprep.subr.mxu0 0.0
        %6720 = vmatpush2.xpose.msra.mxu0 0.0
        %6721 = vmatprep.subr.mxu0 0.0
        %6722 = vmatpush2.xpose.msra.mxu0 0.0
        %6723 = vmatprep.subr.mxu0 0.0
        %6724 = vmatpush2.xpose.msra.mxu0 0.0
        %6725 = vmatprep.subr.mxu0 0.0
        %6726 = vmatpush2.xpose.msra.mxu0 0.0
        %6727 = vmatprep.mubr.f32.mxu0 0.0
        %6728 = vmatmul.mubr.f32.gmra.mxu0 %v6658
        %v6729 = vpop.f32.mrf.mxu0
        %v6730 = vadd.f32 0.0, %v6729
        %v6731 = vpop.f32.mrf.mxu0
        %6732 = vdwg.mxu0
        %v6734 = vsel %vm5020, %v3109, 0
        %v6737 = vsel %vm5020, %v4247, 0
        %6739 = vmatprep.subr.mxu0 0.0
        %6740 = vmatpush1.xpose.msra.mxu0 0.0
        %6741 = vmatprep.subr.mxu0 0.0
        %6742 = vmatpush1.xpose.msra.mxu0 0.0
        %6743 = vmatprep.subr.mxu0 0.0
        %6744 = vmatpush1.xpose.msra.mxu0 0.0
        %6745 = vmatprep.subr.mxu0 0.0
        %6746 = vmatpush1.xpose.msra.mxu0 0.0
        %6747 = vmatprep.subr.mxu0 0.0
        %6748 = vmatpush1.xpose.msra.mxu0 0.0
        %6749 = vmatprep.subr.mxu0 0.0
        %6750 = vmatpush1.xpose.msra.mxu0 0.0
        %6751 = vmatprep.subr.mxu0 0.0
        %6752 = vmatpush1.xpose.msra.mxu0 0.0
        %6753 = vmatprep.subr.mxu0 0.0
        %6754 = vmatpush1.xpose.msra.mxu0 0.0
        %6755 = vmatprep.subr.mxu0 0.0
        %6756 = vmatpush1.xpose.msra.mxu0 0.0
        %6757 = vmatprep.subr.mxu0 0.0
        %6758 = vmatpush1.xpose.msra.mxu0 0.0
        %6759 = vmatprep.subr.mxu0 0.0
        %6760 = vmatpush1.xpose.msra.mxu0 0.0
        %6761 = vmatprep.subr.mxu0 0.0
        %6762 = vmatpush1.xpose.msra.mxu0 0.0
        %6763 = vmatprep.subr.mxu0 0.0
        %6764 = vmatpush1.xpose.msra.mxu0 0.0
        %6765 = vmatprep.subr.mxu0 0.0
        %6766 = vmatpush1.xpose.msra.mxu0 0.0
        %6767 = vmatprep.subr.mxu0 0.0
        %6768 = vmatpush1.xpose.msra.mxu0 0.0
        %6769 = vmatprep.subr.mxu0 0.0
        %6770 = vmatpush1.xpose.msra.mxu0 %v6737
        %6771 = vmatprep.subr.mxu0 0.0
        %6772 = vmatpush2.xpose.msra.mxu0 0.0
        %6773 = vmatprep.subr.mxu0 0.0
        %6774 = vmatpush2.xpose.msra.mxu0 0.0
        %6775 = vmatprep.subr.mxu0 0.0
        %6776 = vmatpush2.xpose.msra.mxu0 0.0
        %6777 = vmatprep.subr.mxu0 0.0
        %6778 = vmatpush2.xpose.msra.mxu0 0.0
        %6779 = vmatprep.subr.mxu0 0.0
        %6780 = vmatpush2.xpose.msra.mxu0 0.0
        %6781 = vmatprep.subr.mxu0 0.0
        %6782 = vmatpush2.xpose.msra.mxu0 0.0
        %6783 = vmatprep.subr.mxu0 0.0
        %6784 = vmatpush2.xpose.msra.mxu0 0.0
        %6785 = vmatprep.subr.mxu0 0.0
        %6786 = vmatpush2.xpose.msra.mxu0 0.0
        %6787 = vmatprep.subr.mxu0 0.0
        %6788 = vmatpush2.xpose.msra.mxu0 0.0
        %6789 = vmatprep.subr.mxu0 0.0
        %6790 = vmatpush2.xpose.msra.mxu0 0.0
        %6791 = vmatprep.subr.mxu0 0.0
        %6792 = vmatpush2.xpose.msra.mxu0 0.0
        %6793 = vmatprep.subr.mxu0 0.0
        %6794 = vmatpush2.xpose.msra.mxu0 0.0
        %6795 = vmatprep.subr.mxu0 0.0
        %6796 = vmatpush2.xpose.msra.mxu0 0.0
        %6797 = vmatprep.subr.mxu0 0.0
        %6798 = vmatpush2.xpose.msra.mxu0 0.0
        %6799 = vmatprep.subr.mxu0 0.0
        %6800 = vmatpush2.xpose.msra.mxu0 0.0
        %6801 = vmatprep.subr.mxu0 0.0
        %6802 = vmatpush2.xpose.msra.mxu0 0.0
        %6803 = vmatprep.mubr.f32.mxu0 0.0
        %6804 = vmatmul.mubr.f32.gmra.mxu0 %v6734
        %v6805 = vpop.f32.mrf.mxu0
        %v6806 = vadd.f32 0.0, %v6805
        %v6807 = vpop.f32.mrf.mxu0
        %6808 = vdwg.mxu0
        %v6810 = vsel %vm5020, %v3179, 0
        %v6813 = vsel %vm5020, %v4317, 0
        %6815 = vmatprep.subr.mxu0 0.0
        %6816 = vmatpush1.xpose.msra.mxu0 0.0
        %6817 = vmatprep.subr.mxu0 0.0
        %6818 = vmatpush1.xpose.msra.mxu0 0.0
        %6819 = vmatprep.subr.mxu0 0.0
        %6820 = vmatpush1.xpose.msra.mxu0 0.0
        %6821 = vmatprep.subr.mxu0 0.0
        %6822 = vmatpush1.xpose.msra.mxu0 0.0
        %6823 = vmatprep.subr.mxu0 0.0
        %6824 = vmatpush1.xpose.msra.mxu0 0.0
        %6825 = vmatprep.subr.mxu0 0.0
        %6826 = vmatpush1.xpose.msra.mxu0 0.0
        %6827 = vmatprep.subr.mxu0 0.0
        %6828 = vmatpush1.xpose.msra.mxu0 0.0
        %6829 = vmatprep.subr.mxu0 0.0
        %6830 = vmatpush1.xpose.msra.mxu0 0.0
        %6831 = vmatprep.subr.mxu0 0.0
        %6832 = vmatpush1.xpose.msra.mxu0 0.0
        %6833 = vmatprep.subr.mxu0 0.0
        %6834 = vmatpush1.xpose.msra.mxu0 0.0
        %6835 = vmatprep.subr.mxu0 0.0
        %6836 = vmatpush1.xpose.msra.mxu0 0.0
        %6837 = vmatprep.subr.mxu0 0.0
        %6838 = vmatpush1.xpose.msra.mxu0 0.0
        %6839 = vmatprep.subr.mxu0 0.0
        %6840 = vmatpush1.xpose.msra.mxu0 0.0
        %6841 = vmatprep.subr.mxu0 0.0
        %6842 = vmatpush1.xpose.msra.mxu0 0.0
        %6843 = vmatprep.subr.mxu0 0.0
        %6844 = vmatpush1.xpose.msra.mxu0 0.0
        %6845 = vmatprep.subr.mxu0 0.0
        %6846 = vmatpush1.xpose.msra.mxu0 %v6813
        %6847 = vmatprep.subr.mxu0 0.0
        %6848 = vmatpush2.xpose.msra.mxu0 0.0
        %6849 = vmatprep.subr.mxu0 0.0
        %6850 = vmatpush2.xpose.msra.mxu0 0.0
        %6851 = vmatprep.subr.mxu0 0.0
        %6852 = vmatpush2.xpose.msra.mxu0 0.0
        %6853 = vmatprep.subr.mxu0 0.0
        %6854 = vmatpush2.xpose.msra.mxu0 0.0
        %6855 = vmatprep.subr.mxu0 0.0
        %6856 = vmatpush2.xpose.msra.mxu0 0.0
        %6857 = vmatprep.subr.mxu0 0.0
        %6858 = vmatpush2.xpose.msra.mxu0 0.0
        %6859 = vmatprep.subr.mxu0 0.0
        %6860 = vmatpush2.xpose.msra.mxu0 0.0
        %6861 = vmatprep.subr.mxu0 0.0
        %6862 = vmatpush2.xpose.msra.mxu0 0.0
        %6863 = vmatprep.subr.mxu0 0.0
        %6864 = vmatpush2.xpose.msra.mxu0 0.0
        %6865 = vmatprep.subr.mxu0 0.0
        %6866 = vmatpush2.xpose.msra.mxu0 0.0
        %6867 = vmatprep.subr.mxu0 0.0
        %6868 = vmatpush2.xpose.msra.mxu0 0.0
        %6869 = vmatprep.subr.mxu0 0.0
        %6870 = vmatpush2.xpose.msra.mxu0 0.0
        %6871 = vmatprep.subr.mxu0 0.0
        %6872 = vmatpush2.xpose.msra.mxu0 0.0
        %6873 = vmatprep.subr.mxu0 0.0
        %6874 = vmatpush2.xpose.msra.mxu0 0.0
        %6875 = vmatprep.subr.mxu0 0.0
        %6876 = vmatpush2.xpose.msra.mxu0 0.0
        %6877 = vmatprep.subr.mxu0 0.0
        %6878 = vmatpush2.xpose.msra.mxu0 0.0
        %6879 = vmatprep.mubr.f32.mxu0 0.0
        %6880 = vmatmul.mubr.f32.gmra.mxu0 %v6810
        %v6881 = vpop.f32.mrf.mxu0
        %v6882 = vadd.f32 0.0, %v6881
        %v6883 = vpop.f32.mrf.mxu0
        %6884 = vdwg.mxu0
        %v6886 = vsel %vm5020, %v3249, 0
        %v6889 = vsel %vm5020, %v4387, 0
        %6891 = vmatprep.subr.mxu0 0.0
        %6892 = vmatpush1.xpose.msra.mxu0 0.0
        %6893 = vmatprep.subr.mxu0 0.0
        %6894 = vmatpush1.xpose.msra.mxu0 0.0
        %6895 = vmatprep.subr.mxu0 0.0
        %6896 = vmatpush1.xpose.msra.mxu0 0.0
        %6897 = vmatprep.subr.mxu0 0.0
        %6898 = vmatpush1.xpose.msra.mxu0 0.0
        %6899 = vmatprep.subr.mxu0 0.0
        %6900 = vmatpush1.xpose.msra.mxu0 0.0
        %6901 = vmatprep.subr.mxu0 0.0
        %6902 = vmatpush1.xpose.msra.mxu0 0.0
        %6903 = vmatprep.subr.mxu0 0.0
        %6904 = vmatpush1.xpose.msra.mxu0 0.0
        %6905 = vmatprep.subr.mxu0 0.0
        %6906 = vmatpush1.xpose.msra.mxu0 0.0
        %6907 = vmatprep.subr.mxu0 0.0
        %6908 = vmatpush1.xpose.msra.mxu0 0.0
        %6909 = vmatprep.subr.mxu0 0.0
        %6910 = vmatpush1.xpose.msra.mxu0 0.0
        %6911 = vmatprep.subr.mxu0 0.0
        %6912 = vmatpush1.xpose.msra.mxu0 0.0
        %6913 = vmatprep.subr.mxu0 0.0
        %6914 = vmatpush1.xpose.msra.mxu0 0.0
        %6915 = vmatprep.subr.mxu0 0.0
        %6916 = vmatpush1.xpose.msra.mxu0 0.0
        %6917 = vmatprep.subr.mxu0 0.0
        %6918 = vmatpush1.xpose.msra.mxu0 0.0
        %6919 = vmatprep.subr.mxu0 0.0
        %6920 = vmatpush1.xpose.msra.mxu0 0.0
        %6921 = vmatprep.subr.mxu0 0.0
        %6922 = vmatpush1.xpose.msra.mxu0 %v6889
        %6923 = vmatprep.subr.mxu0 0.0
        %6924 = vmatpush2.xpose.msra.mxu0 0.0
        %6925 = vmatprep.subr.mxu0 0.0
        %6926 = vmatpush2.xpose.msra.mxu0 0.0
        %6927 = vmatprep.subr.mxu0 0.0
        %6928 = vmatpush2.xpose.msra.mxu0 0.0
        %6929 = vmatprep.subr.mxu0 0.0
        %6930 = vmatpush2.xpose.msra.mxu0 0.0
        %6931 = vmatprep.subr.mxu0 0.0
        %6932 = vmatpush2.xpose.msra.mxu0 0.0
        %6933 = vmatprep.subr.mxu0 0.0
        %6934 = vmatpush2.xpose.msra.mxu0 0.0
        %6935 = vmatprep.subr.mxu0 0.0
        %6936 = vmatpush2.xpose.msra.mxu0 0.0
        %6937 = vmatprep.subr.mxu0 0.0
        %6938 = vmatpush2.xpose.msra.mxu0 0.0
        %6939 = vmatprep.subr.mxu0 0.0
        %6940 = vmatpush2.xpose.msra.mxu0 0.0
        %6941 = vmatprep.subr.mxu0 0.0
        %6942 = vmatpush2.xpose.msra.mxu0 0.0
        %6943 = vmatprep.subr.mxu0 0.0
        %6944 = vmatpush2.xpose.msra.mxu0 0.0
        %6945 = vmatprep.subr.mxu0 0.0
        %6946 = vmatpush2.xpose.msra.mxu0 0.0
        %6947 = vmatprep.subr.mxu0 0.0
        %6948 = vmatpush2.xpose.msra.mxu0 0.0
        %6949 = vmatprep.subr.mxu0 0.0
        %6950 = vmatpush2.xpose.msra.mxu0 0.0
        %6951 = vmatprep.subr.mxu0 0.0
        %6952 = vmatpush2.xpose.msra.mxu0 0.0
        %6953 = vmatprep.subr.mxu0 0.0
        %6954 = vmatpush2.xpose.msra.mxu0 0.0
        %6955 = vmatprep.mubr.f32.mxu0 0.0
        %6956 = vmatmul.mubr.f32.gmra.mxu0 %v6886
        %v6957 = vpop.f32.mrf.mxu0
        %v6958 = vadd.f32 0.0, %v6957
        %v6959 = vpop.f32.mrf.mxu0
        %6960 = vdwg.mxu0
        %v6962 = vsel %vm5020, %v3319, 0
        %v6965 = vsel %vm5020, %v4457, 0
        %6967 = vmatprep.subr.mxu0 0.0
        %6968 = vmatpush1.xpose.msra.mxu0 0.0
        %6969 = vmatprep.subr.mxu0 0.0
        %6970 = vmatpush1.xpose.msra.mxu0 0.0
        %6971 = vmatprep.subr.mxu0 0.0
        %6972 = vmatpush1.xpose.msra.mxu0 0.0
        %6973 = vmatprep.subr.mxu0 0.0
        %6974 = vmatpush1.xpose.msra.mxu0 0.0
        %6975 = vmatprep.subr.mxu0 0.0
        %6976 = vmatpush1.xpose.msra.mxu0 0.0
        %6977 = vmatprep.subr.mxu0 0.0
        %6978 = vmatpush1.xpose.msra.mxu0 0.0
        %6979 = vmatprep.subr.mxu0 0.0
        %6980 = vmatpush1.xpose.msra.mxu0 0.0
        %6981 = vmatprep.subr.mxu0 0.0
        %6982 = vmatpush1.xpose.msra.mxu0 0.0
        %6983 = vmatprep.subr.mxu0 0.0
        %6984 = vmatpush1.xpose.msra.mxu0 0.0
        %6985 = vmatprep.subr.mxu0 0.0
        %6986 = vmatpush1.xpose.msra.mxu0 0.0
        %6987 = vmatprep.subr.mxu0 0.0
        %6988 = vmatpush1.xpose.msra.mxu0 0.0
        %6989 = vmatprep.subr.mxu0 0.0
        %6990 = vmatpush1.xpose.msra.mxu0 0.0
        %6991 = vmatprep.subr.mxu0 0.0
        %6992 = vmatpush1.xpose.msra.mxu0 0.0
        %6993 = vmatprep.subr.mxu0 0.0
        %6994 = vmatpush1.xpose.msra.mxu0 0.0
        %6995 = vmatprep.subr.mxu0 0.0
        %6996 = vmatpush1.xpose.msra.mxu0 0.0
        %6997 = vmatprep.subr.mxu0 0.0
        %6998 = vmatpush1.xpose.msra.mxu0 %v6965
        %6999 = vmatprep.subr.mxu0 0.0
        %7000 = vmatpush2.xpose.msra.mxu0 0.0
        %7001 = vmatprep.subr.mxu0 0.0
        %7002 = vmatpush2.xpose.msra.mxu0 0.0
        %7003 = vmatprep.subr.mxu0 0.0
        %7004 = vmatpush2.xpose.msra.mxu0 0.0
        %7005 = vmatprep.subr.mxu0 0.0
        %7006 = vmatpush2.xpose.msra.mxu0 0.0
        %7007 = vmatprep.subr.mxu0 0.0
        %7008 = vmatpush2.xpose.msra.mxu0 0.0
        %7009 = vmatprep.subr.mxu0 0.0
        %7010 = vmatpush2.xpose.msra.mxu0 0.0
        %7011 = vmatprep.subr.mxu0 0.0
        %7012 = vmatpush2.xpose.msra.mxu0 0.0
        %7013 = vmatprep.subr.mxu0 0.0
        %7014 = vmatpush2.xpose.msra.mxu0 0.0
        %7015 = vmatprep.subr.mxu0 0.0
        %7016 = vmatpush2.xpose.msra.mxu0 0.0
        %7017 = vmatprep.subr.mxu0 0.0
        %7018 = vmatpush2.xpose.msra.mxu0 0.0
        %7019 = vmatprep.subr.mxu0 0.0
        %7020 = vmatpush2.xpose.msra.mxu0 0.0
        %7021 = vmatprep.subr.mxu0 0.0
        %7022 = vmatpush2.xpose.msra.mxu0 0.0
        %7023 = vmatprep.subr.mxu0 0.0
        %7024 = vmatpush2.xpose.msra.mxu0 0.0
        %7025 = vmatprep.subr.mxu0 0.0
        %7026 = vmatpush2.xpose.msra.mxu0 0.0
        %7027 = vmatprep.subr.mxu0 0.0
        %7028 = vmatpush2.xpose.msra.mxu0 0.0
        %7029 = vmatprep.subr.mxu0 0.0
        %7030 = vmatpush2.xpose.msra.mxu0 0.0
        %7031 = vmatprep.mubr.f32.mxu0 0.0
        %7032 = vmatmul.mubr.f32.gmra.mxu0 %v6962
        %v7033 = vpop.f32.mrf.mxu0
        %v7034 = vadd.f32 0.0, %v7033
        %v7035 = vpop.f32.mrf.mxu0
        %7036 = vdwg.mxu0
        %v7038 = vsel %vm5020, %v3392, 0
        %v7041 = vsel %vm5020, %v4527, 0
        %7043 = vmatprep.subr.mxu0 0.0
        %7044 = vmatpush1.xpose.msra.mxu0 0.0
        %7045 = vmatprep.subr.mxu0 0.0
        %7046 = vmatpush1.xpose.msra.mxu0 0.0
        %7047 = vmatprep.subr.mxu0 0.0
        %7048 = vmatpush1.xpose.msra.mxu0 0.0
        %7049 = vmatprep.subr.mxu0 0.0
        %7050 = vmatpush1.xpose.msra.mxu0 0.0
        %7051 = vmatprep.subr.mxu0 0.0
        %7052 = vmatpush1.xpose.msra.mxu0 0.0
        %7053 = vmatprep.subr.mxu0 0.0
        %7054 = vmatpush1.xpose.msra.mxu0 0.0
        %7055 = vmatprep.subr.mxu0 0.0
        %7056 = vmatpush1.xpose.msra.mxu0 0.0
        %7057 = vmatprep.subr.mxu0 0.0
        %7058 = vmatpush1.xpose.msra.mxu0 0.0
        %7059 = vmatprep.subr.mxu0 0.0
        %7060 = vmatpush1.xpose.msra.mxu0 0.0
        %7061 = vmatprep.subr.mxu0 0.0
        %7062 = vmatpush1.xpose.msra.mxu0 0.0
        %7063 = vmatprep.subr.mxu0 0.0
        %7064 = vmatpush1.xpose.msra.mxu0 0.0
        %7065 = vmatprep.subr.mxu0 0.0
        %7066 = vmatpush1.xpose.msra.mxu0 0.0
        %7067 = vmatprep.subr.mxu0 0.0
        %7068 = vmatpush1.xpose.msra.mxu0 0.0
        %7069 = vmatprep.subr.mxu0 0.0
        %7070 = vmatpush1.xpose.msra.mxu0 0.0
        %7071 = vmatprep.subr.mxu0 0.0
        %7072 = vmatpush1.xpose.msra.mxu0 0.0
        %7073 = vmatprep.subr.mxu0 0.0
        %7074 = vmatpush1.xpose.msra.mxu0 %v7041
        %7075 = vmatprep.subr.mxu0 0.0
        %7076 = vmatpush2.xpose.msra.mxu0 0.0
        %7077 = vmatprep.subr.mxu0 0.0
        %7078 = vmatpush2.xpose.msra.mxu0 0.0
        %7079 = vmatprep.subr.mxu0 0.0
        %7080 = vmatpush2.xpose.msra.mxu0 0.0
        %7081 = vmatprep.subr.mxu0 0.0
        %7082 = vmatpush2.xpose.msra.mxu0 0.0
        %7083 = vmatprep.subr.mxu0 0.0
        %7084 = vmatpush2.xpose.msra.mxu0 0.0
        %7085 = vmatprep.subr.mxu0 0.0
        %7086 = vmatpush2.xpose.msra.mxu0 0.0
        %7087 = vmatprep.subr.mxu0 0.0
        %7088 = vmatpush2.xpose.msra.mxu0 0.0
        %7089 = vmatprep.subr.mxu0 0.0
        %7090 = vmatpush2.xpose.msra.mxu0 0.0
        %7091 = vmatprep.subr.mxu0 0.0
        %7092 = vmatpush2.xpose.msra.mxu0 0.0
        %7093 = vmatprep.subr.mxu0 0.0
        %7094 = vmatpush2.xpose.msra.mxu0 0.0
        %7095 = vmatprep.subr.mxu0 0.0
        %7096 = vmatpush2.xpose.msra.mxu0 0.0
        %7097 = vmatprep.subr.mxu0 0.0
        %7098 = vmatpush2.xpose.msra.mxu0 0.0
        %7099 = vmatprep.subr.mxu0 0.0
        %7100 = vmatpush2.xpose.msra.mxu0 0.0
        %7101 = vmatprep.subr.mxu0 0.0
        %7102 = vmatpush2.xpose.msra.mxu0 0.0
        %7103 = vmatprep.subr.mxu0 0.0
        %7104 = vmatpush2.xpose.msra.mxu0 0.0
        %7105 = vmatprep.subr.mxu0 0.0
        %7106 = vmatpush2.xpose.msra.mxu0 0.0
        %7107 = vmatprep.mubr.f32.mxu0 0.0
        %7108 = vmatmul.mubr.f32.gmra.mxu0 %v7038
        %v7109 = vpop.f32.mrf.mxu0
        %v7110 = vadd.f32 0.0, %v7109
        %v7111 = vpop.f32.mrf.mxu0
        %7112 = vdwg.mxu0
        %v7114 = vsel %vm5020, %v3462, 0
        %v7117 = vsel %vm5020, %v4597, 0
        %7119 = vmatprep.subr.mxu0 0.0
        %7120 = vmatpush1.xpose.msra.mxu0 0.0
        %7121 = vmatprep.subr.mxu0 0.0
        %7122 = vmatpush1.xpose.msra.mxu0 0.0
        %7123 = vmatprep.subr.mxu0 0.0
        %7124 = vmatpush1.xpose.msra.mxu0 0.0
        %7125 = vmatprep.subr.mxu0 0.0
        %7126 = vmatpush1.xpose.msra.mxu0 0.0
        %7127 = vmatprep.subr.mxu0 0.0
        %7128 = vmatpush1.xpose.msra.mxu0 0.0
        %7129 = vmatprep.subr.mxu0 0.0
        %7130 = vmatpush1.xpose.msra.mxu0 0.0
        %7131 = vmatprep.subr.mxu0 0.0
        %7132 = vmatpush1.xpose.msra.mxu0 0.0
        %7133 = vmatprep.subr.mxu0 0.0
        %7134 = vmatpush1.xpose.msra.mxu0 0.0
        %7135 = vmatprep.subr.mxu0 0.0
        %7136 = vmatpush1.xpose.msra.mxu0 0.0
        %7137 = vmatprep.subr.mxu0 0.0
        %7138 = vmatpush1.xpose.msra.mxu0 0.0
        %7139 = vmatprep.subr.mxu0 0.0
        %7140 = vmatpush1.xpose.msra.mxu0 0.0
        %7141 = vmatprep.subr.mxu0 0.0
        %7142 = vmatpush1.xpose.msra.mxu0 0.0
        %7143 = vmatprep.subr.mxu0 0.0
        %7144 = vmatpush1.xpose.msra.mxu0 0.0
        %7145 = vmatprep.subr.mxu0 0.0
        %7146 = vmatpush1.xpose.msra.mxu0 0.0
        %7147 = vmatprep.subr.mxu0 0.0
        %7148 = vmatpush1.xpose.msra.mxu0 0.0
        %7149 = vmatprep.subr.mxu0 0.0
        %7150 = vmatpush1.xpose.msra.mxu0 %v7117
        %7151 = vmatprep.subr.mxu0 0.0
        %7152 = vmatpush2.xpose.msra.mxu0 0.0
        %7153 = vmatprep.subr.mxu0 0.0
        %7154 = vmatpush2.xpose.msra.mxu0 0.0
        %7155 = vmatprep.subr.mxu0 0.0
        %7156 = vmatpush2.xpose.msra.mxu0 0.0
        %7157 = vmatprep.subr.mxu0 0.0
        %7158 = vmatpush2.xpose.msra.mxu0 0.0
        %7159 = vmatprep.subr.mxu0 0.0
        %7160 = vmatpush2.xpose.msra.mxu0 0.0
        %7161 = vmatprep.subr.mxu0 0.0
        %7162 = vmatpush2.xpose.msra.mxu0 0.0
        %7163 = vmatprep.subr.mxu0 0.0
        %7164 = vmatpush2.xpose.msra.mxu0 0.0
        %7165 = vmatprep.subr.mxu0 0.0
        %7166 = vmatpush2.xpose.msra.mxu0 0.0
        %7167 = vmatprep.subr.mxu0 0.0
        %7168 = vmatpush2.xpose.msra.mxu0 0.0
        %7169 = vmatprep.subr.mxu0 0.0
        %7170 = vmatpush2.xpose.msra.mxu0 0.0
        %7171 = vmatprep.subr.mxu0 0.0
        %7172 = vmatpush2.xpose.msra.mxu0 0.0
        %7173 = vmatprep.subr.mxu0 0.0
        %7174 = vmatpush2.xpose.msra.mxu0 0.0
        %7175 = vmatprep.subr.mxu0 0.0
        %7176 = vmatpush2.xpose.msra.mxu0 0.0
        %7177 = vmatprep.subr.mxu0 0.0
        %7178 = vmatpush2.xpose.msra.mxu0 0.0
        %7179 = vmatprep.subr.mxu0 0.0
        %7180 = vmatpush2.xpose.msra.mxu0 0.0
        %7181 = vmatprep.subr.mxu0 0.0
        %7182 = vmatpush2.xpose.msra.mxu0 0.0
        %7183 = vmatprep.mubr.f32.mxu0 0.0
        %7184 = vmatmul.mubr.f32.gmra.mxu0 %v7114
        %v7185 = vpop.f32.mrf.mxu0
        %v7186 = vadd.f32 0.0, %v7185
        %v7187 = vpop.f32.mrf.mxu0
        %7188 = vdwg.mxu0
        %v7190 = vsel %vm5020, %v3532, 0
        %v7193 = vsel %vm5020, %v4667, 0
        %7195 = vmatprep.subr.mxu0 0.0
        %7196 = vmatpush1.xpose.msra.mxu0 0.0
        %7197 = vmatprep.subr.mxu0 0.0
        %7198 = vmatpush1.xpose.msra.mxu0 0.0
        %7199 = vmatprep.subr.mxu0 0.0
        %7200 = vmatpush1.xpose.msra.mxu0 0.0
        %7201 = vmatprep.subr.mxu0 0.0
        %7202 = vmatpush1.xpose.msra.mxu0 0.0
        %7203 = vmatprep.subr.mxu0 0.0
        %7204 = vmatpush1.xpose.msra.mxu0 0.0
        %7205 = vmatprep.subr.mxu0 0.0
        %7206 = vmatpush1.xpose.msra.mxu0 0.0
        %7207 = vmatprep.subr.mxu0 0.0
        %7208 = vmatpush1.xpose.msra.mxu0 0.0
        %7209 = vmatprep.subr.mxu0 0.0
        %7210 = vmatpush1.xpose.msra.mxu0 0.0
        %7211 = vmatprep.subr.mxu0 0.0
        %7212 = vmatpush1.xpose.msra.mxu0 0.0
        %7213 = vmatprep.subr.mxu0 0.0
        %7214 = vmatpush1.xpose.msra.mxu0 0.0
        %7215 = vmatprep.subr.mxu0 0.0
        %7216 = vmatpush1.xpose.msra.mxu0 0.0
        %7217 = vmatprep.subr.mxu0 0.0
        %7218 = vmatpush1.xpose.msra.mxu0 0.0
        %7219 = vmatprep.subr.mxu0 0.0
        %7220 = vmatpush1.xpose.msra.mxu0 0.0
        %7221 = vmatprep.subr.mxu0 0.0
        %7222 = vmatpush1.xpose.msra.mxu0 0.0
        %7223 = vmatprep.subr.mxu0 0.0
        %7224 = vmatpush1.xpose.msra.mxu0 0.0
        %7225 = vmatprep.subr.mxu0 0.0
        %7226 = vmatpush1.xpose.msra.mxu0 %v7193
        %7227 = vmatprep.subr.mxu0 0.0
        %7228 = vmatpush2.xpose.msra.mxu0 0.0
        %7229 = vmatprep.subr.mxu0 0.0
        %7230 = vmatpush2.xpose.msra.mxu0 0.0
        %7231 = vmatprep.subr.mxu0 0.0
        %7232 = vmatpush2.xpose.msra.mxu0 0.0
        %7233 = vmatprep.subr.mxu0 0.0
        %7234 = vmatpush2.xpose.msra.mxu0 0.0
        %7235 = vmatprep.subr.mxu0 0.0
        %7236 = vmatpush2.xpose.msra.mxu0 0.0
        %7237 = vmatprep.subr.mxu0 0.0
        %7238 = vmatpush2.xpose.msra.mxu0 0.0
        %7239 = vmatprep.subr.mxu0 0.0
        %7240 = vmatpush2.xpose.msra.mxu0 0.0
        %7241 = vmatprep.subr.mxu0 0.0
        %7242 = vmatpush2.xpose.msra.mxu0 0.0
        %7243 = vmatprep.subr.mxu0 0.0
        %7244 = vmatpush2.xpose.msra.mxu0 0.0
        %7245 = vmatprep.subr.mxu0 0.0
        %7246 = vmatpush2.xpose.msra.mxu0 0.0
        %7247 = vmatprep.subr.mxu0 0.0
        %7248 = vmatpush2.xpose.msra.mxu0 0.0
        %7249 = vmatprep.subr.mxu0 0.0
        %7250 = vmatpush2.xpose.msra.mxu0 0.0
        %7251 = vmatprep.subr.mxu0 0.0
        %7252 = vmatpush2.xpose.msra.mxu0 0.0
        %7253 = vmatprep.subr.mxu0 0.0
        %7254 = vmatpush2.xpose.msra.mxu0 0.0
        %7255 = vmatprep.subr.mxu0 0.0
        %7256 = vmatpush2.xpose.msra.mxu0 0.0
        %7257 = vmatprep.subr.mxu0 0.0
        %7258 = vmatpush2.xpose.msra.mxu0 0.0
        %7259 = vmatprep.mubr.f32.mxu0 0.0
        %7260 = vmatmul.mubr.f32.gmra.mxu0 %v7190
        %v7261 = vpop.f32.mrf.mxu0
        %v7262 = vadd.f32 0.0, %v7261
        %v7263 = vpop.f32.mrf.mxu0
        %7264 = vdwg.mxu0
        %v7266 = vsel %vm5020, %v3602, 0
        %v7269 = vsel %vm5020, %v4737, 0
        %7271 = vmatprep.subr.mxu0 0.0
        %7272 = vmatpush1.xpose.msra.mxu0 0.0
        %7273 = vmatprep.subr.mxu0 0.0
        %7274 = vmatpush1.xpose.msra.mxu0 0.0
        %7275 = vmatprep.subr.mxu0 0.0
        %7276 = vmatpush1.xpose.msra.mxu0 0.0
        %7277 = vmatprep.subr.mxu0 0.0
        %7278 = vmatpush1.xpose.msra.mxu0 0.0
        %7279 = vmatprep.subr.mxu0 0.0
        %7280 = vmatpush1.xpose.msra.mxu0 0.0
        %7281 = vmatprep.subr.mxu0 0.0
        %7282 = vmatpush1.xpose.msra.mxu0 0.0
        %7283 = vmatprep.subr.mxu0 0.0
        %7284 = vmatpush1.xpose.msra.mxu0 0.0
        %7285 = vmatprep.subr.mxu0 0.0
        %7286 = vmatpush1.xpose.msra.mxu0 0.0
        %7287 = vmatprep.subr.mxu0 0.0
        %7288 = vmatpush1.xpose.msra.mxu0 0.0
        %7289 = vmatprep.subr.mxu0 0.0
        %7290 = vmatpush1.xpose.msra.mxu0 0.0
        %7291 = vmatprep.subr.mxu0 0.0
        %7292 = vmatpush1.xpose.msra.mxu0 0.0
        %7293 = vmatprep.subr.mxu0 0.0
        %7294 = vmatpush1.xpose.msra.mxu0 0.0
        %7295 = vmatprep.subr.mxu0 0.0
        %7296 = vmatpush1.xpose.msra.mxu0 0.0
        %7297 = vmatprep.subr.mxu0 0.0
        %7298 = vmatpush1.xpose.msra.mxu0 0.0
        %7299 = vmatprep.subr.mxu0 0.0
        %7300 = vmatpush1.xpose.msra.mxu0 0.0
        %7301 = vmatprep.subr.mxu0 0.0
        %7302 = vmatpush1.xpose.msra.mxu0 %v7269
        %7303 = vmatprep.subr.mxu0 0.0
        %7304 = vmatpush2.xpose.msra.mxu0 0.0
        %7305 = vmatprep.subr.mxu0 0.0
        %7306 = vmatpush2.xpose.msra.mxu0 0.0
        %7307 = vmatprep.subr.mxu0 0.0
        %7308 = vmatpush2.xpose.msra.mxu0 0.0
        %7309 = vmatprep.subr.mxu0 0.0
        %7310 = vmatpush2.xpose.msra.mxu0 0.0
        %7311 = vmatprep.subr.mxu0 0.0
        %7312 = vmatpush2.xpose.msra.mxu0 0.0
        %7313 = vmatprep.subr.mxu0 0.0
        %7314 = vmatpush2.xpose.msra.mxu0 0.0
        %7315 = vmatprep.subr.mxu0 0.0
        %7316 = vmatpush2.xpose.msra.mxu0 0.0
        %7317 = vmatprep.subr.mxu0 0.0
        %7318 = vmatpush2.xpose.msra.mxu0 0.0
        %7319 = vmatprep.subr.mxu0 0.0
        %7320 = vmatpush2.xpose.msra.mxu0 0.0
        %7321 = vmatprep.subr.mxu0 0.0
        %7322 = vmatpush2.xpose.msra.mxu0 0.0
        %7323 = vmatprep.subr.mxu0 0.0
        %7324 = vmatpush2.xpose.msra.mxu0 0.0
        %7325 = vmatprep.subr.mxu0 0.0
        %7326 = vmatpush2.xpose.msra.mxu0 0.0
        %7327 = vmatprep.subr.mxu0 0.0
        %7328 = vmatpush2.xpose.msra.mxu0 0.0
        %7329 = vmatprep.subr.mxu0 0.0
        %7330 = vmatpush2.xpose.msra.mxu0 0.0
        %7331 = vmatprep.subr.mxu0 0.0
        %7332 = vmatpush2.xpose.msra.mxu0 0.0
        %7333 = vmatprep.subr.mxu0 0.0
        %7334 = vmatpush2.xpose.msra.mxu0 0.0
        %7335 = vmatprep.mubr.f32.mxu0 0.0
        %7336 = vmatmul.mubr.f32.gmra.mxu0 %v7266
        %v7337 = vpop.f32.mrf.mxu0
        %v7338 = vadd.f32 0.0, %v7337
        %v7339 = vpop.f32.mrf.mxu0
        %7340 = vdwg.mxu0
        %v7342 = vsel %vm5020, %v3675, 0
        %v7345 = vsel %vm5020, %v4807, 0
        %7347 = vmatprep.subr.mxu0 0.0
        %7348 = vmatpush1.xpose.msra.mxu0 0.0
        %7349 = vmatprep.subr.mxu0 0.0
        %7350 = vmatpush1.xpose.msra.mxu0 0.0
        %7351 = vmatprep.subr.mxu0 0.0
        %7352 = vmatpush1.xpose.msra.mxu0 0.0
        %7353 = vmatprep.subr.mxu0 0.0
        %7354 = vmatpush1.xpose.msra.mxu0 0.0
        %7355 = vmatprep.subr.mxu0 0.0
        %7356 = vmatpush1.xpose.msra.mxu0 0.0
        %7357 = vmatprep.subr.mxu0 0.0
        %7358 = vmatpush1.xpose.msra.mxu0 0.0
        %7359 = vmatprep.subr.mxu0 0.0
        %7360 = vmatpush1.xpose.msra.mxu0 0.0
        %7361 = vmatprep.subr.mxu0 0.0
        %7362 = vmatpush1.xpose.msra.mxu0 0.0
        %7363 = vmatprep.subr.mxu0 0.0
        %7364 = vmatpush1.xpose.msra.mxu0 0.0
        %7365 = vmatprep.subr.mxu0 0.0
        %7366 = vmatpush1.xpose.msra.mxu0 0.0
        %7367 = vmatprep.subr.mxu0 0.0
        %7368 = vmatpush1.xpose.msra.mxu0 0.0
        %7369 = vmatprep.subr.mxu0 0.0
        %7370 = vmatpush1.xpose.msra.mxu0 0.0
        %7371 = vmatprep.subr.mxu0 0.0
        %7372 = vmatpush1.xpose.msra.mxu0 0.0
        %7373 = vmatprep.subr.mxu0 0.0
        %7374 = vmatpush1.xpose.msra.mxu0 0.0
        %7375 = vmatprep.subr.mxu0 0.0
        %7376 = vmatpush1.xpose.msra.mxu0 0.0
        %7377 = vmatprep.subr.mxu0 0.0
        %7378 = vmatpush1.xpose.msra.mxu0 %v7345
        %7379 = vmatprep.subr.mxu0 0.0
        %7380 = vmatpush2.xpose.msra.mxu0 0.0
        %7381 = vmatprep.subr.mxu0 0.0
        %7382 = vmatpush2.xpose.msra.mxu0 0.0
        %7383 = vmatprep.subr.mxu0 0.0
        %7384 = vmatpush2.xpose.msra.mxu0 0.0
        %7385 = vmatprep.subr.mxu0 0.0
        %7386 = vmatpush2.xpose.msra.mxu0 0.0
        %7387 = vmatprep.subr.mxu0 0.0
        %7388 = vmatpush2.xpose.msra.mxu0 0.0
        %7389 = vmatprep.subr.mxu0 0.0
        %7390 = vmatpush2.xpose.msra.mxu0 0.0
        %7391 = vmatprep.subr.mxu0 0.0
        %7392 = vmatpush2.xpose.msra.mxu0 0.0
        %7393 = vmatprep.subr.mxu0 0.0
        %7394 = vmatpush2.xpose.msra.mxu0 0.0
        %7395 = vmatprep.subr.mxu0 0.0
        %7396 = vmatpush2.xpose.msra.mxu0 0.0
        %7397 = vmatprep.subr.mxu0 0.0
        %7398 = vmatpush2.xpose.msra.mxu0 0.0
        %7399 = vmatprep.subr.mxu0 0.0
        %7400 = vmatpush2.xpose.msra.mxu0 0.0
        %7401 = vmatprep.subr.mxu0 0.0
        %7402 = vmatpush2.xpose.msra.mxu0 0.0
        %7403 = vmatprep.subr.mxu0 0.0
        %7404 = vmatpush2.xpose.msra.mxu0 0.0
        %7405 = vmatprep.subr.mxu0 0.0
        %7406 = vmatpush2.xpose.msra.mxu0 0.0
        %7407 = vmatprep.subr.mxu0 0.0
        %7408 = vmatpush2.xpose.msra.mxu0 0.0
        %7409 = vmatprep.subr.mxu0 0.0
        %7410 = vmatpush2.xpose.msra.mxu0 0.0
        %7411 = vmatprep.mubr.f32.mxu0 0.0
        %7412 = vmatmul.mubr.f32.gmra.mxu0 %v7342
        %v7413 = vpop.f32.mrf.mxu0
        %v7414 = vadd.f32 0.0, %v7413
        %v7415 = vpop.f32.mrf.mxu0
        %7416 = vdwg.mxu0
        %v7418 = vsel %vm5020, %v3745, 0
        %v7421 = vsel %vm5020, %v4877, 0
        %7423 = vmatprep.subr.mxu0 0.0
        %7424 = vmatpush1.xpose.msra.mxu0 0.0
        %7425 = vmatprep.subr.mxu0 0.0
        %7426 = vmatpush1.xpose.msra.mxu0 0.0
        %7427 = vmatprep.subr.mxu0 0.0
        %7428 = vmatpush1.xpose.msra.mxu0 0.0
        %7429 = vmatprep.subr.mxu0 0.0
        %7430 = vmatpush1.xpose.msra.mxu0 0.0
        %7431 = vmatprep.subr.mxu0 0.0
        %7432 = vmatpush1.xpose.msra.mxu0 0.0
        %7433 = vmatprep.subr.mxu0 0.0
        %7434 = vmatpush1.xpose.msra.mxu0 0.0
        %7435 = vmatprep.subr.mxu0 0.0
        %7436 = vmatpush1.xpose.msra.mxu0 0.0
        %7437 = vmatprep.subr.mxu0 0.0
        %7438 = vmatpush1.xpose.msra.mxu0 0.0
        %7439 = vmatprep.subr.mxu0 0.0
        %7440 = vmatpush1.xpose.msra.mxu0 0.0
        %7441 = vmatprep.subr.mxu0 0.0
        %7442 = vmatpush1.xpose.msra.mxu0 0.0
        %7443 = vmatprep.subr.mxu0 0.0
        %7444 = vmatpush1.xpose.msra.mxu0 0.0
        %7445 = vmatprep.subr.mxu0 0.0
        %7446 = vmatpush1.xpose.msra.mxu0 0.0
        %7447 = vmatprep.subr.mxu0 0.0
        %7448 = vmatpush1.xpose.msra.mxu0 0.0
        %7449 = vmatprep.subr.mxu0 0.0
        %7450 = vmatpush1.xpose.msra.mxu0 0.0
        %7451 = vmatprep.subr.mxu0 0.0
        %7452 = vmatpush1.xpose.msra.mxu0 0.0
        %7453 = vmatprep.subr.mxu0 0.0
        %7454 = vmatpush1.xpose.msra.mxu0 %v7421
        %7455 = vmatprep.subr.mxu0 0.0
        %7456 = vmatpush2.xpose.msra.mxu0 0.0
        %7457 = vmatprep.subr.mxu0 0.0
        %7458 = vmatpush2.xpose.msra.mxu0 0.0
        %7459 = vmatprep.subr.mxu0 0.0
        %7460 = vmatpush2.xpose.msra.mxu0 0.0
        %7461 = vmatprep.subr.mxu0 0.0
        %7462 = vmatpush2.xpose.msra.mxu0 0.0
        %7463 = vmatprep.subr.mxu0 0.0
        %7464 = vmatpush2.xpose.msra.mxu0 0.0
        %7465 = vmatprep.subr.mxu0 0.0
        %7466 = vmatpush2.xpose.msra.mxu0 0.0
        %7467 = vmatprep.subr.mxu0 0.0
        %7468 = vmatpush2.xpose.msra.mxu0 0.0
        %7469 = vmatprep.subr.mxu0 0.0
        %7470 = vmatpush2.xpose.msra.mxu0 0.0
        %7471 = vmatprep.subr.mxu0 0.0
        %7472 = vmatpush2.xpose.msra.mxu0 0.0
        %7473 = vmatprep.subr.mxu0 0.0
        %7474 = vmatpush2.xpose.msra.mxu0 0.0
        %7475 = vmatprep.subr.mxu0 0.0
        %7476 = vmatpush2.xpose.msra.mxu0 0.0
        %7477 = vmatprep.subr.mxu0 0.0
        %7478 = vmatpush2.xpose.msra.mxu0 0.0
        %7479 = vmatprep.subr.mxu0 0.0
        %7480 = vmatpush2.xpose.msra.mxu0 0.0
        %7481 = vmatprep.subr.mxu0 0.0
        %7482 = vmatpush2.xpose.msra.mxu0 0.0
        %7483 = vmatprep.subr.mxu0 0.0
        %7484 = vmatpush2.xpose.msra.mxu0 0.0
        %7485 = vmatprep.subr.mxu0 0.0
        %7486 = vmatpush2.xpose.msra.mxu0 0.0
        %7487 = vmatprep.mubr.f32.mxu0 0.0
        %7488 = vmatmul.mubr.f32.gmra.mxu0 %v7418
        %v7489 = vpop.f32.mrf.mxu0
        %v7490 = vadd.f32 0.0, %v7489
        %v7491 = vpop.f32.mrf.mxu0
        %7492 = vdwg.mxu0
        %v7494 = vsel %vm5020, %v3815, 0
        %v7497 = vsel %vm5020, %v4947, 0
        %7499 = vmatprep.subr.mxu0 0.0
        %7500 = vmatpush1.xpose.msra.mxu0 0.0
        %7501 = vmatprep.subr.mxu0 0.0
        %7502 = vmatpush1.xpose.msra.mxu0 0.0
        %7503 = vmatprep.subr.mxu0 0.0
        %7504 = vmatpush1.xpose.msra.mxu0 0.0
        %7505 = vmatprep.subr.mxu0 0.0
        %7506 = vmatpush1.xpose.msra.mxu0 0.0
        %7507 = vmatprep.subr.mxu0 0.0
        %7508 = vmatpush1.xpose.msra.mxu0 0.0
        %7509 = vmatprep.subr.mxu0 0.0
        %7510 = vmatpush1.xpose.msra.mxu0 0.0
        %7511 = vmatprep.subr.mxu0 0.0
        %7512 = vmatpush1.xpose.msra.mxu0 0.0
        %7513 = vmatprep.subr.mxu0 0.0
        %7514 = vmatpush1.xpose.msra.mxu0 0.0
        %7515 = vmatprep.subr.mxu0 0.0
        %7516 = vmatpush1.xpose.msra.mxu0 0.0
        %7517 = vmatprep.subr.mxu0 0.0
        %7518 = vmatpush1.xpose.msra.mxu0 0.0
        %7519 = vmatprep.subr.mxu0 0.0
        %7520 = vmatpush1.xpose.msra.mxu0 0.0
        %7521 = vmatprep.subr.mxu0 0.0
        %7522 = vmatpush1.xpose.msra.mxu0 0.0
        %7523 = vmatprep.subr.mxu0 0.0
        %7524 = vmatpush1.xpose.msra.mxu0 0.0
        %7525 = vmatprep.subr.mxu0 0.0
        %7526 = vmatpush1.xpose.msra.mxu0 0.0
        %7527 = vmatprep.subr.mxu0 0.0
        %7528 = vmatpush1.xpose.msra.mxu0 0.0
        %7529 = vmatprep.subr.mxu0 0.0
        %7530 = vmatpush1.xpose.msra.mxu0 %v7497
        %7531 = vmatprep.subr.mxu0 0.0
        %7532 = vmatpush2.xpose.msra.mxu0 0.0
        %7533 = vmatprep.subr.mxu0 0.0
        %7534 = vmatpush2.xpose.msra.mxu0 0.0
        %7535 = vmatprep.subr.mxu0 0.0
        %7536 = vmatpush2.xpose.msra.mxu0 0.0
        %7537 = vmatprep.subr.mxu0 0.0
        %7538 = vmatpush2.xpose.msra.mxu0 0.0
        %7539 = vmatprep.subr.mxu0 0.0
        %7540 = vmatpush2.xpose.msra.mxu0 0.0
        %7541 = vmatprep.subr.mxu0 0.0
        %7542 = vmatpush2.xpose.msra.mxu0 0.0
        %7543 = vmatprep.subr.mxu0 0.0
        %7544 = vmatpush2.xpose.msra.mxu0 0.0
        %7545 = vmatprep.subr.mxu0 0.0
        %7546 = vmatpush2.xpose.msra.mxu0 0.0
        %7547 = vmatprep.subr.mxu0 0.0
        %7548 = vmatpush2.xpose.msra.mxu0 0.0
        %7549 = vmatprep.subr.mxu0 0.0
        %7550 = vmatpush2.xpose.msra.mxu0 0.0
        %7551 = vmatprep.subr.mxu0 0.0
        %7552 = vmatpush2.xpose.msra.mxu0 0.0
        %7553 = vmatprep.subr.mxu0 0.0
        %7554 = vmatpush2.xpose.msra.mxu0 0.0
        %7555 = vmatprep.subr.mxu0 0.0
        %7556 = vmatpush2.xpose.msra.mxu0 0.0
        %7557 = vmatprep.subr.mxu0 0.0
        %7558 = vmatpush2.xpose.msra.mxu0 0.0
        %7559 = vmatprep.subr.mxu0 0.0
        %7560 = vmatpush2.xpose.msra.mxu0 0.0
        %7561 = vmatprep.subr.mxu0 0.0
        %7562 = vmatpush2.xpose.msra.mxu0 0.0
        %7563 = vmatprep.mubr.f32.mxu0 0.0
        %7564 = vmatmul.mubr.f32.gmra.mxu0 %v7494
        %v7565 = vpop.f32.mrf.mxu0
        %v7566 = vadd.f32 0.0, %v7565
        %v7567 = vpop.f32.mrf.mxu0
        %7568 = vdwg.mxu0
        %v7570 = vsel %vm5020, %v3885, 0
        %v7573 = vsel %vm5020, %v5017, 0
        %7575 = vmatprep.subr.mxu0 0.0
        %7576 = vmatpush1.xpose.msra.mxu0 0.0
        %7577 = vmatprep.subr.mxu0 0.0
        %7578 = vmatpush1.xpose.msra.mxu0 0.0
        %7579 = vmatprep.subr.mxu0 0.0
        %7580 = vmatpush1.xpose.msra.mxu0 0.0
        %7581 = vmatprep.subr.mxu0 0.0
        %7582 = vmatpush1.xpose.msra.mxu0 0.0
        %7583 = vmatprep.subr.mxu0 0.0
        %7584 = vmatpush1.xpose.msra.mxu0 0.0
        %7585 = vmatprep.subr.mxu0 0.0
        %7586 = vmatpush1.xpose.msra.mxu0 0.0
        %7587 = vmatprep.subr.mxu0 0.0
        %7588 = vmatpush1.xpose.msra.mxu0 0.0
        %7589 = vmatprep.subr.mxu0 0.0
        %7590 = vmatpush1.xpose.msra.mxu0 0.0
        %7591 = vmatprep.subr.mxu0 0.0
        %7592 = vmatpush1.xpose.msra.mxu0 0.0
        %7593 = vmatprep.subr.mxu0 0.0
        %7594 = vmatpush1.xpose.msra.mxu0 0.0
        %7595 = vmatprep.subr.mxu0 0.0
        %7596 = vmatpush1.xpose.msra.mxu0 0.0
        %7597 = vmatprep.subr.mxu0 0.0
        %7598 = vmatpush1.xpose.msra.mxu0 0.0
        %7599 = vmatprep.subr.mxu0 0.0
        %7600 = vmatpush1.xpose.msra.mxu0 0.0
        %7601 = vmatprep.subr.mxu0 0.0
        %7602 = vmatpush1.xpose.msra.mxu0 0.0
        %7603 = vmatprep.subr.mxu0 0.0
        %7604 = vmatpush1.xpose.msra.mxu0 0.0
        %7605 = vmatprep.subr.mxu0 0.0
        %7606 = vmatpush1.xpose.msra.mxu0 %v7573
        %7607 = vmatprep.subr.mxu0 0.0
        %7608 = vmatpush2.xpose.msra.mxu0 0.0
        %7609 = vmatprep.subr.mxu0 0.0
        %7610 = vmatpush2.xpose.msra.mxu0 0.0
        %7611 = vmatprep.subr.mxu0 0.0
        %7612 = vmatpush2.xpose.msra.mxu0 0.0
        %7613 = vmatprep.subr.mxu0 0.0
        %7614 = vmatpush2.xpose.msra.mxu0 0.0
        %7615 = vmatprep.subr.mxu0 0.0
        %7616 = vmatpush2.xpose.msra.mxu0 0.0
        %7617 = vmatprep.subr.mxu0 0.0
        %7618 = vmatpush2.xpose.msra.mxu0 0.0
        %7619 = vmatprep.subr.mxu0 0.0
        %7620 = vmatpush2.xpose.msra.mxu0 0.0
        %7621 = vmatprep.subr.mxu0 0.0
        %7622 = vmatpush2.xpose.msra.mxu0 0.0
        %7623 = vmatprep.subr.mxu0 0.0
        %7624 = vmatpush2.xpose.msra.mxu0 0.0
        %7625 = vmatprep.subr.mxu0 0.0
        %7626 = vmatpush2.xpose.msra.mxu0 0.0
        %7627 = vmatprep.subr.mxu0 0.0
        %7628 = vmatpush2.xpose.msra.mxu0 0.0
        %7629 = vmatprep.subr.mxu0 0.0
        %7630 = vmatpush2.xpose.msra.mxu0 0.0
        %7631 = vmatprep.subr.mxu0 0.0
        %7632 = vmatpush2.xpose.msra.mxu0 0.0
        %7633 = vmatprep.subr.mxu0 0.0
        %7634 = vmatpush2.xpose.msra.mxu0 0.0
        %7635 = vmatprep.subr.mxu0 0.0
        %7636 = vmatpush2.xpose.msra.mxu0 0.0
        %7637 = vmatprep.subr.mxu0 0.0
        %7638 = vmatpush2.xpose.msra.mxu0 0.0
        %7639 = vmatprep.mubr.f32.mxu0 0.0
        %7640 = vmatmul.mubr.f32.gmra.mxu0 %v7570
        %v7641 = vpop.f32.mrf.mxu0
        %v7642 = vadd.f32 0.0, %v7641
        %v7643 = vpop.f32.mrf.mxu0
        %7644 = vdwg.mxu0
        %v7645 = vmul.f32 %v6502, 0.35355338
        %v7646 = vmul.f32 %v6578, 0.35355338
        %v7647 = vmul.f32 %v6654, 0.35355338
        %v7648 = vmul.f32 %v6730, 0.35355338
        %v7649 = vmul.f32 %v6806, 0.35355338
        %v7650 = vmul.f32 %v6882, 0.35355338
        %v7651 = vmul.f32 %v6958, 0.35355338
        %v7652 = vmul.f32 %v7034, 0.35355338
        %v7653 = vmul.f32 %v7110, 0.35355338
        %v7654 = vmul.f32 %v7186, 0.35355338
        %v7655 = vmul.f32 %v7262, 0.35355338
        %v7656 = vmul.f32 %v7338, 0.35355338
        %v7657 = vmul.f32 %v7414, 0.35355338
        %v7658 = vmul.f32 %v7490, 0.35355338
        %v7659 = vmul.f32 %v7566, 0.35355338
        %v7660 = vmul.f32 %v7642, 0.35355338
        %v7661 = vsel %vm5020, %v7645, -inf
        %7662 = vmax.xlane.f32.xlu0 %v7661
        %v7663 = vpop.xlane.xlu0 %7662
        %v7664 = vsel %vm5020, %v7646, -inf
        %7665 = vmax.xlane.f32.xlu0 %v7664
        %v7666 = vpop.xlane.xlu0 %7665
        %v7667 = vsel %vm5020, %v7647, -inf
        %7668 = vmax.xlane.f32.xlu0 %v7667
        %v7669 = vpop.xlane.xlu0 %7668
        %v7670 = vsel %vm5020, %v7648, -inf
        %7671 = vmax.xlane.f32.xlu0 %v7670
        %v7672 = vpop.xlane.xlu0 %7671
        %v7673 = vsel %vm5020, %v7649, -inf
        %7674 = vmax.xlane.f32.xlu0 %v7673
        %v7675 = vpop.xlane.xlu0 %7674
        %v7676 = vsel %vm5020, %v7650, -inf
        %7677 = vmax.xlane.f32.xlu0 %v7676
        %v7678 = vpop.xlane.xlu0 %7677
        %v7679 = vsel %vm5020, %v7651, -inf
        %7680 = vmax.xlane.f32.xlu0 %v7679
        %v7681 = vpop.xlane.xlu0 %7680
        %v7682 = vsel %vm5020, %v7652, -inf
        %7683 = vmax.xlane.f32.xlu0 %v7682
        %v7684 = vpop.xlane.xlu0 %7683
        %v7685 = vsel %vm5020, %v7653, -inf
        %7686 = vmax.xlane.f32.xlu0 %v7685
        %v7687 = vpop.xlane.xlu0 %7686
        %v7688 = vsel %vm5020, %v7654, -inf
        %7689 = vmax.xlane.f32.xlu0 %v7688
        %v7690 = vpop.xlane.xlu0 %7689
        %v7691 = vsel %vm5020, %v7655, -inf
        %7692 = vmax.xlane.f32.xlu0 %v7691
        %v7693 = vpop.xlane.xlu0 %7692
        %v7694 = vsel %vm5020, %v7656, -inf
        %7695 = vmax.xlane.f32.xlu0 %v7694
        %v7696 = vpop.xlane.xlu0 %7695
        %v7697 = vsel %vm5020, %v7657, -inf
        %7698 = vmax.xlane.f32.xlu0 %v7697
        %v7699 = vpop.xlane.xlu0 %7698
        %v7700 = vsel %vm5020, %v7658, -inf
        %7701 = vmax.xlane.f32.xlu0 %v7700
        %v7702 = vpop.xlane.xlu0 %7701
        %v7703 = vsel %vm5020, %v7659, -inf
        %7704 = vmax.xlane.f32.xlu0 %v7703
        %v7705 = vpop.xlane.xlu0 %7704
        %v7706 = vsel %vm5020, %v7660, -inf
        %7707 = vmax.xlane.f32.xlu0 %v7706
        %v7708 = vpop.xlane.xlu0 %7707
        %v7709 = vsub.f32 %v7645, %v7663
        %v7710 = vsub.f32 %v7646, %v7666
        %v7711 = vsub.f32 %v7647, %v7669
        %v7712 = vsub.f32 %v7648, %v7672
        %v7713 = vsub.f32 %v7649, %v7675
        %v7714 = vsub.f32 %v7650, %v7678
        %v7715 = vsub.f32 %v7651, %v7681
        %v7716 = vsub.f32 %v7652, %v7684
        %v7717 = vsub.f32 %v7653, %v7687
        %v7718 = vsub.f32 %v7654, %v7690
        %v7719 = vsub.f32 %v7655, %v7693
        %v7720 = vsub.f32 %v7656, %v7696
        %v7721 = vsub.f32 %v7657, %v7699
        %v7722 = vsub.f32 %v7658, %v7702
        %v7723 = vsub.f32 %v7659, %v7705
        %v7724 = vsub.f32 %v7660, %v7708
        %v7725 = vmul.f32 %v7709, 1.442695
        %v7726 = vpow.pop %v7725
        %v7727 = vmul.f32 %v7710, 1.442695
        %v7728 = vpow.pop %v7727
        %v7729 = vmul.f32 %v7711, 1.442695
        %v7730 = vpow.pop %v7729
        %v7731 = vmul.f32 %v7712, 1.442695
        %v7732 = vpow.pop %v7731
        %v7733 = vmul.f32 %v7713, 1.442695
        %v7734 = vpow.pop %v7733
        %v7735 = vmul.f32 %v7714, 1.442695
        %v7736 = vpow.pop %v7735
        %v7737 = vmul.f32 %v7715, 1.442695
        %v7738 = vpow.pop %v7737
        %v7739 = vmul.f32 %v7716, 1.442695
        %v7740 = vpow.pop %v7739
        %v7741 = vmul.f32 %v7717, 1.442695
        %v7742 = vpow.pop %v7741
        %v7743 = vmul.f32 %v7718, 1.442695
        %v7744 = vpow.pop %v7743
        %v7745 = vmul.f32 %v7719, 1.442695
        %v7746 = vpow.pop %v7745
        %v7747 = vmul.f32 %v7720, 1.442695
        %v7748 = vpow.pop %v7747
        %v7749 = vmul.f32 %v7721, 1.442695
        %v7750 = vpow.pop %v7749
        %v7751 = vmul.f32 %v7722, 1.442695
        %v7752 = vpow.pop %v7751
        %v7753 = vmul.f32 %v7723, 1.442695
        %v7754 = vpow.pop %v7753
        %v7755 = vmul.f32 %v7724, 1.442695
        %v7756 = vpow.pop %v7755
        %v7757 = vsel %vm5020, %v7726, 0.0
        %7758 = vadd.xlane.f32.xlu0 %v7757
        %v7759 = vpop.xlane.xlu0 %7758
        %v7760 = vsel %vm5020, %v7728, 0.0
        %7761 = vadd.xlane.f32.xlu0 %v7760
        %v7762 = vpop.xlane.xlu0 %7761
        %v7763 = vsel %vm5020, %v7730, 0.0
        %7764 = vadd.xlane.f32.xlu0 %v7763
        %v7765 = vpop.xlane.xlu0 %7764
        %v7766 = vsel %vm5020, %v7732, 0.0
        %7767 = vadd.xlane.f32.xlu0 %v7766
        %v7768 = vpop.xlane.xlu0 %7767
        %v7769 = vsel %vm5020, %v7734, 0.0
        %7770 = vadd.xlane.f32.xlu0 %v7769
        %v7771 = vpop.xlane.xlu0 %7770
        %v7772 = vsel %vm5020, %v7736, 0.0
        %7773 = vadd.xlane.f32.xlu0 %v7772
        %v7774 = vpop.xlane.xlu0 %7773
        %v7775 = vsel %vm5020, %v7738, 0.0
        %7776 = vadd.xlane.f32.xlu0 %v7775
        %v7777 = vpop.xlane.xlu0 %7776
        %v7778 = vsel %vm5020, %v7740, 0.0
        %7779 = vadd.xlane.f32.xlu0 %v7778
        %v7780 = vpop.xlane.xlu0 %7779
        %v7781 = vsel %vm5020, %v7742, 0.0
        %7782 = vadd.xlane.f32.xlu0 %v7781
        %v7783 = vpop.xlane.xlu0 %7782
        %v7784 = vsel %vm5020, %v7744, 0.0
        %7785 = vadd.xlane.f32.xlu0 %v7784
        %v7786 = vpop.xlane.xlu0 %7785
        %v7787 = vsel %vm5020, %v7746, 0.0
        %7788 = vadd.xlane.f32.xlu0 %v7787
        %v7789 = vpop.xlane.xlu0 %7788
        %v7790 = vsel %vm5020, %v7748, 0.0
        %7791 = vadd.xlane.f32.xlu0 %v7790
        %v7792 = vpop.xlane.xlu0 %7791
        %v7793 = vsel %vm5020, %v7750, 0.0
        %7794 = vadd.xlane.f32.xlu0 %v7793
        %v7795 = vpop.xlane.xlu0 %7794
        %v7796 = vsel %vm5020, %v7752, 0.0
        %7797 = vadd.xlane.f32.xlu0 %v7796
        %v7798 = vpop.xlane.xlu0 %7797
        %v7799 = vsel %vm5020, %v7754, 0.0
        %7800 = vadd.xlane.f32.xlu0 %v7799
        %v7801 = vpop.xlane.xlu0 %7800
        %v7802 = vsel %vm5020, %v7756, 0.0
        %7803 = vadd.xlane.f32.xlu0 %v7802
        %v7804 = vpop.xlane.xlu0 %7803
        %v7805 = vrcp.pop %v7759
        %v7806 = vrcp.pop %v7762
        %v7807 = vrcp.pop %v7765
        %v7808 = vrcp.pop %v7768
        %v7809 = vrcp.pop %v7771
        %v7810 = vrcp.pop %v7774
        %v7811 = vrcp.pop %v7777
        %v7812 = vrcp.pop %v7780
        %v7813 = vrcp.pop %v7783
        %v7814 = vrcp.pop %v7786
        %v7815 = vrcp.pop %v7789
        %v7816 = vrcp.pop %v7792
        %v7817 = vrcp.pop %v7795
        %v7818 = vrcp.pop %v7798
        %v7819 = vrcp.pop %v7801
        %v7820 = vrcp.pop %v7804
        %v7821 = vmul.f32 %v7726, %v7805
        %v7822 = vmul.f32 %v7728, %v7806
        %v7823 = vmul.f32 %v7730, %v7807
        %v7824 = vmul.f32 %v7732, %v7808
        %v7825 = vmul.f32 %v7734, %v7809
        %v7826 = vmul.f32 %v7736, %v7810
        %v7827 = vmul.f32 %v7738, %v7811
        %v7828 = vmul.f32 %v7740, %v7812
        %v7829 = vmul.f32 %v7742, %v7813
        %v7830 = vmul.f32 %v7744, %v7814
        %v7831 = vmul.f32 %v7746, %v7815
        %v7832 = vmul.f32 %v7748, %v7816
        %v7833 = vmul.f32 %v7750, %v7817
        %v7834 = vmul.f32 %v7752, %v7818
        %v7835 = vmul.f32 %v7754, %v7819
        %v7836 = vmul.f32 %v7756, %v7820
        %v7838 = vsel %vm5020, %v6413, 0
        %7840 = vmatprep.subr.mxu0 0.0
        %7841 = vmatpush1.xpose.msra.mxu0 0.0
        %7842 = vmatprep.subr.mxu0 0.0
        %7843 = vmatpush1.xpose.msra.mxu0 0.0
        %7844 = vmatprep.subr.mxu0 0.0
        %7845 = vmatpush1.xpose.msra.mxu0 0.0
        %7846 = vmatprep.subr.mxu0 0.0
        %7847 = vmatpush1.xpose.msra.mxu0 0.0
        %7848 = vmatprep.subr.mxu0 0.0
        %7849 = vmatpush1.xpose.msra.mxu0 0.0
        %7850 = vmatprep.subr.mxu0 0.0
        %7851 = vmatpush1.xpose.msra.mxu0 0.0
        %7852 = vmatprep.subr.mxu0 0.0
        %7853 = vmatpush1.xpose.msra.mxu0 0.0
        %7854 = vmatprep.subr.mxu0 0.0
        %7855 = vmatpush1.xpose.msra.mxu0 0.0
        %7856 = vmatprep.subr.mxu0 0.0
        %7857 = vmatpush1.xpose.msra.mxu0 0.0
        %7858 = vmatprep.subr.mxu0 0.0
        %7859 = vmatpush1.xpose.msra.mxu0 0.0
        %7860 = vmatprep.subr.mxu0 0.0
        %7861 = vmatpush1.xpose.msra.mxu0 0.0
        %7862 = vmatprep.subr.mxu0 0.0
        %7863 = vmatpush1.xpose.msra.mxu0 0.0
        %7864 = vmatprep.subr.mxu0 0.0
        %7865 = vmatpush1.xpose.msra.mxu0 0.0
        %7866 = vmatprep.subr.mxu0 0.0
        %7867 = vmatpush1.xpose.msra.mxu0 0.0
        %7868 = vmatprep.subr.mxu0 0.0
        %7869 = vmatpush1.xpose.msra.mxu0 0.0
        %7870 = vmatprep.subr.mxu0 0.0
        %7871 = vmatpush1.xpose.msra.mxu0 %v6430
        %7872 = vmatprep.subr.mxu0 0.0
        %7873 = vmatpush2.xpose.msra.mxu0 0.0
        %7874 = vmatprep.subr.mxu0 0.0
        %7875 = vmatpush2.xpose.msra.mxu0 0.0
        %7876 = vmatprep.subr.mxu0 0.0
        %7877 = vmatpush2.xpose.msra.mxu0 0.0
        %7878 = vmatprep.subr.mxu0 0.0
        %7879 = vmatpush2.xpose.msra.mxu0 0.0
        %7880 = vmatprep.subr.mxu0 0.0
        %7881 = vmatpush2.xpose.msra.mxu0 0.0
        %7882 = vmatprep.subr.mxu0 0.0
        %7883 = vmatpush2.xpose.msra.mxu0 0.0
        %7884 = vmatprep.subr.mxu0 0.0
        %7885 = vmatpush2.xpose.msra.mxu0 0.0
        %7886 = vmatprep.subr.mxu0 0.0
        %7887 = vmatpush2.xpose.msra.mxu0 0.0
        %7888 = vmatprep.subr.mxu0 0.0
        %7889 = vmatpush2.xpose.msra.mxu0 0.0
        %7890 = vmatprep.subr.mxu0 0.0
        %7891 = vmatpush2.xpose.msra.mxu0 0.0
        %7892 = vmatprep.subr.mxu0 0.0
        %7893 = vmatpush2.xpose.msra.mxu0 0.0
        %7894 = vmatprep.subr.mxu0 0.0
        %7895 = vmatpush2.xpose.msra.mxu0 0.0
        %7896 = vmatprep.subr.mxu0 0.0
        %7897 = vmatpush2.xpose.msra.mxu0 0.0
        %7898 = vmatprep.subr.mxu0 0.0
        %7899 = vmatpush2.xpose.msra.mxu0 0.0
        %7900 = vmatprep.subr.mxu0 0.0
        %7901 = vmatpush2.xpose.msra.mxu0 0.0
        %7902 = vmatprep.subr.mxu0 0.0
        %7903 = vmatpush2.xpose.msra.mxu0 0.0
        %7904 = vmatprep.mubr.f32.mxu0 0.0
        %7905 = vmatmul.mubr.f32.gmra.mxu0 %v7838
        %v7906 = vpop.f32.mrf.mxu0
        %v7907 = vadd.f32 0.0, %v7906
        %v7908 = vpop.f32.mrf.mxu0
        %7909 = vdwg.mxu0
        %v7911 = vsel %vm5020, %v6414, 0
        %7913 = vmatprep.subr.mxu0 0.0
        %7914 = vmatpush1.xpose.msra.mxu0 0.0
        %7915 = vmatprep.subr.mxu0 0.0
        %7916 = vmatpush1.xpose.msra.mxu0 0.0
        %7917 = vmatprep.subr.mxu0 0.0
        %7918 = vmatpush1.xpose.msra.mxu0 0.0
        %7919 = vmatprep.subr.mxu0 0.0
        %7920 = vmatpush1.xpose.msra.mxu0 0.0
        %7921 = vmatprep.subr.mxu0 0.0
        %7922 = vmatpush1.xpose.msra.mxu0 0.0
        %7923 = vmatprep.subr.mxu0 0.0
        %7924 = vmatpush1.xpose.msra.mxu0 0.0
        %7925 = vmatprep.subr.mxu0 0.0
        %7926 = vmatpush1.xpose.msra.mxu0 0.0
        %7927 = vmatprep.subr.mxu0 0.0
        %7928 = vmatpush1.xpose.msra.mxu0 0.0
        %7929 = vmatprep.subr.mxu0 0.0
        %7930 = vmatpush1.xpose.msra.mxu0 0.0
        %7931 = vmatprep.subr.mxu0 0.0
        %7932 = vmatpush1.xpose.msra.mxu0 0.0
        %7933 = vmatprep.subr.mxu0 0.0
        %7934 = vmatpush1.xpose.msra.mxu0 0.0
        %7935 = vmatprep.subr.mxu0 0.0
        %7936 = vmatpush1.xpose.msra.mxu0 0.0
        %7937 = vmatprep.subr.mxu0 0.0
        %7938 = vmatpush1.xpose.msra.mxu0 0.0
        %7939 = vmatprep.subr.mxu0 0.0
        %7940 = vmatpush1.xpose.msra.mxu0 0.0
        %7941 = vmatprep.subr.mxu0 0.0
        %7942 = vmatpush1.xpose.msra.mxu0 0.0
        %7943 = vmatprep.subr.mxu0 0.0
        %7944 = vmatpush1.xpose.msra.mxu0 %v6506
        %7945 = vmatprep.subr.mxu0 0.0
        %7946 = vmatpush2.xpose.msra.mxu0 0.0
        %7947 = vmatprep.subr.mxu0 0.0
        %7948 = vmatpush2.xpose.msra.mxu0 0.0
        %7949 = vmatprep.subr.mxu0 0.0
        %7950 = vmatpush2.xpose.msra.mxu0 0.0
        %7951 = vmatprep.subr.mxu0 0.0
        %7952 = vmatpush2.xpose.msra.mxu0 0.0
        %7953 = vmatprep.subr.mxu0 0.0
        %7954 = vmatpush2.xpose.msra.mxu0 0.0
        %7955 = vmatprep.subr.mxu0 0.0
        %7956 = vmatpush2.xpose.msra.mxu0 0.0
        %7957 = vmatprep.subr.mxu0 0.0
        %7958 = vmatpush2.xpose.msra.mxu0 0.0
        %7959 = vmatprep.subr.mxu0 0.0
        %7960 = vmatpush2.xpose.msra.mxu0 0.0
        %7961 = vmatprep.subr.mxu0 0.0
        %7962 = vmatpush2.xpose.msra.mxu0 0.0
        %7963 = vmatprep.subr.mxu0 0.0
        %7964 = vmatpush2.xpose.msra.mxu0 0.0
        %7965 = vmatprep.subr.mxu0 0.0
        %7966 = vmatpush2.xpose.msra.mxu0 0.0
        %7967 = vmatprep.subr.mxu0 0.0
        %7968 = vmatpush2.xpose.msra.mxu0 0.0
        %7969 = vmatprep.subr.mxu0 0.0
        %7970 = vmatpush2.xpose.msra.mxu0 0.0
        %7971 = vmatprep.subr.mxu0 0.0
        %7972 = vmatpush2.xpose.msra.mxu0 0.0
        %7973 = vmatprep.subr.mxu0 0.0
        %7974 = vmatpush2.xpose.msra.mxu0 0.0
        %7975 = vmatprep.subr.mxu0 0.0
        %7976 = vmatpush2.xpose.msra.mxu0 0.0
        %7977 = vmatprep.mubr.f32.mxu0 0.0
        %7978 = vmatmul.mubr.f32.gmra.mxu0 %v7911
        %v7979 = vpop.f32.mrf.mxu0
        %v7980 = vadd.f32 0.0, %v7979
        %v7981 = vpop.f32.mrf.mxu0
        %7982 = vdwg.mxu0
        %v7984 = vsel %vm5020, %v6415, 0
        %7986 = vmatprep.subr.mxu0 0.0
        %7987 = vmatpush1.xpose.msra.mxu0 0.0
        %7988 = vmatprep.subr.mxu0 0.0
        %7989 = vmatpush1.xpose.msra.mxu0 0.0
        %7990 = vmatprep.subr.mxu0 0.0
        %7991 = vmatpush1.xpose.msra.mxu0 0.0
        %7992 = vmatprep.subr.mxu0 0.0
        %7993 = vmatpush1.xpose.msra.mxu0 0.0
        %7994 = vmatprep.subr.mxu0 0.0
        %7995 = vmatpush1.xpose.msra.mxu0 0.0
        %7996 = vmatprep.subr.mxu0 0.0
        %7997 = vmatpush1.xpose.msra.mxu0 0.0
        %7998 = vmatprep.subr.mxu0 0.0
        %7999 = vmatpush1.xpose.msra.mxu0 0.0
        %8000 = vmatprep.subr.mxu0 0.0
        %8001 = vmatpush1.xpose.msra.mxu0 0.0
        %8002 = vmatprep.subr.mxu0 0.0
        %8003 = vmatpush1.xpose.msra.mxu0 0.0
        %8004 = vmatprep.subr.mxu0 0.0
        %8005 = vmatpush1.xpose.msra.mxu0 0.0
        %8006 = vmatprep.subr.mxu0 0.0
        %8007 = vmatpush1.xpose.msra.mxu0 0.0
        %8008 = vmatprep.subr.mxu0 0.0
        %8009 = vmatpush1.xpose.msra.mxu0 0.0
        %8010 = vmatprep.subr.mxu0 0.0
        %8011 = vmatpush1.xpose.msra.mxu0 0.0
        %8012 = vmatprep.subr.mxu0 0.0
        %8013 = vmatpush1.xpose.msra.mxu0 0.0
        %8014 = vmatprep.subr.mxu0 0.0
        %8015 = vmatpush1.xpose.msra.mxu0 0.0
        %8016 = vmatprep.subr.mxu0 0.0
        %8017 = vmatpush1.xpose.msra.mxu0 %v6582
        %8018 = vmatprep.subr.mxu0 0.0
        %8019 = vmatpush2.xpose.msra.mxu0 0.0
        %8020 = vmatprep.subr.mxu0 0.0
        %8021 = vmatpush2.xpose.msra.mxu0 0.0
        %8022 = vmatprep.subr.mxu0 0.0
        %8023 = vmatpush2.xpose.msra.mxu0 0.0
        %8024 = vmatprep.subr.mxu0 0.0
        %8025 = vmatpush2.xpose.msra.mxu0 0.0
        %8026 = vmatprep.subr.mxu0 0.0
        %8027 = vmatpush2.xpose.msra.mxu0 0.0
        %8028 = vmatprep.subr.mxu0 0.0
        %8029 = vmatpush2.xpose.msra.mxu0 0.0
        %8030 = vmatprep.subr.mxu0 0.0
        %8031 = vmatpush2.xpose.msra.mxu0 0.0
        %8032 = vmatprep.subr.mxu0 0.0
        %8033 = vmatpush2.xpose.msra.mxu0 0.0
        %8034 = vmatprep.subr.mxu0 0.0
        %8035 = vmatpush2.xpose.msra.mxu0 0.0
        %8036 = vmatprep.subr.mxu0 0.0
        %8037 = vmatpush2.xpose.msra.mxu0 0.0
        %8038 = vmatprep.subr.mxu0 0.0
        %8039 = vmatpush2.xpose.msra.mxu0 0.0
        %8040 = vmatprep.subr.mxu0 0.0
        %8041 = vmatpush2.xpose.msra.mxu0 0.0
        %8042 = vmatprep.subr.mxu0 0.0
        %8043 = vmatpush2.xpose.msra.mxu0 0.0
        %8044 = vmatprep.subr.mxu0 0.0
        %8045 = vmatpush2.xpose.msra.mxu0 0.0
        %8046 = vmatprep.subr.mxu0 0.0
        %8047 = vmatpush2.xpose.msra.mxu0 0.0
        %8048 = vmatprep.subr.mxu0 0.0
        %8049 = vmatpush2.xpose.msra.mxu0 0.0
        %8050 = vmatprep.mubr.f32.mxu0 0.0
        %8051 = vmatmul.mubr.f32.gmra.mxu0 %v7984
        %v8052 = vpop.f32.mrf.mxu0
        %v8053 = vadd.f32 0.0, %v8052
        %v8054 = vpop.f32.mrf.mxu0
        %8055 = vdwg.mxu0
        %v8057 = vsel %vm5020, %v6416, 0
        %8059 = vmatprep.subr.mxu0 0.0
        %8060 = vmatpush1.xpose.msra.mxu0 0.0
        %8061 = vmatprep.subr.mxu0 0.0
        %8062 = vmatpush1.xpose.msra.mxu0 0.0
        %8063 = vmatprep.subr.mxu0 0.0
        %8064 = vmatpush1.xpose.msra.mxu0 0.0
        %8065 = vmatprep.subr.mxu0 0.0
        %8066 = vmatpush1.xpose.msra.mxu0 0.0
        %8067 = vmatprep.subr.mxu0 0.0
        %8068 = vmatpush1.xpose.msra.mxu0 0.0
        %8069 = vmatprep.subr.mxu0 0.0
        %8070 = vmatpush1.xpose.msra.mxu0 0.0
        %8071 = vmatprep.subr.mxu0 0.0
        %8072 = vmatpush1.xpose.msra.mxu0 0.0
        %8073 = vmatprep.subr.mxu0 0.0
        %8074 = vmatpush1.xpose.msra.mxu0 0.0
        %8075 = vmatprep.subr.mxu0 0.0
        %8076 = vmatpush1.xpose.msra.mxu0 0.0
        %8077 = vmatprep.subr.mxu0 0.0
        %8078 = vmatpush1.xpose.msra.mxu0 0.0
        %8079 = vmatprep.subr.mxu0 0.0
        %8080 = vmatpush1.xpose.msra.mxu0 0.0
        %8081 = vmatprep.subr.mxu0 0.0
        %8082 = vmatpush1.xpose.msra.mxu0 0.0
        %8083 = vmatprep.subr.mxu0 0.0
        %8084 = vmatpush1.xpose.msra.mxu0 0.0
        %8085 = vmatprep.subr.mxu0 0.0
        %8086 = vmatpush1.xpose.msra.mxu0 0.0
        %8087 = vmatprep.subr.mxu0 0.0
        %8088 = vmatpush1.xpose.msra.mxu0 0.0
        %8089 = vmatprep.subr.mxu0 0.0
        %8090 = vmatpush1.xpose.msra.mxu0 %v6658
        %8091 = vmatprep.subr.mxu0 0.0
        %8092 = vmatpush2.xpose.msra.mxu0 0.0
        %8093 = vmatprep.subr.mxu0 0.0
        %8094 = vmatpush2.xpose.msra.mxu0 0.0
        %8095 = vmatprep.subr.mxu0 0.0
        %8096 = vmatpush2.xpose.msra.mxu0 0.0
        %8097 = vmatprep.subr.mxu0 0.0
        %8098 = vmatpush2.xpose.msra.mxu0 0.0
        %8099 = vmatprep.subr.mxu0 0.0
        %8100 = vmatpush2.xpose.msra.mxu0 0.0
        %8101 = vmatprep.subr.mxu0 0.0
        %8102 = vmatpush2.xpose.msra.mxu0 0.0
        %8103 = vmatprep.subr.mxu0 0.0
        %8104 = vmatpush2.xpose.msra.mxu0 0.0
        %8105 = vmatprep.subr.mxu0 0.0
        %8106 = vmatpush2.xpose.msra.mxu0 0.0
        %8107 = vmatprep.subr.mxu0 0.0
        %8108 = vmatpush2.xpose.msra.mxu0 0.0
        %8109 = vmatprep.subr.mxu0 0.0
        %8110 = vmatpush2.xpose.msra.mxu0 0.0
        %8111 = vmatprep.subr.mxu0 0.0
        %8112 = vmatpush2.xpose.msra.mxu0 0.0
        %8113 = vmatprep.subr.mxu0 0.0
        %8114 = vmatpush2.xpose.msra.mxu0 0.0
        %8115 = vmatprep.subr.mxu0 0.0
        %8116 = vmatpush2.xpose.msra.mxu0 0.0
        %8117 = vmatprep.subr.mxu0 0.0
        %8118 = vmatpush2.xpose.msra.mxu0 0.0
        %8119 = vmatprep.subr.mxu0 0.0
        %8120 = vmatpush2.xpose.msra.mxu0 0.0
        %8121 = vmatprep.subr.mxu0 0.0
        %8122 = vmatpush2.xpose.msra.mxu0 0.0
        %8123 = vmatprep.mubr.f32.mxu0 0.0
        %8124 = vmatmul.mubr.f32.gmra.mxu0 %v8057
        %v8125 = vpop.f32.mrf.mxu0
        %v8126 = vadd.f32 0.0, %v8125
        %v8127 = vpop.f32.mrf.mxu0
        %8128 = vdwg.mxu0
        %v8130 = vsel %vm5020, %v6417, 0
        %8132 = vmatprep.subr.mxu0 0.0
        %8133 = vmatpush1.xpose.msra.mxu0 0.0
        %8134 = vmatprep.subr.mxu0 0.0
        %8135 = vmatpush1.xpose.msra.mxu0 0.0
        %8136 = vmatprep.subr.mxu0 0.0
        %8137 = vmatpush1.xpose.msra.mxu0 0.0
        %8138 = vmatprep.subr.mxu0 0.0
        %8139 = vmatpush1.xpose.msra.mxu0 0.0
        %8140 = vmatprep.subr.mxu0 0.0
        %8141 = vmatpush1.xpose.msra.mxu0 0.0
        %8142 = vmatprep.subr.mxu0 0.0
        %8143 = vmatpush1.xpose.msra.mxu0 0.0
        %8144 = vmatprep.subr.mxu0 0.0
        %8145 = vmatpush1.xpose.msra.mxu0 0.0
        %8146 = vmatprep.subr.mxu0 0.0
        %8147 = vmatpush1.xpose.msra.mxu0 0.0
        %8148 = vmatprep.subr.mxu0 0.0
        %8149 = vmatpush1.xpose.msra.mxu0 0.0
        %8150 = vmatprep.subr.mxu0 0.0
        %8151 = vmatpush1.xpose.msra.mxu0 0.0
        %8152 = vmatprep.subr.mxu0 0.0
        %8153 = vmatpush1.xpose.msra.mxu0 0.0
        %8154 = vmatprep.subr.mxu0 0.0
        %8155 = vmatpush1.xpose.msra.mxu0 0.0
        %8156 = vmatprep.subr.mxu0 0.0
        %8157 = vmatpush1.xpose.msra.mxu0 0.0
        %8158 = vmatprep.subr.mxu0 0.0
        %8159 = vmatpush1.xpose.msra.mxu0 0.0
        %8160 = vmatprep.subr.mxu0 0.0
        %8161 = vmatpush1.xpose.msra.mxu0 0.0
        %8162 = vmatprep.subr.mxu0 0.0
        %8163 = vmatpush1.xpose.msra.mxu0 %v6734
        %8164 = vmatprep.subr.mxu0 0.0
        %8165 = vmatpush2.xpose.msra.mxu0 0.0
        %8166 = vmatprep.subr.mxu0 0.0
        %8167 = vmatpush2.xpose.msra.mxu0 0.0
        %8168 = vmatprep.subr.mxu0 0.0
        %8169 = vmatpush2.xpose.msra.mxu0 0.0
        %8170 = vmatprep.subr.mxu0 0.0
        %8171 = vmatpush2.xpose.msra.mxu0 0.0
        %8172 = vmatprep.subr.mxu0 0.0
        %8173 = vmatpush2.xpose.msra.mxu0 0.0
        %8174 = vmatprep.subr.mxu0 0.0
        %8175 = vmatpush2.xpose.msra.mxu0 0.0
        %8176 = vmatprep.subr.mxu0 0.0
        %8177 = vmatpush2.xpose.msra.mxu0 0.0
        %8178 = vmatprep.subr.mxu0 0.0
        %8179 = vmatpush2.xpose.msra.mxu0 0.0
        %8180 = vmatprep.subr.mxu0 0.0
        %8181 = vmatpush2.xpose.msra.mxu0 0.0
        %8182 = vmatprep.subr.mxu0 0.0
        %8183 = vmatpush2.xpose.msra.mxu0 0.0
        %8184 = vmatprep.subr.mxu0 0.0
        %8185 = vmatpush2.xpose.msra.mxu0 0.0
        %8186 = vmatprep.subr.mxu0 0.0
        %8187 = vmatpush2.xpose.msra.mxu0 0.0
        %8188 = vmatprep.subr.mxu0 0.0
        %8189 = vmatpush2.xpose.msra.mxu0 0.0
        %8190 = vmatprep.subr.mxu0 0.0
        %8191 = vmatpush2.xpose.msra.mxu0 0.0
        %8192 = vmatprep.subr.mxu0 0.0
        %8193 = vmatpush2.xpose.msra.mxu0 0.0
        %8194 = vmatprep.subr.mxu0 0.0
        %8195 = vmatpush2.xpose.msra.mxu0 0.0
        %8196 = vmatprep.mubr.f32.mxu0 0.0
        %8197 = vmatmul.mubr.f32.gmra.mxu0 %v8130
        %v8198 = vpop.f32.mrf.mxu0
        %v8199 = vadd.f32 0.0, %v8198
        %v8200 = vpop.f32.mrf.mxu0
        %8201 = vdwg.mxu0
        %v8203 = vsel %vm5020, %v6418, 0
        %8205 = vmatprep.subr.mxu0 0.0
        %8206 = vmatpush1.xpose.msra.mxu0 0.0
        %8207 = vmatprep.subr.mxu0 0.0
        %8208 = vmatpush1.xpose.msra.mxu0 0.0
        %8209 = vmatprep.subr.mxu0 0.0
        %8210 = vmatpush1.xpose.msra.mxu0 0.0
        %8211 = vmatprep.subr.mxu0 0.0
        %8212 = vmatpush1.xpose.msra.mxu0 0.0
        %8213 = vmatprep.subr.mxu0 0.0
        %8214 = vmatpush1.xpose.msra.mxu0 0.0
        %8215 = vmatprep.subr.mxu0 0.0
        %8216 = vmatpush1.xpose.msra.mxu0 0.0
        %8217 = vmatprep.subr.mxu0 0.0
        %8218 = vmatpush1.xpose.msra.mxu0 0.0
        %8219 = vmatprep.subr.mxu0 0.0
        %8220 = vmatpush1.xpose.msra.mxu0 0.0
        %8221 = vmatprep.subr.mxu0 0.0
        %8222 = vmatpush1.xpose.msra.mxu0 0.0
        %8223 = vmatprep.subr.mxu0 0.0
        %8224 = vmatpush1.xpose.msra.mxu0 0.0
        %8225 = vmatprep.subr.mxu0 0.0
        %8226 = vmatpush1.xpose.msra.mxu0 0.0
        %8227 = vmatprep.subr.mxu0 0.0
        %8228 = vmatpush1.xpose.msra.mxu0 0.0
        %8229 = vmatprep.subr.mxu0 0.0
        %8230 = vmatpush1.xpose.msra.mxu0 0.0
        %8231 = vmatprep.subr.mxu0 0.0
        %8232 = vmatpush1.xpose.msra.mxu0 0.0
        %8233 = vmatprep.subr.mxu0 0.0
        %8234 = vmatpush1.xpose.msra.mxu0 0.0
        %8235 = vmatprep.subr.mxu0 0.0
        %8236 = vmatpush1.xpose.msra.mxu0 %v6810
        %8237 = vmatprep.subr.mxu0 0.0
        %8238 = vmatpush2.xpose.msra.mxu0 0.0
        %8239 = vmatprep.subr.mxu0 0.0
        %8240 = vmatpush2.xpose.msra.mxu0 0.0
        %8241 = vmatprep.subr.mxu0 0.0
        %8242 = vmatpush2.xpose.msra.mxu0 0.0
        %8243 = vmatprep.subr.mxu0 0.0
        %8244 = vmatpush2.xpose.msra.mxu0 0.0
        %8245 = vmatprep.subr.mxu0 0.0
        %8246 = vmatpush2.xpose.msra.mxu0 0.0
        %8247 = vmatprep.subr.mxu0 0.0
        %8248 = vmatpush2.xpose.msra.mxu0 0.0
        %8249 = vmatprep.subr.mxu0 0.0
        %8250 = vmatpush2.xpose.msra.mxu0 0.0
        %8251 = vmatprep.subr.mxu0 0.0
        %8252 = vmatpush2.xpose.msra.mxu0 0.0
        %8253 = vmatprep.subr.mxu0 0.0
        %8254 = vmatpush2.xpose.msra.mxu0 0.0
        %8255 = vmatprep.subr.mxu0 0.0
        %8256 = vmatpush2.xpose.msra.mxu0 0.0
        %8257 = vmatprep.subr.mxu0 0.0
        %8258 = vmatpush2.xpose.msra.mxu0 0.0
        %8259 = vmatprep.subr.mxu0 0.0
        %8260 = vmatpush2.xpose.msra.mxu0 0.0
        %8261 = vmatprep.subr.mxu0 0.0
        %8262 = vmatpush2.xpose.msra.mxu0 0.0
        %8263 = vmatprep.subr.mxu0 0.0
        %8264 = vmatpush2.xpose.msra.mxu0 0.0
        %8265 = vmatprep.subr.mxu0 0.0
        %8266 = vmatpush2.xpose.msra.mxu0 0.0
        %8267 = vmatprep.subr.mxu0 0.0
        %8268 = vmatpush2.xpose.msra.mxu0 0.0
        %8269 = vmatprep.mubr.f32.mxu0 0.0
        %8270 = vmatmul.mubr.f32.gmra.mxu0 %v8203
        %v8271 = vpop.f32.mrf.mxu0
        %v8272 = vadd.f32 0.0, %v8271
        %v8273 = vpop.f32.mrf.mxu0
        %8274 = vdwg.mxu0
        %v8276 = vsel %vm5020, %v6419, 0
        %8278 = vmatprep.subr.mxu0 0.0
        %8279 = vmatpush1.xpose.msra.mxu0 0.0
        %8280 = vmatprep.subr.mxu0 0.0
        %8281 = vmatpush1.xpose.msra.mxu0 0.0
        %8282 = vmatprep.subr.mxu0 0.0
        %8283 = vmatpush1.xpose.msra.mxu0 0.0
        %8284 = vmatprep.subr.mxu0 0.0
        %8285 = vmatpush1.xpose.msra.mxu0 0.0
        %8286 = vmatprep.subr.mxu0 0.0
        %8287 = vmatpush1.xpose.msra.mxu0 0.0
        %8288 = vmatprep.subr.mxu0 0.0
        %8289 = vmatpush1.xpose.msra.mxu0 0.0
        %8290 = vmatprep.subr.mxu0 0.0
        %8291 = vmatpush1.xpose.msra.mxu0 0.0
        %8292 = vmatprep.subr.mxu0 0.0
        %8293 = vmatpush1.xpose.msra.mxu0 0.0
        %8294 = vmatprep.subr.mxu0 0.0
        %8295 = vmatpush1.xpose.msra.mxu0 0.0
        %8296 = vmatprep.subr.mxu0 0.0
        %8297 = vmatpush1.xpose.msra.mxu0 0.0
        %8298 = vmatprep.subr.mxu0 0.0
        %8299 = vmatpush1.xpose.msra.mxu0 0.0
        %8300 = vmatprep.subr.mxu0 0.0
        %8301 = vmatpush1.xpose.msra.mxu0 0.0
        %8302 = vmatprep.subr.mxu0 0.0
        %8303 = vmatpush1.xpose.msra.mxu0 0.0
        %8304 = vmatprep.subr.mxu0 0.0
        %8305 = vmatpush1.xpose.msra.mxu0 0.0
        %8306 = vmatprep.subr.mxu0 0.0
        %8307 = vmatpush1.xpose.msra.mxu0 0.0
        %8308 = vmatprep.subr.mxu0 0.0
        %8309 = vmatpush1.xpose.msra.mxu0 %v6886
        %8310 = vmatprep.subr.mxu0 0.0
        %8311 = vmatpush2.xpose.msra.mxu0 0.0
        %8312 = vmatprep.subr.mxu0 0.0
        %8313 = vmatpush2.xpose.msra.mxu0 0.0
        %8314 = vmatprep.subr.mxu0 0.0
        %8315 = vmatpush2.xpose.msra.mxu0 0.0
        %8316 = vmatprep.subr.mxu0 0.0
        %8317 = vmatpush2.xpose.msra.mxu0 0.0
        %8318 = vmatprep.subr.mxu0 0.0
        %8319 = vmatpush2.xpose.msra.mxu0 0.0
        %8320 = vmatprep.subr.mxu0 0.0
        %8321 = vmatpush2.xpose.msra.mxu0 0.0
        %8322 = vmatprep.subr.mxu0 0.0
        %8323 = vmatpush2.xpose.msra.mxu0 0.0
        %8324 = vmatprep.subr.mxu0 0.0
        %8325 = vmatpush2.xpose.msra.mxu0 0.0
        %8326 = vmatprep.subr.mxu0 0.0
        %8327 = vmatpush2.xpose.msra.mxu0 0.0
        %8328 = vmatprep.subr.mxu0 0.0
        %8329 = vmatpush2.xpose.msra.mxu0 0.0
        %8330 = vmatprep.subr.mxu0 0.0
        %8331 = vmatpush2.xpose.msra.mxu0 0.0
        %8332 = vmatprep.subr.mxu0 0.0
        %8333 = vmatpush2.xpose.msra.mxu0 0.0
        %8334 = vmatprep.subr.mxu0 0.0
        %8335 = vmatpush2.xpose.msra.mxu0 0.0
        %8336 = vmatprep.subr.mxu0 0.0
        %8337 = vmatpush2.xpose.msra.mxu0 0.0
        %8338 = vmatprep.subr.mxu0 0.0
        %8339 = vmatpush2.xpose.msra.mxu0 0.0
        %8340 = vmatprep.subr.mxu0 0.0
        %8341 = vmatpush2.xpose.msra.mxu0 0.0
        %8342 = vmatprep.mubr.f32.mxu0 0.0
        %8343 = vmatmul.mubr.f32.gmra.mxu0 %v8276
        %v8344 = vpop.f32.mrf.mxu0
        %v8345 = vadd.f32 0.0, %v8344
        %v8346 = vpop.f32.mrf.mxu0
        %8347 = vdwg.mxu0
        %v8349 = vsel %vm5020, %v6420, 0
        %8351 = vmatprep.subr.mxu0 0.0
        %8352 = vmatpush1.xpose.msra.mxu0 0.0
        %8353 = vmatprep.subr.mxu0 0.0
        %8354 = vmatpush1.xpose.msra.mxu0 0.0
        %8355 = vmatprep.subr.mxu0 0.0
        %8356 = vmatpush1.xpose.msra.mxu0 0.0
        %8357 = vmatprep.subr.mxu0 0.0
        %8358 = vmatpush1.xpose.msra.mxu0 0.0
        %8359 = vmatprep.subr.mxu0 0.0
        %8360 = vmatpush1.xpose.msra.mxu0 0.0
        %8361 = vmatprep.subr.mxu0 0.0
        %8362 = vmatpush1.xpose.msra.mxu0 0.0
        %8363 = vmatprep.subr.mxu0 0.0
        %8364 = vmatpush1.xpose.msra.mxu0 0.0
        %8365 = vmatprep.subr.mxu0 0.0
        %8366 = vmatpush1.xpose.msra.mxu0 0.0
        %8367 = vmatprep.subr.mxu0 0.0
        %8368 = vmatpush1.xpose.msra.mxu0 0.0
        %8369 = vmatprep.subr.mxu0 0.0
        %8370 = vmatpush1.xpose.msra.mxu0 0.0
        %8371 = vmatprep.subr.mxu0 0.0
        %8372 = vmatpush1.xpose.msra.mxu0 0.0
        %8373 = vmatprep.subr.mxu0 0.0
        %8374 = vmatpush1.xpose.msra.mxu0 0.0
        %8375 = vmatprep.subr.mxu0 0.0
        %8376 = vmatpush1.xpose.msra.mxu0 0.0
        %8377 = vmatprep.subr.mxu0 0.0
        %8378 = vmatpush1.xpose.msra.mxu0 0.0
        %8379 = vmatprep.subr.mxu0 0.0
        %8380 = vmatpush1.xpose.msra.mxu0 0.0
        %8381 = vmatprep.subr.mxu0 0.0
        %8382 = vmatpush1.xpose.msra.mxu0 %v6962
        %8383 = vmatprep.subr.mxu0 0.0
        %8384 = vmatpush2.xpose.msra.mxu0 0.0
        %8385 = vmatprep.subr.mxu0 0.0
        %8386 = vmatpush2.xpose.msra.mxu0 0.0
        %8387 = vmatprep.subr.mxu0 0.0
        %8388 = vmatpush2.xpose.msra.mxu0 0.0
        %8389 = vmatprep.subr.mxu0 0.0
        %8390 = vmatpush2.xpose.msra.mxu0 0.0
        %8391 = vmatprep.subr.mxu0 0.0
        %8392 = vmatpush2.xpose.msra.mxu0 0.0
        %8393 = vmatprep.subr.mxu0 0.0
        %8394 = vmatpush2.xpose.msra.mxu0 0.0
        %8395 = vmatprep.subr.mxu0 0.0
        %8396 = vmatpush2.xpose.msra.mxu0 0.0
        %8397 = vmatprep.subr.mxu0 0.0
        %8398 = vmatpush2.xpose.msra.mxu0 0.0
        %8399 = vmatprep.subr.mxu0 0.0
        %8400 = vmatpush2.xpose.msra.mxu0 0.0
        %8401 = vmatprep.subr.mxu0 0.0
        %8402 = vmatpush2.xpose.msra.mxu0 0.0
        %8403 = vmatprep.subr.mxu0 0.0
        %8404 = vmatpush2.xpose.msra.mxu0 0.0
        %8405 = vmatprep.subr.mxu0 0.0
        %8406 = vmatpush2.xpose.msra.mxu0 0.0
        %8407 = vmatprep.subr.mxu0 0.0
        %8408 = vmatpush2.xpose.msra.mxu0 0.0
        %8409 = vmatprep.subr.mxu0 0.0
        %8410 = vmatpush2.xpose.msra.mxu0 0.0
        %8411 = vmatprep.subr.mxu0 0.0
        %8412 = vmatpush2.xpose.msra.mxu0 0.0
        %8413 = vmatprep.subr.mxu0 0.0
        %8414 = vmatpush2.xpose.msra.mxu0 0.0
        %8415 = vmatprep.mubr.f32.mxu0 0.0
        %8416 = vmatmul.mubr.f32.gmra.mxu0 %v8349
        %v8417 = vpop.f32.mrf.mxu0
        %v8418 = vadd.f32 0.0, %v8417
        %v8419 = vpop.f32.mrf.mxu0
        %8420 = vdwg.mxu0
        %v8422 = vsel %vm5020, %v6421, 0
        %8424 = vmatprep.subr.mxu0 0.0
        %8425 = vmatpush1.xpose.msra.mxu0 0.0
        %8426 = vmatprep.subr.mxu0 0.0
        %8427 = vmatpush1.xpose.msra.mxu0 0.0
        %8428 = vmatprep.subr.mxu0 0.0
        %8429 = vmatpush1.xpose.msra.mxu0 0.0
        %8430 = vmatprep.subr.mxu0 0.0
        %8431 = vmatpush1.xpose.msra.mxu0 0.0
        %8432 = vmatprep.subr.mxu0 0.0
        %8433 = vmatpush1.xpose.msra.mxu0 0.0
        %8434 = vmatprep.subr.mxu0 0.0
        %8435 = vmatpush1.xpose.msra.mxu0 0.0
        %8436 = vmatprep.subr.mxu0 0.0
        %8437 = vmatpush1.xpose.msra.mxu0 0.0
        %8438 = vmatprep.subr.mxu0 0.0
        %8439 = vmatpush1.xpose.msra.mxu0 0.0
        %8440 = vmatprep.subr.mxu0 0.0
        %8441 = vmatpush1.xpose.msra.mxu0 0.0
        %8442 = vmatprep.subr.mxu0 0.0
        %8443 = vmatpush1.xpose.msra.mxu0 0.0
        %8444 = vmatprep.subr.mxu0 0.0
        %8445 = vmatpush1.xpose.msra.mxu0 0.0
        %8446 = vmatprep.subr.mxu0 0.0
        %8447 = vmatpush1.xpose.msra.mxu0 0.0
        %8448 = vmatprep.subr.mxu0 0.0
        %8449 = vmatpush1.xpose.msra.mxu0 0.0
        %8450 = vmatprep.subr.mxu0 0.0
        %8451 = vmatpush1.xpose.msra.mxu0 0.0
        %8452 = vmatprep.subr.mxu0 0.0
        %8453 = vmatpush1.xpose.msra.mxu0 0.0
        %8454 = vmatprep.subr.mxu0 0.0
        %8455 = vmatpush1.xpose.msra.mxu0 %v7038
        %8456 = vmatprep.subr.mxu0 0.0
        %8457 = vmatpush2.xpose.msra.mxu0 0.0
        %8458 = vmatprep.subr.mxu0 0.0
        %8459 = vmatpush2.xpose.msra.mxu0 0.0
        %8460 = vmatprep.subr.mxu0 0.0
        %8461 = vmatpush2.xpose.msra.mxu0 0.0
        %8462 = vmatprep.subr.mxu0 0.0
        %8463 = vmatpush2.xpose.msra.mxu0 0.0
        %8464 = vmatprep.subr.mxu0 0.0
        %8465 = vmatpush2.xpose.msra.mxu0 0.0
        %8466 = vmatprep.subr.mxu0 0.0
        %8467 = vmatpush2.xpose.msra.mxu0 0.0
        %8468 = vmatprep.subr.mxu0 0.0
        %8469 = vmatpush2.xpose.msra.mxu0 0.0
        %8470 = vmatprep.subr.mxu0 0.0
        %8471 = vmatpush2.xpose.msra.mxu0 0.0
        %8472 = vmatprep.subr.mxu0 0.0
        %8473 = vmatpush2.xpose.msra.mxu0 0.0
        %8474 = vmatprep.subr.mxu0 0.0
        %8475 = vmatpush2.xpose.msra.mxu0 0.0
        %8476 = vmatprep.subr.mxu0 0.0
        %8477 = vmatpush2.xpose.msra.mxu0 0.0
        %8478 = vmatprep.subr.mxu0 0.0
        %8479 = vmatpush2.xpose.msra.mxu0 0.0
        %8480 = vmatprep.subr.mxu0 0.0
        %8481 = vmatpush2.xpose.msra.mxu0 0.0
        %8482 = vmatprep.subr.mxu0 0.0
        %8483 = vmatpush2.xpose.msra.mxu0 0.0
        %8484 = vmatprep.subr.mxu0 0.0
        %8485 = vmatpush2.xpose.msra.mxu0 0.0
        %8486 = vmatprep.subr.mxu0 0.0
        %8487 = vmatpush2.xpose.msra.mxu0 0.0
        %8488 = vmatprep.mubr.f32.mxu0 0.0
        %8489 = vmatmul.mubr.f32.gmra.mxu0 %v8422
        %v8490 = vpop.f32.mrf.mxu0
        %v8491 = vadd.f32 0.0, %v8490
        %v8492 = vpop.f32.mrf.mxu0
        %8493 = vdwg.mxu0
        %v8495 = vsel %vm5020, %v6422, 0
        %8497 = vmatprep.subr.mxu0 0.0
        %8498 = vmatpush1.xpose.msra.mxu0 0.0
        %8499 = vmatprep.subr.mxu0 0.0
        %8500 = vmatpush1.xpose.msra.mxu0 0.0
        %8501 = vmatprep.subr.mxu0 0.0
        %8502 = vmatpush1.xpose.msra.mxu0 0.0
        %8503 = vmatprep.subr.mxu0 0.0
        %8504 = vmatpush1.xpose.msra.mxu0 0.0
        %8505 = vmatprep.subr.mxu0 0.0
        %8506 = vmatpush1.xpose.msra.mxu0 0.0
        %8507 = vmatprep.subr.mxu0 0.0
        %8508 = vmatpush1.xpose.msra.mxu0 0.0
        %8509 = vmatprep.subr.mxu0 0.0
        %8510 = vmatpush1.xpose.msra.mxu0 0.0
        %8511 = vmatprep.subr.mxu0 0.0
        %8512 = vmatpush1.xpose.msra.mxu0 0.0
        %8513 = vmatprep.subr.mxu0 0.0
        %8514 = vmatpush1.xpose.msra.mxu0 0.0
        %8515 = vmatprep.subr.mxu0 0.0
        %8516 = vmatpush1.xpose.msra.mxu0 0.0
        %8517 = vmatprep.subr.mxu0 0.0
        %8518 = vmatpush1.xpose.msra.mxu0 0.0
        %8519 = vmatprep.subr.mxu0 0.0
        %8520 = vmatpush1.xpose.msra.mxu0 0.0
        %8521 = vmatprep.subr.mxu0 0.0
        %8522 = vmatpush1.xpose.msra.mxu0 0.0
        %8523 = vmatprep.subr.mxu0 0.0
        %8524 = vmatpush1.xpose.msra.mxu0 0.0
        %8525 = vmatprep.subr.mxu0 0.0
        %8526 = vmatpush1.xpose.msra.mxu0 0.0
        %8527 = vmatprep.subr.mxu0 0.0
        %8528 = vmatpush1.xpose.msra.mxu0 %v7114
        %8529 = vmatprep.subr.mxu0 0.0
        %8530 = vmatpush2.xpose.msra.mxu0 0.0
        %8531 = vmatprep.subr.mxu0 0.0
        %8532 = vmatpush2.xpose.msra.mxu0 0.0
        %8533 = vmatprep.subr.mxu0 0.0
        %8534 = vmatpush2.xpose.msra.mxu0 0.0
        %8535 = vmatprep.subr.mxu0 0.0
        %8536 = vmatpush2.xpose.msra.mxu0 0.0
        %8537 = vmatprep.subr.mxu0 0.0
        %8538 = vmatpush2.xpose.msra.mxu0 0.0
        %8539 = vmatprep.subr.mxu0 0.0
        %8540 = vmatpush2.xpose.msra.mxu0 0.0
        %8541 = vmatprep.subr.mxu0 0.0
        %8542 = vmatpush2.xpose.msra.mxu0 0.0
        %8543 = vmatprep.subr.mxu0 0.0
        %8544 = vmatpush2.xpose.msra.mxu0 0.0
        %8545 = vmatprep.subr.mxu0 0.0
        %8546 = vmatpush2.xpose.msra.mxu0 0.0
        %8547 = vmatprep.subr.mxu0 0.0
        %8548 = vmatpush2.xpose.msra.mxu0 0.0
        %8549 = vmatprep.subr.mxu0 0.0
        %8550 = vmatpush2.xpose.msra.mxu0 0.0
        %8551 = vmatprep.subr.mxu0 0.0
        %8552 = vmatpush2.xpose.msra.mxu0 0.0
        %8553 = vmatprep.subr.mxu0 0.0
        %8554 = vmatpush2.xpose.msra.mxu0 0.0
        %8555 = vmatprep.subr.mxu0 0.0
        %8556 = vmatpush2.xpose.msra.mxu0 0.0
        %8557 = vmatprep.subr.mxu0 0.0
        %8558 = vmatpush2.xpose.msra.mxu0 0.0
        %8559 = vmatprep.subr.mxu0 0.0
        %8560 = vmatpush2.xpose.msra.mxu0 0.0
        %8561 = vmatprep.mubr.f32.mxu0 0.0
        %8562 = vmatmul.mubr.f32.gmra.mxu0 %v8495
        %v8563 = vpop.f32.mrf.mxu0
        %v8564 = vadd.f32 0.0, %v8563
        %v8565 = vpop.f32.mrf.mxu0
        %8566 = vdwg.mxu0
        %v8568 = vsel %vm5020, %v6423, 0
        %8570 = vmatprep.subr.mxu0 0.0
        %8571 = vmatpush1.xpose.msra.mxu0 0.0
        %8572 = vmatprep.subr.mxu0 0.0
        %8573 = vmatpush1.xpose.msra.mxu0 0.0
        %8574 = vmatprep.subr.mxu0 0.0
        %8575 = vmatpush1.xpose.msra.mxu0 0.0
        %8576 = vmatprep.subr.mxu0 0.0
        %8577 = vmatpush1.xpose.msra.mxu0 0.0
        %8578 = vmatprep.subr.mxu0 0.0
        %8579 = vmatpush1.xpose.msra.mxu0 0.0
        %8580 = vmatprep.subr.mxu0 0.0
        %8581 = vmatpush1.xpose.msra.mxu0 0.0
        %8582 = vmatprep.subr.mxu0 0.0
        %8583 = vmatpush1.xpose.msra.mxu0 0.0
        %8584 = vmatprep.subr.mxu0 0.0
        %8585 = vmatpush1.xpose.msra.mxu0 0.0
        %8586 = vmatprep.subr.mxu0 0.0
        %8587 = vmatpush1.xpose.msra.mxu0 0.0
        %8588 = vmatprep.subr.mxu0 0.0
        %8589 = vmatpush1.xpose.msra.mxu0 0.0
        %8590 = vmatprep.subr.mxu0 0.0
        %8591 = vmatpush1.xpose.msra.mxu0 0.0
        %8592 = vmatprep.subr.mxu0 0.0
        %8593 = vmatpush1.xpose.msra.mxu0 0.0
        %8594 = vmatprep.subr.mxu0 0.0
        %8595 = vmatpush1.xpose.msra.mxu0 0.0
        %8596 = vmatprep.subr.mxu0 0.0
        %8597 = vmatpush1.xpose.msra.mxu0 0.0
        %8598 = vmatprep.subr.mxu0 0.0
        %8599 = vmatpush1.xpose.msra.mxu0 0.0
        %8600 = vmatprep.subr.mxu0 0.0
        %8601 = vmatpush1.xpose.msra.mxu0 %v7190
        %8602 = vmatprep.subr.mxu0 0.0
        %8603 = vmatpush2.xpose.msra.mxu0 0.0
        %8604 = vmatprep.subr.mxu0 0.0
        %8605 = vmatpush2.xpose.msra.mxu0 0.0
        %8606 = vmatprep.subr.mxu0 0.0
        %8607 = vmatpush2.xpose.msra.mxu0 0.0
        %8608 = vmatprep.subr.mxu0 0.0
        %8609 = vmatpush2.xpose.msra.mxu0 0.0
        %8610 = vmatprep.subr.mxu0 0.0
        %8611 = vmatpush2.xpose.msra.mxu0 0.0
        %8612 = vmatprep.subr.mxu0 0.0
        %8613 = vmatpush2.xpose.msra.mxu0 0.0
        %8614 = vmatprep.subr.mxu0 0.0
        %8615 = vmatpush2.xpose.msra.mxu0 0.0
        %8616 = vmatprep.subr.mxu0 0.0
        %8617 = vmatpush2.xpose.msra.mxu0 0.0
        %8618 = vmatprep.subr.mxu0 0.0
        %8619 = vmatpush2.xpose.msra.mxu0 0.0
        %8620 = vmatprep.subr.mxu0 0.0
        %8621 = vmatpush2.xpose.msra.mxu0 0.0
        %8622 = vmatprep.subr.mxu0 0.0
        %8623 = vmatpush2.xpose.msra.mxu0 0.0
        %8624 = vmatprep.subr.mxu0 0.0
        %8625 = vmatpush2.xpose.msra.mxu0 0.0
        %8626 = vmatprep.subr.mxu0 0.0
        %8627 = vmatpush2.xpose.msra.mxu0 0.0
        %8628 = vmatprep.subr.mxu0 0.0
        %8629 = vmatpush2.xpose.msra.mxu0 0.0
        %8630 = vmatprep.subr.mxu0 0.0
        %8631 = vmatpush2.xpose.msra.mxu0 0.0
        %8632 = vmatprep.subr.mxu0 0.0
        %8633 = vmatpush2.xpose.msra.mxu0 0.0
        %8634 = vmatprep.mubr.f32.mxu0 0.0
        %8635 = vmatmul.mubr.f32.gmra.mxu0 %v8568
        %v8636 = vpop.f32.mrf.mxu0
        %v8637 = vadd.f32 0.0, %v8636
        %v8638 = vpop.f32.mrf.mxu0
        %8639 = vdwg.mxu0
        %v8641 = vsel %vm5020, %v6424, 0
        %8643 = vmatprep.subr.mxu0 0.0
        %8644 = vmatpush1.xpose.msra.mxu0 0.0
        %8645 = vmatprep.subr.mxu0 0.0
        %8646 = vmatpush1.xpose.msra.mxu0 0.0
        %8647 = vmatprep.subr.mxu0 0.0
        %8648 = vmatpush1.xpose.msra.mxu0 0.0
        %8649 = vmatprep.subr.mxu0 0.0
        %8650 = vmatpush1.xpose.msra.mxu0 0.0
        %8651 = vmatprep.subr.mxu0 0.0
        %8652 = vmatpush1.xpose.msra.mxu0 0.0
        %8653 = vmatprep.subr.mxu0 0.0
        %8654 = vmatpush1.xpose.msra.mxu0 0.0
        %8655 = vmatprep.subr.mxu0 0.0
        %8656 = vmatpush1.xpose.msra.mxu0 0.0
        %8657 = vmatprep.subr.mxu0 0.0
        %8658 = vmatpush1.xpose.msra.mxu0 0.0
        %8659 = vmatprep.subr.mxu0 0.0
        %8660 = vmatpush1.xpose.msra.mxu0 0.0
        %8661 = vmatprep.subr.mxu0 0.0
        %8662 = vmatpush1.xpose.msra.mxu0 0.0
        %8663 = vmatprep.subr.mxu0 0.0
        %8664 = vmatpush1.xpose.msra.mxu0 0.0
        %8665 = vmatprep.subr.mxu0 0.0
        %8666 = vmatpush1.xpose.msra.mxu0 0.0
        %8667 = vmatprep.subr.mxu0 0.0
        %8668 = vmatpush1.xpose.msra.mxu0 0.0
        %8669 = vmatprep.subr.mxu0 0.0
        %8670 = vmatpush1.xpose.msra.mxu0 0.0
        %8671 = vmatprep.subr.mxu0 0.0
        %8672 = vmatpush1.xpose.msra.mxu0 0.0
        %8673 = vmatprep.subr.mxu0 0.0
        %8674 = vmatpush1.xpose.msra.mxu0 %v7266
        %8675 = vmatprep.subr.mxu0 0.0
        %8676 = vmatpush2.xpose.msra.mxu0 0.0
        %8677 = vmatprep.subr.mxu0 0.0
        %8678 = vmatpush2.xpose.msra.mxu0 0.0
        %8679 = vmatprep.subr.mxu0 0.0
        %8680 = vmatpush2.xpose.msra.mxu0 0.0
        %8681 = vmatprep.subr.mxu0 0.0
        %8682 = vmatpush2.xpose.msra.mxu0 0.0
        %8683 = vmatprep.subr.mxu0 0.0
        %8684 = vmatpush2.xpose.msra.mxu0 0.0
        %8685 = vmatprep.subr.mxu0 0.0
        %8686 = vmatpush2.xpose.msra.mxu0 0.0
        %8687 = vmatprep.subr.mxu0 0.0
        %8688 = vmatpush2.xpose.msra.mxu0 0.0
        %8689 = vmatprep.subr.mxu0 0.0
        %8690 = vmatpush2.xpose.msra.mxu0 0.0
        %8691 = vmatprep.subr.mxu0 0.0
        %8692 = vmatpush2.xpose.msra.mxu0 0.0
        %8693 = vmatprep.subr.mxu0 0.0
        %8694 = vmatpush2.xpose.msra.mxu0 0.0
        %8695 = vmatprep.subr.mxu0 0.0
        %8696 = vmatpush2.xpose.msra.mxu0 0.0
        %8697 = vmatprep.subr.mxu0 0.0
        %8698 = vmatpush2.xpose.msra.mxu0 0.0
        %8699 = vmatprep.subr.mxu0 0.0
        %8700 = vmatpush2.xpose.msra.mxu0 0.0
        %8701 = vmatprep.subr.mxu0 0.0
        %8702 = vmatpush2.xpose.msra.mxu0 0.0
        %8703 = vmatprep.subr.mxu0 0.0
        %8704 = vmatpush2.xpose.msra.mxu0 0.0
        %8705 = vmatprep.subr.mxu0 0.0
        %8706 = vmatpush2.xpose.msra.mxu0 0.0
        %8707 = vmatprep.mubr.f32.mxu0 0.0
        %8708 = vmatmul.mubr.f32.gmra.mxu0 %v8641
        %v8709 = vpop.f32.mrf.mxu0
        %v8710 = vadd.f32 0.0, %v8709
        %v8711 = vpop.f32.mrf.mxu0
        %8712 = vdwg.mxu0
        %v8714 = vsel %vm5020, %v6425, 0
        %8716 = vmatprep.subr.mxu0 0.0
        %8717 = vmatpush1.xpose.msra.mxu0 0.0
        %8718 = vmatprep.subr.mxu0 0.0
        %8719 = vmatpush1.xpose.msra.mxu0 0.0
        %8720 = vmatprep.subr.mxu0 0.0
        %8721 = vmatpush1.xpose.msra.mxu0 0.0
        %8722 = vmatprep.subr.mxu0 0.0
        %8723 = vmatpush1.xpose.msra.mxu0 0.0
        %8724 = vmatprep.subr.mxu0 0.0
        %8725 = vmatpush1.xpose.msra.mxu0 0.0
        %8726 = vmatprep.subr.mxu0 0.0
        %8727 = vmatpush1.xpose.msra.mxu0 0.0
        %8728 = vmatprep.subr.mxu0 0.0
        %8729 = vmatpush1.xpose.msra.mxu0 0.0
        %8730 = vmatprep.subr.mxu0 0.0
        %8731 = vmatpush1.xpose.msra.mxu0 0.0
        %8732 = vmatprep.subr.mxu0 0.0
        %8733 = vmatpush1.xpose.msra.mxu0 0.0
        %8734 = vmatprep.subr.mxu0 0.0
        %8735 = vmatpush1.xpose.msra.mxu0 0.0
        %8736 = vmatprep.subr.mxu0 0.0
        %8737 = vmatpush1.xpose.msra.mxu0 0.0
        %8738 = vmatprep.subr.mxu0 0.0
        %8739 = vmatpush1.xpose.msra.mxu0 0.0
        %8740 = vmatprep.subr.mxu0 0.0
        %8741 = vmatpush1.xpose.msra.mxu0 0.0
        %8742 = vmatprep.subr.mxu0 0.0
        %8743 = vmatpush1.xpose.msra.mxu0 0.0
        %8744 = vmatprep.subr.mxu0 0.0
        %8745 = vmatpush1.xpose.msra.mxu0 0.0
        %8746 = vmatprep.subr.mxu0 0.0
        %8747 = vmatpush1.xpose.msra.mxu0 %v7342
        %8748 = vmatprep.subr.mxu0 0.0
        %8749 = vmatpush2.xpose.msra.mxu0 0.0
        %8750 = vmatprep.subr.mxu0 0.0
        %8751 = vmatpush2.xpose.msra.mxu0 0.0
        %8752 = vmatprep.subr.mxu0 0.0
        %8753 = vmatpush2.xpose.msra.mxu0 0.0
        %8754 = vmatprep.subr.mxu0 0.0
        %8755 = vmatpush2.xpose.msra.mxu0 0.0
        %8756 = vmatprep.subr.mxu0 0.0
        %8757 = vmatpush2.xpose.msra.mxu0 0.0
        %8758 = vmatprep.subr.mxu0 0.0
        %8759 = vmatpush2.xpose.msra.mxu0 0.0
        %8760 = vmatprep.subr.mxu0 0.0
        %8761 = vmatpush2.xpose.msra.mxu0 0.0
        %8762 = vmatprep.subr.mxu0 0.0
        %8763 = vmatpush2.xpose.msra.mxu0 0.0
        %8764 = vmatprep.subr.mxu0 0.0
        %8765 = vmatpush2.xpose.msra.mxu0 0.0
        %8766 = vmatprep.subr.mxu0 0.0
        %8767 = vmatpush2.xpose.msra.mxu0 0.0
        %8768 = vmatprep.subr.mxu0 0.0
        %8769 = vmatpush2.xpose.msra.mxu0 0.0
        %8770 = vmatprep.subr.mxu0 0.0
        %8771 = vmatpush2.xpose.msra.mxu0 0.0
        %8772 = vmatprep.subr.mxu0 0.0
        %8773 = vmatpush2.xpose.msra.mxu0 0.0
        %8774 = vmatprep.subr.mxu0 0.0
        %8775 = vmatpush2.xpose.msra.mxu0 0.0
        %8776 = vmatprep.subr.mxu0 0.0
        %8777 = vmatpush2.xpose.msra.mxu0 0.0
        %8778 = vmatprep.subr.mxu0 0.0
        %8779 = vmatpush2.xpose.msra.mxu0 0.0
        %8780 = vmatprep.mubr.f32.mxu0 0.0
        %8781 = vmatmul.mubr.f32.gmra.mxu0 %v8714
        %v8782 = vpop.f32.mrf.mxu0
        %v8783 = vadd.f32 0.0, %v8782
        %v8784 = vpop.f32.mrf.mxu0
        %8785 = vdwg.mxu0
        %v8787 = vsel %vm5020, %v6426, 0
        %8789 = vmatprep.subr.mxu0 0.0
        %8790 = vmatpush1.xpose.msra.mxu0 0.0
        %8791 = vmatprep.subr.mxu0 0.0
        %8792 = vmatpush1.xpose.msra.mxu0 0.0
        %8793 = vmatprep.subr.mxu0 0.0
        %8794 = vmatpush1.xpose.msra.mxu0 0.0
        %8795 = vmatprep.subr.mxu0 0.0
        %8796 = vmatpush1.xpose.msra.mxu0 0.0
        %8797 = vmatprep.subr.mxu0 0.0
        %8798 = vmatpush1.xpose.msra.mxu0 0.0
        %8799 = vmatprep.subr.mxu0 0.0
        %8800 = vmatpush1.xpose.msra.mxu0 0.0
        %8801 = vmatprep.subr.mxu0 0.0
        %8802 = vmatpush1.xpose.msra.mxu0 0.0
        %8803 = vmatprep.subr.mxu0 0.0
        %8804 = vmatpush1.xpose.msra.mxu0 0.0
        %8805 = vmatprep.subr.mxu0 0.0
        %8806 = vmatpush1.xpose.msra.mxu0 0.0
        %8807 = vmatprep.subr.mxu0 0.0
        %8808 = vmatpush1.xpose.msra.mxu0 0.0
        %8809 = vmatprep.subr.mxu0 0.0
        %8810 = vmatpush1.xpose.msra.mxu0 0.0
        %8811 = vmatprep.subr.mxu0 0.0
        %8812 = vmatpush1.xpose.msra.mxu0 0.0
        %8813 = vmatprep.subr.mxu0 0.0
        %8814 = vmatpush1.xpose.msra.mxu0 0.0
        %8815 = vmatprep.subr.mxu0 0.0
        %8816 = vmatpush1.xpose.msra.mxu0 0.0
        %8817 = vmatprep.subr.mxu0 0.0
        %8818 = vmatpush1.xpose.msra.mxu0 0.0
        %8819 = vmatprep.subr.mxu0 0.0
        %8820 = vmatpush1.xpose.msra.mxu0 %v7418
        %8821 = vmatprep.subr.mxu0 0.0
        %8822 = vmatpush2.xpose.msra.mxu0 0.0
        %8823 = vmatprep.subr.mxu0 0.0
        %8824 = vmatpush2.xpose.msra.mxu0 0.0
        %8825 = vmatprep.subr.mxu0 0.0
        %8826 = vmatpush2.xpose.msra.mxu0 0.0
        %8827 = vmatprep.subr.mxu0 0.0
        %8828 = vmatpush2.xpose.msra.mxu0 0.0
        %8829 = vmatprep.subr.mxu0 0.0
        %8830 = vmatpush2.xpose.msra.mxu0 0.0
        %8831 = vmatprep.subr.mxu0 0.0
        %8832 = vmatpush2.xpose.msra.mxu0 0.0
        %8833 = vmatprep.subr.mxu0 0.0
        %8834 = vmatpush2.xpose.msra.mxu0 0.0
        %8835 = vmatprep.subr.mxu0 0.0
        %8836 = vmatpush2.xpose.msra.mxu0 0.0
        %8837 = vmatprep.subr.mxu0 0.0
        %8838 = vmatpush2.xpose.msra.mxu0 0.0
        %8839 = vmatprep.subr.mxu0 0.0
        %8840 = vmatpush2.xpose.msra.mxu0 0.0
        %8841 = vmatprep.subr.mxu0 0.0
        %8842 = vmatpush2.xpose.msra.mxu0 0.0
        %8843 = vmatprep.subr.mxu0 0.0
        %8844 = vmatpush2.xpose.msra.mxu0 0.0
        %8845 = vmatprep.subr.mxu0 0.0
        %8846 = vmatpush2.xpose.msra.mxu0 0.0
        %8847 = vmatprep.subr.mxu0 0.0
        %8848 = vmatpush2.xpose.msra.mxu0 0.0
        %8849 = vmatprep.subr.mxu0 0.0
        %8850 = vmatpush2.xpose.msra.mxu0 0.0
        %8851 = vmatprep.subr.mxu0 0.0
        %8852 = vmatpush2.xpose.msra.mxu0 0.0
        %8853 = vmatprep.mubr.f32.mxu0 0.0
        %8854 = vmatmul.mubr.f32.gmra.mxu0 %v8787
        %v8855 = vpop.f32.mrf.mxu0
        %v8856 = vadd.f32 0.0, %v8855
        %v8857 = vpop.f32.mrf.mxu0
        %8858 = vdwg.mxu0
        %v8860 = vsel %vm5020, %v6427, 0
        %8862 = vmatprep.subr.mxu0 0.0
        %8863 = vmatpush1.xpose.msra.mxu0 0.0
        %8864 = vmatprep.subr.mxu0 0.0
        %8865 = vmatpush1.xpose.msra.mxu0 0.0
        %8866 = vmatprep.subr.mxu0 0.0
        %8867 = vmatpush1.xpose.msra.mxu0 0.0
        %8868 = vmatprep.subr.mxu0 0.0
        %8869 = vmatpush1.xpose.msra.mxu0 0.0
        %8870 = vmatprep.subr.mxu0 0.0
        %8871 = vmatpush1.xpose.msra.mxu0 0.0
        %8872 = vmatprep.subr.mxu0 0.0
        %8873 = vmatpush1.xpose.msra.mxu0 0.0
        %8874 = vmatprep.subr.mxu0 0.0
        %8875 = vmatpush1.xpose.msra.mxu0 0.0
        %8876 = vmatprep.subr.mxu0 0.0
        %8877 = vmatpush1.xpose.msra.mxu0 0.0
        %8878 = vmatprep.subr.mxu0 0.0
        %8879 = vmatpush1.xpose.msra.mxu0 0.0
        %8880 = vmatprep.subr.mxu0 0.0
        %8881 = vmatpush1.xpose.msra.mxu0 0.0
        %8882 = vmatprep.subr.mxu0 0.0
        %8883 = vmatpush1.xpose.msra.mxu0 0.0
        %8884 = vmatprep.subr.mxu0 0.0
        %8885 = vmatpush1.xpose.msra.mxu0 0.0
        %8886 = vmatprep.subr.mxu0 0.0
        %8887 = vmatpush1.xpose.msra.mxu0 0.0
        %8888 = vmatprep.subr.mxu0 0.0
        %8889 = vmatpush1.xpose.msra.mxu0 0.0
        %8890 = vmatprep.subr.mxu0 0.0
        %8891 = vmatpush1.xpose.msra.mxu0 0.0
        %8892 = vmatprep.subr.mxu0 0.0
        %8893 = vmatpush1.xpose.msra.mxu0 %v7494
        %8894 = vmatprep.subr.mxu0 0.0
        %8895 = vmatpush2.xpose.msra.mxu0 0.0
        %8896 = vmatprep.subr.mxu0 0.0
        %8897 = vmatpush2.xpose.msra.mxu0 0.0
        %8898 = vmatprep.subr.mxu0 0.0
        %8899 = vmatpush2.xpose.msra.mxu0 0.0
        %8900 = vmatprep.subr.mxu0 0.0
        %8901 = vmatpush2.xpose.msra.mxu0 0.0
        %8902 = vmatprep.subr.mxu0 0.0
        %8903 = vmatpush2.xpose.msra.mxu0 0.0
        %8904 = vmatprep.subr.mxu0 0.0
        %8905 = vmatpush2.xpose.msra.mxu0 0.0
        %8906 = vmatprep.subr.mxu0 0.0
        %8907 = vmatpush2.xpose.msra.mxu0 0.0
        %8908 = vmatprep.subr.mxu0 0.0
        %8909 = vmatpush2.xpose.msra.mxu0 0.0
        %8910 = vmatprep.subr.mxu0 0.0
        %8911 = vmatpush2.xpose.msra.mxu0 0.0
        %8912 = vmatprep.subr.mxu0 0.0
        %8913 = vmatpush2.xpose.msra.mxu0 0.0
        %8914 = vmatprep.subr.mxu0 0.0
        %8915 = vmatpush2.xpose.msra.mxu0 0.0
        %8916 = vmatprep.subr.mxu0 0.0
        %8917 = vmatpush2.xpose.msra.mxu0 0.0
        %8918 = vmatprep.subr.mxu0 0.0
        %8919 = vmatpush2.xpose.msra.mxu0 0.0
        %8920 = vmatprep.subr.mxu0 0.0
        %8921 = vmatpush2.xpose.msra.mxu0 0.0
        %8922 = vmatprep.subr.mxu0 0.0
        %8923 = vmatpush2.xpose.msra.mxu0 0.0
        %8924 = vmatprep.subr.mxu0 0.0
        %8925 = vmatpush2.xpose.msra.mxu0 0.0
        %8926 = vmatprep.mubr.f32.mxu0 0.0
        %8927 = vmatmul.mubr.f32.gmra.mxu0 %v8860
        %v8928 = vpop.f32.mrf.mxu0
        %v8929 = vadd.f32 0.0, %v8928
        %v8930 = vpop.f32.mrf.mxu0
        %8931 = vdwg.mxu0
        %v8933 = vsel %vm5020, %v6428, 0
        %8935 = vmatprep.subr.mxu0 0.0
        %8936 = vmatpush1.xpose.msra.mxu0 0.0
        %8937 = vmatprep.subr.mxu0 0.0
        %8938 = vmatpush1.xpose.msra.mxu0 0.0
        %8939 = vmatprep.subr.mxu0 0.0
        %8940 = vmatpush1.xpose.msra.mxu0 0.0
        %8941 = vmatprep.subr.mxu0 0.0
        %8942 = vmatpush1.xpose.msra.mxu0 0.0
        %8943 = vmatprep.subr.mxu0 0.0
        %8944 = vmatpush1.xpose.msra.mxu0 0.0
        %8945 = vmatprep.subr.mxu0 0.0
        %8946 = vmatpush1.xpose.msra.mxu0 0.0
        %8947 = vmatprep.subr.mxu0 0.0
        %8948 = vmatpush1.xpose.msra.mxu0 0.0
        %8949 = vmatprep.subr.mxu0 0.0
        %8950 = vmatpush1.xpose.msra.mxu0 0.0
        %8951 = vmatprep.subr.mxu0 0.0
        %8952 = vmatpush1.xpose.msra.mxu0 0.0
        %8953 = vmatprep.subr.mxu0 0.0
        %8954 = vmatpush1.xpose.msra.mxu0 0.0
        %8955 = vmatprep.subr.mxu0 0.0
        %8956 = vmatpush1.xpose.msra.mxu0 0.0
        %8957 = vmatprep.subr.mxu0 0.0
        %8958 = vmatpush1.xpose.msra.mxu0 0.0
        %8959 = vmatprep.subr.mxu0 0.0
        %8960 = vmatpush1.xpose.msra.mxu0 0.0
        %8961 = vmatprep.subr.mxu0 0.0
        %8962 = vmatpush1.xpose.msra.mxu0 0.0
        %8963 = vmatprep.subr.mxu0 0.0
        %8964 = vmatpush1.xpose.msra.mxu0 0.0
        %8965 = vmatprep.subr.mxu0 0.0
        %8966 = vmatpush1.xpose.msra.mxu0 %v7570
        %8967 = vmatprep.subr.mxu0 0.0
        %8968 = vmatpush2.xpose.msra.mxu0 0.0
        %8969 = vmatprep.subr.mxu0 0.0
        %8970 = vmatpush2.xpose.msra.mxu0 0.0
        %8971 = vmatprep.subr.mxu0 0.0
        %8972 = vmatpush2.xpose.msra.mxu0 0.0
        %8973 = vmatprep.subr.mxu0 0.0
        %8974 = vmatpush2.xpose.msra.mxu0 0.0
        %8975 = vmatprep.subr.mxu0 0.0
        %8976 = vmatpush2.xpose.msra.mxu0 0.0
        %8977 = vmatprep.subr.mxu0 0.0
        %8978 = vmatpush2.xpose.msra.mxu0 0.0
        %8979 = vmatprep.subr.mxu0 0.0
        %8980 = vmatpush2.xpose.msra.mxu0 0.0
        %8981 = vmatprep.subr.mxu0 0.0
        %8982 = vmatpush2.xpose.msra.mxu0 0.0
        %8983 = vmatprep.subr.mxu0 0.0
        %8984 = vmatpush2.xpose.msra.mxu0 0.0
        %8985 = vmatprep.subr.mxu0 0.0
        %8986 = vmatpush2.xpose.msra.mxu0 0.0
        %8987 = vmatprep.subr.mxu0 0.0
        %8988 = vmatpush2.xpose.msra.mxu0 0.0
        %8989 = vmatprep.subr.mxu0 0.0
        %8990 = vmatpush2.xpose.msra.mxu0 0.0
        %8991 = vmatprep.subr.mxu0 0.0
        %8992 = vmatpush2.xpose.msra.mxu0 0.0
        %8993 = vmatprep.subr.mxu0 0.0
        %8994 = vmatpush2.xpose.msra.mxu0 0.0
        %8995 = vmatprep.subr.mxu0 0.0
        %8996 = vmatpush2.xpose.msra.mxu0 0.0
        %8997 = vmatprep.subr.mxu0 0.0
        %8998 = vmatpush2.xpose.msra.mxu0 0.0
        %8999 = vmatprep.mubr.f32.mxu0 0.0
        %9000 = vmatmul.mubr.f32.gmra.mxu0 %v8933
        %v9001 = vpop.f32.mrf.mxu0
        %v9002 = vadd.f32 0.0, %v9001
        %v9003 = vpop.f32.mrf.mxu0
        %9004 = vdwg.mxu0
        %9005 = vmatprep.subr.mxu0 0.0
        %9006 = vmatpush1.msra.mxu0 0.0
        %9007 = vmatprep.subr.mxu0 0.0
        %9008 = vmatpush1.msra.mxu0 0.0
        %9009 = vmatprep.subr.mxu0 0.0
        %9010 = vmatpush1.msra.mxu0 0.0
        %9011 = vmatprep.subr.mxu0 0.0
        %9012 = vmatpush1.msra.mxu0 0.0
        %9013 = vmatprep.subr.mxu0 0.0
        %9014 = vmatpush1.msra.mxu0 0.0
        %9015 = vmatprep.subr.mxu0 0.0
        %9016 = vmatpush1.msra.mxu0 0.0
        %9017 = vmatprep.subr.mxu0 0.0
        %9018 = vmatpush1.msra.mxu0 0.0
        %9019 = vmatprep.subr.mxu0 0.0
        %9020 = vmatpush1.msra.mxu0 0.0
        %9021 = vmatprep.subr.mxu0 0.0
        %9022 = vmatpush1.msra.mxu0 0.0
        %9023 = vmatprep.subr.mxu0 0.0
        %9024 = vmatpush1.msra.mxu0 0.0
        %9025 = vmatprep.subr.mxu0 0.0
        %9026 = vmatpush1.msra.mxu0 0.0
        %9027 = vmatprep.subr.mxu0 0.0
        %9028 = vmatpush1.msra.mxu0 0.0
        %9029 = vmatprep.subr.mxu0 0.0
        %9030 = vmatpush1.msra.mxu0 0.0
        %9031 = vmatprep.subr.mxu0 0.0
        %9032 = vmatpush1.msra.mxu0 0.0
        %9033 = vmatprep.subr.mxu0 0.0
        %9034 = vmatpush1.msra.mxu0 0.0
        %9035 = vmatprep.subr.mxu0 0.0
        %9036 = vmatpush1.msra.mxu0 %v7821
        %9037 = vmatprep.subr.mxu0 0.0
        %9038 = vmatpush2.msra.mxu0 0.0
        %9039 = vmatprep.subr.mxu0 0.0
        %9040 = vmatpush2.msra.mxu0 0.0
        %9041 = vmatprep.subr.mxu0 0.0
        %9042 = vmatpush2.msra.mxu0 0.0
        %9043 = vmatprep.subr.mxu0 0.0
        %9044 = vmatpush2.msra.mxu0 0.0
        %9045 = vmatprep.subr.mxu0 0.0
        %9046 = vmatpush2.msra.mxu0 0.0
        %9047 = vmatprep.subr.mxu0 0.0
        %9048 = vmatpush2.msra.mxu0 0.0
        %9049 = vmatprep.subr.mxu0 0.0
        %9050 = vmatpush2.msra.mxu0 0.0
        %9051 = vmatprep.subr.mxu0 0.0
        %9052 = vmatpush2.msra.mxu0 0.0
        %9053 = vmatprep.subr.mxu0 0.0
        %9054 = vmatpush2.msra.mxu0 0.0
        %9055 = vmatprep.subr.mxu0 0.0
        %9056 = vmatpush2.msra.mxu0 0.0
        %9057 = vmatprep.subr.mxu0 0.0
        %9058 = vmatpush2.msra.mxu0 0.0
        %9059 = vmatprep.subr.mxu0 0.0
        %9060 = vmatpush2.msra.mxu0 0.0
        %9061 = vmatprep.subr.mxu0 0.0
        %9062 = vmatpush2.msra.mxu0 0.0
        %9063 = vmatprep.subr.mxu0 0.0
        %9064 = vmatpush2.msra.mxu0 0.0
        %9065 = vmatprep.subr.mxu0 0.0
        %9066 = vmatpush2.msra.mxu0 0.0
        %9067 = vmatprep.subr.mxu0 0.0
        %9068 = vmatpush2.msra.mxu0 0.0
        %9069 = vmatprep.mubr.f32.mxu0 0.0
        %9070 = vmatmul.mubr.f32.gmra.mxu0 %v5022
        %v9071 = vpop.f32.mrf.mxu0
        %v9072 = vadd.f32 0.0, %v9071
        %v9073 = vpop.f32.mrf.mxu0
        %9074 = vdwg.mxu0
        %9075 = vmatprep.subr.mxu0 0.0
        %9076 = vmatpush1.msra.mxu0 0.0
        %9077 = vmatprep.subr.mxu0 0.0
        %9078 = vmatpush1.msra.mxu0 0.0
        %9079 = vmatprep.subr.mxu0 0.0
        %9080 = vmatpush1.msra.mxu0 0.0
        %9081 = vmatprep.subr.mxu0 0.0
        %9082 = vmatpush1.msra.mxu0 0.0
        %9083 = vmatprep.subr.mxu0 0.0
        %9084 = vmatpush1.msra.mxu0 0.0
        %9085 = vmatprep.subr.mxu0 0.0
        %9086 = vmatpush1.msra.mxu0 0.0
        %9087 = vmatprep.subr.mxu0 0.0
        %9088 = vmatpush1.msra.mxu0 0.0
        %9089 = vmatprep.subr.mxu0 0.0
        %9090 = vmatpush1.msra.mxu0 0.0
        %9091 = vmatprep.subr.mxu0 0.0
        %9092 = vmatpush1.msra.mxu0 0.0
        %9093 = vmatprep.subr.mxu0 0.0
        %9094 = vmatpush1.msra.mxu0 0.0
        %9095 = vmatprep.subr.mxu0 0.0
        %9096 = vmatpush1.msra.mxu0 0.0
        %9097 = vmatprep.subr.mxu0 0.0
        %9098 = vmatpush1.msra.mxu0 0.0
        %9099 = vmatprep.subr.mxu0 0.0
        %9100 = vmatpush1.msra.mxu0 0.0
        %9101 = vmatprep.subr.mxu0 0.0
        %9102 = vmatpush1.msra.mxu0 0.0
        %9103 = vmatprep.subr.mxu0 0.0
        %9104 = vmatpush1.msra.mxu0 0.0
        %9105 = vmatprep.subr.mxu0 0.0
        %9106 = vmatpush1.msra.mxu0 %v7822
        %9107 = vmatprep.subr.mxu0 0.0
        %9108 = vmatpush2.msra.mxu0 0.0
        %9109 = vmatprep.subr.mxu0 0.0
        %9110 = vmatpush2.msra.mxu0 0.0
        %9111 = vmatprep.subr.mxu0 0.0
        %9112 = vmatpush2.msra.mxu0 0.0
        %9113 = vmatprep.subr.mxu0 0.0
        %9114 = vmatpush2.msra.mxu0 0.0
        %9115 = vmatprep.subr.mxu0 0.0
        %9116 = vmatpush2.msra.mxu0 0.0
        %9117 = vmatprep.subr.mxu0 0.0
        %9118 = vmatpush2.msra.mxu0 0.0
        %9119 = vmatprep.subr.mxu0 0.0
        %9120 = vmatpush2.msra.mxu0 0.0
        %9121 = vmatprep.subr.mxu0 0.0
        %9122 = vmatpush2.msra.mxu0 0.0
        %9123 = vmatprep.subr.mxu0 0.0
        %9124 = vmatpush2.msra.mxu0 0.0
        %9125 = vmatprep.subr.mxu0 0.0
        %9126 = vmatpush2.msra.mxu0 0.0
        %9127 = vmatprep.subr.mxu0 0.0
        %9128 = vmatpush2.msra.mxu0 0.0
        %9129 = vmatprep.subr.mxu0 0.0
        %9130 = vmatpush2.msra.mxu0 0.0
        %9131 = vmatprep.subr.mxu0 0.0
        %9132 = vmatpush2.msra.mxu0 0.0
        %9133 = vmatprep.subr.mxu0 0.0
        %9134 = vmatpush2.msra.mxu0 0.0
        %9135 = vmatprep.subr.mxu0 0.0
        %9136 = vmatpush2.msra.mxu0 0.0
        %9137 = vmatprep.subr.mxu0 0.0
        %9138 = vmatpush2.msra.mxu0 0.0
        %9139 = vmatprep.mubr.f32.mxu0 0.0
        %9140 = vmatmul.mubr.f32.gmra.mxu0 %v5098
        %v9141 = vpop.f32.mrf.mxu0
        %v9142 = vadd.f32 0.0, %v9141
        %v9143 = vpop.f32.mrf.mxu0
        %9144 = vdwg.mxu0
        %9145 = vmatprep.subr.mxu0 0.0
        %9146 = vmatpush1.msra.mxu0 0.0
        %9147 = vmatprep.subr.mxu0 0.0
        %9148 = vmatpush1.msra.mxu0 0.0
        %9149 = vmatprep.subr.mxu0 0.0
        %9150 = vmatpush1.msra.mxu0 0.0
        %9151 = vmatprep.subr.mxu0 0.0
        %9152 = vmatpush1.msra.mxu0 0.0
        %9153 = vmatprep.subr.mxu0 0.0
        %9154 = vmatpush1.msra.mxu0 0.0
        %9155 = vmatprep.subr.mxu0 0.0
        %9156 = vmatpush1.msra.mxu0 0.0
        %9157 = vmatprep.subr.mxu0 0.0
        %9158 = vmatpush1.msra.mxu0 0.0
        %9159 = vmatprep.subr.mxu0 0.0
        %9160 = vmatpush1.msra.mxu0 0.0
        %9161 = vmatprep.subr.mxu0 0.0
        %9162 = vmatpush1.msra.mxu0 0.0
        %9163 = vmatprep.subr.mxu0 0.0
        %9164 = vmatpush1.msra.mxu0 0.0
        %9165 = vmatprep.subr.mxu0 0.0
        %9166 = vmatpush1.msra.mxu0 0.0
        %9167 = vmatprep.subr.mxu0 0.0
        %9168 = vmatpush1.msra.mxu0 0.0
        %9169 = vmatprep.subr.mxu0 0.0
        %9170 = vmatpush1.msra.mxu0 0.0
        %9171 = vmatprep.subr.mxu0 0.0
        %9172 = vmatpush1.msra.mxu0 0.0
        %9173 = vmatprep.subr.mxu0 0.0
        %9174 = vmatpush1.msra.mxu0 0.0
        %9175 = vmatprep.subr.mxu0 0.0
        %9176 = vmatpush1.msra.mxu0 %v7823
        %9177 = vmatprep.subr.mxu0 0.0
        %9178 = vmatpush2.msra.mxu0 0.0
        %9179 = vmatprep.subr.mxu0 0.0
        %9180 = vmatpush2.msra.mxu0 0.0
        %9181 = vmatprep.subr.mxu0 0.0
        %9182 = vmatpush2.msra.mxu0 0.0
        %9183 = vmatprep.subr.mxu0 0.0
        %9184 = vmatpush2.msra.mxu0 0.0
        %9185 = vmatprep.subr.mxu0 0.0
        %9186 = vmatpush2.msra.mxu0 0.0
        %9187 = vmatprep.subr.mxu0 0.0
        %9188 = vmatpush2.msra.mxu0 0.0
        %9189 = vmatprep.subr.mxu0 0.0
        %9190 = vmatpush2.msra.mxu0 0.0
        %9191 = vmatprep.subr.mxu0 0.0
        %9192 = vmatpush2.msra.mxu0 0.0
        %9193 = vmatprep.subr.mxu0 0.0
        %9194 = vmatpush2.msra.mxu0 0.0
        %9195 = vmatprep.subr.mxu0 0.0
        %9196 = vmatpush2.msra.mxu0 0.0
        %9197 = vmatprep.subr.mxu0 0.0
        %9198 = vmatpush2.msra.mxu0 0.0
        %9199 = vmatprep.subr.mxu0 0.0
        %9200 = vmatpush2.msra.mxu0 0.0
        %9201 = vmatprep.subr.mxu0 0.0
        %9202 = vmatpush2.msra.mxu0 0.0
        %9203 = vmatprep.subr.mxu0 0.0
        %9204 = vmatpush2.msra.mxu0 0.0
        %9205 = vmatprep.subr.mxu0 0.0
        %9206 = vmatpush2.msra.mxu0 0.0
        %9207 = vmatprep.subr.mxu0 0.0
        %9208 = vmatpush2.msra.mxu0 0.0
        %9209 = vmatprep.mubr.f32.mxu0 0.0
        %9210 = vmatmul.mubr.f32.gmra.mxu0 %v5174
        %v9211 = vpop.f32.mrf.mxu0
        %v9212 = vadd.f32 0.0, %v9211
        %v9213 = vpop.f32.mrf.mxu0
        %9214 = vdwg.mxu0
        %9215 = vmatprep.subr.mxu0 0.0
        %9216 = vmatpush1.msra.mxu0 0.0
        %9217 = vmatprep.subr.mxu0 0.0
        %9218 = vmatpush1.msra.mxu0 0.0
        %9219 = vmatprep.subr.mxu0 0.0
        %9220 = vmatpush1.msra.mxu0 0.0
        %9221 = vmatprep.subr.mxu0 0.0
        %9222 = vmatpush1.msra.mxu0 0.0
        %9223 = vmatprep.subr.mxu0 0.0
        %9224 = vmatpush1.msra.mxu0 0.0
        %9225 = vmatprep.subr.mxu0 0.0
        %9226 = vmatpush1.msra.mxu0 0.0
        %9227 = vmatprep.subr.mxu0 0.0
        %9228 = vmatpush1.msra.mxu0 0.0
        %9229 = vmatprep.subr.mxu0 0.0
        %9230 = vmatpush1.msra.mxu0 0.0
        %9231 = vmatprep.subr.mxu0 0.0
        %9232 = vmatpush1.msra.mxu0 0.0
        %9233 = vmatprep.subr.mxu0 0.0
        %9234 = vmatpush1.msra.mxu0 0.0
        %9235 = vmatprep.subr.mxu0 0.0
        %9236 = vmatpush1.msra.mxu0 0.0
        %9237 = vmatprep.subr.mxu0 0.0
        %9238 = vmatpush1.msra.mxu0 0.0
        %9239 = vmatprep.subr.mxu0 0.0
        %9240 = vmatpush1.msra.mxu0 0.0
        %9241 = vmatprep.subr.mxu0 0.0
        %9242 = vmatpush1.msra.mxu0 0.0
        %9243 = vmatprep.subr.mxu0 0.0
        %9244 = vmatpush1.msra.mxu0 0.0
        %9245 = vmatprep.subr.mxu0 0.0
        %9246 = vmatpush1.msra.mxu0 %v7824
        %9247 = vmatprep.subr.mxu0 0.0
        %9248 = vmatpush2.msra.mxu0 0.0
        %9249 = vmatprep.subr.mxu0 0.0
        %9250 = vmatpush2.msra.mxu0 0.0
        %9251 = vmatprep.subr.mxu0 0.0
        %9252 = vmatpush2.msra.mxu0 0.0
        %9253 = vmatprep.subr.mxu0 0.0
        %9254 = vmatpush2.msra.mxu0 0.0
        %9255 = vmatprep.subr.mxu0 0.0
        %9256 = vmatpush2.msra.mxu0 0.0
        %9257 = vmatprep.subr.mxu0 0.0
        %9258 = vmatpush2.msra.mxu0 0.0
        %9259 = vmatprep.subr.mxu0 0.0
        %9260 = vmatpush2.msra.mxu0 0.0
        %9261 = vmatprep.subr.mxu0 0.0
        %9262 = vmatpush2.msra.mxu0 0.0
        %9263 = vmatprep.subr.mxu0 0.0
        %9264 = vmatpush2.msra.mxu0 0.0
        %9265 = vmatprep.subr.mxu0 0.0
        %9266 = vmatpush2.msra.mxu0 0.0
        %9267 = vmatprep.subr.mxu0 0.0
        %9268 = vmatpush2.msra.mxu0 0.0
        %9269 = vmatprep.subr.mxu0 0.0
        %9270 = vmatpush2.msra.mxu0 0.0
        %9271 = vmatprep.subr.mxu0 0.0
        %9272 = vmatpush2.msra.mxu0 0.0
        %9273 = vmatprep.subr.mxu0 0.0
        %9274 = vmatpush2.msra.mxu0 0.0
        %9275 = vmatprep.subr.mxu0 0.0
        %9276 = vmatpush2.msra.mxu0 0.0
        %9277 = vmatprep.subr.mxu0 0.0
        %9278 = vmatpush2.msra.mxu0 0.0
        %9279 = vmatprep.mubr.f32.mxu0 0.0
        %9280 = vmatmul.mubr.f32.gmra.mxu0 %v5250
        %v9281 = vpop.f32.mrf.mxu0
        %v9282 = vadd.f32 0.0, %v9281
        %v9283 = vpop.f32.mrf.mxu0
        %9284 = vdwg.mxu0
        %9285 = vmatprep.subr.mxu0 0.0
        %9286 = vmatpush1.msra.mxu0 0.0
        %9287 = vmatprep.subr.mxu0 0.0
        %9288 = vmatpush1.msra.mxu0 0.0
        %9289 = vmatprep.subr.mxu0 0.0
        %9290 = vmatpush1.msra.mxu0 0.0
        %9291 = vmatprep.subr.mxu0 0.0
        %9292 = vmatpush1.msra.mxu0 0.0
        %9293 = vmatprep.subr.mxu0 0.0
        %9294 = vmatpush1.msra.mxu0 0.0
        %9295 = vmatprep.subr.mxu0 0.0
        %9296 = vmatpush1.msra.mxu0 0.0
        %9297 = vmatprep.subr.mxu0 0.0
        %9298 = vmatpush1.msra.mxu0 0.0
        %9299 = vmatprep.subr.mxu0 0.0
        %9300 = vmatpush1.msra.mxu0 0.0
        %9301 = vmatprep.subr.mxu0 0.0
        %9302 = vmatpush1.msra.mxu0 0.0
        %9303 = vmatprep.subr.mxu0 0.0
        %9304 = vmatpush1.msra.mxu0 0.0
        %9305 = vmatprep.subr.mxu0 0.0
        %9306 = vmatpush1.msra.mxu0 0.0
        %9307 = vmatprep.subr.mxu0 0.0
        %9308 = vmatpush1.msra.mxu0 0.0
        %9309 = vmatprep.subr.mxu0 0.0
        %9310 = vmatpush1.msra.mxu0 0.0
        %9311 = vmatprep.subr.mxu0 0.0
        %9312 = vmatpush1.msra.mxu0 0.0
        %9313 = vmatprep.subr.mxu0 0.0
        %9314 = vmatpush1.msra.mxu0 0.0
        %9315 = vmatprep.subr.mxu0 0.0
        %9316 = vmatpush1.msra.mxu0 %v7825
        %9317 = vmatprep.subr.mxu0 0.0
        %9318 = vmatpush2.msra.mxu0 0.0
        %9319 = vmatprep.subr.mxu0 0.0
        %9320 = vmatpush2.msra.mxu0 0.0
        %9321 = vmatprep.subr.mxu0 0.0
        %9322 = vmatpush2.msra.mxu0 0.0
        %9323 = vmatprep.subr.mxu0 0.0
        %9324 = vmatpush2.msra.mxu0 0.0
        %9325 = vmatprep.subr.mxu0 0.0
        %9326 = vmatpush2.msra.mxu0 0.0
        %9327 = vmatprep.subr.mxu0 0.0
        %9328 = vmatpush2.msra.mxu0 0.0
        %9329 = vmatprep.subr.mxu0 0.0
        %9330 = vmatpush2.msra.mxu0 0.0
        %9331 = vmatprep.subr.mxu0 0.0
        %9332 = vmatpush2.msra.mxu0 0.0
        %9333 = vmatprep.subr.mxu0 0.0
        %9334 = vmatpush2.msra.mxu0 0.0
        %9335 = vmatprep.subr.mxu0 0.0
        %9336 = vmatpush2.msra.mxu0 0.0
        %9337 = vmatprep.subr.mxu0 0.0
        %9338 = vmatpush2.msra.mxu0 0.0
        %9339 = vmatprep.subr.mxu0 0.0
        %9340 = vmatpush2.msra.mxu0 0.0
        %9341 = vmatprep.subr.mxu0 0.0
        %9342 = vmatpush2.msra.mxu0 0.0
        %9343 = vmatprep.subr.mxu0 0.0
        %9344 = vmatpush2.msra.mxu0 0.0
        %9345 = vmatprep.subr.mxu0 0.0
        %9346 = vmatpush2.msra.mxu0 0.0
        %9347 = vmatprep.subr.mxu0 0.0
        %9348 = vmatpush2.msra.mxu0 0.0
        %9349 = vmatprep.mubr.f32.mxu0 0.0
        %9350 = vmatmul.mubr.f32.gmra.mxu0 %v5326
        %v9351 = vpop.f32.mrf.mxu0
        %v9352 = vadd.f32 0.0, %v9351
        %v9353 = vpop.f32.mrf.mxu0
        %9354 = vdwg.mxu0
        %9355 = vmatprep.subr.mxu0 0.0
        %9356 = vmatpush1.msra.mxu0 0.0
        %9357 = vmatprep.subr.mxu0 0.0
        %9358 = vmatpush1.msra.mxu0 0.0
        %9359 = vmatprep.subr.mxu0 0.0
        %9360 = vmatpush1.msra.mxu0 0.0
        %9361 = vmatprep.subr.mxu0 0.0
        %9362 = vmatpush1.msra.mxu0 0.0
        %9363 = vmatprep.subr.mxu0 0.0
        %9364 = vmatpush1.msra.mxu0 0.0
        %9365 = vmatprep.subr.mxu0 0.0
        %9366 = vmatpush1.msra.mxu0 0.0
        %9367 = vmatprep.subr.mxu0 0.0
        %9368 = vmatpush1.msra.mxu0 0.0
        %9369 = vmatprep.subr.mxu0 0.0
        %9370 = vmatpush1.msra.mxu0 0.0
        %9371 = vmatprep.subr.mxu0 0.0
        %9372 = vmatpush1.msra.mxu0 0.0
        %9373 = vmatprep.subr.mxu0 0.0
        %9374 = vmatpush1.msra.mxu0 0.0
        %9375 = vmatprep.subr.mxu0 0.0
        %9376 = vmatpush1.msra.mxu0 0.0
        %9377 = vmatprep.subr.mxu0 0.0
        %9378 = vmatpush1.msra.mxu0 0.0
        %9379 = vmatprep.subr.mxu0 0.0
        %9380 = vmatpush1.msra.mxu0 0.0
        %9381 = vmatprep.subr.mxu0 0.0
        %9382 = vmatpush1.msra.mxu0 0.0
        %9383 = vmatprep.subr.mxu0 0.0
        %9384 = vmatpush1.msra.mxu0 0.0
        %9385 = vmatprep.subr.mxu0 0.0
        %9386 = vmatpush1.msra.mxu0 %v7826
        %9387 = vmatprep.subr.mxu0 0.0
        %9388 = vmatpush2.msra.mxu0 0.0
        %9389 = vmatprep.subr.mxu0 0.0
        %9390 = vmatpush2.msra.mxu0 0.0
        %9391 = vmatprep.subr.mxu0 0.0
        %9392 = vmatpush2.msra.mxu0 0.0
        %9393 = vmatprep.subr.mxu0 0.0
        %9394 = vmatpush2.msra.mxu0 0.0
        %9395 = vmatprep.subr.mxu0 0.0
        %9396 = vmatpush2.msra.mxu0 0.0
        %9397 = vmatprep.subr.mxu0 0.0
        %9398 = vmatpush2.msra.mxu0 0.0
        %9399 = vmatprep.subr.mxu0 0.0
        %9400 = vmatpush2.msra.mxu0 0.0
        %9401 = vmatprep.subr.mxu0 0.0
        %9402 = vmatpush2.msra.mxu0 0.0
        %9403 = vmatprep.subr.mxu0 0.0
        %9404 = vmatpush2.msra.mxu0 0.0
        %9405 = vmatprep.subr.mxu0 0.0
        %9406 = vmatpush2.msra.mxu0 0.0
        %9407 = vmatprep.subr.mxu0 0.0
        %9408 = vmatpush2.msra.mxu0 0.0
        %9409 = vmatprep.subr.mxu0 0.0
        %9410 = vmatpush2.msra.mxu0 0.0
        %9411 = vmatprep.subr.mxu0 0.0
        %9412 = vmatpush2.msra.mxu0 0.0
        %9413 = vmatprep.subr.mxu0 0.0
        %9414 = vmatpush2.msra.mxu0 0.0
        %9415 = vmatprep.subr.mxu0 0.0
        %9416 = vmatpush2.msra.mxu0 0.0
        %9417 = vmatprep.subr.mxu0 0.0
        %9418 = vmatpush2.msra.mxu0 0.0
        %9419 = vmatprep.mubr.f32.mxu0 0.0
        %9420 = vmatmul.mubr.f32.gmra.mxu0 %v5402
        %v9421 = vpop.f32.mrf.mxu0
        %v9422 = vadd.f32 0.0, %v9421
        %v9423 = vpop.f32.mrf.mxu0
        %9424 = vdwg.mxu0
        %9425 = vmatprep.subr.mxu0 0.0
        %9426 = vmatpush1.msra.mxu0 0.0
        %9427 = vmatprep.subr.mxu0 0.0
        %9428 = vmatpush1.msra.mxu0 0.0
        %9429 = vmatprep.subr.mxu0 0.0
        %9430 = vmatpush1.msra.mxu0 0.0
        %9431 = vmatprep.subr.mxu0 0.0
        %9432 = vmatpush1.msra.mxu0 0.0
        %9433 = vmatprep.subr.mxu0 0.0
        %9434 = vmatpush1.msra.mxu0 0.0
        %9435 = vmatprep.subr.mxu0 0.0
        %9436 = vmatpush1.msra.mxu0 0.0
        %9437 = vmatprep.subr.mxu0 0.0
        %9438 = vmatpush1.msra.mxu0 0.0
        %9439 = vmatprep.subr.mxu0 0.0
        %9440 = vmatpush1.msra.mxu0 0.0
        %9441 = vmatprep.subr.mxu0 0.0
        %9442 = vmatpush1.msra.mxu0 0.0
        %9443 = vmatprep.subr.mxu0 0.0
        %9444 = vmatpush1.msra.mxu0 0.0
        %9445 = vmatprep.subr.mxu0 0.0
        %9446 = vmatpush1.msra.mxu0 0.0
        %9447 = vmatprep.subr.mxu0 0.0
        %9448 = vmatpush1.msra.mxu0 0.0
        %9449 = vmatprep.subr.mxu0 0.0
        %9450 = vmatpush1.msra.mxu0 0.0
        %9451 = vmatprep.subr.mxu0 0.0
        %9452 = vmatpush1.msra.mxu0 0.0
        %9453 = vmatprep.subr.mxu0 0.0
        %9454 = vmatpush1.msra.mxu0 0.0
        %9455 = vmatprep.subr.mxu0 0.0
        %9456 = vmatpush1.msra.mxu0 %v7827
        %9457 = vmatprep.subr.mxu0 0.0
        %9458 = vmatpush2.msra.mxu0 0.0
        %9459 = vmatprep.subr.mxu0 0.0
        %9460 = vmatpush2.msra.mxu0 0.0
        %9461 = vmatprep.subr.mxu0 0.0
        %9462 = vmatpush2.msra.mxu0 0.0
        %9463 = vmatprep.subr.mxu0 0.0
        %9464 = vmatpush2.msra.mxu0 0.0
        %9465 = vmatprep.subr.mxu0 0.0
        %9466 = vmatpush2.msra.mxu0 0.0
        %9467 = vmatprep.subr.mxu0 0.0
        %9468 = vmatpush2.msra.mxu0 0.0
        %9469 = vmatprep.subr.mxu0 0.0
        %9470 = vmatpush2.msra.mxu0 0.0
        %9471 = vmatprep.subr.mxu0 0.0
        %9472 = vmatpush2.msra.mxu0 0.0
        %9473 = vmatprep.subr.mxu0 0.0
        %9474 = vmatpush2.msra.mxu0 0.0
        %9475 = vmatprep.subr.mxu0 0.0
        %9476 = vmatpush2.msra.mxu0 0.0
        %9477 = vmatprep.subr.mxu0 0.0
        %9478 = vmatpush2.msra.mxu0 0.0
        %9479 = vmatprep.subr.mxu0 0.0
        %9480 = vmatpush2.msra.mxu0 0.0
        %9481 = vmatprep.subr.mxu0 0.0
        %9482 = vmatpush2.msra.mxu0 0.0
        %9483 = vmatprep.subr.mxu0 0.0
        %9484 = vmatpush2.msra.mxu0 0.0
        %9485 = vmatprep.subr.mxu0 0.0
        %9486 = vmatpush2.msra.mxu0 0.0
        %9487 = vmatprep.subr.mxu0 0.0
        %9488 = vmatpush2.msra.mxu0 0.0
        %9489 = vmatprep.mubr.f32.mxu0 0.0
        %9490 = vmatmul.mubr.f32.gmra.mxu0 %v5478
        %v9491 = vpop.f32.mrf.mxu0
        %v9492 = vadd.f32 0.0, %v9491
        %v9493 = vpop.f32.mrf.mxu0
        %9494 = vdwg.mxu0
        %9495 = vmatprep.subr.mxu0 0.0
        %9496 = vmatpush1.msra.mxu0 0.0
        %9497 = vmatprep.subr.mxu0 0.0
        %9498 = vmatpush1.msra.mxu0 0.0
        %9499 = vmatprep.subr.mxu0 0.0
        %9500 = vmatpush1.msra.mxu0 0.0
        %9501 = vmatprep.subr.mxu0 0.0
        %9502 = vmatpush1.msra.mxu0 0.0
        %9503 = vmatprep.subr.mxu0 0.0
        %9504 = vmatpush1.msra.mxu0 0.0
        %9505 = vmatprep.subr.mxu0 0.0
        %9506 = vmatpush1.msra.mxu0 0.0
        %9507 = vmatprep.subr.mxu0 0.0
        %9508 = vmatpush1.msra.mxu0 0.0
        %9509 = vmatprep.subr.mxu0 0.0
        %9510 = vmatpush1.msra.mxu0 0.0
        %9511 = vmatprep.subr.mxu0 0.0
        %9512 = vmatpush1.msra.mxu0 0.0
        %9513 = vmatprep.subr.mxu0 0.0
        %9514 = vmatpush1.msra.mxu0 0.0
        %9515 = vmatprep.subr.mxu0 0.0
        %9516 = vmatpush1.msra.mxu0 0.0
        %9517 = vmatprep.subr.mxu0 0.0
        %9518 = vmatpush1.msra.mxu0 0.0
        %9519 = vmatprep.subr.mxu0 0.0
        %9520 = vmatpush1.msra.mxu0 0.0
        %9521 = vmatprep.subr.mxu0 0.0
        %9522 = vmatpush1.msra.mxu0 0.0
        %9523 = vmatprep.subr.mxu0 0.0
        %9524 = vmatpush1.msra.mxu0 0.0
        %9525 = vmatprep.subr.mxu0 0.0
        %9526 = vmatpush1.msra.mxu0 %v7828
        %9527 = vmatprep.subr.mxu0 0.0
        %9528 = vmatpush2.msra.mxu0 0.0
        %9529 = vmatprep.subr.mxu0 0.0
        %9530 = vmatpush2.msra.mxu0 0.0
        %9531 = vmatprep.subr.mxu0 0.0
        %9532 = vmatpush2.msra.mxu0 0.0
        %9533 = vmatprep.subr.mxu0 0.0
        %9534 = vmatpush2.msra.mxu0 0.0
        %9535 = vmatprep.subr.mxu0 0.0
        %9536 = vmatpush2.msra.mxu0 0.0
        %9537 = vmatprep.subr.mxu0 0.0
        %9538 = vmatpush2.msra.mxu0 0.0
        %9539 = vmatprep.subr.mxu0 0.0
        %9540 = vmatpush2.msra.mxu0 0.0
        %9541 = vmatprep.subr.mxu0 0.0
        %9542 = vmatpush2.msra.mxu0 0.0
        %9543 = vmatprep.subr.mxu0 0.0
        %9544 = vmatpush2.msra.mxu0 0.0
        %9545 = vmatprep.subr.mxu0 0.0
        %9546 = vmatpush2.msra.mxu0 0.0
        %9547 = vmatprep.subr.mxu0 0.0
        %9548 = vmatpush2.msra.mxu0 0.0
        %9549 = vmatprep.subr.mxu0 0.0
        %9550 = vmatpush2.msra.mxu0 0.0
        %9551 = vmatprep.subr.mxu0 0.0
        %9552 = vmatpush2.msra.mxu0 0.0
        %9553 = vmatprep.subr.mxu0 0.0
        %9554 = vmatpush2.msra.mxu0 0.0
        %9555 = vmatprep.subr.mxu0 0.0
        %9556 = vmatpush2.msra.mxu0 0.0
        %9557 = vmatprep.subr.mxu0 0.0
        %9558 = vmatpush2.msra.mxu0 0.0
        %9559 = vmatprep.mubr.f32.mxu0 0.0
        %9560 = vmatmul.mubr.f32.gmra.mxu0 %v5554
        %v9561 = vpop.f32.mrf.mxu0
        %v9562 = vadd.f32 0.0, %v9561
        %v9563 = vpop.f32.mrf.mxu0
        %9564 = vdwg.mxu0
        %9565 = vmatprep.subr.mxu0 0.0
        %9566 = vmatpush1.msra.mxu0 0.0
        %9567 = vmatprep.subr.mxu0 0.0
        %9568 = vmatpush1.msra.mxu0 0.0
        %9569 = vmatprep.subr.mxu0 0.0
        %9570 = vmatpush1.msra.mxu0 0.0
        %9571 = vmatprep.subr.mxu0 0.0
        %9572 = vmatpush1.msra.mxu0 0.0
        %9573 = vmatprep.subr.mxu0 0.0
        %9574 = vmatpush1.msra.mxu0 0.0
        %9575 = vmatprep.subr.mxu0 0.0
        %9576 = vmatpush1.msra.mxu0 0.0
        %9577 = vmatprep.subr.mxu0 0.0
        %9578 = vmatpush1.msra.mxu0 0.0
        %9579 = vmatprep.subr.mxu0 0.0
        %9580 = vmatpush1.msra.mxu0 0.0
        %9581 = vmatprep.subr.mxu0 0.0
        %9582 = vmatpush1.msra.mxu0 0.0
        %9583 = vmatprep.subr.mxu0 0.0
        %9584 = vmatpush1.msra.mxu0 0.0
        %9585 = vmatprep.subr.mxu0 0.0
        %9586 = vmatpush1.msra.mxu0 0.0
        %9587 = vmatprep.subr.mxu0 0.0
        %9588 = vmatpush1.msra.mxu0 0.0
        %9589 = vmatprep.subr.mxu0 0.0
        %9590 = vmatpush1.msra.mxu0 0.0
        %9591 = vmatprep.subr.mxu0 0.0
        %9592 = vmatpush1.msra.mxu0 0.0
        %9593 = vmatprep.subr.mxu0 0.0
        %9594 = vmatpush1.msra.mxu0 0.0
        %9595 = vmatprep.subr.mxu0 0.0
        %9596 = vmatpush1.msra.mxu0 %v7829
        %9597 = vmatprep.subr.mxu0 0.0
        %9598 = vmatpush2.msra.mxu0 0.0
        %9599 = vmatprep.subr.mxu0 0.0
        %9600 = vmatpush2.msra.mxu0 0.0
        %9601 = vmatprep.subr.mxu0 0.0
        %9602 = vmatpush2.msra.mxu0 0.0
        %9603 = vmatprep.subr.mxu0 0.0
        %9604 = vmatpush2.msra.mxu0 0.0
        %9605 = vmatprep.subr.mxu0 0.0
        %9606 = vmatpush2.msra.mxu0 0.0
        %9607 = vmatprep.subr.mxu0 0.0
        %9608 = vmatpush2.msra.mxu0 0.0
        %9609 = vmatprep.subr.mxu0 0.0
        %9610 = vmatpush2.msra.mxu0 0.0
        %9611 = vmatprep.subr.mxu0 0.0
        %9612 = vmatpush2.msra.mxu0 0.0
        %9613 = vmatprep.subr.mxu0 0.0
        %9614 = vmatpush2.msra.mxu0 0.0
        %9615 = vmatprep.subr.mxu0 0.0
        %9616 = vmatpush2.msra.mxu0 0.0
        %9617 = vmatprep.subr.mxu0 0.0
        %9618 = vmatpush2.msra.mxu0 0.0
        %9619 = vmatprep.subr.mxu0 0.0
        %9620 = vmatpush2.msra.mxu0 0.0
        %9621 = vmatprep.subr.mxu0 0.0
        %9622 = vmatpush2.msra.mxu0 0.0
        %9623 = vmatprep.subr.mxu0 0.0
        %9624 = vmatpush2.msra.mxu0 0.0
        %9625 = vmatprep.subr.mxu0 0.0
        %9626 = vmatpush2.msra.mxu0 0.0
        %9627 = vmatprep.subr.mxu0 0.0
        %9628 = vmatpush2.msra.mxu0 0.0
        %9629 = vmatprep.mubr.f32.mxu0 0.0
        %9630 = vmatmul.mubr.f32.gmra.mxu0 %v5630
        %v9631 = vpop.f32.mrf.mxu0
        %v9632 = vadd.f32 0.0, %v9631
        %v9633 = vpop.f32.mrf.mxu0
        %9634 = vdwg.mxu0
        %9635 = vmatprep.subr.mxu0 0.0
        %9636 = vmatpush1.msra.mxu0 0.0
        %9637 = vmatprep.subr.mxu0 0.0
        %9638 = vmatpush1.msra.mxu0 0.0
        %9639 = vmatprep.subr.mxu0 0.0
        %9640 = vmatpush1.msra.mxu0 0.0
        %9641 = vmatprep.subr.mxu0 0.0
        %9642 = vmatpush1.msra.mxu0 0.0
        %9643 = vmatprep.subr.mxu0 0.0
        %9644 = vmatpush1.msra.mxu0 0.0
        %9645 = vmatprep.subr.mxu0 0.0
        %9646 = vmatpush1.msra.mxu0 0.0
        %9647 = vmatprep.subr.mxu0 0.0
        %9648 = vmatpush1.msra.mxu0 0.0
        %9649 = vmatprep.subr.mxu0 0.0
        %9650 = vmatpush1.msra.mxu0 0.0
        %9651 = vmatprep.subr.mxu0 0.0
        %9652 = vmatpush1.msra.mxu0 0.0
        %9653 = vmatprep.subr.mxu0 0.0
        %9654 = vmatpush1.msra.mxu0 0.0
        %9655 = vmatprep.subr.mxu0 0.0
        %9656 = vmatpush1.msra.mxu0 0.0
        %9657 = vmatprep.subr.mxu0 0.0
        %9658 = vmatpush1.msra.mxu0 0.0
        %9659 = vmatprep.subr.mxu0 0.0
        %9660 = vmatpush1.msra.mxu0 0.0
        %9661 = vmatprep.subr.mxu0 0.0
        %9662 = vmatpush1.msra.mxu0 0.0
        %9663 = vmatprep.subr.mxu0 0.0
        %9664 = vmatpush1.msra.mxu0 0.0
        %9665 = vmatprep.subr.mxu0 0.0
        %9666 = vmatpush1.msra.mxu0 %v7830
        %9667 = vmatprep.subr.mxu0 0.0
        %9668 = vmatpush2.msra.mxu0 0.0
        %9669 = vmatprep.subr.mxu0 0.0
        %9670 = vmatpush2.msra.mxu0 0.0
        %9671 = vmatprep.subr.mxu0 0.0
        %9672 = vmatpush2.msra.mxu0 0.0
        %9673 = vmatprep.subr.mxu0 0.0
        %9674 = vmatpush2.msra.mxu0 0.0
        %9675 = vmatprep.subr.mxu0 0.0
        %9676 = vmatpush2.msra.mxu0 0.0
        %9677 = vmatprep.subr.mxu0 0.0
        %9678 = vmatpush2.msra.mxu0 0.0
        %9679 = vmatprep.subr.mxu0 0.0
        %9680 = vmatpush2.msra.mxu0 0.0
        %9681 = vmatprep.subr.mxu0 0.0
        %9682 = vmatpush2.msra.mxu0 0.0
        %9683 = vmatprep.subr.mxu0 0.0
        %9684 = vmatpush2.msra.mxu0 0.0
        %9685 = vmatprep.subr.mxu0 0.0
        %9686 = vmatpush2.msra.mxu0 0.0
        %9687 = vmatprep.subr.mxu0 0.0
        %9688 = vmatpush2.msra.mxu0 0.0
        %9689 = vmatprep.subr.mxu0 0.0
        %9690 = vmatpush2.msra.mxu0 0.0
        %9691 = vmatprep.subr.mxu0 0.0
        %9692 = vmatpush2.msra.mxu0 0.0
        %9693 = vmatprep.subr.mxu0 0.0
        %9694 = vmatpush2.msra.mxu0 0.0
        %9695 = vmatprep.subr.mxu0 0.0
        %9696 = vmatpush2.msra.mxu0 0.0
        %9697 = vmatprep.subr.mxu0 0.0
        %9698 = vmatpush2.msra.mxu0 0.0
        %9699 = vmatprep.mubr.f32.mxu0 0.0
        %9700 = vmatmul.mubr.f32.gmra.mxu0 %v5706
        %v9701 = vpop.f32.mrf.mxu0
        %v9702 = vadd.f32 0.0, %v9701
        %v9703 = vpop.f32.mrf.mxu0
        %9704 = vdwg.mxu0
        %9705 = vmatprep.subr.mxu0 0.0
        %9706 = vmatpush1.msra.mxu0 0.0
        %9707 = vmatprep.subr.mxu0 0.0
        %9708 = vmatpush1.msra.mxu0 0.0
        %9709 = vmatprep.subr.mxu0 0.0
        %9710 = vmatpush1.msra.mxu0 0.0
        %9711 = vmatprep.subr.mxu0 0.0
        %9712 = vmatpush1.msra.mxu0 0.0
        %9713 = vmatprep.subr.mxu0 0.0
        %9714 = vmatpush1.msra.mxu0 0.0
        %9715 = vmatprep.subr.mxu0 0.0
        %9716 = vmatpush1.msra.mxu0 0.0
        %9717 = vmatprep.subr.mxu0 0.0
        %9718 = vmatpush1.msra.mxu0 0.0
        %9719 = vmatprep.subr.mxu0 0.0
        %9720 = vmatpush1.msra.mxu0 0.0
        %9721 = vmatprep.subr.mxu0 0.0
        %9722 = vmatpush1.msra.mxu0 0.0
        %9723 = vmatprep.subr.mxu0 0.0
        %9724 = vmatpush1.msra.mxu0 0.0
        %9725 = vmatprep.subr.mxu0 0.0
        %9726 = vmatpush1.msra.mxu0 0.0
        %9727 = vmatprep.subr.mxu0 0.0
        %9728 = vmatpush1.msra.mxu0 0.0
        %9729 = vmatprep.subr.mxu0 0.0
        %9730 = vmatpush1.msra.mxu0 0.0
        %9731 = vmatprep.subr.mxu0 0.0
        %9732 = vmatpush1.msra.mxu0 0.0
        %9733 = vmatprep.subr.mxu0 0.0
        %9734 = vmatpush1.msra.mxu0 0.0
        %9735 = vmatprep.subr.mxu0 0.0
        %9736 = vmatpush1.msra.mxu0 %v7831
        %9737 = vmatprep.subr.mxu0 0.0
        %9738 = vmatpush2.msra.mxu0 0.0
        %9739 = vmatprep.subr.mxu0 0.0
        %9740 = vmatpush2.msra.mxu0 0.0
        %9741 = vmatprep.subr.mxu0 0.0
        %9742 = vmatpush2.msra.mxu0 0.0
        %9743 = vmatprep.subr.mxu0 0.0
        %9744 = vmatpush2.msra.mxu0 0.0
        %9745 = vmatprep.subr.mxu0 0.0
        %9746 = vmatpush2.msra.mxu0 0.0
        %9747 = vmatprep.subr.mxu0 0.0
        %9748 = vmatpush2.msra.mxu0 0.0
        %9749 = vmatprep.subr.mxu0 0.0
        %9750 = vmatpush2.msra.mxu0 0.0
        %9751 = vmatprep.subr.mxu0 0.0
        %9752 = vmatpush2.msra.mxu0 0.0
        %9753 = vmatprep.subr.mxu0 0.0
        %9754 = vmatpush2.msra.mxu0 0.0
        %9755 = vmatprep.subr.mxu0 0.0
        %9756 = vmatpush2.msra.mxu0 0.0
        %9757 = vmatprep.subr.mxu0 0.0
        %9758 = vmatpush2.msra.mxu0 0.0
        %9759 = vmatprep.subr.mxu0 0.0
        %9760 = vmatpush2.msra.mxu0 0.0
        %9761 = vmatprep.subr.mxu0 0.0
        %9762 = vmatpush2.msra.mxu0 0.0
        %9763 = vmatprep.subr.mxu0 0.0
        %9764 = vmatpush2.msra.mxu0 0.0
        %9765 = vmatprep.subr.mxu0 0.0
        %9766 = vmatpush2.msra.mxu0 0.0
        %9767 = vmatprep.subr.mxu0 0.0
        %9768 = vmatpush2.msra.mxu0 0.0
        %9769 = vmatprep.mubr.f32.mxu0 0.0
        %9770 = vmatmul.mubr.f32.gmra.mxu0 %v5782
        %v9771 = vpop.f32.mrf.mxu0
        %v9772 = vadd.f32 0.0, %v9771
        %v9773 = vpop.f32.mrf.mxu0
        %9774 = vdwg.mxu0
        %9775 = vmatprep.subr.mxu0 0.0
        %9776 = vmatpush1.msra.mxu0 0.0
        %9777 = vmatprep.subr.mxu0 0.0
        %9778 = vmatpush1.msra.mxu0 0.0
        %9779 = vmatprep.subr.mxu0 0.0
        %9780 = vmatpush1.msra.mxu0 0.0
        %9781 = vmatprep.subr.mxu0 0.0
        %9782 = vmatpush1.msra.mxu0 0.0
        %9783 = vmatprep.subr.mxu0 0.0
        %9784 = vmatpush1.msra.mxu0 0.0
        %9785 = vmatprep.subr.mxu0 0.0
        %9786 = vmatpush1.msra.mxu0 0.0
        %9787 = vmatprep.subr.mxu0 0.0
        %9788 = vmatpush1.msra.mxu0 0.0
        %9789 = vmatprep.subr.mxu0 0.0
        %9790 = vmatpush1.msra.mxu0 0.0
        %9791 = vmatprep.subr.mxu0 0.0
        %9792 = vmatpush1.msra.mxu0 0.0
        %9793 = vmatprep.subr.mxu0 0.0
        %9794 = vmatpush1.msra.mxu0 0.0
        %9795 = vmatprep.subr.mxu0 0.0
        %9796 = vmatpush1.msra.mxu0 0.0
        %9797 = vmatprep.subr.mxu0 0.0
        %9798 = vmatpush1.msra.mxu0 0.0
        %9799 = vmatprep.subr.mxu0 0.0
        %9800 = vmatpush1.msra.mxu0 0.0
        %9801 = vmatprep.subr.mxu0 0.0
        %9802 = vmatpush1.msra.mxu0 0.0
        %9803 = vmatprep.subr.mxu0 0.0
        %9804 = vmatpush1.msra.mxu0 0.0
        %9805 = vmatprep.subr.mxu0 0.0
        %9806 = vmatpush1.msra.mxu0 %v7832
        %9807 = vmatprep.subr.mxu0 0.0
        %9808 = vmatpush2.msra.mxu0 0.0
        %9809 = vmatprep.subr.mxu0 0.0
        %9810 = vmatpush2.msra.mxu0 0.0
        %9811 = vmatprep.subr.mxu0 0.0
        %9812 = vmatpush2.msra.mxu0 0.0
        %9813 = vmatprep.subr.mxu0 0.0
        %9814 = vmatpush2.msra.mxu0 0.0
        %9815 = vmatprep.subr.mxu0 0.0
        %9816 = vmatpush2.msra.mxu0 0.0
        %9817 = vmatprep.subr.mxu0 0.0
        %9818 = vmatpush2.msra.mxu0 0.0
        %9819 = vmatprep.subr.mxu0 0.0
        %9820 = vmatpush2.msra.mxu0 0.0
        %9821 = vmatprep.subr.mxu0 0.0
        %9822 = vmatpush2.msra.mxu0 0.0
        %9823 = vmatprep.subr.mxu0 0.0
        %9824 = vmatpush2.msra.mxu0 0.0
        %9825 = vmatprep.subr.mxu0 0.0
        %9826 = vmatpush2.msra.mxu0 0.0
        %9827 = vmatprep.subr.mxu0 0.0
        %9828 = vmatpush2.msra.mxu0 0.0
        %9829 = vmatprep.subr.mxu0 0.0
        %9830 = vmatpush2.msra.mxu0 0.0
        %9831 = vmatprep.subr.mxu0 0.0
        %9832 = vmatpush2.msra.mxu0 0.0
        %9833 = vmatprep.subr.mxu0 0.0
        %9834 = vmatpush2.msra.mxu0 0.0
        %9835 = vmatprep.subr.mxu0 0.0
        %9836 = vmatpush2.msra.mxu0 0.0
        %9837 = vmatprep.subr.mxu0 0.0
        %9838 = vmatpush2.msra.mxu0 0.0
        %9839 = vmatprep.mubr.f32.mxu0 0.0
        %9840 = vmatmul.mubr.f32.gmra.mxu0 %v5858
        %v9841 = vpop.f32.mrf.mxu0
        %v9842 = vadd.f32 0.0, %v9841
        %v9843 = vpop.f32.mrf.mxu0
        %9844 = vdwg.mxu0
        %9845 = vmatprep.subr.mxu0 0.0
        %9846 = vmatpush1.msra.mxu0 0.0
        %9847 = vmatprep.subr.mxu0 0.0
        %9848 = vmatpush1.msra.mxu0 0.0
        %9849 = vmatprep.subr.mxu0 0.0
        %9850 = vmatpush1.msra.mxu0 0.0
        %9851 = vmatprep.subr.mxu0 0.0
        %9852 = vmatpush1.msra.mxu0 0.0
        %9853 = vmatprep.subr.mxu0 0.0
        %9854 = vmatpush1.msra.mxu0 0.0
        %9855 = vmatprep.subr.mxu0 0.0
        %9856 = vmatpush1.msra.mxu0 0.0
        %9857 = vmatprep.subr.mxu0 0.0
        %9858 = vmatpush1.msra.mxu0 0.0
        %9859 = vmatprep.subr.mxu0 0.0
        %9860 = vmatpush1.msra.mxu0 0.0
        %9861 = vmatprep.subr.mxu0 0.0
        %9862 = vmatpush1.msra.mxu0 0.0
        %9863 = vmatprep.subr.mxu0 0.0
        %9864 = vmatpush1.msra.mxu0 0.0
        %9865 = vmatprep.subr.mxu0 0.0
        %9866 = vmatpush1.msra.mxu0 0.0
        %9867 = vmatprep.subr.mxu0 0.0
        %9868 = vmatpush1.msra.mxu0 0.0
        %9869 = vmatprep.subr.mxu0 0.0
        %9870 = vmatpush1.msra.mxu0 0.0
        %9871 = vmatprep.subr.mxu0 0.0
        %9872 = vmatpush1.msra.mxu0 0.0
        %9873 = vmatprep.subr.mxu0 0.0
        %9874 = vmatpush1.msra.mxu0 0.0
        %9875 = vmatprep.subr.mxu0 0.0
        %9876 = vmatpush1.msra.mxu0 %v7833
        %9877 = vmatprep.subr.mxu0 0.0
        %9878 = vmatpush2.msra.mxu0 0.0
        %9879 = vmatprep.subr.mxu0 0.0
        %9880 = vmatpush2.msra.mxu0 0.0
        %9881 = vmatprep.subr.mxu0 0.0
        %9882 = vmatpush2.msra.mxu0 0.0
        %9883 = vmatprep.subr.mxu0 0.0
        %9884 = vmatpush2.msra.mxu0 0.0
        %9885 = vmatprep.subr.mxu0 0.0
        %9886 = vmatpush2.msra.mxu0 0.0
        %9887 = vmatprep.subr.mxu0 0.0
        %9888 = vmatpush2.msra.mxu0 0.0
        %9889 = vmatprep.subr.mxu0 0.0
        %9890 = vmatpush2.msra.mxu0 0.0
        %9891 = vmatprep.subr.mxu0 0.0
        %9892 = vmatpush2.msra.mxu0 0.0
        %9893 = vmatprep.subr.mxu0 0.0
        %9894 = vmatpush2.msra.mxu0 0.0
        %9895 = vmatprep.subr.mxu0 0.0
        %9896 = vmatpush2.msra.mxu0 0.0
        %9897 = vmatprep.subr.mxu0 0.0
        %9898 = vmatpush2.msra.mxu0 0.0
        %9899 = vmatprep.subr.mxu0 0.0
        %9900 = vmatpush2.msra.mxu0 0.0
        %9901 = vmatprep.subr.mxu0 0.0
        %9902 = vmatpush2.msra.mxu0 0.0
        %9903 = vmatprep.subr.mxu0 0.0
        %9904 = vmatpush2.msra.mxu0 0.0
        %9905 = vmatprep.subr.mxu0 0.0
        %9906 = vmatpush2.msra.mxu0 0.0
        %9907 = vmatprep.subr.mxu0 0.0
        %9908 = vmatpush2.msra.mxu0 0.0
        %9909 = vmatprep.mubr.f32.mxu0 0.0
        %9910 = vmatmul.mubr.f32.gmra.mxu0 %v5934
        %v9911 = vpop.f32.mrf.mxu0
        %v9912 = vadd.f32 0.0, %v9911
        %v9913 = vpop.f32.mrf.mxu0
        %9914 = vdwg.mxu0
        %9915 = vmatprep.subr.mxu0 0.0
        %9916 = vmatpush1.msra.mxu0 0.0
        %9917 = vmatprep.subr.mxu0 0.0
        %9918 = vmatpush1.msra.mxu0 0.0
        %9919 = vmatprep.subr.mxu0 0.0
        %9920 = vmatpush1.msra.mxu0 0.0
        %9921 = vmatprep.subr.mxu0 0.0
        %9922 = vmatpush1.msra.mxu0 0.0
        %9923 = vmatprep.subr.mxu0 0.0
        %9924 = vmatpush1.msra.mxu0 0.0
        %9925 = vmatprep.subr.mxu0 0.0
        %9926 = vmatpush1.msra.mxu0 0.0
        %9927 = vmatprep.subr.mxu0 0.0
        %9928 = vmatpush1.msra.mxu0 0.0
        %9929 = vmatprep.subr.mxu0 0.0
        %9930 = vmatpush1.msra.mxu0 0.0
        %9931 = vmatprep.subr.mxu0 0.0
        %9932 = vmatpush1.msra.mxu0 0.0
        %9933 = vmatprep.subr.mxu0 0.0
        %9934 = vmatpush1.msra.mxu0 0.0
        %9935 = vmatprep.subr.mxu0 0.0
        %9936 = vmatpush1.msra.mxu0 0.0
        %9937 = vmatprep.subr.mxu0 0.0
        %9938 = vmatpush1.msra.mxu0 0.0
        %9939 = vmatprep.subr.mxu0 0.0
        %9940 = vmatpush1.msra.mxu0 0.0
        %9941 = vmatprep.subr.mxu0 0.0
        %9942 = vmatpush1.msra.mxu0 0.0
        %9943 = vmatprep.subr.mxu0 0.0
        %9944 = vmatpush1.msra.mxu0 0.0
        %9945 = vmatprep.subr.mxu0 0.0
        %9946 = vmatpush1.msra.mxu0 %v7834
        %9947 = vmatprep.subr.mxu0 0.0
        %9948 = vmatpush2.msra.mxu0 0.0
        %9949 = vmatprep.subr.mxu0 0.0
        %9950 = vmatpush2.msra.mxu0 0.0
        %9951 = vmatprep.subr.mxu0 0.0
        %9952 = vmatpush2.msra.mxu0 0.0
        %9953 = vmatprep.subr.mxu0 0.0
        %9954 = vmatpush2.msra.mxu0 0.0
        %9955 = vmatprep.subr.mxu0 0.0
        %9956 = vmatpush2.msra.mxu0 0.0
        %9957 = vmatprep.subr.mxu0 0.0
        %9958 = vmatpush2.msra.mxu0 0.0
        %9959 = vmatprep.subr.mxu0 0.0
        %9960 = vmatpush2.msra.mxu0 0.0
        %9961 = vmatprep.subr.mxu0 0.0
        %9962 = vmatpush2.msra.mxu0 0.0
        %9963 = vmatprep.subr.mxu0 0.0
        %9964 = vmatpush2.msra.mxu0 0.0
        %9965 = vmatprep.subr.mxu0 0.0
        %9966 = vmatpush2.msra.mxu0 0.0
        %9967 = vmatprep.subr.mxu0 0.0
        %9968 = vmatpush2.msra.mxu0 0.0
        %9969 = vmatprep.subr.mxu0 0.0
        %9970 = vmatpush2.msra.mxu0 0.0
        %9971 = vmatprep.subr.mxu0 0.0
        %9972 = vmatpush2.msra.mxu0 0.0
        %9973 = vmatprep.subr.mxu0 0.0
        %9974 = vmatpush2.msra.mxu0 0.0
        %9975 = vmatprep.subr.mxu0 0.0
        %9976 = vmatpush2.msra.mxu0 0.0
        %9977 = vmatprep.subr.mxu0 0.0
        %9978 = vmatpush2.msra.mxu0 0.0
        %9979 = vmatprep.mubr.f32.mxu0 0.0
        %9980 = vmatmul.mubr.f32.gmra.mxu0 %v6010
        %v9981 = vpop.f32.mrf.mxu0
        %v9982 = vadd.f32 0.0, %v9981
        %v9983 = vpop.f32.mrf.mxu0
        %9984 = vdwg.mxu0
        %9985 = vmatprep.subr.mxu0 0.0
        %9986 = vmatpush1.msra.mxu0 0.0
        %9987 = vmatprep.subr.mxu0 0.0
        %9988 = vmatpush1.msra.mxu0 0.0
        %9989 = vmatprep.subr.mxu0 0.0
        %9990 = vmatpush1.msra.mxu0 0.0
        %9991 = vmatprep.subr.mxu0 0.0
        %9992 = vmatpush1.msra.mxu0 0.0
        %9993 = vmatprep.subr.mxu0 0.0
        %9994 = vmatpush1.msra.mxu0 0.0
        %9995 = vmatprep.subr.mxu0 0.0
        %9996 = vmatpush1.msra.mxu0 0.0
        %9997 = vmatprep.subr.mxu0 0.0
        %9998 = vmatpush1.msra.mxu0 0.0
        %9999 = vmatprep.subr.mxu0 0.0
        %10000 = vmatpush1.msra.mxu0 0.0
        %10001 = vmatprep.subr.mxu0 0.0
        %10002 = vmatpush1.msra.mxu0 0.0
        %10003 = vmatprep.subr.mxu0 0.0
        %10004 = vmatpush1.msra.mxu0 0.0
        %10005 = vmatprep.subr.mxu0 0.0
        %10006 = vmatpush1.msra.mxu0 0.0
        %10007 = vmatprep.subr.mxu0 0.0
        %10008 = vmatpush1.msra.mxu0 0.0
        %10009 = vmatprep.subr.mxu0 0.0
        %10010 = vmatpush1.msra.mxu0 0.0
        %10011 = vmatprep.subr.mxu0 0.0
        %10012 = vmatpush1.msra.mxu0 0.0
        %10013 = vmatprep.subr.mxu0 0.0
        %10014 = vmatpush1.msra.mxu0 0.0
        %10015 = vmatprep.subr.mxu0 0.0
        %10016 = vmatpush1.msra.mxu0 %v7835
        %10017 = vmatprep.subr.mxu0 0.0
        %10018 = vmatpush2.msra.mxu0 0.0
        %10019 = vmatprep.subr.mxu0 0.0
        %10020 = vmatpush2.msra.mxu0 0.0
        %10021 = vmatprep.subr.mxu0 0.0
        %10022 = vmatpush2.msra.mxu0 0.0
        %10023 = vmatprep.subr.mxu0 0.0
        %10024 = vmatpush2.msra.mxu0 0.0
        %10025 = vmatprep.subr.mxu0 0.0
        %10026 = vmatpush2.msra.mxu0 0.0
        %10027 = vmatprep.subr.mxu0 0.0
        %10028 = vmatpush2.msra.mxu0 0.0
        %10029 = vmatprep.subr.mxu0 0.0
        %10030 = vmatpush2.msra.mxu0 0.0
        %10031 = vmatprep.subr.mxu0 0.0
        %10032 = vmatpush2.msra.mxu0 0.0
        %10033 = vmatprep.subr.mxu0 0.0
        %10034 = vmatpush2.msra.mxu0 0.0
        %10035 = vmatprep.subr.mxu0 0.0
        %10036 = vmatpush2.msra.mxu0 0.0
        %10037 = vmatprep.subr.mxu0 0.0
        %10038 = vmatpush2.msra.mxu0 0.0
        %10039 = vmatprep.subr.mxu0 0.0
        %10040 = vmatpush2.msra.mxu0 0.0
        %10041 = vmatprep.subr.mxu0 0.0
        %10042 = vmatpush2.msra.mxu0 0.0
        %10043 = vmatprep.subr.mxu0 0.0
        %10044 = vmatpush2.msra.mxu0 0.0
        %10045 = vmatprep.subr.mxu0 0.0
        %10046 = vmatpush2.msra.mxu0 0.0
        %10047 = vmatprep.subr.mxu0 0.0
        %10048 = vmatpush2.msra.mxu0 0.0
        %10049 = vmatprep.mubr.f32.mxu0 0.0
        %10050 = vmatmul.mubr.f32.gmra.mxu0 %v6086
        %v10051 = vpop.f32.mrf.mxu0
        %v10052 = vadd.f32 0.0, %v10051
        %v10053 = vpop.f32.mrf.mxu0
        %10054 = vdwg.mxu0
        %10055 = vmatprep.subr.mxu0 0.0
        %10056 = vmatpush1.msra.mxu0 0.0
        %10057 = vmatprep.subr.mxu0 0.0
        %10058 = vmatpush1.msra.mxu0 0.0
        %10059 = vmatprep.subr.mxu0 0.0
        %10060 = vmatpush1.msra.mxu0 0.0
        %10061 = vmatprep.subr.mxu0 0.0
        %10062 = vmatpush1.msra.mxu0 0.0
        %10063 = vmatprep.subr.mxu0 0.0
        %10064 = vmatpush1.msra.mxu0 0.0
        %10065 = vmatprep.subr.mxu0 0.0
        %10066 = vmatpush1.msra.mxu0 0.0
        %10067 = vmatprep.subr.mxu0 0.0
        %10068 = vmatpush1.msra.mxu0 0.0
        %10069 = vmatprep.subr.mxu0 0.0
        %10070 = vmatpush1.msra.mxu0 0.0
        %10071 = vmatprep.subr.mxu0 0.0
        %10072 = vmatpush1.msra.mxu0 0.0
        %10073 = vmatprep.subr.mxu0 0.0
        %10074 = vmatpush1.msra.mxu0 0.0
        %10075 = vmatprep.subr.mxu0 0.0
        %10076 = vmatpush1.msra.mxu0 0.0
        %10077 = vmatprep.subr.mxu0 0.0
        %10078 = vmatpush1.msra.mxu0 0.0
        %10079 = vmatprep.subr.mxu0 0.0
        %10080 = vmatpush1.msra.mxu0 0.0
        %10081 = vmatprep.subr.mxu0 0.0
        %10082 = vmatpush1.msra.mxu0 0.0
        %10083 = vmatprep.subr.mxu0 0.0
        %10084 = vmatpush1.msra.mxu0 0.0
        %10085 = vmatprep.subr.mxu0 0.0
        %10086 = vmatpush1.msra.mxu0 %v7836
        %10087 = vmatprep.subr.mxu0 0.0
        %10088 = vmatpush2.msra.mxu0 0.0
        %10089 = vmatprep.subr.mxu0 0.0
        %10090 = vmatpush2.msra.mxu0 0.0
        %10091 = vmatprep.subr.mxu0 0.0
        %10092 = vmatpush2.msra.mxu0 0.0
        %10093 = vmatprep.subr.mxu0 0.0
        %10094 = vmatpush2.msra.mxu0 0.0
        %10095 = vmatprep.subr.mxu0 0.0
        %10096 = vmatpush2.msra.mxu0 0.0
        %10097 = vmatprep.subr.mxu0 0.0
        %10098 = vmatpush2.msra.mxu0 0.0
        %10099 = vmatprep.subr.mxu0 0.0
        %10100 = vmatpush2.msra.mxu0 0.0
        %10101 = vmatprep.subr.mxu0 0.0
        %10102 = vmatpush2.msra.mxu0 0.0
        %10103 = vmatprep.subr.mxu0 0.0
        %10104 = vmatpush2.msra.mxu0 0.0
        %10105 = vmatprep.subr.mxu0 0.0
        %10106 = vmatpush2.msra.mxu0 0.0
        %10107 = vmatprep.subr.mxu0 0.0
        %10108 = vmatpush2.msra.mxu0 0.0
        %10109 = vmatprep.subr.mxu0 0.0
        %10110 = vmatpush2.msra.mxu0 0.0
        %10111 = vmatprep.subr.mxu0 0.0
        %10112 = vmatpush2.msra.mxu0 0.0
        %10113 = vmatprep.subr.mxu0 0.0
        %10114 = vmatpush2.msra.mxu0 0.0
        %10115 = vmatprep.subr.mxu0 0.0
        %10116 = vmatpush2.msra.mxu0 0.0
        %10117 = vmatprep.subr.mxu0 0.0
        %10118 = vmatpush2.msra.mxu0 0.0
        %10119 = vmatprep.mubr.f32.mxu0 0.0
        %10120 = vmatmul.mubr.f32.gmra.mxu0 %v6162
        %v10121 = vpop.f32.mrf.mxu0
        %v10122 = vadd.f32 0.0, %v10121
        %v10123 = vpop.f32.mrf.mxu0
        %10124 = vdwg.mxu0
        %v10125 = vmul.f32 %v7907, %v9072
        %v10126 = vmul.f32 %v7980, %v9142
        %v10127 = vmul.f32 %v8053, %v9212
        %v10128 = vmul.f32 %v8126, %v9282
        %v10129 = vmul.f32 %v8199, %v9352
        %v10130 = vmul.f32 %v8272, %v9422
        %v10131 = vmul.f32 %v8345, %v9492
        %v10132 = vmul.f32 %v8418, %v9562
        %v10133 = vmul.f32 %v8491, %v9632
        %v10134 = vmul.f32 %v8564, %v9702
        %v10135 = vmul.f32 %v8637, %v9772
        %v10136 = vmul.f32 %v8710, %v9842
        %v10137 = vmul.f32 %v8783, %v9912
        %v10138 = vmul.f32 %v8856, %v9982
        %v10139 = vmul.f32 %v8929, %v10052
        %v10140 = vmul.f32 %v9002, %v10122
        %v10142 = vsel %vm5020, %v10125, 0
        %10144 = vmatprep.subr.mxu0 0.0
        %10145 = vmatpush1.msra.mxu0 0.0
        %10146 = vmatprep.subr.mxu0 0.0
        %10147 = vmatpush1.msra.mxu0 0.0
        %10148 = vmatprep.subr.mxu0 0.0
        %10149 = vmatpush1.msra.mxu0 0.0
        %10150 = vmatprep.subr.mxu0 0.0
        %10151 = vmatpush1.msra.mxu0 0.0
        %10152 = vmatprep.subr.mxu0 0.0
        %10153 = vmatpush1.msra.mxu0 0.0
        %10154 = vmatprep.subr.mxu0 0.0
        %10155 = vmatpush1.msra.mxu0 0.0
        %10156 = vmatprep.subr.mxu0 0.0
        %10157 = vmatpush1.msra.mxu0 0.0
        %10158 = vmatprep.subr.mxu0 0.0
        %10159 = vmatpush1.msra.mxu0 0.0
        %10160 = vmatprep.subr.mxu0 0.0
        %10161 = vmatpush1.msra.mxu0 0.0
        %10162 = vmatprep.subr.mxu0 0.0
        %10163 = vmatpush1.msra.mxu0 0.0
        %10164 = vmatprep.subr.mxu0 0.0
        %10165 = vmatpush1.msra.mxu0 0.0
        %10166 = vmatprep.subr.mxu0 0.0
        %10167 = vmatpush1.msra.mxu0 0.0
        %10168 = vmatprep.subr.mxu0 0.0
        %10169 = vmatpush1.msra.mxu0 0.0
        %10170 = vmatprep.subr.mxu0 0.0
        %10171 = vmatpush1.msra.mxu0 0.0
        %10172 = vmatprep.subr.mxu0 0.0
        %10173 = vmatpush1.msra.mxu0 0.0
        %10174 = vmatprep.subr.mxu0 0.0
        %10175 = vmatpush1.msra.mxu0 %v463
        %10176 = vmatprep.subr.mxu0 0.0
        %10177 = vmatpush2.msra.mxu0 0.0
        %10178 = vmatprep.subr.mxu0 0.0
        %10179 = vmatpush2.msra.mxu0 0.0
        %10180 = vmatprep.subr.mxu0 0.0
        %10181 = vmatpush2.msra.mxu0 0.0
        %10182 = vmatprep.subr.mxu0 0.0
        %10183 = vmatpush2.msra.mxu0 0.0
        %10184 = vmatprep.subr.mxu0 0.0
        %10185 = vmatpush2.msra.mxu0 0.0
        %10186 = vmatprep.subr.mxu0 0.0
        %10187 = vmatpush2.msra.mxu0 0.0
        %10188 = vmatprep.subr.mxu0 0.0
        %10189 = vmatpush2.msra.mxu0 0.0
        %10190 = vmatprep.subr.mxu0 0.0
        %10191 = vmatpush2.msra.mxu0 0.0
        %10192 = vmatprep.subr.mxu0 0.0
        %10193 = vmatpush2.msra.mxu0 0.0
        %10194 = vmatprep.subr.mxu0 0.0
        %10195 = vmatpush2.msra.mxu0 0.0
        %10196 = vmatprep.subr.mxu0 0.0
        %10197 = vmatpush2.msra.mxu0 0.0
        %10198 = vmatprep.subr.mxu0 0.0
        %10199 = vmatpush2.msra.mxu0 0.0
        %10200 = vmatprep.subr.mxu0 0.0
        %10201 = vmatpush2.msra.mxu0 0.0
        %10202 = vmatprep.subr.mxu0 0.0
        %10203 = vmatpush2.msra.mxu0 0.0
        %10204 = vmatprep.subr.mxu0 0.0
        %10205 = vmatpush2.msra.mxu0 0.0
        %10206 = vmatprep.subr.mxu0 0.0
        %10207 = vmatpush2.msra.mxu0 0.0
        %10208 = vmatprep.mubr.f32.mxu0 0.0
        %10209 = vmatmul.mubr.f32.gmra.mxu0 %v10142
        %v10210 = vpop.f32.mrf.mxu0
        %v10211 = vadd.f32 0.0, %v10210
        %v10212 = vpop.f32.mrf.mxu0
        %10213 = vdwg.mxu0
        %v10215 = vsel %vm5020, %v10126, 0
        %10217 = vmatprep.subr.mxu0 0.0
        %10218 = vmatpush1.msra.mxu0 0.0
        %10219 = vmatprep.subr.mxu0 0.0
        %10220 = vmatpush1.msra.mxu0 0.0
        %10221 = vmatprep.subr.mxu0 0.0
        %10222 = vmatpush1.msra.mxu0 0.0
        %10223 = vmatprep.subr.mxu0 0.0
        %10224 = vmatpush1.msra.mxu0 0.0
        %10225 = vmatprep.subr.mxu0 0.0
        %10226 = vmatpush1.msra.mxu0 0.0
        %10227 = vmatprep.subr.mxu0 0.0
        %10228 = vmatpush1.msra.mxu0 0.0
        %10229 = vmatprep.subr.mxu0 0.0
        %10230 = vmatpush1.msra.mxu0 0.0
        %10231 = vmatprep.subr.mxu0 0.0
        %10232 = vmatpush1.msra.mxu0 0.0
        %10233 = vmatprep.subr.mxu0 0.0
        %10234 = vmatpush1.msra.mxu0 0.0
        %10235 = vmatprep.subr.mxu0 0.0
        %10236 = vmatpush1.msra.mxu0 0.0
        %10237 = vmatprep.subr.mxu0 0.0
        %10238 = vmatpush1.msra.mxu0 0.0
        %10239 = vmatprep.subr.mxu0 0.0
        %10240 = vmatpush1.msra.mxu0 0.0
        %10241 = vmatprep.subr.mxu0 0.0
        %10242 = vmatpush1.msra.mxu0 0.0
        %10243 = vmatprep.subr.mxu0 0.0
        %10244 = vmatpush1.msra.mxu0 0.0
        %10245 = vmatprep.subr.mxu0 0.0
        %10246 = vmatpush1.msra.mxu0 0.0
        %10247 = vmatprep.subr.mxu0 0.0
        %10248 = vmatpush1.msra.mxu0 %v464
        %10249 = vmatprep.subr.mxu0 0.0
        %10250 = vmatpush2.msra.mxu0 0.0
        %10251 = vmatprep.subr.mxu0 0.0
        %10252 = vmatpush2.msra.mxu0 0.0
        %10253 = vmatprep.subr.mxu0 0.0
        %10254 = vmatpush2.msra.mxu0 0.0
        %10255 = vmatprep.subr.mxu0 0.0
        %10256 = vmatpush2.msra.mxu0 0.0
        %10257 = vmatprep.subr.mxu0 0.0
        %10258 = vmatpush2.msra.mxu0 0.0
        %10259 = vmatprep.subr.mxu0 0.0
        %10260 = vmatpush2.msra.mxu0 0.0
        %10261 = vmatprep.subr.mxu0 0.0
        %10262 = vmatpush2.msra.mxu0 0.0
        %10263 = vmatprep.subr.mxu0 0.0
        %10264 = vmatpush2.msra.mxu0 0.0
        %10265 = vmatprep.subr.mxu0 0.0
        %10266 = vmatpush2.msra.mxu0 0.0
        %10267 = vmatprep.subr.mxu0 0.0
        %10268 = vmatpush2.msra.mxu0 0.0
        %10269 = vmatprep.subr.mxu0 0.0
        %10270 = vmatpush2.msra.mxu0 0.0
        %10271 = vmatprep.subr.mxu0 0.0
        %10272 = vmatpush2.msra.mxu0 0.0
        %10273 = vmatprep.subr.mxu0 0.0
        %10274 = vmatpush2.msra.mxu0 0.0
        %10275 = vmatprep.subr.mxu0 0.0
        %10276 = vmatpush2.msra.mxu0 0.0
        %10277 = vmatprep.subr.mxu0 0.0
        %10278 = vmatpush2.msra.mxu0 0.0
        %10279 = vmatprep.subr.mxu0 0.0
        %10280 = vmatpush2.msra.mxu0 0.0
        %10281 = vmatprep.mubr.f32.mxu0 0.0
        %10282 = vmatmul.mubr.f32.gmra.mxu0 %v10215
        %v10283 = vpop.f32.mrf.mxu0
        %v10284 = vadd.f32 0.0, %v10283
        %v10285 = vpop.f32.mrf.mxu0
        %10286 = vdwg.mxu0
        %v10288 = vsel %vm5020, %v10127, 0
        %10290 = vmatprep.subr.mxu0 0.0
        %10291 = vmatpush1.msra.mxu0 0.0
        %10292 = vmatprep.subr.mxu0 0.0
        %10293 = vmatpush1.msra.mxu0 0.0
        %10294 = vmatprep.subr.mxu0 0.0
        %10295 = vmatpush1.msra.mxu0 0.0
        %10296 = vmatprep.subr.mxu0 0.0
        %10297 = vmatpush1.msra.mxu0 0.0
        %10298 = vmatprep.subr.mxu0 0.0
        %10299 = vmatpush1.msra.mxu0 0.0
        %10300 = vmatprep.subr.mxu0 0.0
        %10301 = vmatpush1.msra.mxu0 0.0
        %10302 = vmatprep.subr.mxu0 0.0
        %10303 = vmatpush1.msra.mxu0 0.0
        %10304 = vmatprep.subr.mxu0 0.0
        %10305 = vmatpush1.msra.mxu0 0.0
        %10306 = vmatprep.subr.mxu0 0.0
        %10307 = vmatpush1.msra.mxu0 0.0
        %10308 = vmatprep.subr.mxu0 0.0
        %10309 = vmatpush1.msra.mxu0 0.0
        %10310 = vmatprep.subr.mxu0 0.0
        %10311 = vmatpush1.msra.mxu0 0.0
        %10312 = vmatprep.subr.mxu0 0.0
        %10313 = vmatpush1.msra.mxu0 0.0
        %10314 = vmatprep.subr.mxu0 0.0
        %10315 = vmatpush1.msra.mxu0 0.0
        %10316 = vmatprep.subr.mxu0 0.0
        %10317 = vmatpush1.msra.mxu0 0.0
        %10318 = vmatprep.subr.mxu0 0.0
        %10319 = vmatpush1.msra.mxu0 0.0
        %10320 = vmatprep.subr.mxu0 0.0
        %10321 = vmatpush1.msra.mxu0 %v465
        %10322 = vmatprep.subr.mxu0 0.0
        %10323 = vmatpush2.msra.mxu0 0.0
        %10324 = vmatprep.subr.mxu0 0.0
        %10325 = vmatpush2.msra.mxu0 0.0
        %10326 = vmatprep.subr.mxu0 0.0
        %10327 = vmatpush2.msra.mxu0 0.0
        %10328 = vmatprep.subr.mxu0 0.0
        %10329 = vmatpush2.msra.mxu0 0.0
        %10330 = vmatprep.subr.mxu0 0.0
        %10331 = vmatpush2.msra.mxu0 0.0
        %10332 = vmatprep.subr.mxu0 0.0
        %10333 = vmatpush2.msra.mxu0 0.0
        %10334 = vmatprep.subr.mxu0 0.0
        %10335 = vmatpush2.msra.mxu0 0.0
        %10336 = vmatprep.subr.mxu0 0.0
        %10337 = vmatpush2.msra.mxu0 0.0
        %10338 = vmatprep.subr.mxu0 0.0
        %10339 = vmatpush2.msra.mxu0 0.0
        %10340 = vmatprep.subr.mxu0 0.0
        %10341 = vmatpush2.msra.mxu0 0.0
        %10342 = vmatprep.subr.mxu0 0.0
        %10343 = vmatpush2.msra.mxu0 0.0
        %10344 = vmatprep.subr.mxu0 0.0
        %10345 = vmatpush2.msra.mxu0 0.0
        %10346 = vmatprep.subr.mxu0 0.0
        %10347 = vmatpush2.msra.mxu0 0.0
        %10348 = vmatprep.subr.mxu0 0.0
        %10349 = vmatpush2.msra.mxu0 0.0
        %10350 = vmatprep.subr.mxu0 0.0
        %10351 = vmatpush2.msra.mxu0 0.0
        %10352 = vmatprep.subr.mxu0 0.0
        %10353 = vmatpush2.msra.mxu0 0.0
        %10354 = vmatprep.mubr.f32.mxu0 0.0
        %10355 = vmatmul.mubr.f32.gmra.mxu0 %v10288
        %v10356 = vpop.f32.mrf.mxu0
        %v10357 = vadd.f32 0.0, %v10356
        %v10358 = vpop.f32.mrf.mxu0
        %10359 = vdwg.mxu0
        %v10361 = vsel %vm5020, %v10128, 0
        %10363 = vmatprep.subr.mxu0 0.0
        %10364 = vmatpush1.msra.mxu0 0.0
        %10365 = vmatprep.subr.mxu0 0.0
        %10366 = vmatpush1.msra.mxu0 0.0
        %10367 = vmatprep.subr.mxu0 0.0
        %10368 = vmatpush1.msra.mxu0 0.0
        %10369 = vmatprep.subr.mxu0 0.0
        %10370 = vmatpush1.msra.mxu0 0.0
        %10371 = vmatprep.subr.mxu0 0.0
        %10372 = vmatpush1.msra.mxu0 0.0
        %10373 = vmatprep.subr.mxu0 0.0
        %10374 = vmatpush1.msra.mxu0 0.0
        %10375 = vmatprep.subr.mxu0 0.0
        %10376 = vmatpush1.msra.mxu0 0.0
        %10377 = vmatprep.subr.mxu0 0.0
        %10378 = vmatpush1.msra.mxu0 0.0
        %10379 = vmatprep.subr.mxu0 0.0
        %10380 = vmatpush1.msra.mxu0 0.0
        %10381 = vmatprep.subr.mxu0 0.0
        %10382 = vmatpush1.msra.mxu0 0.0
        %10383 = vmatprep.subr.mxu0 0.0
        %10384 = vmatpush1.msra.mxu0 0.0
        %10385 = vmatprep.subr.mxu0 0.0
        %10386 = vmatpush1.msra.mxu0 0.0
        %10387 = vmatprep.subr.mxu0 0.0
        %10388 = vmatpush1.msra.mxu0 0.0
        %10389 = vmatprep.subr.mxu0 0.0
        %10390 = vmatpush1.msra.mxu0 0.0
        %10391 = vmatprep.subr.mxu0 0.0
        %10392 = vmatpush1.msra.mxu0 0.0
        %10393 = vmatprep.subr.mxu0 0.0
        %10394 = vmatpush1.msra.mxu0 %v466
        %10395 = vmatprep.subr.mxu0 0.0
        %10396 = vmatpush2.msra.mxu0 0.0
        %10397 = vmatprep.subr.mxu0 0.0
        %10398 = vmatpush2.msra.mxu0 0.0
        %10399 = vmatprep.subr.mxu0 0.0
        %10400 = vmatpush2.msra.mxu0 0.0
        %10401 = vmatprep.subr.mxu0 0.0
        %10402 = vmatpush2.msra.mxu0 0.0
        %10403 = vmatprep.subr.mxu0 0.0
        %10404 = vmatpush2.msra.mxu0 0.0
        %10405 = vmatprep.subr.mxu0 0.0
        %10406 = vmatpush2.msra.mxu0 0.0
        %10407 = vmatprep.subr.mxu0 0.0
        %10408 = vmatpush2.msra.mxu0 0.0
        %10409 = vmatprep.subr.mxu0 0.0
        %10410 = vmatpush2.msra.mxu0 0.0
        %10411 = vmatprep.subr.mxu0 0.0
        %10412 = vmatpush2.msra.mxu0 0.0
        %10413 = vmatprep.subr.mxu0 0.0
        %10414 = vmatpush2.msra.mxu0 0.0
        %10415 = vmatprep.subr.mxu0 0.0
        %10416 = vmatpush2.msra.mxu0 0.0
        %10417 = vmatprep.subr.mxu0 0.0
        %10418 = vmatpush2.msra.mxu0 0.0
        %10419 = vmatprep.subr.mxu0 0.0
        %10420 = vmatpush2.msra.mxu0 0.0
        %10421 = vmatprep.subr.mxu0 0.0
        %10422 = vmatpush2.msra.mxu0 0.0
        %10423 = vmatprep.subr.mxu0 0.0
        %10424 = vmatpush2.msra.mxu0 0.0
        %10425 = vmatprep.subr.mxu0 0.0
        %10426 = vmatpush2.msra.mxu0 0.0
        %10427 = vmatprep.mubr.f32.mxu0 0.0
        %10428 = vmatmul.mubr.f32.gmra.mxu0 %v10361
        %v10429 = vpop.f32.mrf.mxu0
        %v10430 = vadd.f32 0.0, %v10429
        %v10431 = vpop.f32.mrf.mxu0
        %10432 = vdwg.mxu0
        %v10434 = vsel %vm5020, %v10129, 0
        %10436 = vmatprep.subr.mxu0 0.0
        %10437 = vmatpush1.msra.mxu0 0.0
        %10438 = vmatprep.subr.mxu0 0.0
        %10439 = vmatpush1.msra.mxu0 0.0
        %10440 = vmatprep.subr.mxu0 0.0
        %10441 = vmatpush1.msra.mxu0 0.0
        %10442 = vmatprep.subr.mxu0 0.0
        %10443 = vmatpush1.msra.mxu0 0.0
        %10444 = vmatprep.subr.mxu0 0.0
        %10445 = vmatpush1.msra.mxu0 0.0
        %10446 = vmatprep.subr.mxu0 0.0
        %10447 = vmatpush1.msra.mxu0 0.0
        %10448 = vmatprep.subr.mxu0 0.0
        %10449 = vmatpush1.msra.mxu0 0.0
        %10450 = vmatprep.subr.mxu0 0.0
        %10451 = vmatpush1.msra.mxu0 0.0
        %10452 = vmatprep.subr.mxu0 0.0
        %10453 = vmatpush1.msra.mxu0 0.0
        %10454 = vmatprep.subr.mxu0 0.0
        %10455 = vmatpush1.msra.mxu0 0.0
        %10456 = vmatprep.subr.mxu0 0.0
        %10457 = vmatpush1.msra.mxu0 0.0
        %10458 = vmatprep.subr.mxu0 0.0
        %10459 = vmatpush1.msra.mxu0 0.0
        %10460 = vmatprep.subr.mxu0 0.0
        %10461 = vmatpush1.msra.mxu0 0.0
        %10462 = vmatprep.subr.mxu0 0.0
        %10463 = vmatpush1.msra.mxu0 0.0
        %10464 = vmatprep.subr.mxu0 0.0
        %10465 = vmatpush1.msra.mxu0 0.0
        %10466 = vmatprep.subr.mxu0 0.0
        %10467 = vmatpush1.msra.mxu0 %v463
        %10468 = vmatprep.subr.mxu0 0.0
        %10469 = vmatpush2.msra.mxu0 0.0
        %10470 = vmatprep.subr.mxu0 0.0
        %10471 = vmatpush2.msra.mxu0 0.0
        %10472 = vmatprep.subr.mxu0 0.0
        %10473 = vmatpush2.msra.mxu0 0.0
        %10474 = vmatprep.subr.mxu0 0.0
        %10475 = vmatpush2.msra.mxu0 0.0
        %10476 = vmatprep.subr.mxu0 0.0
        %10477 = vmatpush2.msra.mxu0 0.0
        %10478 = vmatprep.subr.mxu0 0.0
        %10479 = vmatpush2.msra.mxu0 0.0
        %10480 = vmatprep.subr.mxu0 0.0
        %10481 = vmatpush2.msra.mxu0 0.0
        %10482 = vmatprep.subr.mxu0 0.0
        %10483 = vmatpush2.msra.mxu0 0.0
        %10484 = vmatprep.subr.mxu0 0.0
        %10485 = vmatpush2.msra.mxu0 0.0
        %10486 = vmatprep.subr.mxu0 0.0
        %10487 = vmatpush2.msra.mxu0 0.0
        %10488 = vmatprep.subr.mxu0 0.0
        %10489 = vmatpush2.msra.mxu0 0.0
        %10490 = vmatprep.subr.mxu0 0.0
        %10491 = vmatpush2.msra.mxu0 0.0
        %10492 = vmatprep.subr.mxu0 0.0
        %10493 = vmatpush2.msra.mxu0 0.0
        %10494 = vmatprep.subr.mxu0 0.0
        %10495 = vmatpush2.msra.mxu0 0.0
        %10496 = vmatprep.subr.mxu0 0.0
        %10497 = vmatpush2.msra.mxu0 0.0
        %10498 = vmatprep.subr.mxu0 0.0
        %10499 = vmatpush2.msra.mxu0 0.0
        %10500 = vmatprep.mubr.f32.mxu0 0.0
        %10501 = vmatmul.mubr.f32.gmra.mxu0 %v10434
        %v10502 = vpop.f32.mrf.mxu0
        %v10503 = vadd.f32 0.0, %v10502
        %v10504 = vpop.f32.mrf.mxu0
        %10505 = vdwg.mxu0
        %v10507 = vsel %vm5020, %v10130, 0
        %10509 = vmatprep.subr.mxu0 0.0
        %10510 = vmatpush1.msra.mxu0 0.0
        %10511 = vmatprep.subr.mxu0 0.0
        %10512 = vmatpush1.msra.mxu0 0.0
        %10513 = vmatprep.subr.mxu0 0.0
        %10514 = vmatpush1.msra.mxu0 0.0
        %10515 = vmatprep.subr.mxu0 0.0
        %10516 = vmatpush1.msra.mxu0 0.0
        %10517 = vmatprep.subr.mxu0 0.0
        %10518 = vmatpush1.msra.mxu0 0.0
        %10519 = vmatprep.subr.mxu0 0.0
        %10520 = vmatpush1.msra.mxu0 0.0
        %10521 = vmatprep.subr.mxu0 0.0
        %10522 = vmatpush1.msra.mxu0 0.0
        %10523 = vmatprep.subr.mxu0 0.0
        %10524 = vmatpush1.msra.mxu0 0.0
        %10525 = vmatprep.subr.mxu0 0.0
        %10526 = vmatpush1.msra.mxu0 0.0
        %10527 = vmatprep.subr.mxu0 0.0
        %10528 = vmatpush1.msra.mxu0 0.0
        %10529 = vmatprep.subr.mxu0 0.0
        %10530 = vmatpush1.msra.mxu0 0.0
        %10531 = vmatprep.subr.mxu0 0.0
        %10532 = vmatpush1.msra.mxu0 0.0
        %10533 = vmatprep.subr.mxu0 0.0
        %10534 = vmatpush1.msra.mxu0 0.0
        %10535 = vmatprep.subr.mxu0 0.0
        %10536 = vmatpush1.msra.mxu0 0.0
        %10537 = vmatprep.subr.mxu0 0.0
        %10538 = vmatpush1.msra.mxu0 0.0
        %10539 = vmatprep.subr.mxu0 0.0
        %10540 = vmatpush1.msra.mxu0 %v464
        %10541 = vmatprep.subr.mxu0 0.0
        %10542 = vmatpush2.msra.mxu0 0.0
        %10543 = vmatprep.subr.mxu0 0.0
        %10544 = vmatpush2.msra.mxu0 0.0
        %10545 = vmatprep.subr.mxu0 0.0
        %10546 = vmatpush2.msra.mxu0 0.0
        %10547 = vmatprep.subr.mxu0 0.0
        %10548 = vmatpush2.msra.mxu0 0.0
        %10549 = vmatprep.subr.mxu0 0.0
        %10550 = vmatpush2.msra.mxu0 0.0
        %10551 = vmatprep.subr.mxu0 0.0
        %10552 = vmatpush2.msra.mxu0 0.0
        %10553 = vmatprep.subr.mxu0 0.0
        %10554 = vmatpush2.msra.mxu0 0.0
        %10555 = vmatprep.subr.mxu0 0.0
        %10556 = vmatpush2.msra.mxu0 0.0
        %10557 = vmatprep.subr.mxu0 0.0
        %10558 = vmatpush2.msra.mxu0 0.0
        %10559 = vmatprep.subr.mxu0 0.0
        %10560 = vmatpush2.msra.mxu0 0.0
        %10561 = vmatprep.subr.mxu0 0.0
        %10562 = vmatpush2.msra.mxu0 0.0
        %10563 = vmatprep.subr.mxu0 0.0
        %10564 = vmatpush2.msra.mxu0 0.0
        %10565 = vmatprep.subr.mxu0 0.0
        %10566 = vmatpush2.msra.mxu0 0.0
        %10567 = vmatprep.subr.mxu0 0.0
        %10568 = vmatpush2.msra.mxu0 0.0
        %10569 = vmatprep.subr.mxu0 0.0
        %10570 = vmatpush2.msra.mxu0 0.0
        %10571 = vmatprep.subr.mxu0 0.0
        %10572 = vmatpush2.msra.mxu0 0.0
        %10573 = vmatprep.mubr.f32.mxu0 0.0
        %10574 = vmatmul.mubr.f32.gmra.mxu0 %v10507
        %v10575 = vpop.f32.mrf.mxu0
        %v10576 = vadd.f32 0.0, %v10575
        %v10577 = vpop.f32.mrf.mxu0
        %10578 = vdwg.mxu0
        %v10580 = vsel %vm5020, %v10131, 0
        %10582 = vmatprep.subr.mxu0 0.0
        %10583 = vmatpush1.msra.mxu0 0.0
        %10584 = vmatprep.subr.mxu0 0.0
        %10585 = vmatpush1.msra.mxu0 0.0
        %10586 = vmatprep.subr.mxu0 0.0
        %10587 = vmatpush1.msra.mxu0 0.0
        %10588 = vmatprep.subr.mxu0 0.0
        %10589 = vmatpush1.msra.mxu0 0.0
        %10590 = vmatprep.subr.mxu0 0.0
        %10591 = vmatpush1.msra.mxu0 0.0
        %10592 = vmatprep.subr.mxu0 0.0
        %10593 = vmatpush1.msra.mxu0 0.0
        %10594 = vmatprep.subr.mxu0 0.0
        %10595 = vmatpush1.msra.mxu0 0.0
        %10596 = vmatprep.subr.mxu0 0.0
        %10597 = vmatpush1.msra.mxu0 0.0
        %10598 = vmatprep.subr.mxu0 0.0
        %10599 = vmatpush1.msra.mxu0 0.0
        %10600 = vmatprep.subr.mxu0 0.0
        %10601 = vmatpush1.msra.mxu0 0.0
        %10602 = vmatprep.subr.mxu0 0.0
        %10603 = vmatpush1.msra.mxu0 0.0
        %10604 = vmatprep.subr.mxu0 0.0
        %10605 = vmatpush1.msra.mxu0 0.0
        %10606 = vmatprep.subr.mxu0 0.0
        %10607 = vmatpush1.msra.mxu0 0.0
        %10608 = vmatprep.subr.mxu0 0.0
        %10609 = vmatpush1.msra.mxu0 0.0
        %10610 = vmatprep.subr.mxu0 0.0
        %10611 = vmatpush1.msra.mxu0 0.0
        %10612 = vmatprep.subr.mxu0 0.0
        %10613 = vmatpush1.msra.mxu0 %v465
        %10614 = vmatprep.subr.mxu0 0.0
        %10615 = vmatpush2.msra.mxu0 0.0
        %10616 = vmatprep.subr.mxu0 0.0
        %10617 = vmatpush2.msra.mxu0 0.0
        %10618 = vmatprep.subr.mxu0 0.0
        %10619 = vmatpush2.msra.mxu0 0.0
        %10620 = vmatprep.subr.mxu0 0.0
        %10621 = vmatpush2.msra.mxu0 0.0
        %10622 = vmatprep.subr.mxu0 0.0
        %10623 = vmatpush2.msra.mxu0 0.0
        %10624 = vmatprep.subr.mxu0 0.0
        %10625 = vmatpush2.msra.mxu0 0.0
        %10626 = vmatprep.subr.mxu0 0.0
        %10627 = vmatpush2.msra.mxu0 0.0
        %10628 = vmatprep.subr.mxu0 0.0
        %10629 = vmatpush2.msra.mxu0 0.0
        %10630 = vmatprep.subr.mxu0 0.0
        %10631 = vmatpush2.msra.mxu0 0.0
        %10632 = vmatprep.subr.mxu0 0.0
        %10633 = vmatpush2.msra.mxu0 0.0
        %10634 = vmatprep.subr.mxu0 0.0
        %10635 = vmatpush2.msra.mxu0 0.0
        %10636 = vmatprep.subr.mxu0 0.0
        %10637 = vmatpush2.msra.mxu0 0.0
        %10638 = vmatprep.subr.mxu0 0.0
        %10639 = vmatpush2.msra.mxu0 0.0
        %10640 = vmatprep.subr.mxu0 0.0
        %10641 = vmatpush2.msra.mxu0 0.0
        %10642 = vmatprep.subr.mxu0 0.0
        %10643 = vmatpush2.msra.mxu0 0.0
        %10644 = vmatprep.subr.mxu0 0.0
        %10645 = vmatpush2.msra.mxu0 0.0
        %10646 = vmatprep.mubr.f32.mxu0 0.0
        %10647 = vmatmul.mubr.f32.gmra.mxu0 %v10580
        %v10648 = vpop.f32.mrf.mxu0
        %v10649 = vadd.f32 0.0, %v10648
        %v10650 = vpop.f32.mrf.mxu0
        %10651 = vdwg.mxu0
        %v10653 = vsel %vm5020, %v10132, 0
        %10655 = vmatprep.subr.mxu0 0.0
        %10656 = vmatpush1.msra.mxu0 0.0
        %10657 = vmatprep.subr.mxu0 0.0
        %10658 = vmatpush1.msra.mxu0 0.0
        %10659 = vmatprep.subr.mxu0 0.0
        %10660 = vmatpush1.msra.mxu0 0.0
        %10661 = vmatprep.subr.mxu0 0.0
        %10662 = vmatpush1.msra.mxu0 0.0
        %10663 = vmatprep.subr.mxu0 0.0
        %10664 = vmatpush1.msra.mxu0 0.0
        %10665 = vmatprep.subr.mxu0 0.0
        %10666 = vmatpush1.msra.mxu0 0.0
        %10667 = vmatprep.subr.mxu0 0.0
        %10668 = vmatpush1.msra.mxu0 0.0
        %10669 = vmatprep.subr.mxu0 0.0
        %10670 = vmatpush1.msra.mxu0 0.0
        %10671 = vmatprep.subr.mxu0 0.0
        %10672 = vmatpush1.msra.mxu0 0.0
        %10673 = vmatprep.subr.mxu0 0.0
        %10674 = vmatpush1.msra.mxu0 0.0
        %10675 = vmatprep.subr.mxu0 0.0
        %10676 = vmatpush1.msra.mxu0 0.0
        %10677 = vmatprep.subr.mxu0 0.0
        %10678 = vmatpush1.msra.mxu0 0.0
        %10679 = vmatprep.subr.mxu0 0.0
        %10680 = vmatpush1.msra.mxu0 0.0
        %10681 = vmatprep.subr.mxu0 0.0
        %10682 = vmatpush1.msra.mxu0 0.0
        %10683 = vmatprep.subr.mxu0 0.0
        %10684 = vmatpush1.msra.mxu0 0.0
        %10685 = vmatprep.subr.mxu0 0.0
        %10686 = vmatpush1.msra.mxu0 %v466
        %10687 = vmatprep.subr.mxu0 0.0
        %10688 = vmatpush2.msra.mxu0 0.0
        %10689 = vmatprep.subr.mxu0 0.0
        %10690 = vmatpush2.msra.mxu0 0.0
        %10691 = vmatprep.subr.mxu0 0.0
        %10692 = vmatpush2.msra.mxu0 0.0
        %10693 = vmatprep.subr.mxu0 0.0
        %10694 = vmatpush2.msra.mxu0 0.0
        %10695 = vmatprep.subr.mxu0 0.0
        %10696 = vmatpush2.msra.mxu0 0.0
        %10697 = vmatprep.subr.mxu0 0.0
        %10698 = vmatpush2.msra.mxu0 0.0
        %10699 = vmatprep.subr.mxu0 0.0
        %10700 = vmatpush2.msra.mxu0 0.0
        %10701 = vmatprep.subr.mxu0 0.0
        %10702 = vmatpush2.msra.mxu0 0.0
        %10703 = vmatprep.subr.mxu0 0.0
        %10704 = vmatpush2.msra.mxu0 0.0
        %10705 = vmatprep.subr.mxu0 0.0
        %10706 = vmatpush2.msra.mxu0 0.0
        %10707 = vmatprep.subr.mxu0 0.0
        %10708 = vmatpush2.msra.mxu0 0.0
        %10709 = vmatprep.subr.mxu0 0.0
        %10710 = vmatpush2.msra.mxu0 0.0
        %10711 = vmatprep.subr.mxu0 0.0
        %10712 = vmatpush2.msra.mxu0 0.0
        %10713 = vmatprep.subr.mxu0 0.0
        %10714 = vmatpush2.msra.mxu0 0.0
        %10715 = vmatprep.subr.mxu0 0.0
        %10716 = vmatpush2.msra.mxu0 0.0
        %10717 = vmatprep.subr.mxu0 0.0
        %10718 = vmatpush2.msra.mxu0 0.0
        %10719 = vmatprep.mubr.f32.mxu0 0.0
        %10720 = vmatmul.mubr.f32.gmra.mxu0 %v10653
        %v10721 = vpop.f32.mrf.mxu0
        %v10722 = vadd.f32 0.0, %v10721
        %v10723 = vpop.f32.mrf.mxu0
        %10724 = vdwg.mxu0
        %v10726 = vsel %vm5020, %v10133, 0
        %10728 = vmatprep.subr.mxu0 0.0
        %10729 = vmatpush1.msra.mxu0 0.0
        %10730 = vmatprep.subr.mxu0 0.0
        %10731 = vmatpush1.msra.mxu0 0.0
        %10732 = vmatprep.subr.mxu0 0.0
        %10733 = vmatpush1.msra.mxu0 0.0
        %10734 = vmatprep.subr.mxu0 0.0
        %10735 = vmatpush1.msra.mxu0 0.0
        %10736 = vmatprep.subr.mxu0 0.0
        %10737 = vmatpush1.msra.mxu0 0.0
        %10738 = vmatprep.subr.mxu0 0.0
        %10739 = vmatpush1.msra.mxu0 0.0
        %10740 = vmatprep.subr.mxu0 0.0
        %10741 = vmatpush1.msra.mxu0 0.0
        %10742 = vmatprep.subr.mxu0 0.0
        %10743 = vmatpush1.msra.mxu0 0.0
        %10744 = vmatprep.subr.mxu0 0.0
        %10745 = vmatpush1.msra.mxu0 0.0
        %10746 = vmatprep.subr.mxu0 0.0
        %10747 = vmatpush1.msra.mxu0 0.0
        %10748 = vmatprep.subr.mxu0 0.0
        %10749 = vmatpush1.msra.mxu0 0.0
        %10750 = vmatprep.subr.mxu0 0.0
        %10751 = vmatpush1.msra.mxu0 0.0
        %10752 = vmatprep.subr.mxu0 0.0
        %10753 = vmatpush1.msra.mxu0 0.0
        %10754 = vmatprep.subr.mxu0 0.0
        %10755 = vmatpush1.msra.mxu0 0.0
        %10756 = vmatprep.subr.mxu0 0.0
        %10757 = vmatpush1.msra.mxu0 0.0
        %10758 = vmatprep.subr.mxu0 0.0
        %10759 = vmatpush1.msra.mxu0 %v463
        %10760 = vmatprep.subr.mxu0 0.0
        %10761 = vmatpush2.msra.mxu0 0.0
        %10762 = vmatprep.subr.mxu0 0.0
        %10763 = vmatpush2.msra.mxu0 0.0
        %10764 = vmatprep.subr.mxu0 0.0
        %10765 = vmatpush2.msra.mxu0 0.0
        %10766 = vmatprep.subr.mxu0 0.0
        %10767 = vmatpush2.msra.mxu0 0.0
        %10768 = vmatprep.subr.mxu0 0.0
        %10769 = vmatpush2.msra.mxu0 0.0
        %10770 = vmatprep.subr.mxu0 0.0
        %10771 = vmatpush2.msra.mxu0 0.0
        %10772 = vmatprep.subr.mxu0 0.0
        %10773 = vmatpush2.msra.mxu0 0.0
        %10774 = vmatprep.subr.mxu0 0.0
        %10775 = vmatpush2.msra.mxu0 0.0
        %10776 = vmatprep.subr.mxu0 0.0
        %10777 = vmatpush2.msra.mxu0 0.0
        %10778 = vmatprep.subr.mxu0 0.0
        %10779 = vmatpush2.msra.mxu0 0.0
        %10780 = vmatprep.subr.mxu0 0.0
        %10781 = vmatpush2.msra.mxu0 0.0
        %10782 = vmatprep.subr.mxu0 0.0
        %10783 = vmatpush2.msra.mxu0 0.0
        %10784 = vmatprep.subr.mxu0 0.0
        %10785 = vmatpush2.msra.mxu0 0.0
        %10786 = vmatprep.subr.mxu0 0.0
        %10787 = vmatpush2.msra.mxu0 0.0
        %10788 = vmatprep.subr.mxu0 0.0
        %10789 = vmatpush2.msra.mxu0 0.0
        %10790 = vmatprep.subr.mxu0 0.0
        %10791 = vmatpush2.msra.mxu0 0.0
        %10792 = vmatprep.mubr.f32.mxu0 0.0
        %10793 = vmatmul.mubr.f32.gmra.mxu0 %v10726
        %v10794 = vpop.f32.mrf.mxu0
        %v10795 = vadd.f32 0.0, %v10794
        %v10796 = vpop.f32.mrf.mxu0
        %10797 = vdwg.mxu0
        %v10799 = vsel %vm5020, %v10134, 0
        %10801 = vmatprep.subr.mxu0 0.0
        %10802 = vmatpush1.msra.mxu0 0.0
        %10803 = vmatprep.subr.mxu0 0.0
        %10804 = vmatpush1.msra.mxu0 0.0
        %10805 = vmatprep.subr.mxu0 0.0
        %10806 = vmatpush1.msra.mxu0 0.0
        %10807 = vmatprep.subr.mxu0 0.0
        %10808 = vmatpush1.msra.mxu0 0.0
        %10809 = vmatprep.subr.mxu0 0.0
        %10810 = vmatpush1.msra.mxu0 0.0
        %10811 = vmatprep.subr.mxu0 0.0
        %10812 = vmatpush1.msra.mxu0 0.0
        %10813 = vmatprep.subr.mxu0 0.0
        %10814 = vmatpush1.msra.mxu0 0.0
        %10815 = vmatprep.subr.mxu0 0.0
        %10816 = vmatpush1.msra.mxu0 0.0
        %10817 = vmatprep.subr.mxu0 0.0
        %10818 = vmatpush1.msra.mxu0 0.0
        %10819 = vmatprep.subr.mxu0 0.0
        %10820 = vmatpush1.msra.mxu0 0.0
        %10821 = vmatprep.subr.mxu0 0.0
        %10822 = vmatpush1.msra.mxu0 0.0
        %10823 = vmatprep.subr.mxu0 0.0
        %10824 = vmatpush1.msra.mxu0 0.0
        %10825 = vmatprep.subr.mxu0 0.0
        %10826 = vmatpush1.msra.mxu0 0.0
        %10827 = vmatprep.subr.mxu0 0.0
        %10828 = vmatpush1.msra.mxu0 0.0
        %10829 = vmatprep.subr.mxu0 0.0
        %10830 = vmatpush1.msra.mxu0 0.0
        %10831 = vmatprep.subr.mxu0 0.0
        %10832 = vmatpush1.msra.mxu0 %v464
        %10833 = vmatprep.subr.mxu0 0.0
        %10834 = vmatpush2.msra.mxu0 0.0
        %10835 = vmatprep.subr.mxu0 0.0
        %10836 = vmatpush2.msra.mxu0 0.0
        %10837 = vmatprep.subr.mxu0 0.0
        %10838 = vmatpush2.msra.mxu0 0.0
        %10839 = vmatprep.subr.mxu0 0.0
        %10840 = vmatpush2.msra.mxu0 0.0
        %10841 = vmatprep.subr.mxu0 0.0
        %10842 = vmatpush2.msra.mxu0 0.0
        %10843 = vmatprep.subr.mxu0 0.0
        %10844 = vmatpush2.msra.mxu0 0.0
        %10845 = vmatprep.subr.mxu0 0.0
        %10846 = vmatpush2.msra.mxu0 0.0
        %10847 = vmatprep.subr.mxu0 0.0
        %10848 = vmatpush2.msra.mxu0 0.0
        %10849 = vmatprep.subr.mxu0 0.0
        %10850 = vmatpush2.msra.mxu0 0.0
        %10851 = vmatprep.subr.mxu0 0.0
        %10852 = vmatpush2.msra.mxu0 0.0
        %10853 = vmatprep.subr.mxu0 0.0
        %10854 = vmatpush2.msra.mxu0 0.0
        %10855 = vmatprep.subr.mxu0 0.0
        %10856 = vmatpush2.msra.mxu0 0.0
        %10857 = vmatprep.subr.mxu0 0.0
        %10858 = vmatpush2.msra.mxu0 0.0
        %10859 = vmatprep.subr.mxu0 0.0
        %10860 = vmatpush2.msra.mxu0 0.0
        %10861 = vmatprep.subr.mxu0 0.0
        %10862 = vmatpush2.msra.mxu0 0.0
        %10863 = vmatprep.subr.mxu0 0.0
        %10864 = vmatpush2.msra.mxu0 0.0
        %10865 = vmatprep.mubr.f32.mxu0 0.0
        %10866 = vmatmul.mubr.f32.gmra.mxu0 %v10799
        %v10867 = vpop.f32.mrf.mxu0
        %v10868 = vadd.f32 0.0, %v10867
        %v10869 = vpop.f32.mrf.mxu0
        %10870 = vdwg.mxu0
        %v10872 = vsel %vm5020, %v10135, 0
        %10874 = vmatprep.subr.mxu0 0.0
        %10875 = vmatpush1.msra.mxu0 0.0
        %10876 = vmatprep.subr.mxu0 0.0
        %10877 = vmatpush1.msra.mxu0 0.0
        %10878 = vmatprep.subr.mxu0 0.0
        %10879 = vmatpush1.msra.mxu0 0.0
        %10880 = vmatprep.subr.mxu0 0.0
        %10881 = vmatpush1.msra.mxu0 0.0
        %10882 = vmatprep.subr.mxu0 0.0
        %10883 = vmatpush1.msra.mxu0 0.0
        %10884 = vmatprep.subr.mxu0 0.0
        %10885 = vmatpush1.msra.mxu0 0.0
        %10886 = vmatprep.subr.mxu0 0.0
        %10887 = vmatpush1.msra.mxu0 0.0
        %10888 = vmatprep.subr.mxu0 0.0
        %10889 = vmatpush1.msra.mxu0 0.0
        %10890 = vmatprep.subr.mxu0 0.0
        %10891 = vmatpush1.msra.mxu0 0.0
        %10892 = vmatprep.subr.mxu0 0.0
        %10893 = vmatpush1.msra.mxu0 0.0
        %10894 = vmatprep.subr.mxu0 0.0
        %10895 = vmatpush1.msra.mxu0 0.0
        %10896 = vmatprep.subr.mxu0 0.0
        %10897 = vmatpush1.msra.mxu0 0.0
        %10898 = vmatprep.subr.mxu0 0.0
        %10899 = vmatpush1.msra.mxu0 0.0
        %10900 = vmatprep.subr.mxu0 0.0
        %10901 = vmatpush1.msra.mxu0 0.0
        %10902 = vmatprep.subr.mxu0 0.0
        %10903 = vmatpush1.msra.mxu0 0.0
        %10904 = vmatprep.subr.mxu0 0.0
        %10905 = vmatpush1.msra.mxu0 %v465
        %10906 = vmatprep.subr.mxu0 0.0
        %10907 = vmatpush2.msra.mxu0 0.0
        %10908 = vmatprep.subr.mxu0 0.0
        %10909 = vmatpush2.msra.mxu0 0.0
        %10910 = vmatprep.subr.mxu0 0.0
        %10911 = vmatpush2.msra.mxu0 0.0
        %10912 = vmatprep.subr.mxu0 0.0
        %10913 = vmatpush2.msra.mxu0 0.0
        %10914 = vmatprep.subr.mxu0 0.0
        %10915 = vmatpush2.msra.mxu0 0.0
        %10916 = vmatprep.subr.mxu0 0.0
        %10917 = vmatpush2.msra.mxu0 0.0
        %10918 = vmatprep.subr.mxu0 0.0
        %10919 = vmatpush2.msra.mxu0 0.0
        %10920 = vmatprep.subr.mxu0 0.0
        %10921 = vmatpush2.msra.mxu0 0.0
        %10922 = vmatprep.subr.mxu0 0.0
        %10923 = vmatpush2.msra.mxu0 0.0
        %10924 = vmatprep.subr.mxu0 0.0
        %10925 = vmatpush2.msra.mxu0 0.0
        %10926 = vmatprep.subr.mxu0 0.0
        %10927 = vmatpush2.msra.mxu0 0.0
        %10928 = vmatprep.subr.mxu0 0.0
        %10929 = vmatpush2.msra.mxu0 0.0
        %10930 = vmatprep.subr.mxu0 0.0
        %10931 = vmatpush2.msra.mxu0 0.0
        %10932 = vmatprep.subr.mxu0 0.0
        %10933 = vmatpush2.msra.mxu0 0.0
        %10934 = vmatprep.subr.mxu0 0.0
        %10935 = vmatpush2.msra.mxu0 0.0
        %10936 = vmatprep.subr.mxu0 0.0
        %10937 = vmatpush2.msra.mxu0 0.0
        %10938 = vmatprep.mubr.f32.mxu0 0.0
        %10939 = vmatmul.mubr.f32.gmra.mxu0 %v10872
        %v10940 = vpop.f32.mrf.mxu0
        %v10941 = vadd.f32 0.0, %v10940
        %v10942 = vpop.f32.mrf.mxu0
        %10943 = vdwg.mxu0
        %v10945 = vsel %vm5020, %v10136, 0
        %10947 = vmatprep.subr.mxu0 0.0
        %10948 = vmatpush1.msra.mxu0 0.0
        %10949 = vmatprep.subr.mxu0 0.0
        %10950 = vmatpush1.msra.mxu0 0.0
        %10951 = vmatprep.subr.mxu0 0.0
        %10952 = vmatpush1.msra.mxu0 0.0
        %10953 = vmatprep.subr.mxu0 0.0
        %10954 = vmatpush1.msra.mxu0 0.0
        %10955 = vmatprep.subr.mxu0 0.0
        %10956 = vmatpush1.msra.mxu0 0.0
        %10957 = vmatprep.subr.mxu0 0.0
        %10958 = vmatpush1.msra.mxu0 0.0
        %10959 = vmatprep.subr.mxu0 0.0
        %10960 = vmatpush1.msra.mxu0 0.0
        %10961 = vmatprep.subr.mxu0 0.0
        %10962 = vmatpush1.msra.mxu0 0.0
        %10963 = vmatprep.subr.mxu0 0.0
        %10964 = vmatpush1.msra.mxu0 0.0
        %10965 = vmatprep.subr.mxu0 0.0
        %10966 = vmatpush1.msra.mxu0 0.0
        %10967 = vmatprep.subr.mxu0 0.0
        %10968 = vmatpush1.msra.mxu0 0.0
        %10969 = vmatprep.subr.mxu0 0.0
        %10970 = vmatpush1.msra.mxu0 0.0
        %10971 = vmatprep.subr.mxu0 0.0
        %10972 = vmatpush1.msra.mxu0 0.0
        %10973 = vmatprep.subr.mxu0 0.0
        %10974 = vmatpush1.msra.mxu0 0.0
        %10975 = vmatprep.subr.mxu0 0.0
        %10976 = vmatpush1.msra.mxu0 0.0
        %10977 = vmatprep.subr.mxu0 0.0
        %10978 = vmatpush1.msra.mxu0 %v466
        %10979 = vmatprep.subr.mxu0 0.0
        %10980 = vmatpush2.msra.mxu0 0.0
        %10981 = vmatprep.subr.mxu0 0.0
        %10982 = vmatpush2.msra.mxu0 0.0
        %10983 = vmatprep.subr.mxu0 0.0
        %10984 = vmatpush2.msra.mxu0 0.0
        %10985 = vmatprep.subr.mxu0 0.0
        %10986 = vmatpush2.msra.mxu0 0.0
        %10987 = vmatprep.subr.mxu0 0.0
        %10988 = vmatpush2.msra.mxu0 0.0
        %10989 = vmatprep.subr.mxu0 0.0
        %10990 = vmatpush2.msra.mxu0 0.0
        %10991 = vmatprep.subr.mxu0 0.0
        %10992 = vmatpush2.msra.mxu0 0.0
        %10993 = vmatprep.subr.mxu0 0.0
        %10994 = vmatpush2.msra.mxu0 0.0
        %10995 = vmatprep.subr.mxu0 0.0
        %10996 = vmatpush2.msra.mxu0 0.0
        %10997 = vmatprep.subr.mxu0 0.0
        %10998 = vmatpush2.msra.mxu0 0.0
        %10999 = vmatprep.subr.mxu0 0.0
        %11000 = vmatpush2.msra.mxu0 0.0
        %11001 = vmatprep.subr.mxu0 0.0
        %11002 = vmatpush2.msra.mxu0 0.0
        %11003 = vmatprep.subr.mxu0 0.0
        %11004 = vmatpush2.msra.mxu0 0.0
        %11005 = vmatprep.subr.mxu0 0.0
        %11006 = vmatpush2.msra.mxu0 0.0
        %11007 = vmatprep.subr.mxu0 0.0
        %11008 = vmatpush2.msra.mxu0 0.0
        %11009 = vmatprep.subr.mxu0 0.0
        %11010 = vmatpush2.msra.mxu0 0.0
        %11011 = vmatprep.mubr.f32.mxu0 0.0
        %11012 = vmatmul.mubr.f32.gmra.mxu0 %v10945
        %v11013 = vpop.f32.mrf.mxu0
        %v11014 = vadd.f32 0.0, %v11013
        %v11015 = vpop.f32.mrf.mxu0
        %11016 = vdwg.mxu0
        %v11018 = vsel %vm5020, %v10137, 0
        %11020 = vmatprep.subr.mxu0 0.0
        %11021 = vmatpush1.msra.mxu0 0.0
        %11022 = vmatprep.subr.mxu0 0.0
        %11023 = vmatpush1.msra.mxu0 0.0
        %11024 = vmatprep.subr.mxu0 0.0
        %11025 = vmatpush1.msra.mxu0 0.0
        %11026 = vmatprep.subr.mxu0 0.0
        %11027 = vmatpush1.msra.mxu0 0.0
        %11028 = vmatprep.subr.mxu0 0.0
        %11029 = vmatpush1.msra.mxu0 0.0
        %11030 = vmatprep.subr.mxu0 0.0
        %11031 = vmatpush1.msra.mxu0 0.0
        %11032 = vmatprep.subr.mxu0 0.0
        %11033 = vmatpush1.msra.mxu0 0.0
        %11034 = vmatprep.subr.mxu0 0.0
        %11035 = vmatpush1.msra.mxu0 0.0
        %11036 = vmatprep.subr.mxu0 0.0
        %11037 = vmatpush1.msra.mxu0 0.0
        %11038 = vmatprep.subr.mxu0 0.0
        %11039 = vmatpush1.msra.mxu0 0.0
        %11040 = vmatprep.subr.mxu0 0.0
        %11041 = vmatpush1.msra.mxu0 0.0
        %11042 = vmatprep.subr.mxu0 0.0
        %11043 = vmatpush1.msra.mxu0 0.0
        %11044 = vmatprep.subr.mxu0 0.0
        %11045 = vmatpush1.msra.mxu0 0.0
        %11046 = vmatprep.subr.mxu0 0.0
        %11047 = vmatpush1.msra.mxu0 0.0
        %11048 = vmatprep.subr.mxu0 0.0
        %11049 = vmatpush1.msra.mxu0 0.0
        %11050 = vmatprep.subr.mxu0 0.0
        %11051 = vmatpush1.msra.mxu0 %v463
        %11052 = vmatprep.subr.mxu0 0.0
        %11053 = vmatpush2.msra.mxu0 0.0
        %11054 = vmatprep.subr.mxu0 0.0
        %11055 = vmatpush2.msra.mxu0 0.0
        %11056 = vmatprep.subr.mxu0 0.0
        %11057 = vmatpush2.msra.mxu0 0.0
        %11058 = vmatprep.subr.mxu0 0.0
        %11059 = vmatpush2.msra.mxu0 0.0
        %11060 = vmatprep.subr.mxu0 0.0
        %11061 = vmatpush2.msra.mxu0 0.0
        %11062 = vmatprep.subr.mxu0 0.0
        %11063 = vmatpush2.msra.mxu0 0.0
        %11064 = vmatprep.subr.mxu0 0.0
        %11065 = vmatpush2.msra.mxu0 0.0
        %11066 = vmatprep.subr.mxu0 0.0
        %11067 = vmatpush2.msra.mxu0 0.0
        %11068 = vmatprep.subr.mxu0 0.0
        %11069 = vmatpush2.msra.mxu0 0.0
        %11070 = vmatprep.subr.mxu0 0.0
        %11071 = vmatpush2.msra.mxu0 0.0
        %11072 = vmatprep.subr.mxu0 0.0
        %11073 = vmatpush2.msra.mxu0 0.0
        %11074 = vmatprep.subr.mxu0 0.0
        %11075 = vmatpush2.msra.mxu0 0.0
        %11076 = vmatprep.subr.mxu0 0.0
        %11077 = vmatpush2.msra.mxu0 0.0
        %11078 = vmatprep.subr.mxu0 0.0
        %11079 = vmatpush2.msra.mxu0 0.0
        %11080 = vmatprep.subr.mxu0 0.0
        %11081 = vmatpush2.msra.mxu0 0.0
        %11082 = vmatprep.subr.mxu0 0.0
        %11083 = vmatpush2.msra.mxu0 0.0
        %11084 = vmatprep.mubr.f32.mxu0 0.0
        %11085 = vmatmul.mubr.f32.gmra.mxu0 %v11018
        %v11086 = vpop.f32.mrf.mxu0
        %v11087 = vadd.f32 0.0, %v11086
        %v11088 = vpop.f32.mrf.mxu0
        %11089 = vdwg.mxu0
        %v11091 = vsel %vm5020, %v10138, 0
        %11093 = vmatprep.subr.mxu0 0.0
        %11094 = vmatpush1.msra.mxu0 0.0
        %11095 = vmatprep.subr.mxu0 0.0
        %11096 = vmatpush1.msra.mxu0 0.0
        %11097 = vmatprep.subr.mxu0 0.0
        %11098 = vmatpush1.msra.mxu0 0.0
        %11099 = vmatprep.subr.mxu0 0.0
        %11100 = vmatpush1.msra.mxu0 0.0
        %11101 = vmatprep.subr.mxu0 0.0
        %11102 = vmatpush1.msra.mxu0 0.0
        %11103 = vmatprep.subr.mxu0 0.0
        %11104 = vmatpush1.msra.mxu0 0.0
        %11105 = vmatprep.subr.mxu0 0.0
        %11106 = vmatpush1.msra.mxu0 0.0
        %11107 = vmatprep.subr.mxu0 0.0
        %11108 = vmatpush1.msra.mxu0 0.0
        %11109 = vmatprep.subr.mxu0 0.0
        %11110 = vmatpush1.msra.mxu0 0.0
        %11111 = vmatprep.subr.mxu0 0.0
        %11112 = vmatpush1.msra.mxu0 0.0
        %11113 = vmatprep.subr.mxu0 0.0
        %11114 = vmatpush1.msra.mxu0 0.0
        %11115 = vmatprep.subr.mxu0 0.0
        %11116 = vmatpush1.msra.mxu0 0.0
        %11117 = vmatprep.subr.mxu0 0.0
        %11118 = vmatpush1.msra.mxu0 0.0
        %11119 = vmatprep.subr.mxu0 0.0
        %11120 = vmatpush1.msra.mxu0 0.0
        %11121 = vmatprep.subr.mxu0 0.0
        %11122 = vmatpush1.msra.mxu0 0.0
        %11123 = vmatprep.subr.mxu0 0.0
        %11124 = vmatpush1.msra.mxu0 %v464
        %11125 = vmatprep.subr.mxu0 0.0
        %11126 = vmatpush2.msra.mxu0 0.0
        %11127 = vmatprep.subr.mxu0 0.0
        %11128 = vmatpush2.msra.mxu0 0.0
        %11129 = vmatprep.subr.mxu0 0.0
        %11130 = vmatpush2.msra.mxu0 0.0
        %11131 = vmatprep.subr.mxu0 0.0
        %11132 = vmatpush2.msra.mxu0 0.0
        %11133 = vmatprep.subr.mxu0 0.0
        %11134 = vmatpush2.msra.mxu0 0.0
        %11135 = vmatprep.subr.mxu0 0.0
        %11136 = vmatpush2.msra.mxu0 0.0
        %11137 = vmatprep.subr.mxu0 0.0
        %11138 = vmatpush2.msra.mxu0 0.0
        %11139 = vmatprep.subr.mxu0 0.0
        %11140 = vmatpush2.msra.mxu0 0.0
        %11141 = vmatprep.subr.mxu0 0.0
        %11142 = vmatpush2.msra.mxu0 0.0
        %11143 = vmatprep.subr.mxu0 0.0
        %11144 = vmatpush2.msra.mxu0 0.0
        %11145 = vmatprep.subr.mxu0 0.0
        %11146 = vmatpush2.msra.mxu0 0.0
        %11147 = vmatprep.subr.mxu0 0.0
        %11148 = vmatpush2.msra.mxu0 0.0
        %11149 = vmatprep.subr.mxu0 0.0
        %11150 = vmatpush2.msra.mxu0 0.0
        %11151 = vmatprep.subr.mxu0 0.0
        %11152 = vmatpush2.msra.mxu0 0.0
        %11153 = vmatprep.subr.mxu0 0.0
        %11154 = vmatpush2.msra.mxu0 0.0
        %11155 = vmatprep.subr.mxu0 0.0
        %11156 = vmatpush2.msra.mxu0 0.0
        %11157 = vmatprep.mubr.f32.mxu0 0.0
        %11158 = vmatmul.mubr.f32.gmra.mxu0 %v11091
        %v11159 = vpop.f32.mrf.mxu0
        %v11160 = vadd.f32 0.0, %v11159
        %v11161 = vpop.f32.mrf.mxu0
        %11162 = vdwg.mxu0
        %v11164 = vsel %vm5020, %v10139, 0
        %11166 = vmatprep.subr.mxu0 0.0
        %11167 = vmatpush1.msra.mxu0 0.0
        %11168 = vmatprep.subr.mxu0 0.0
        %11169 = vmatpush1.msra.mxu0 0.0
        %11170 = vmatprep.subr.mxu0 0.0
        %11171 = vmatpush1.msra.mxu0 0.0
        %11172 = vmatprep.subr.mxu0 0.0
        %11173 = vmatpush1.msra.mxu0 0.0
        %11174 = vmatprep.subr.mxu0 0.0
        %11175 = vmatpush1.msra.mxu0 0.0
        %11176 = vmatprep.subr.mxu0 0.0
        %11177 = vmatpush1.msra.mxu0 0.0
        %11178 = vmatprep.subr.mxu0 0.0
        %11179 = vmatpush1.msra.mxu0 0.0
        %11180 = vmatprep.subr.mxu0 0.0
        %11181 = vmatpush1.msra.mxu0 0.0
        %11182 = vmatprep.subr.mxu0 0.0
        %11183 = vmatpush1.msra.mxu0 0.0
        %11184 = vmatprep.subr.mxu0 0.0
        %11185 = vmatpush1.msra.mxu0 0.0
        %11186 = vmatprep.subr.mxu0 0.0
        %11187 = vmatpush1.msra.mxu0 0.0
        %11188 = vmatprep.subr.mxu0 0.0
        %11189 = vmatpush1.msra.mxu0 0.0
        %11190 = vmatprep.subr.mxu0 0.0
        %11191 = vmatpush1.msra.mxu0 0.0
        %11192 = vmatprep.subr.mxu0 0.0
        %11193 = vmatpush1.msra.mxu0 0.0
        %11194 = vmatprep.subr.mxu0 0.0
        %11195 = vmatpush1.msra.mxu0 0.0
        %11196 = vmatprep.subr.mxu0 0.0
        %11197 = vmatpush1.msra.mxu0 %v465
        %11198 = vmatprep.subr.mxu0 0.0
        %11199 = vmatpush2.msra.mxu0 0.0
        %11200 = vmatprep.subr.mxu0 0.0
        %11201 = vmatpush2.msra.mxu0 0.0
        %11202 = vmatprep.subr.mxu0 0.0
        %11203 = vmatpush2.msra.mxu0 0.0
        %11204 = vmatprep.subr.mxu0 0.0
        %11205 = vmatpush2.msra.mxu0 0.0
        %11206 = vmatprep.subr.mxu0 0.0
        %11207 = vmatpush2.msra.mxu0 0.0
        %11208 = vmatprep.subr.mxu0 0.0
        %11209 = vmatpush2.msra.mxu0 0.0
        %11210 = vmatprep.subr.mxu0 0.0
        %11211 = vmatpush2.msra.mxu0 0.0
        %11212 = vmatprep.subr.mxu0 0.0
        %11213 = vmatpush2.msra.mxu0 0.0
        %11214 = vmatprep.subr.mxu0 0.0
        %11215 = vmatpush2.msra.mxu0 0.0
        %11216 = vmatprep.subr.mxu0 0.0
        %11217 = vmatpush2.msra.mxu0 0.0
        %11218 = vmatprep.subr.mxu0 0.0
        %11219 = vmatpush2.msra.mxu0 0.0
        %11220 = vmatprep.subr.mxu0 0.0
        %11221 = vmatpush2.msra.mxu0 0.0
        %11222 = vmatprep.subr.mxu0 0.0
        %11223 = vmatpush2.msra.mxu0 0.0
        %11224 = vmatprep.subr.mxu0 0.0
        %11225 = vmatpush2.msra.mxu0 0.0
        %11226 = vmatprep.subr.mxu0 0.0
        %11227 = vmatpush2.msra.mxu0 0.0
        %11228 = vmatprep.subr.mxu0 0.0
        %11229 = vmatpush2.msra.mxu0 0.0
        %11230 = vmatprep.mubr.f32.mxu0 0.0
        %11231 = vmatmul.mubr.f32.gmra.mxu0 %v11164
        %v11232 = vpop.f32.mrf.mxu0
        %v11233 = vadd.f32 0.0, %v11232
        %v11234 = vpop.f32.mrf.mxu0
        %11235 = vdwg.mxu0
        %v11237 = vsel %vm5020, %v10140, 0
        %11239 = vmatprep.subr.mxu0 0.0
        %11240 = vmatpush1.msra.mxu0 0.0
        %11241 = vmatprep.subr.mxu0 0.0
        %11242 = vmatpush1.msra.mxu0 0.0
        %11243 = vmatprep.subr.mxu0 0.0
        %11244 = vmatpush1.msra.mxu0 0.0
        %11245 = vmatprep.subr.mxu0 0.0
        %11246 = vmatpush1.msra.mxu0 0.0
        %11247 = vmatprep.subr.mxu0 0.0
        %11248 = vmatpush1.msra.mxu0 0.0
        %11249 = vmatprep.subr.mxu0 0.0
        %11250 = vmatpush1.msra.mxu0 0.0
        %11251 = vmatprep.subr.mxu0 0.0
        %11252 = vmatpush1.msra.mxu0 0.0
        %11253 = vmatprep.subr.mxu0 0.0
        %11254 = vmatpush1.msra.mxu0 0.0
        %11255 = vmatprep.subr.mxu0 0.0
        %11256 = vmatpush1.msra.mxu0 0.0
        %11257 = vmatprep.subr.mxu0 0.0
        %11258 = vmatpush1.msra.mxu0 0.0
        %11259 = vmatprep.subr.mxu0 0.0
        %11260 = vmatpush1.msra.mxu0 0.0
        %11261 = vmatprep.subr.mxu0 0.0
        %11262 = vmatpush1.msra.mxu0 0.0
        %11263 = vmatprep.subr.mxu0 0.0
        %11264 = vmatpush1.msra.mxu0 0.0
        %11265 = vmatprep.subr.mxu0 0.0
        %11266 = vmatpush1.msra.mxu0 0.0
        %11267 = vmatprep.subr.mxu0 0.0
        %11268 = vmatpush1.msra.mxu0 0.0
        %11269 = vmatprep.subr.mxu0 0.0
        %11270 = vmatpush1.msra.mxu0 %v466
        %11271 = vmatprep.subr.mxu0 0.0
        %11272 = vmatpush2.msra.mxu0 0.0
        %11273 = vmatprep.subr.mxu0 0.0
        %11274 = vmatpush2.msra.mxu0 0.0
        %11275 = vmatprep.subr.mxu0 0.0
        %11276 = vmatpush2.msra.mxu0 0.0
        %11277 = vmatprep.subr.mxu0 0.0
        %11278 = vmatpush2.msra.mxu0 0.0
        %11279 = vmatprep.subr.mxu0 0.0
        %11280 = vmatpush2.msra.mxu0 0.0
        %11281 = vmatprep.subr.mxu0 0.0
        %11282 = vmatpush2.msra.mxu0 0.0
        %11283 = vmatprep.subr.mxu0 0.0
        %11284 = vmatpush2.msra.mxu0 0.0
        %11285 = vmatprep.subr.mxu0 0.0
        %11286 = vmatpush2.msra.mxu0 0.0
        %11287 = vmatprep.subr.mxu0 0.0
        %11288 = vmatpush2.msra.mxu0 0.0
        %11289 = vmatprep.subr.mxu0 0.0
        %11290 = vmatpush2.msra.mxu0 0.0
        %11291 = vmatprep.subr.mxu0 0.0
        %11292 = vmatpush2.msra.mxu0 0.0
        %11293 = vmatprep.subr.mxu0 0.0
        %11294 = vmatpush2.msra.mxu0 0.0
        %11295 = vmatprep.subr.mxu0 0.0
        %11296 = vmatpush2.msra.mxu0 0.0
        %11297 = vmatprep.subr.mxu0 0.0
        %11298 = vmatpush2.msra.mxu0 0.0
        %11299 = vmatprep.subr.mxu0 0.0
        %11300 = vmatpush2.msra.mxu0 0.0
        %11301 = vmatprep.subr.mxu0 0.0
        %11302 = vmatpush2.msra.mxu0 0.0
        %11303 = vmatprep.mubr.f32.mxu0 0.0
        %11304 = vmatmul.mubr.f32.gmra.mxu0 %v11237
        %v11305 = vpop.f32.mrf.mxu0
        %v11306 = vadd.f32 0.0, %v11305
        %v11307 = vpop.f32.mrf.mxu0
        %11308 = vdwg.mxu0
        %v11309 = vsel %vm467, %v10211, 0.0
        %v11310 = vsel %vm467, %v10284, 0.0
        %v11311 = vadd.f32 %v11309, %v11310
        %v11312 = vsel %vm467, %v10357, 0.0
        %v11313 = vadd.f32 %v11311, %v11312
        %v11314 = vsel %vm467, %v10430, 0.0
        %v11315 = vadd.f32 %v11313, %v11314
        %v11316 = vsel %vm467, %v10503, 0.0
        %v11317 = vsel %vm467, %v10576, 0.0
        %v11318 = vadd.f32 %v11316, %v11317
        %v11319 = vsel %vm467, %v10649, 0.0
        %v11320 = vadd.f32 %v11318, %v11319
        %v11321 = vsel %vm467, %v10722, 0.0
        %v11322 = vadd.f32 %v11320, %v11321
        %v11323 = vsel %vm467, %v10795, 0.0
        %v11324 = vsel %vm467, %v10868, 0.0
        %v11325 = vadd.f32 %v11323, %v11324
        %v11326 = vsel %vm467, %v10941, 0.0
        %v11327 = vadd.f32 %v11325, %v11326
        %v11328 = vsel %vm467, %v11014, 0.0
        %v11329 = vadd.f32 %v11327, %v11328
        %v11330 = vsel %vm467, %v11087, 0.0
        %v11331 = vsel %vm467, %v11160, 0.0
        %v11332 = vadd.f32 %v11330, %v11331
        %v11333 = vsel %vm467, %v11233, 0.0
        %v11334 = vadd.f32 %v11332, %v11333
        %v11335 = vsel %vm467, %v11306, 0.0
        %v11336 = vadd.f32 %v11334, %v11335
        %v11337 = vld [vmem:[%s7] sm:$0x1]
        %v11339 = vlaneseq
        %v11340 = vshrl.u32 %v11339, 7
        %v11341 = vsub.s32 0, %v11340
        %v11342 = vrot.slane %v11337, %v11341
        %v11344 = vadd.f32 %v11315, %v11342
        %v11345 = vadd.f32 %v11322, %v11342
        %v11346 = vadd.f32 %v11329, %v11342
        %v11347 = vadd.f32 %v11336, %v11342
        %11348 = vst.msk [vmem:[%s435] sm:$0xff] %vm467, %v11344
        %11349 = vst.msk [vmem:[%s435 + $0x8] sm:$0xff] %vm467, %v11345
        %11350 = vst.msk [vmem:[%s435 + $0x10] sm:$0xff] %vm467, %v11346
        %11351 = vst.msk [vmem:[%s435 + $0x18] sm:$0xff] %vm467, %v11347
        %s11352 = sand.u32 %s216, 1
        %s11353 = scalar_lea.sflag [#allocation4], %s11352
        %s11354 = sand.u32 %s216, 1
        %s11355 = smul.addr %s11354, 32
        %s11356 = scalar_lea.vmem [#allocation14], %s11355
        // Predicated region
        $region81: #{tpu_custom_call.1} parent=51 // pred_check
          %p11357 = pneg %p226
        $region82: #{tpu_custom_call.1} parent=51 // pred_check_branch
          %11359 = sbr.rel (%p11357) target = $region84
        $region83: #{tpu_custom_call.1} parent=51 // pred_region
          %s11360 = smul.u32 4, %s30
          %s11362 = ssub.s32 512, 512
          %11363 = vsyncadd %s11353, %s11362
          %s11364 = smul.addr %s11360, 128
          %s11365 = scalar_lea.hbm %s8, %s11364
          %s11366 = sshll.u32 %s11356, 4
          %s11367 = int_to_ptr.vmem [resolvable:$true] %s11366
          %11372 = dma.vmem_to_hbm [thread:$0]  %s11367, 512, %s11365, %s11353, 128, 128, 8
        $region84: #{tpu_custom_call.1} parent=51 // pred_fallthru
          _
      $region52: #{tpu_custom_call.1} parent=5 // pred_fallthru
        _
      %p11373 = scmp.le.s32.totalorder 2, %s25
      // Predicated region
      $region85: #{tpu_custom_call.1} parent=5 // pred_check
        %p11374 = pneg %p11373
      $region86: #{tpu_custom_call.1} parent=5 // pred_check_branch
        %11376 = sbr.rel (%p11374) target = $region88
      $region87: #{tpu_custom_call.1} parent=5 // pred_region
        %s11377 = ssub.s32 %s25, 2
        // Predicated region
        $region89: #{tpu_custom_call.1} parent=87 // pred_check
          %p11378 = pneg %p232
        $region90: #{tpu_custom_call.1} parent=87 // pred_check_branch
          %11380 = sbr.rel (%p11378) target = $region92
        $region91: #{tpu_custom_call.1} parent=87 // pred_region
          %s11381 = sand.u32 %s217, 1
          %s11382 = scalar_lea.sflag [#allocation4], %s11381
          %s11383 = sand.u32 %s217, 1
          %s11384 = smul.addr %s11383, 32
          %s11385 = scalar_lea.vmem [#allocation14], %s11384
          %11386 = dma.done %s11382, 512
        $region92: #{tpu_custom_call.1} parent=87 // pred_fallthru
          _
      $region88: #{tpu_custom_call.1} parent=5 // pred_fallthru
        _
    $region6: #{tpu_custom_call.1} parent=1 // loop_footer
      %s29 = sadd.s32 1, %s25
    $region7: #{tpu_custom_call.1} parent=1 // loop_footer_branch
      %24 = sbr.rel target = $region3
    $region8: #{tpu_custom_call.1} parent=1 // loop_exit
      _
    %11387 = vsyncpa [#allocation3], 1
    %s11388 = scalar_lea.sflag [#allocation3], 1
    %11389 = vsyncpa %s11388, 1
    %11390 = vsyncpa [#allocation6], 1
    %s11391 = scalar_lea.sflag [#allocation6], 1
    %11392 = vsyncpa %s11391, 1
    %11393 = vsyncpa [#allocation9], 1
    %11394 = vsyncpa [#allocation12], 1
    %11395 = vsyncpa [#allocation4], 1
    %s11396 = scalar_lea.sflag [#allocation4], 1
    %11397 = vsyncpa %s11396, 1

</llo_original>
